<compile_context>
chip_gen: v7x
topology: tpu7x:2x2x1
jax: 0.10.0
libtpu: 0.0.40
codegen_flags: <defaults>
</compile_context>

<pallas_src>
import functools
import math

import numpy as np

import jax
import jax.numpy as jnp
from jax.experimental import pallas as pl
from jax.experimental.pallas import tpu as pltpu

KH = KW = 3          # conv kernel (3x3, stride 1, padding 1)
BN_EPS = 1e-5        # PyTorch BatchNorm default eps
SCALE = 2            # param.network.image_scale


# ---------------------------------------------------------------------------
# In-kernel helpers (operate on VMEM *values*)
# ---------------------------------------------------------------------------
def _im2col3x3(v):
    """v: (H, W, C) bf16 -> (H*W, 9*C) bf16 (zero-pad 1, tap-major / channel-minor)."""
    h, w, c = v.shape
    zr = jnp.zeros((1, w, c), v.dtype)
    p = jnp.concatenate([zr, v, zr], axis=0)
    zc = jnp.zeros((h + 2, 1, c), v.dtype)
    p = jnp.concatenate([zc, p, zc], axis=1)                   # (H+2, W+2, C)
    taps = [p[ky:ky + h, kx:kx + w, :] for ky in range(3) for kx in range(3)]
    return jnp.concatenate(taps, axis=-1).reshape(h * w, 9 * c)


def _decoder_level(x_flat, skip_val, u_mat, w1s, w1u, b1, w2, b2):
    """One UnetDecoderStep.

    x_flat:   (Hi*Wi, Cin) bf16   upsample input (flat spatial)
    skip_val: (Hs, Ws, Cs)  bf16  encoder skip (Hs=2*Hi, Ws=2*Wi)
    u_mat:    (Hs*Ws, Hi*Wi) bf16 kron(A_h, A_w) bilinear 2x operator
    returns   (Hs*Ws, Cout) f32
    """
    hs, ws, _ = skip_val.shape
    cin = x_flat.shape[-1]

    # --- bilinear 2x upsample (align_corners=False): one MXU matmul
    up_flat = jnp.dot(u_mat, x_flat, preferred_element_type=jnp.float32)
    up = up_flat.astype(jnp.bfloat16).reshape(hs, ws, cin)

    # --- conv1 (+folded BN) + ReLU on cat([skip, up]): two accumulated matmuls
    y1 = jnp.dot(_im2col3x3(skip_val), w1s, preferred_element_type=jnp.float32)
    y1 = y1 + jnp.dot(_im2col3x3(up), w1u, preferred_element_type=jnp.float32)
    y1 = jnp.maximum(y1 + b1, 0.0)                             # (Hs*Ws, Cout) f32
    y1 = y1.astype(jnp.bfloat16).reshape(hs, ws, y1.shape[-1])

    # --- conv2 (+folded BN) + ReLU
    y2 = jnp.dot(_im2col3x3(y1), w2, preferred_element_type=jnp.float32)
    return jnp.maximum(y2 + b2, 0.0)                           # (Hs*Ws, Cout) f32


# ---------------------------------------------------------------------------
# Fused decoder kernel (one grid step = one batch element)
# ---------------------------------------------------------------------------
def _unet_decoder_kernel(*refs, num_levels):
    L = num_levels
    x_ref = refs[0]
    skip_refs = refs[1:1 + L]
    u_refs = refs[1 + L:1 + 2 * L]
    prm = refs[1 + 2 * L:1 + 7 * L]          # per level: w1s, w1u, b1, w2, b2
    wc_ref = refs[1 + 7 * L]
    bc_ref = refs[2 + 7 * L]
    feat_ref = refs[3 + 7 * L]
    cls_ref = refs[4 + 7 * L]

    xv = x_ref[0]                                              # (Hi, Wi, Cin) bf16
    y_flat = xv.reshape(xv.shape[0] * xv.shape[1], xv.shape[2])
    for l in range(L):
        y_flat = _decoder_level(
            y_flat.astype(jnp.bfloat16),
            skip_refs[l][0],
            u_refs[l][...],
            prm[5 * l][...],
            prm[5 * l + 1][...],
            prm[5 * l + 2][...],
            prm[5 * l + 3][...],
            prm[5 * l + 4][...],
        )                                                      # (H*W, C) f32

    feat_ref[0] = y_flat.astype(feat_ref.dtype)

    # classifier: 1x1 pointwise conv as one flattened matmul.
    # TODO(synk): nn.Dropout(0.3) before the classifier is eval-mode identity here.
    xb = y_flat.astype(jnp.bfloat16)
    cls = jnp.dot(xb, wc_ref[...], preferred_element_type=jnp.float32) + bc_ref[...]
    cls_ref[0] = cls.astype(cls_ref.dtype)


# ---------------------------------------------------------------------------
# Wrapper
# ---------------------------------------------------------------------------
def _upsample_matrix(n_in):
    """(2*n_in, n_in) bilinear (align_corners=False) 2x upsample matrix (exact in bf16)."""
    n_out = SCALE * n_in
    a = np.zeros((n_out, n_in), np.float32)
    for o in range(n_out):
        src = max((o + 0.5) * 0.5 - 0.5, 0.0)
        j0 = min(int(math.floor(src)), n_in - 1)
        lam = src - j0
        j1 = min(j0 + 1, n_in - 1)
        a[o, j0] += 1.0 - lam
        a[o, j1] += lam
    return a


def _batch_spec(shape):
    return pl.BlockSpec((1,) + tuple(shape[1:]), lambda i: (i,) + (0,) * (len(shape) - 1))


def _full_spec(shape):
    nd = len(shape)
    return pl.BlockSpec(tuple(shape), lambda i: (0,) * nd)


def unet_decoder_forward(x_nchw, skips_nchw, params):
    """Matches UNetDecoder.forward (output_feature_map=True): returns (out, feature)."""
    steps = params["steps"]
    wc, bc = params["classifier"]
    L = len(steps)
    n = x_nchw.shape[0]

    x = jnp.transpose(x_nchw, (0, 2, 3, 1)).astype(jnp.bfloat16)        # NCHW -> NHWC
    skips_nhwc = [jnp.transpose(s, (0, 2, 3, 1)).astype(jnp.bfloat16)
                  for s in skips_nchw]
    # decoder level l consumes skip[layer_num - 2 - layer] == skips[L - 1 - l]
    level_skips = [skips_nhwc[L - 1 - l] for l in range(L)]

    cur_h, cur_w = x.shape[1], x.shape[2]
    u_mats = []
    for s in level_skips:
        hs, ws = s.shape[1], s.shape[2]
        # TODO(synk): only the offset == 0 path of UnetDecoderStep is implemented
        # (skip spatial == 2 * input spatial); then F.pad of the skip is a no-op.
        assert hs == SCALE * cur_h and ws == SCALE * cur_w
        u = np.kron(_upsample_matrix(cur_h), _upsample_matrix(cur_w))   # (hs*ws, h*w)
        u_mats.append(jnp.asarray(u, dtype=jnp.bfloat16))
        cur_h, cur_w = hs, ws

    inputs = [x]
    in_specs = [_batch_spec(x.shape)]
    for s in level_skips:
        inputs.append(s)
        in_specs.append(_batch_spec(s.shape))
    for u in u_mats:
        inputs.append(u)
        in_specs.append(_full_spec(u.shape))
    for lvl in steps:                        # (w1s, w1u, b1, w2, b2) per level
        for t in lvl:
            inputs.append(t)
            in_specs.append(_full_spec(t.shape))
    inputs += [wc, bc]
    in_specs += [_full_spec(wc.shape), _full_spec(bc.shape)]

    c_feat = level_skips[-1].shape[-1]
    n_cls = wc.shape[-1]
    hw = cur_h * cur_w
    out_shape = (
        jax.ShapeDtypeStruct((n, hw, c_feat), jnp.float32),   # feature map (flat HW)
        jax.ShapeDtypeStruct((n, hw, n_cls), jnp.float32),    # classifier  (flat HW)
    )
    out_specs = [pl.BlockSpec((1, hw, c_feat), lambda i: (i, 0, 0)),
                 pl.BlockSpec((1, hw, n_cls), lambda i: (i, 0, 0))]

    kern = functools.partial(_unet_decoder_kernel, num_levels=L)
    feat, cls = pl.pallas_call(
        kern,
        out_shape=out_shape,
        grid_spec=pltpu.PrefetchScalarGridSpec(
            num_scalar_prefetch=0,
            grid=(n,),
            in_specs=in_specs,
            out_specs=out_specs,
        ),
        compiler_params=pltpu.CompilerParams(
            dimension_semantics=("parallel",),
            vmem_limit_bytes=56 * 1024 * 1024,
        ),
    )(*inputs)

    feat = feat.reshape(n, cur_h, cur_w, c_feat)
    cls = cls.reshape(n, cur_h, cur_w, n_cls)
    # module returns (classifier(dropout(feat)), feat) in NCHW
    return jnp.transpose(cls, (0, 3, 1, 2)), jnp.transpose(feat, (0, 3, 1, 2))


# ---------------------------------------------------------------------------
# Deterministic parameter construction (shapes match the PyTorch module)
# ---------------------------------------------------------------------------
def _conv_init(key, cin, cout):
    k1, k2 = jax.random.split(key)
    w = 0.05 * jax.random.normal(k1, (KH, KW, cin, cout), jnp.float32)   # HWIO
    b = 0.01 * jax.random.normal(k2, (cout,), jnp.float32)
    return w, b


def _bn_init(key, c):
    k1, k2, k3, k4 = jax.random.split(key, 4)
    gamma = 1.0 + 0.1 * jax.random.normal(k1, (c,), jnp.float32)
    beta = 0.1 * jax.random.normal(k2, (c,), jnp.float32)
    rmean = 0.05 * jax.random.normal(k3, (c,), jnp.float32)
    rvar = 0.9 + 0.2 * jax.random.uniform(k4, (c,), jnp.float32)
    return gamma, beta, rmean, rvar


def _fold_bn(w, b, gamma, beta, rmean, rvar):
    """Eval-mode BN folded INTO the conv weights (scale) + a bias term."""
    scale = gamma * jax.lax.rsqrt(rvar + BN_EPS)
    return w * scale, beta + (b - rmean) * scale


def init_params(key, feature_num, layer_num, out_chns):
    f = list(feature_num[::-1]) + [out_chns]     # reversed + classifier channels
    steps = []
    for layer in range(layer_num - 1):
        cin, cout = f[layer], f[layer + 1]       # cin = upsampled chans, cout = skip chans
        kl = jax.random.fold_in(key, layer)
        k1, k2, k3, k4 = jax.random.split(kl, 4)
        w1, c1b = _conv_init(k1, cin + cout, cout)     # conv1: cat([skip, up]) -> cout
        w1, b1 = _fold_bn(w1, c1b, *_bn_init(k2, cout))
        w2, c2b = _conv_init(k3, cout, cout)
        w2, b2 = _fold_bn(w2, c2b, *_bn_init(k4, cout))
        # pack for the kernel: im2col columns are tap-major / channel-minor.
        # torch.cat([skip, inputs], dim=1) -> first `cout` input channels are the skip.
        w1s = w1[:, :, :cout, :].reshape(KH * KW * cout, cout).astype(jnp.bfloat16)
        w1u = w1[:, :, cout:, :].reshape(KH * KW * cin, cout).astype(jnp.bfloat16)
        w2p = w2.reshape(KH * KW * cout, cout).astype(jnp.bfloat16)
        steps.append((w1s, w1u,
                      b1.reshape(1, cout).astype(jnp.float32),
                      w2p,
                      b2.reshape(1, cout).astype(jnp.float32)))
    # classifier.  TODO(synk): the module hardcodes nn.Conv3d(.., 1) which cannot run
    # on 4-D (2-D image) inputs in PyTorch; implemented as the equivalent 1x1 conv.
    kc1, kc2 = jax.random.split(jax.random.fold_in(key, 10_000))
    wc = (0.05 * jax.random.normal(kc1, (f[-2], out_chns), jnp.float32)).astype(jnp.bfloat16)
    bc = 0.01 * jax.random.normal(kc2, (1, out_chns), jnp.float32)
    return {"steps": steps, "classifier": (wc, bc)}


if __name__ == "__main__":
    key = jax.random.PRNGKey(0)
    kp, kx, ks = jax.random.split(key, 3)

    out_chns = 4
    feature_num = (8, 16, 32, 64)     # small variant of the default (16,...,256)
    layer_num = 4
    N = 2
    f_rev = list(feature_num[::-1])   # [64, 32, 16, 8]

    # bottleneck embedding (NCHW) and encoder skips (NCHW, encoder order:
    # skip[0] largest spatial).  Consistent with a 16x16 input encoder.
    x = jax.random.normal(kx, (N, f_rev[0], 2, 2), jnp.float32)
    skips = []
    h = 16
    for l, c in enumerate(feature_num[:-1]):          # channels 8, 16, 32
        skips.append(jax.random.normal(jax.random.fold_in(ks, l),
                                       (N, c, h, h), jnp.float32))
        h //= 2

    params = init_params(kp, feature_num, layer_num, out_chns)

    fwd = jax.jit(unet_decoder_forward)
    out, feature = fwd(x, skips, params)
    jax.block_until_ready(out)
    jax.block_until_ready(feature)

    # sanity: shapes match the PyTorch module (NCHW), output_feature_map=True
    assert out.shape == (N, out_chns, 16, 16)
    assert feature.shape == (N, feature_num[0], 16, 16)

    print("KERNEL_OK")
</pallas_src>

<mosaic_0001>
module attributes {stable_mosaic.version = 11 : i64} {
  func.func @_unet_decoder_kernel(%arg0: i32, %arg1: memref<1x2x2x64xbf16, #tpu.memory_space<vmem>>, %arg2: memref<1x4x4x32xbf16, #tpu.memory_space<vmem>>, %arg3: memref<1x8x8x16xbf16, #tpu.memory_space<vmem>>, %arg4: memref<1x16x16x8xbf16, #tpu.memory_space<vmem>>, %arg5: memref<16x4xbf16, #tpu.memory_space<vmem>>, %arg6: memref<64x16xbf16, #tpu.memory_space<vmem>>, %arg7: memref<256x64xbf16, #tpu.memory_space<vmem>>, %arg8: memref<288x32xbf16, #tpu.memory_space<vmem>>, %arg9: memref<576x32xbf16, #tpu.memory_space<vmem>>, %arg10: memref<1x32xf32, #tpu.memory_space<vmem>>, %arg11: memref<288x32xbf16, #tpu.memory_space<vmem>>, %arg12: memref<1x32xf32, #tpu.memory_space<vmem>>, %arg13: memref<144x16xbf16, #tpu.memory_space<vmem>>, %arg14: memref<288x16xbf16, #tpu.memory_space<vmem>>, %arg15: memref<1x16xf32, #tpu.memory_space<vmem>>, %arg16: memref<144x16xbf16, #tpu.memory_space<vmem>>, %arg17: memref<1x16xf32, #tpu.memory_space<vmem>>, %arg18: memref<72x8xbf16, #tpu.memory_space<vmem>>, %arg19: memref<144x8xbf16, #tpu.memory_space<vmem>>, %arg20: memref<1x8xf32, #tpu.memory_space<vmem>>, %arg21: memref<72x8xbf16, #tpu.memory_space<vmem>>, %arg22: memref<1x8xf32, #tpu.memory_space<vmem>>, %arg23: memref<8x4xbf16, #tpu.memory_space<vmem>>, %arg24: memref<1x4xf32, #tpu.memory_space<vmem>>, %arg25: memref<1x256x8xf32, #tpu.memory_space<vmem>>, %arg26: memref<1x256x4xf32, #tpu.memory_space<vmem>>) attributes {dimension_semantics = [#tpu.dimension_semantics<parallel>], iteration_bounds = array<i64: 2>, scalar_prefetch = 0 : i64, scratch_operands = 0 : i64, tpu.core_type = #tpu.core_type<tc>, window_params = [{transform_indices = @transform_0, window_bounds = array<i64: 1, 2, 2, 64>}, {transform_indices = @transform_1, window_bounds = array<i64: 1, 4, 4, 32>}, {transform_indices = @transform_2, window_bounds = array<i64: 1, 8, 8, 16>}, {transform_indices = @transform_3, window_bounds = array<i64: 1, 16, 16, 8>}, {pipeline_mode = #tpu.pipeline_mode<synchronous>, transform_indices = @transform_4, window_bounds = array<i64: 16, 4>}, {pipeline_mode = #tpu.pipeline_mode<synchronous>, transform_indices = @transform_5, window_bounds = array<i64: 64, 16>}, {pipeline_mode = #tpu.pipeline_mode<synchronous>, transform_indices = @transform_6, window_bounds = array<i64: 256, 64>}, {pipeline_mode = #tpu.pipeline_mode<synchronous>, transform_indices = @transform_7, window_bounds = array<i64: 288, 32>}, {pipeline_mode = #tpu.pipeline_mode<synchronous>, transform_indices = @transform_8, window_bounds = array<i64: 576, 32>}, {pipeline_mode = #tpu.pipeline_mode<synchronous>, transform_indices = @transform_9, window_bounds = array<i64: 1, 32>}, {pipeline_mode = #tpu.pipeline_mode<synchronous>, transform_indices = @transform_10, window_bounds = array<i64: 288, 32>}, {pipeline_mode = #tpu.pipeline_mode<synchronous>, transform_indices = @transform_11, window_bounds = array<i64: 1, 32>}, {pipeline_mode = #tpu.pipeline_mode<synchronous>, transform_indices = @transform_12, window_bounds = array<i64: 144, 16>}, {pipeline_mode = #tpu.pipeline_mode<synchronous>, transform_indices = @transform_13, window_bounds = array<i64: 288, 16>}, {pipeline_mode = #tpu.pipeline_mode<synchronous>, transform_indices = @transform_14, window_bounds = array<i64: 1, 16>}, {pipeline_mode = #tpu.pipeline_mode<synchronous>, transform_indices = @transform_15, window_bounds = array<i64: 144, 16>}, {pipeline_mode = #tpu.pipeline_mode<synchronous>, transform_indices = @transform_16, window_bounds = array<i64: 1, 16>}, {pipeline_mode = #tpu.pipeline_mode<synchronous>, transform_indices = @transform_17, window_bounds = array<i64: 72, 8>}, {pipeline_mode = #tpu.pipeline_mode<synchronous>, transform_indices = @transform_18, window_bounds = array<i64: 144, 8>}, {pipeline_mode = #tpu.pipeline_mode<synchronous>, transform_indices = @transform_19, window_bounds = array<i64: 1, 8>}, {pipeline_mode = #tpu.pipeline_mode<synchronous>, transform_indices = @transform_20, window_bounds = array<i64: 72, 8>}, {pipeline_mode = #tpu.pipeline_mode<synchronous>, transform_indices = @transform_21, window_bounds = array<i64: 1, 8>}, {pipeline_mode = #tpu.pipeline_mode<synchronous>, transform_indices = @transform_22, window_bounds = array<i64: 8, 4>}, {pipeline_mode = #tpu.pipeline_mode<synchronous>, transform_indices = @transform_23, window_bounds = array<i64: 1, 4>}, {transform_indices = @transform_24, window_bounds = array<i64: 1, 256, 8>}, {transform_indices = @transform_25, window_bounds = array<i64: 1, 256, 4>}]} {
    %c0 = arith.constant 0 : index
    %c0_0 = arith.constant 0 : index
    %c0_1 = arith.constant 0 : index
    %c0_2 = arith.constant 0 : index
    %0 = vector.load %arg1[%c0, %c0_0, %c0_1, %c0_2] : memref<1x2x2x64xbf16, #tpu.memory_space<vmem>>, vector<1x2x2x64xbf16>
    %1 = vector.shape_cast %0 : vector<1x2x2x64xbf16> to vector<2x2x64xbf16>
    %2 = vector.shape_cast %1 : vector<2x2x64xbf16> to vector<4x64xbf16>
    %c0_3 = arith.constant 0 : index
    %c0_4 = arith.constant 0 : index
    %c0_5 = arith.constant 0 : index
    %c0_6 = arith.constant 0 : index
    %3 = vector.load %arg2[%c0_3, %c0_4, %c0_5, %c0_6] : memref<1x4x4x32xbf16, #tpu.memory_space<vmem>>, vector<1x4x4x32xbf16>
    %4 = vector.shape_cast %3 : vector<1x4x4x32xbf16> to vector<4x4x32xbf16>
    %c0_7 = arith.constant 0 : index
    %c0_8 = arith.constant 0 : index
    %5 = vector.load %arg5[%c0_7, %c0_8] : memref<16x4xbf16, #tpu.memory_space<vmem>>, vector<16x4xbf16>
    %c0_9 = arith.constant 0 : index
    %c0_10 = arith.constant 0 : index
    %6 = vector.load %arg8[%c0_9, %c0_10] : memref<288x32xbf16, #tpu.memory_space<vmem>>, vector<288x32xbf16>
    %c0_11 = arith.constant 0 : index
    %c0_12 = arith.constant 0 : index
    %7 = vector.load %arg9[%c0_11, %c0_12] : memref<576x32xbf16, #tpu.memory_space<vmem>>, vector<576x32xbf16>
    %c0_13 = arith.constant 0 : index
    %c0_14 = arith.constant 0 : index
    %8 = vector.load %arg10[%c0_13, %c0_14] : memref<1x32xf32, #tpu.memory_space<vmem>>, vector<1x32xf32>
    %c0_15 = arith.constant 0 : index
    %c0_16 = arith.constant 0 : index
    %9 = vector.load %arg11[%c0_15, %c0_16] : memref<288x32xbf16, #tpu.memory_space<vmem>>, vector<288x32xbf16>
    %c0_17 = arith.constant 0 : index
    %c0_18 = arith.constant 0 : index
    %10 = vector.load %arg12[%c0_17, %c0_18] : memref<1x32xf32, #tpu.memory_space<vmem>>, vector<1x32xf32>
    %cst = arith.constant dense<0.000000e+00> : vector<16x64xf32>
    %11 = tpu.matmul %5, %2, %cst {dimension_numbers = #tpu.dot_dimension_numbers<[1], [0], [0], [1], [0, 0, 1, 1], [], []>} : vector<16x4xbf16>, vector<4x64xbf16>, vector<16x64xf32> -> vector<16x64xf32>
    %12 = arith.truncf %11 : vector<16x64xf32> to vector<16x64xbf16>
    %13 = vector.shape_cast %12 : vector<16x64xbf16> to vector<4x4x64xbf16>
    %cst_19 = arith.constant 0.000000e+00 : bf16
    %14 = vector.broadcast %cst_19 : bf16 to vector<1x4x32xbf16>
    %15 = tpu.concatenate %14, %4, %14 in 0 : vector<1x4x32xbf16>, vector<4x4x32xbf16>, vector<1x4x32xbf16> -> vector<6x4x32xbf16>
    %cst_20 = arith.constant 0.000000e+00 : bf16
    %16 = vector.broadcast %cst_20 : bf16 to vector<6x1x32xbf16>
    %17 = tpu.concatenate %16, %15, %16 in 1 : vector<6x1x32xbf16>, vector<6x4x32xbf16>, vector<6x1x32xbf16> -> vector<6x6x32xbf16>
    %18 = vector.extract_strided_slice %17 {offsets = [0, 0, 0], sizes = [4, 4, 32], strides = [1, 1, 1]} : vector<6x6x32xbf16> to vector<4x4x32xbf16>
    %19 = vector.extract_strided_slice %17 {offsets = [0, 1, 0], sizes = [4, 4, 32], strides = [1, 1, 1]} : vector<6x6x32xbf16> to vector<4x4x32xbf16>
    %20 = vector.extract_strided_slice %17 {offsets = [0, 2, 0], sizes = [4, 4, 32], strides = [1, 1, 1]} : vector<6x6x32xbf16> to vector<4x4x32xbf16>
    %21 = vector.extract_strided_slice %17 {offsets = [1, 0, 0], sizes = [4, 4, 32], strides = [1, 1, 1]} : vector<6x6x32xbf16> to vector<4x4x32xbf16>
    %22 = vector.extract_strided_slice %17 {offsets = [1, 1, 0], sizes = [4, 4, 32], strides = [1, 1, 1]} : vector<6x6x32xbf16> to vector<4x4x32xbf16>
    %23 = vector.extract_strided_slice %17 {offsets = [1, 2, 0], sizes = [4, 4, 32], strides = [1, 1, 1]} : vector<6x6x32xbf16> to vector<4x4x32xbf16>
    %24 = vector.extract_strided_slice %17 {offsets = [2, 0, 0], sizes = [4, 4, 32], strides = [1, 1, 1]} : vector<6x6x32xbf16> to vector<4x4x32xbf16>
    %25 = vector.extract_strided_slice %17 {offsets = [2, 1, 0], sizes = [4, 4, 32], strides = [1, 1, 1]} : vector<6x6x32xbf16> to vector<4x4x32xbf16>
    %26 = vector.extract_strided_slice %17 {offsets = [2, 2, 0], sizes = [4, 4, 32], strides = [1, 1, 1]} : vector<6x6x32xbf16> to vector<4x4x32xbf16>
    %27 = tpu.concatenate %18, %19, %20, %21, %22, %23, %24, %25, %26 in 2 : vector<4x4x32xbf16>, vector<4x4x32xbf16>, vector<4x4x32xbf16>, vector<4x4x32xbf16>, vector<4x4x32xbf16>, vector<4x4x32xbf16>, vector<4x4x32xbf16>, vector<4x4x32xbf16>, vector<4x4x32xbf16> -> vector<4x4x288xbf16>
    %28 = vector.shape_cast %27 : vector<4x4x288xbf16> to vector<16x288xbf16>
    %cst_21 = arith.constant dense<0.000000e+00> : vector<16x32xf32>
    %29 = tpu.matmul %28, %6, %cst_21 {dimension_numbers = #tpu.dot_dimension_numbers<[1], [0], [0], [1], [0, 0, 1, 1], [], []>} : vector<16x288xbf16>, vector<288x32xbf16>, vector<16x32xf32> -> vector<16x32xf32>
    %cst_22 = arith.constant 0.000000e+00 : bf16
    %30 = vector.broadcast %cst_22 : bf16 to vector<1x4x64xbf16>
    %31 = tpu.concatenate %30, %13, %30 in 0 : vector<1x4x64xbf16>, vector<4x4x64xbf16>, vector<1x4x64xbf16> -> vector<6x4x64xbf16>
    %cst_23 = arith.constant 0.000000e+00 : bf16
    %32 = vector.broadcast %cst_23 : bf16 to vector<6x1x64xbf16>
    %33 = tpu.concatenate %32, %31, %32 in 1 : vector<6x1x64xbf16>, vector<6x4x64xbf16>, vector<6x1x64xbf16> -> vector<6x6x64xbf16>
    %34 = vector.extract_strided_slice %33 {offsets = [0, 0, 0], sizes = [4, 4, 64], strides = [1, 1, 1]} : vector<6x6x64xbf16> to vector<4x4x64xbf16>
    %35 = vector.extract_strided_slice %33 {offsets = [0, 1, 0], sizes = [4, 4, 64], strides = [1, 1, 1]} : vector<6x6x64xbf16> to vector<4x4x64xbf16>
    %36 = vector.extract_strided_slice %33 {offsets = [0, 2, 0], sizes = [4, 4, 64], strides = [1, 1, 1]} : vector<6x6x64xbf16> to vector<4x4x64xbf16>
    %37 = vector.extract_strided_slice %33 {offsets = [1, 0, 0], sizes = [4, 4, 64], strides = [1, 1, 1]} : vector<6x6x64xbf16> to vector<4x4x64xbf16>
    %38 = vector.extract_strided_slice %33 {offsets = [1, 1, 0], sizes = [4, 4, 64], strides = [1, 1, 1]} : vector<6x6x64xbf16> to vector<4x4x64xbf16>
    %39 = vector.extract_strided_slice %33 {offsets = [1, 2, 0], sizes = [4, 4, 64], strides = [1, 1, 1]} : vector<6x6x64xbf16> to vector<4x4x64xbf16>
    %40 = vector.extract_strided_slice %33 {offsets = [2, 0, 0], sizes = [4, 4, 64], strides = [1, 1, 1]} : vector<6x6x64xbf16> to vector<4x4x64xbf16>
    %41 = vector.extract_strided_slice %33 {offsets = [2, 1, 0], sizes = [4, 4, 64], strides = [1, 1, 1]} : vector<6x6x64xbf16> to vector<4x4x64xbf16>
    %42 = vector.extract_strided_slice %33 {offsets = [2, 2, 0], sizes = [4, 4, 64], strides = [1, 1, 1]} : vector<6x6x64xbf16> to vector<4x4x64xbf16>
    %43 = tpu.concatenate %34, %35, %36, %37, %38, %39, %40, %41, %42 in 2 : vector<4x4x64xbf16>, vector<4x4x64xbf16>, vector<4x4x64xbf16>, vector<4x4x64xbf16>, vector<4x4x64xbf16>, vector<4x4x64xbf16>, vector<4x4x64xbf16>, vector<4x4x64xbf16>, vector<4x4x64xbf16> -> vector<4x4x576xbf16>
    %44 = vector.shape_cast %43 : vector<4x4x576xbf16> to vector<16x576xbf16>
    %cst_24 = arith.constant dense<0.000000e+00> : vector<16x32xf32>
    %45 = tpu.matmul %44, %7, %cst_24 {dimension_numbers = #tpu.dot_dimension_numbers<[1], [0], [0], [1], [0, 0, 1, 1], [], []>} : vector<16x576xbf16>, vector<576x32xbf16>, vector<16x32xf32> -> vector<16x32xf32>
    %46 = arith.addf %29, %45 : vector<16x32xf32>
    %47 = vector.broadcast %8 : vector<1x32xf32> to vector<16x32xf32>
    %48 = arith.addf %46, %47 : vector<16x32xf32>
    %cst_25 = arith.constant 0.000000e+00 : f32
    %49 = vector.broadcast %cst_25 : f32 to vector<16x32xf32>
    %50 = arith.maximumf %48, %49 : vector<16x32xf32>
    %51 = arith.truncf %50 : vector<16x32xf32> to vector<16x32xbf16>
    %52 = vector.shape_cast %51 : vector<16x32xbf16> to vector<4x4x32xbf16>
    %cst_26 = arith.constant 0.000000e+00 : bf16
    %53 = vector.broadcast %cst_26 : bf16 to vector<1x4x32xbf16>
    %54 = tpu.concatenate %53, %52, %53 in 0 : vector<1x4x32xbf16>, vector<4x4x32xbf16>, vector<1x4x32xbf16> -> vector<6x4x32xbf16>
    %cst_27 = arith.constant 0.000000e+00 : bf16
    %55 = vector.broadcast %cst_27 : bf16 to vector<6x1x32xbf16>
    %56 = tpu.concatenate %55, %54, %55 in 1 : vector<6x1x32xbf16>, vector<6x4x32xbf16>, vector<6x1x32xbf16> -> vector<6x6x32xbf16>
    %57 = vector.extract_strided_slice %56 {offsets = [0, 0, 0], sizes = [4, 4, 32], strides = [1, 1, 1]} : vector<6x6x32xbf16> to vector<4x4x32xbf16>
    %58 = vector.extract_strided_slice %56 {offsets = [0, 1, 0], sizes = [4, 4, 32], strides = [1, 1, 1]} : vector<6x6x32xbf16> to vector<4x4x32xbf16>
    %59 = vector.extract_strided_slice %56 {offsets = [0, 2, 0], sizes = [4, 4, 32], strides = [1, 1, 1]} : vector<6x6x32xbf16> to vector<4x4x32xbf16>
    %60 = vector.extract_strided_slice %56 {offsets = [1, 0, 0], sizes = [4, 4, 32], strides = [1, 1, 1]} : vector<6x6x32xbf16> to vector<4x4x32xbf16>
    %61 = vector.extract_strided_slice %56 {offsets = [1, 1, 0], sizes = [4, 4, 32], strides = [1, 1, 1]} : vector<6x6x32xbf16> to vector<4x4x32xbf16>
    %62 = vector.extract_strided_slice %56 {offsets = [1, 2, 0], sizes = [4, 4, 32], strides = [1, 1, 1]} : vector<6x6x32xbf16> to vector<4x4x32xbf16>
    %63 = vector.extract_strided_slice %56 {offsets = [2, 0, 0], sizes = [4, 4, 32], strides = [1, 1, 1]} : vector<6x6x32xbf16> to vector<4x4x32xbf16>
    %64 = vector.extract_strided_slice %56 {offsets = [2, 1, 0], sizes = [4, 4, 32], strides = [1, 1, 1]} : vector<6x6x32xbf16> to vector<4x4x32xbf16>
    %65 = vector.extract_strided_slice %56 {offsets = [2, 2, 0], sizes = [4, 4, 32], strides = [1, 1, 1]} : vector<6x6x32xbf16> to vector<4x4x32xbf16>
    %66 = tpu.concatenate %57, %58, %59, %60, %61, %62, %63, %64, %65 in 2 : vector<4x4x32xbf16>, vector<4x4x32xbf16>, vector<4x4x32xbf16>, vector<4x4x32xbf16>, vector<4x4x32xbf16>, vector<4x4x32xbf16>, vector<4x4x32xbf16>, vector<4x4x32xbf16>, vector<4x4x32xbf16> -> vector<4x4x288xbf16>
    %67 = vector.shape_cast %66 : vector<4x4x288xbf16> to vector<16x288xbf16>
    %cst_28 = arith.constant dense<0.000000e+00> : vector<16x32xf32>
    %68 = tpu.matmul %67, %9, %cst_28 {dimension_numbers = #tpu.dot_dimension_numbers<[1], [0], [0], [1], [0, 0, 1, 1], [], []>} : vector<16x288xbf16>, vector<288x32xbf16>, vector<16x32xf32> -> vector<16x32xf32>
    %69 = vector.broadcast %10 : vector<1x32xf32> to vector<16x32xf32>
    %70 = arith.addf %68, %69 : vector<16x32xf32>
    %cst_29 = arith.constant 0.000000e+00 : f32
    %71 = vector.broadcast %cst_29 : f32 to vector<16x32xf32>
    %72 = arith.maximumf %70, %71 : vector<16x32xf32>
    %73 = arith.truncf %72 : vector<16x32xf32> to vector<16x32xbf16>
    %c0_30 = arith.constant 0 : index
    %c0_31 = arith.constant 0 : index
    %c0_32 = arith.constant 0 : index
    %c0_33 = arith.constant 0 : index
    %74 = vector.load %arg3[%c0_30, %c0_31, %c0_32, %c0_33] : memref<1x8x8x16xbf16, #tpu.memory_space<vmem>>, vector<1x8x8x16xbf16>
    %75 = vector.shape_cast %74 : vector<1x8x8x16xbf16> to vector<8x8x16xbf16>
    %c0_34 = arith.constant 0 : index
    %c0_35 = arith.constant 0 : index
    %76 = vector.load %arg6[%c0_34, %c0_35] : memref<64x16xbf16, #tpu.memory_space<vmem>>, vector<64x16xbf16>
    %c0_36 = arith.constant 0 : index
    %c0_37 = arith.constant 0 : index
    %77 = vector.load %arg13[%c0_36, %c0_37] : memref<144x16xbf16, #tpu.memory_space<vmem>>, vector<144x16xbf16>
    %c0_38 = arith.constant 0 : index
    %c0_39 = arith.constant 0 : index
    %78 = vector.load %arg14[%c0_38, %c0_39] : memref<288x16xbf16, #tpu.memory_space<vmem>>, vector<288x16xbf16>
    %c0_40 = arith.constant 0 : index
    %c0_41 = arith.constant 0 : index
    %79 = vector.load %arg15[%c0_40, %c0_41] : memref<1x16xf32, #tpu.memory_space<vmem>>, vector<1x16xf32>
    %c0_42 = arith.constant 0 : index
    %c0_43 = arith.constant 0 : index
    %80 = vector.load %arg16[%c0_42, %c0_43] : memref<144x16xbf16, #tpu.memory_space<vmem>>, vector<144x16xbf16>
    %c0_44 = arith.constant 0 : index
    %c0_45 = arith.constant 0 : index
    %81 = vector.load %arg17[%c0_44, %c0_45] : memref<1x16xf32, #tpu.memory_space<vmem>>, vector<1x16xf32>
    %cst_46 = arith.constant dense<0.000000e+00> : vector<64x32xf32>
    %82 = tpu.matmul %76, %73, %cst_46 {dimension_numbers = #tpu.dot_dimension_numbers<[1], [0], [0], [1], [0, 0, 1, 1], [], []>} : vector<64x16xbf16>, vector<16x32xbf16>, vector<64x32xf32> -> vector<64x32xf32>
    %83 = arith.truncf %82 : vector<64x32xf32> to vector<64x32xbf16>
    %84 = vector.shape_cast %83 : vector<64x32xbf16> to vector<8x8x32xbf16>
    %cst_47 = arith.constant 0.000000e+00 : bf16
    %85 = vector.broadcast %cst_47 : bf16 to vector<1x8x16xbf16>
    %86 = tpu.concatenate %85, %75, %85 in 0 : vector<1x8x16xbf16>, vector<8x8x16xbf16>, vector<1x8x16xbf16> -> vector<10x8x16xbf16>
    %cst_48 = arith.constant 0.000000e+00 : bf16
    %87 = vector.broadcast %cst_48 : bf16 to vector<10x1x16xbf16>
    %88 = tpu.concatenate %87, %86, %87 in 1 : vector<10x1x16xbf16>, vector<10x8x16xbf16>, vector<10x1x16xbf16> -> vector<10x10x16xbf16>
    %89 = vector.extract_strided_slice %88 {offsets = [0, 0, 0], sizes = [8, 8, 16], strides = [1, 1, 1]} : vector<10x10x16xbf16> to vector<8x8x16xbf16>
    %90 = vector.extract_strided_slice %88 {offsets = [0, 1, 0], sizes = [8, 8, 16], strides = [1, 1, 1]} : vector<10x10x16xbf16> to vector<8x8x16xbf16>
    %91 = vector.extract_strided_slice %88 {offsets = [0, 2, 0], sizes = [8, 8, 16], strides = [1, 1, 1]} : vector<10x10x16xbf16> to vector<8x8x16xbf16>
    %92 = vector.extract_strided_slice %88 {offsets = [1, 0, 0], sizes = [8, 8, 16], strides = [1, 1, 1]} : vector<10x10x16xbf16> to vector<8x8x16xbf16>
    %93 = vector.extract_strided_slice %88 {offsets = [1, 1, 0], sizes = [8, 8, 16], strides = [1, 1, 1]} : vector<10x10x16xbf16> to vector<8x8x16xbf16>
    %94 = vector.extract_strided_slice %88 {offsets = [1, 2, 0], sizes = [8, 8, 16], strides = [1, 1, 1]} : vector<10x10x16xbf16> to vector<8x8x16xbf16>
    %95 = vector.extract_strided_slice %88 {offsets = [2, 0, 0], sizes = [8, 8, 16], strides = [1, 1, 1]} : vector<10x10x16xbf16> to vector<8x8x16xbf16>
    %96 = vector.extract_strided_slice %88 {offsets = [2, 1, 0], sizes = [8, 8, 16], strides = [1, 1, 1]} : vector<10x10x16xbf16> to vector<8x8x16xbf16>
    %97 = vector.extract_strided_slice %88 {offsets = [2, 2, 0], sizes = [8, 8, 16], strides = [1, 1, 1]} : vector<10x10x16xbf16> to vector<8x8x16xbf16>
    %98 = tpu.concatenate %89, %90, %91, %92, %93, %94, %95, %96, %97 in 2 : vector<8x8x16xbf16>, vector<8x8x16xbf16>, vector<8x8x16xbf16>, vector<8x8x16xbf16>, vector<8x8x16xbf16>, vector<8x8x16xbf16>, vector<8x8x16xbf16>, vector<8x8x16xbf16>, vector<8x8x16xbf16> -> vector<8x8x144xbf16>
    %99 = vector.shape_cast %98 : vector<8x8x144xbf16> to vector<64x144xbf16>
    %cst_49 = arith.constant dense<0.000000e+00> : vector<64x16xf32>
    %100 = tpu.matmul %99, %77, %cst_49 {dimension_numbers = #tpu.dot_dimension_numbers<[1], [0], [0], [1], [0, 0, 1, 1], [], []>} : vector<64x144xbf16>, vector<144x16xbf16>, vector<64x16xf32> -> vector<64x16xf32>
    %cst_50 = arith.constant 0.000000e+00 : bf16
    %101 = vector.broadcast %cst_50 : bf16 to vector<1x8x32xbf16>
    %102 = tpu.concatenate %101, %84, %101 in 0 : vector<1x8x32xbf16>, vector<8x8x32xbf16>, vector<1x8x32xbf16> -> vector<10x8x32xbf16>
    %cst_51 = arith.constant 0.000000e+00 : bf16
    %103 = vector.broadcast %cst_51 : bf16 to vector<10x1x32xbf16>
    %104 = tpu.concatenate %103, %102, %103 in 1 : vector<10x1x32xbf16>, vector<10x8x32xbf16>, vector<10x1x32xbf16> -> vector<10x10x32xbf16>
    %105 = vector.extract_strided_slice %104 {offsets = [0, 0, 0], sizes = [8, 8, 32], strides = [1, 1, 1]} : vector<10x10x32xbf16> to vector<8x8x32xbf16>
    %106 = vector.extract_strided_slice %104 {offsets = [0, 1, 0], sizes = [8, 8, 32], strides = [1, 1, 1]} : vector<10x10x32xbf16> to vector<8x8x32xbf16>
    %107 = vector.extract_strided_slice %104 {offsets = [0, 2, 0], sizes = [8, 8, 32], strides = [1, 1, 1]} : vector<10x10x32xbf16> to vector<8x8x32xbf16>
    %108 = vector.extract_strided_slice %104 {offsets = [1, 0, 0], sizes = [8, 8, 32], strides = [1, 1, 1]} : vector<10x10x32xbf16> to vector<8x8x32xbf16>
    %109 = vector.extract_strided_slice %104 {offsets = [1, 1, 0], sizes = [8, 8, 32], strides = [1, 1, 1]} : vector<10x10x32xbf16> to vector<8x8x32xbf16>
    %110 = vector.extract_strided_slice %104 {offsets = [1, 2, 0], sizes = [8, 8, 32], strides = [1, 1, 1]} : vector<10x10x32xbf16> to vector<8x8x32xbf16>
    %111 = vector.extract_strided_slice %104 {offsets = [2, 0, 0], sizes = [8, 8, 32], strides = [1, 1, 1]} : vector<10x10x32xbf16> to vector<8x8x32xbf16>
    %112 = vector.extract_strided_slice %104 {offsets = [2, 1, 0], sizes = [8, 8, 32], strides = [1, 1, 1]} : vector<10x10x32xbf16> to vector<8x8x32xbf16>
    %113 = vector.extract_strided_slice %104 {offsets = [2, 2, 0], sizes = [8, 8, 32], strides = [1, 1, 1]} : vector<10x10x32xbf16> to vector<8x8x32xbf16>
    %114 = tpu.concatenate %105, %106, %107, %108, %109, %110, %111, %112, %113 in 2 : vector<8x8x32xbf16>, vector<8x8x32xbf16>, vector<8x8x32xbf16>, vector<8x8x32xbf16>, vector<8x8x32xbf16>, vector<8x8x32xbf16>, vector<8x8x32xbf16>, vector<8x8x32xbf16>, vector<8x8x32xbf16> -> vector<8x8x288xbf16>
    %115 = vector.shape_cast %114 : vector<8x8x288xbf16> to vector<64x288xbf16>
    %cst_52 = arith.constant dense<0.000000e+00> : vector<64x16xf32>
    %116 = tpu.matmul %115, %78, %cst_52 {dimension_numbers = #tpu.dot_dimension_numbers<[1], [0], [0], [1], [0, 0, 1, 1], [], []>} : vector<64x288xbf16>, vector<288x16xbf16>, vector<64x16xf32> -> vector<64x16xf32>
    %117 = arith.addf %100, %116 : vector<64x16xf32>
    %118 = vector.broadcast %79 : vector<1x16xf32> to vector<64x16xf32>
    %119 = arith.addf %117, %118 : vector<64x16xf32>
    %cst_53 = arith.constant 0.000000e+00 : f32
    %120 = vector.broadcast %cst_53 : f32 to vector<64x16xf32>
    %121 = arith.maximumf %119, %120 : vector<64x16xf32>
    %122 = arith.truncf %121 : vector<64x16xf32> to vector<64x16xbf16>
    %123 = vector.shape_cast %122 : vector<64x16xbf16> to vector<8x8x16xbf16>
    %cst_54 = arith.constant 0.000000e+00 : bf16
    %124 = vector.broadcast %cst_54 : bf16 to vector<1x8x16xbf16>
    %125 = tpu.concatenate %124, %123, %124 in 0 : vector<1x8x16xbf16>, vector<8x8x16xbf16>, vector<1x8x16xbf16> -> vector<10x8x16xbf16>
    %cst_55 = arith.constant 0.000000e+00 : bf16
    %126 = vector.broadcast %cst_55 : bf16 to vector<10x1x16xbf16>
    %127 = tpu.concatenate %126, %125, %126 in 1 : vector<10x1x16xbf16>, vector<10x8x16xbf16>, vector<10x1x16xbf16> -> vector<10x10x16xbf16>
    %128 = vector.extract_strided_slice %127 {offsets = [0, 0, 0], sizes = [8, 8, 16], strides = [1, 1, 1]} : vector<10x10x16xbf16> to vector<8x8x16xbf16>
    %129 = vector.extract_strided_slice %127 {offsets = [0, 1, 0], sizes = [8, 8, 16], strides = [1, 1, 1]} : vector<10x10x16xbf16> to vector<8x8x16xbf16>
    %130 = vector.extract_strided_slice %127 {offsets = [0, 2, 0], sizes = [8, 8, 16], strides = [1, 1, 1]} : vector<10x10x16xbf16> to vector<8x8x16xbf16>
    %131 = vector.extract_strided_slice %127 {offsets = [1, 0, 0], sizes = [8, 8, 16], strides = [1, 1, 1]} : vector<10x10x16xbf16> to vector<8x8x16xbf16>
    %132 = vector.extract_strided_slice %127 {offsets = [1, 1, 0], sizes = [8, 8, 16], strides = [1, 1, 1]} : vector<10x10x16xbf16> to vector<8x8x16xbf16>
    %133 = vector.extract_strided_slice %127 {offsets = [1, 2, 0], sizes = [8, 8, 16], strides = [1, 1, 1]} : vector<10x10x16xbf16> to vector<8x8x16xbf16>
    %134 = vector.extract_strided_slice %127 {offsets = [2, 0, 0], sizes = [8, 8, 16], strides = [1, 1, 1]} : vector<10x10x16xbf16> to vector<8x8x16xbf16>
    %135 = vector.extract_strided_slice %127 {offsets = [2, 1, 0], sizes = [8, 8, 16], strides = [1, 1, 1]} : vector<10x10x16xbf16> to vector<8x8x16xbf16>
    %136 = vector.extract_strided_slice %127 {offsets = [2, 2, 0], sizes = [8, 8, 16], strides = [1, 1, 1]} : vector<10x10x16xbf16> to vector<8x8x16xbf16>
    %137 = tpu.concatenate %128, %129, %130, %131, %132, %133, %134, %135, %136 in 2 : vector<8x8x16xbf16>, vector<8x8x16xbf16>, vector<8x8x16xbf16>, vector<8x8x16xbf16>, vector<8x8x16xbf16>, vector<8x8x16xbf16>, vector<8x8x16xbf16>, vector<8x8x16xbf16>, vector<8x8x16xbf16> -> vector<8x8x144xbf16>
    %138 = vector.shape_cast %137 : vector<8x8x144xbf16> to vector<64x144xbf16>
    %cst_56 = arith.constant dense<0.000000e+00> : vector<64x16xf32>
    %139 = tpu.matmul %138, %80, %cst_56 {dimension_numbers = #tpu.dot_dimension_numbers<[1], [0], [0], [1], [0, 0, 1, 1], [], []>} : vector<64x144xbf16>, vector<144x16xbf16>, vector<64x16xf32> -> vector<64x16xf32>
    %140 = vector.broadcast %81 : vector<1x16xf32> to vector<64x16xf32>
    %141 = arith.addf %139, %140 : vector<64x16xf32>
    %cst_57 = arith.constant 0.000000e+00 : f32
    %142 = vector.broadcast %cst_57 : f32 to vector<64x16xf32>
    %143 = arith.maximumf %141, %142 : vector<64x16xf32>
    %144 = arith.truncf %143 : vector<64x16xf32> to vector<64x16xbf16>
    %c0_58 = arith.constant 0 : index
    %c0_59 = arith.constant 0 : index
    %c0_60 = arith.constant 0 : index
    %c0_61 = arith.constant 0 : index
    %145 = vector.load %arg4[%c0_58, %c0_59, %c0_60, %c0_61] : memref<1x16x16x8xbf16, #tpu.memory_space<vmem>>, vector<1x16x16x8xbf16>
    %146 = vector.shape_cast %145 : vector<1x16x16x8xbf16> to vector<16x16x8xbf16>
    %c0_62 = arith.constant 0 : index
    %c0_63 = arith.constant 0 : index
    %147 = vector.load %arg7[%c0_62, %c0_63] : memref<256x64xbf16, #tpu.memory_space<vmem>>, vector<256x64xbf16>
    %c0_64 = arith.constant 0 : index
    %c0_65 = arith.constant 0 : index
    %148 = vector.load %arg18[%c0_64, %c0_65] : memref<72x8xbf16, #tpu.memory_space<vmem>>, vector<72x8xbf16>
    %c0_66 = arith.constant 0 : index
    %c0_67 = arith.constant 0 : index
    %149 = vector.load %arg19[%c0_66, %c0_67] : memref<144x8xbf16, #tpu.memory_space<vmem>>, vector<144x8xbf16>
    %c0_68 = arith.constant 0 : index
    %c0_69 = arith.constant 0 : index
    %150 = vector.load %arg20[%c0_68, %c0_69] : memref<1x8xf32, #tpu.memory_space<vmem>>, vector<1x8xf32>
    %c0_70 = arith.constant 0 : index
    %c0_71 = arith.constant 0 : index
    %151 = vector.load %arg21[%c0_70, %c0_71] : memref<72x8xbf16, #tpu.memory_space<vmem>>, vector<72x8xbf16>
    %c0_72 = arith.constant 0 : index
    %c0_73 = arith.constant 0 : index
    %152 = vector.load %arg22[%c0_72, %c0_73] : memref<1x8xf32, #tpu.memory_space<vmem>>, vector<1x8xf32>
    %cst_74 = arith.constant dense<0.000000e+00> : vector<256x16xf32>
    %153 = tpu.matmul %147, %144, %cst_74 {dimension_numbers = #tpu.dot_dimension_numbers<[1], [0], [0], [1], [0, 0, 1, 1], [], []>} : vector<256x64xbf16>, vector<64x16xbf16>, vector<256x16xf32> -> vector<256x16xf32>
    %154 = arith.truncf %153 : vector<256x16xf32> to vector<256x16xbf16>
    %155 = vector.shape_cast %154 : vector<256x16xbf16> to vector<16x16x16xbf16>
    %cst_75 = arith.constant 0.000000e+00 : bf16
    %156 = vector.broadcast %cst_75 : bf16 to vector<1x16x8xbf16>
    %157 = tpu.concatenate %156, %146, %156 in 0 : vector<1x16x8xbf16>, vector<16x16x8xbf16>, vector<1x16x8xbf16> -> vector<18x16x8xbf16>
    %cst_76 = arith.constant 0.000000e+00 : bf16
    %158 = vector.broadcast %cst_76 : bf16 to vector<18x1x8xbf16>
    %159 = tpu.concatenate %158, %157, %158 in 1 : vector<18x1x8xbf16>, vector<18x16x8xbf16>, vector<18x1x8xbf16> -> vector<18x18x8xbf16>
    %160 = vector.extract_strided_slice %159 {offsets = [0, 0, 0], sizes = [16, 16, 8], strides = [1, 1, 1]} : vector<18x18x8xbf16> to vector<16x16x8xbf16>
    %161 = vector.extract_strided_slice %159 {offsets = [0, 1, 0], sizes = [16, 16, 8], strides = [1, 1, 1]} : vector<18x18x8xbf16> to vector<16x16x8xbf16>
    %162 = vector.extract_strided_slice %159 {offsets = [0, 2, 0], sizes = [16, 16, 8], strides = [1, 1, 1]} : vector<18x18x8xbf16> to vector<16x16x8xbf16>
    %163 = vector.extract_strided_slice %159 {offsets = [1, 0, 0], sizes = [16, 16, 8], strides = [1, 1, 1]} : vector<18x18x8xbf16> to vector<16x16x8xbf16>
    %164 = vector.extract_strided_slice %159 {offsets = [1, 1, 0], sizes = [16, 16, 8], strides = [1, 1, 1]} : vector<18x18x8xbf16> to vector<16x16x8xbf16>
    %165 = vector.extract_strided_slice %159 {offsets = [1, 2, 0], sizes = [16, 16, 8], strides = [1, 1, 1]} : vector<18x18x8xbf16> to vector<16x16x8xbf16>
    %166 = vector.extract_strided_slice %159 {offsets = [2, 0, 0], sizes = [16, 16, 8], strides = [1, 1, 1]} : vector<18x18x8xbf16> to vector<16x16x8xbf16>
    %167 = vector.extract_strided_slice %159 {offsets = [2, 1, 0], sizes = [16, 16, 8], strides = [1, 1, 1]} : vector<18x18x8xbf16> to vector<16x16x8xbf16>
    %168 = vector.extract_strided_slice %159 {offsets = [2, 2, 0], sizes = [16, 16, 8], strides = [1, 1, 1]} : vector<18x18x8xbf16> to vector<16x16x8xbf16>
    %169 = tpu.concatenate %160, %161, %162, %163, %164, %165, %166, %167, %168 in 2 : vector<16x16x8xbf16>, vector<16x16x8xbf16>, vector<16x16x8xbf16>, vector<16x16x8xbf16>, vector<16x16x8xbf16>, vector<16x16x8xbf16>, vector<16x16x8xbf16>, vector<16x16x8xbf16>, vector<16x16x8xbf16> -> vector<16x16x72xbf16>
    %170 = vector.shape_cast %169 : vector<16x16x72xbf16> to vector<256x72xbf16>
    %cst_77 = arith.constant dense<0.000000e+00> : vector<256x8xf32>
    %171 = tpu.matmul %170, %148, %cst_77 {dimension_numbers = #tpu.dot_dimension_numbers<[1], [0], [0], [1], [0, 0, 1, 1], [], []>} : vector<256x72xbf16>, vector<72x8xbf16>, vector<256x8xf32> -> vector<256x8xf32>
    %cst_78 = arith.constant 0.000000e+00 : bf16
    %172 = vector.broadcast %cst_78 : bf16 to vector<1x16x16xbf16>
    %173 = tpu.concatenate %172, %155, %172 in 0 : vector<1x16x16xbf16>, vector<16x16x16xbf16>, vector<1x16x16xbf16> -> vector<18x16x16xbf16>
    %cst_79 = arith.constant 0.000000e+00 : bf16
    %174 = vector.broadcast %cst_79 : bf16 to vector<18x1x16xbf16>
    %175 = tpu.concatenate %174, %173, %174 in 1 : vector<18x1x16xbf16>, vector<18x16x16xbf16>, vector<18x1x16xbf16> -> vector<18x18x16xbf16>
    %176 = vector.extract_strided_slice %175 {offsets = [0, 0, 0], sizes = [16, 16, 16], strides = [1, 1, 1]} : vector<18x18x16xbf16> to vector<16x16x16xbf16>
    %177 = vector.extract_strided_slice %175 {offsets = [0, 1, 0], sizes = [16, 16, 16], strides = [1, 1, 1]} : vector<18x18x16xbf16> to vector<16x16x16xbf16>
    %178 = vector.extract_strided_slice %175 {offsets = [0, 2, 0], sizes = [16, 16, 16], strides = [1, 1, 1]} : vector<18x18x16xbf16> to vector<16x16x16xbf16>
    %179 = vector.extract_strided_slice %175 {offsets = [1, 0, 0], sizes = [16, 16, 16], strides = [1, 1, 1]} : vector<18x18x16xbf16> to vector<16x16x16xbf16>
    %180 = vector.extract_strided_slice %175 {offsets = [1, 1, 0], sizes = [16, 16, 16], strides = [1, 1, 1]} : vector<18x18x16xbf16> to vector<16x16x16xbf16>
    %181 = vector.extract_strided_slice %175 {offsets = [1, 2, 0], sizes = [16, 16, 16], strides = [1, 1, 1]} : vector<18x18x16xbf16> to vector<16x16x16xbf16>
    %182 = vector.extract_strided_slice %175 {offsets = [2, 0, 0], sizes = [16, 16, 16], strides = [1, 1, 1]} : vector<18x18x16xbf16> to vector<16x16x16xbf16>
    %183 = vector.extract_strided_slice %175 {offsets = [2, 1, 0], sizes = [16, 16, 16], strides = [1, 1, 1]} : vector<18x18x16xbf16> to vector<16x16x16xbf16>
    %184 = vector.extract_strided_slice %175 {offsets = [2, 2, 0], sizes = [16, 16, 16], strides = [1, 1, 1]} : vector<18x18x16xbf16> to vector<16x16x16xbf16>
    %185 = tpu.concatenate %176, %177, %178, %179, %180, %181, %182, %183, %184 in 2 : vector<16x16x16xbf16>, vector<16x16x16xbf16>, vector<16x16x16xbf16>, vector<16x16x16xbf16>, vector<16x16x16xbf16>, vector<16x16x16xbf16>, vector<16x16x16xbf16>, vector<16x16x16xbf16>, vector<16x16x16xbf16> -> vector<16x16x144xbf16>
    %186 = vector.shape_cast %185 : vector<16x16x144xbf16> to vector<256x144xbf16>
    %cst_80 = arith.constant dense<0.000000e+00> : vector<256x8xf32>
    %187 = tpu.matmul %186, %149, %cst_80 {dimension_numbers = #tpu.dot_dimension_numbers<[1], [0], [0], [1], [0, 0, 1, 1], [], []>} : vector<256x144xbf16>, vector<144x8xbf16>, vector<256x8xf32> -> vector<256x8xf32>
    %188 = arith.addf %171, %187 : vector<256x8xf32>
    %189 = vector.broadcast %150 : vector<1x8xf32> to vector<256x8xf32>
    %190 = arith.addf %188, %189 : vector<256x8xf32>
    %cst_81 = arith.constant 0.000000e+00 : f32
    %191 = vector.broadcast %cst_81 : f32 to vector<256x8xf32>
    %192 = arith.maximumf %190, %191 : vector<256x8xf32>
    %193 = arith.truncf %192 : vector<256x8xf32> to vector<256x8xbf16>
    %194 = vector.shape_cast %193 : vector<256x8xbf16> to vector<16x16x8xbf16>
    %cst_82 = arith.constant 0.000000e+00 : bf16
    %195 = vector.broadcast %cst_82 : bf16 to vector<1x16x8xbf16>
    %196 = tpu.concatenate %195, %194, %195 in 0 : vector<1x16x8xbf16>, vector<16x16x8xbf16>, vector<1x16x8xbf16> -> vector<18x16x8xbf16>
    %cst_83 = arith.constant 0.000000e+00 : bf16
    %197 = vector.broadcast %cst_83 : bf16 to vector<18x1x8xbf16>
    %198 = tpu.concatenate %197, %196, %197 in 1 : vector<18x1x8xbf16>, vector<18x16x8xbf16>, vector<18x1x8xbf16> -> vector<18x18x8xbf16>
    %199 = vector.extract_strided_slice %198 {offsets = [0, 0, 0], sizes = [16, 16, 8], strides = [1, 1, 1]} : vector<18x18x8xbf16> to vector<16x16x8xbf16>
    %200 = vector.extract_strided_slice %198 {offsets = [0, 1, 0], sizes = [16, 16, 8], strides = [1, 1, 1]} : vector<18x18x8xbf16> to vector<16x16x8xbf16>
    %201 = vector.extract_strided_slice %198 {offsets = [0, 2, 0], sizes = [16, 16, 8], strides = [1, 1, 1]} : vector<18x18x8xbf16> to vector<16x16x8xbf16>
    %202 = vector.extract_strided_slice %198 {offsets = [1, 0, 0], sizes = [16, 16, 8], strides = [1, 1, 1]} : vector<18x18x8xbf16> to vector<16x16x8xbf16>
    %203 = vector.extract_strided_slice %198 {offsets = [1, 1, 0], sizes = [16, 16, 8], strides = [1, 1, 1]} : vector<18x18x8xbf16> to vector<16x16x8xbf16>
    %204 = vector.extract_strided_slice %198 {offsets = [1, 2, 0], sizes = [16, 16, 8], strides = [1, 1, 1]} : vector<18x18x8xbf16> to vector<16x16x8xbf16>
    %205 = vector.extract_strided_slice %198 {offsets = [2, 0, 0], sizes = [16, 16, 8], strides = [1, 1, 1]} : vector<18x18x8xbf16> to vector<16x16x8xbf16>
    %206 = vector.extract_strided_slice %198 {offsets = [2, 1, 0], sizes = [16, 16, 8], strides = [1, 1, 1]} : vector<18x18x8xbf16> to vector<16x16x8xbf16>
    %207 = vector.extract_strided_slice %198 {offsets = [2, 2, 0], sizes = [16, 16, 8], strides = [1, 1, 1]} : vector<18x18x8xbf16> to vector<16x16x8xbf16>
    %208 = tpu.concatenate %199, %200, %201, %202, %203, %204, %205, %206, %207 in 2 : vector<16x16x8xbf16>, vector<16x16x8xbf16>, vector<16x16x8xbf16>, vector<16x16x8xbf16>, vector<16x16x8xbf16>, vector<16x16x8xbf16>, vector<16x16x8xbf16>, vector<16x16x8xbf16>, vector<16x16x8xbf16> -> vector<16x16x72xbf16>
    %209 = vector.shape_cast %208 : vector<16x16x72xbf16> to vector<256x72xbf16>
    %cst_84 = arith.constant dense<0.000000e+00> : vector<256x8xf32>
    %210 = tpu.matmul %209, %151, %cst_84 {dimension_numbers = #tpu.dot_dimension_numbers<[1], [0], [0], [1], [0, 0, 1, 1], [], []>} : vector<256x72xbf16>, vector<72x8xbf16>, vector<256x8xf32> -> vector<256x8xf32>
    %211 = vector.broadcast %152 : vector<1x8xf32> to vector<256x8xf32>
    %212 = arith.addf %210, %211 : vector<256x8xf32>
    %cst_85 = arith.constant 0.000000e+00 : f32
    %213 = vector.broadcast %cst_85 : f32 to vector<256x8xf32>
    %214 = arith.maximumf %212, %213 : vector<256x8xf32>
    %c0_86 = arith.constant 0 : index
    %c0_87 = arith.constant 0 : index
    %c0_88 = arith.constant 0 : index
    %215 = vector.load %arg25[%c0_86, %c0_87, %c0_88] : memref<1x256x8xf32, #tpu.memory_space<vmem>>, vector<1x256x8xf32>
    %216 = vector.shape_cast %215 : vector<1x256x8xf32> to vector<256x8xf32>
    %217 = vector.shape_cast %214 : vector<256x8xf32> to vector<1x256x8xf32>
    tpu.vector_store %arg25[%c0_86, %c0_87, %c0_88], %217 {strides = array<i32>} : memref<1x256x8xf32, #tpu.memory_space<vmem>>, vector<1x256x8xf32>,
    %218 = arith.truncf %214 : vector<256x8xf32> to vector<256x8xbf16>
    %c0_89 = arith.constant 0 : index
    %c0_90 = arith.constant 0 : index
    %219 = vector.load %arg23[%c0_89, %c0_90] : memref<8x4xbf16, #tpu.memory_space<vmem>>, vector<8x4xbf16>
    %cst_91 = arith.constant dense<0.000000e+00> : vector<256x4xf32>
    %220 = tpu.matmul %218, %219, %cst_91 {dimension_numbers = #tpu.dot_dimension_numbers<[1], [0], [0], [1], [0, 0, 1, 1], [], []>} : vector<256x8xbf16>, vector<8x4xbf16>, vector<256x4xf32> -> vector<256x4xf32>
    %c0_92 = arith.constant 0 : index
    %c0_93 = arith.constant 0 : index
    %221 = vector.load %arg24[%c0_92, %c0_93] : memref<1x4xf32, #tpu.memory_space<vmem>>, vector<1x4xf32>
    %222 = vector.broadcast %221 : vector<1x4xf32> to vector<256x4xf32>
    %223 = arith.addf %220, %222 : vector<256x4xf32>
    %c0_94 = arith.constant 0 : index
    %c0_95 = arith.constant 0 : index
    %c0_96 = arith.constant 0 : index
    %224 = vector.load %arg26[%c0_94, %c0_95, %c0_96] : memref<1x256x4xf32, #tpu.memory_space<vmem>>, vector<1x256x4xf32>
    %225 = vector.shape_cast %224 : vector<1x256x4xf32> to vector<256x4xf32>
    %226 = vector.shape_cast %223 : vector<256x4xf32> to vector<1x256x4xf32>
    tpu.vector_store %arg26[%c0_94, %c0_95, %c0_96], %226 {strides = array<i32>} : memref<1x256x4xf32, #tpu.memory_space<vmem>>, vector<1x256x4xf32>,
    return
  }
  func.func @transform_0(%arg0: i32) -> (i32, i32, i32, i32) {
    %c0_i32 = arith.constant 0 : i32
    %c0_i32_0 = arith.constant 0 : i32
    %c0_i32_1 = arith.constant 0 : i32
    %c0_i32_2 = arith.constant 0 : i32
    return %arg0, %c0_i32, %c0_i32_0, %c0_i32_1 : i32, i32, i32, i32
  }
  func.func @transform_1(%arg0: i32) -> (i32, i32, i32, i32) {
    %c0_i32 = arith.constant 0 : i32
    %c0_i32_0 = arith.constant 0 : i32
    %c0_i32_1 = arith.constant 0 : i32
    %c0_i32_2 = arith.constant 0 : i32
    return %arg0, %c0_i32, %c0_i32_0, %c0_i32_1 : i32, i32, i32, i32
  }
  func.func @transform_2(%arg0: i32) -> (i32, i32, i32, i32) {
    %c0_i32 = arith.constant 0 : i32
    %c0_i32_0 = arith.constant 0 : i32
    %c0_i32_1 = arith.constant 0 : i32
    %c0_i32_2 = arith.constant 0 : i32
    return %arg0, %c0_i32, %c0_i32_0, %c0_i32_1 : i32, i32, i32, i32
  }
  func.func @transform_3(%arg0: i32) -> (i32, i32, i32, i32) {
    %c0_i32 = arith.constant 0 : i32
    %c0_i32_0 = arith.constant 0 : i32
    %c0_i32_1 = arith.constant 0 : i32
    %c0_i32_2 = arith.constant 0 : i32
    return %arg0, %c0_i32, %c0_i32_0, %c0_i32_1 : i32, i32, i32, i32
  }
  func.func @transform_4(%arg0: i32) -> (i32, i32) {
    %c0_i32 = arith.constant 0 : i32
    %c0_i32_0 = arith.constant 0 : i32
    %c0_i32_1 = arith.constant 0 : i32
    return %c0_i32, %c0_i32_0 : i32, i32
  }
  func.func @transform_5(%arg0: i32) -> (i32, i32) {
    %c0_i32 = arith.constant 0 : i32
    %c0_i32_0 = arith.constant 0 : i32
    %c0_i32_1 = arith.constant 0 : i32
    return %c0_i32, %c0_i32_0 : i32, i32
  }
  func.func @transform_6(%arg0: i32) -> (i32, i32) {
    %c0_i32 = arith.constant 0 : i32
    %c0_i32_0 = arith.constant 0 : i32
    %c0_i32_1 = arith.constant 0 : i32
    return %c0_i32, %c0_i32_0 : i32, i32
  }
  func.func @transform_7(%arg0: i32) -> (i32, i32) {
    %c0_i32 = arith.constant 0 : i32
    %c0_i32_0 = arith.constant 0 : i32
    %c0_i32_1 = arith.constant 0 : i32
    return %c0_i32, %c0_i32_0 : i32, i32
  }
  func.func @transform_8(%arg0: i32) -> (i32, i32) {
    %c0_i32 = arith.constant 0 : i32
    %c0_i32_0 = arith.constant 0 : i32
    %c0_i32_1 = arith.constant 0 : i32
    return %c0_i32, %c0_i32_0 : i32, i32
  }
  func.func @transform_9(%arg0: i32) -> (i32, i32) {
    %c0_i32 = arith.constant 0 : i32
    %c0_i32_0 = arith.constant 0 : i32
    %c0_i32_1 = arith.constant 0 : i32
    return %c0_i32, %c0_i32_0 : i32, i32
  }
  func.func @transform_10(%arg0: i32) -> (i32, i32) {
    %c0_i32 = arith.constant 0 : i32
    %c0_i32_0 = arith.constant 0 : i32
    %c0_i32_1 = arith.constant 0 : i32
    return %c0_i32, %c0_i32_0 : i32, i32
  }
  func.func @transform_11(%arg0: i32) -> (i32, i32) {
    %c0_i32 = arith.constant 0 : i32
    %c0_i32_0 = arith.constant 0 : i32
    %c0_i32_1 = arith.constant 0 : i32
    return %c0_i32, %c0_i32_0 : i32, i32
  }
  func.func @transform_12(%arg0: i32) -> (i32, i32) {
    %c0_i32 = arith.constant 0 : i32
    %c0_i32_0 = arith.constant 0 : i32
    %c0_i32_1 = arith.constant 0 : i32
    return %c0_i32, %c0_i32_0 : i32, i32
  }
  func.func @transform_13(%arg0: i32) -> (i32, i32) {
    %c0_i32 = arith.constant 0 : i32
    %c0_i32_0 = arith.constant 0 : i32
    %c0_i32_1 = arith.constant 0 : i32
    return %c0_i32, %c0_i32_0 : i32, i32
  }
  func.func @transform_14(%arg0: i32) -> (i32, i32) {
    %c0_i32 = arith.constant 0 : i32
    %c0_i32_0 = arith.constant 0 : i32
    %c0_i32_1 = arith.constant 0 : i32
    return %c0_i32, %c0_i32_0 : i32, i32
  }
  func.func @transform_15(%arg0: i32) -> (i32, i32) {
    %c0_i32 = arith.constant 0 : i32
    %c0_i32_0 = arith.constant 0 : i32
    %c0_i32_1 = arith.constant 0 : i32
    return %c0_i32, %c0_i32_0 : i32, i32
  }
  func.func @transform_16(%arg0: i32) -> (i32, i32) {
    %c0_i32 = arith.constant 0 : i32
    %c0_i32_0 = arith.constant 0 : i32
    %c0_i32_1 = arith.constant 0 : i32
    return %c0_i32, %c0_i32_0 : i32, i32
  }
  func.func @transform_17(%arg0: i32) -> (i32, i32) {
    %c0_i32 = arith.constant 0 : i32
    %c0_i32_0 = arith.constant 0 : i32
    %c0_i32_1 = arith.constant 0 : i32
    return %c0_i32, %c0_i32_0 : i32, i32
  }
  func.func @transform_18(%arg0: i32) -> (i32, i32) {
    %c0_i32 = arith.constant 0 : i32
    %c0_i32_0 = arith.constant 0 : i32
    %c0_i32_1 = arith.constant 0 : i32
    return %c0_i32, %c0_i32_0 : i32, i32
  }
  func.func @transform_19(%arg0: i32) -> (i32, i32) {
    %c0_i32 = arith.constant 0 : i32
    %c0_i32_0 = arith.constant 0 : i32
    %c0_i32_1 = arith.constant 0 : i32
    return %c0_i32, %c0_i32_0 : i32, i32
  }
  func.func @transform_20(%arg0: i32) -> (i32, i32) {
    %c0_i32 = arith.constant 0 : i32
    %c0_i32_0 = arith.constant 0 : i32
    %c0_i32_1 = arith.constant 0 : i32
    return %c0_i32, %c0_i32_0 : i32, i32
  }
  func.func @transform_21(%arg0: i32) -> (i32, i32) {
    %c0_i32 = arith.constant 0 : i32
    %c0_i32_0 = arith.constant 0 : i32
    %c0_i32_1 = arith.constant 0 : i32
    return %c0_i32, %c0_i32_0 : i32, i32
  }
  func.func @transform_22(%arg0: i32) -> (i32, i32) {
    %c0_i32 = arith.constant 0 : i32
    %c0_i32_0 = arith.constant 0 : i32
    %c0_i32_1 = arith.constant 0 : i32
    return %c0_i32, %c0_i32_0 : i32, i32
  }
  func.func @transform_23(%arg0: i32) -> (i32, i32) {
    %c0_i32 = arith.constant 0 : i32
    %c0_i32_0 = arith.constant 0 : i32
    %c0_i32_1 = arith.constant 0 : i32
    return %c0_i32, %c0_i32_0 : i32, i32
  }
  func.func @transform_24(%arg0: i32) -> (i32, i32, i32) {
    %c0_i32 = arith.constant 0 : i32
    %c0_i32_0 = arith.constant 0 : i32
    %c0_i32_1 = arith.constant 0 : i32
    return %arg0, %c0_i32, %c0_i32_0 : i32, i32, i32
  }
  func.func @transform_25(%arg0: i32) -> (i32, i32, i32) {
    %c0_i32 = arith.constant 0 : i32
    %c0_i32_0 = arith.constant 0 : i32
    %c0_i32_1 = arith.constant 0 : i32
    return %arg0, %c0_i32, %c0_i32_0 : i32, i32, i32
  }
}

</mosaic_0001>

<llo_original>
// kernel: unet_decoder_forward.1
$region0: #{unet_decoder_forward.1}
  #allocation0 [shape = 'u32[]', space=smem, size = 0x4, offset = 0x4, fixed_abs, tag = 'smem constant byte address 0x4 - core index']
  #allocation1 [shape = 'u32[144,128]{1,0:T(1,128)}', space=vmem, size = 0x12000, scoped, tag = 'internal scratch']
  %s0 = inlined_call_operand.vmem [shape: bf16[2,2,2,64], index: 0, kind: input, shape index: {}]
  %s1 = inlined_call_operand.vmem [shape: bf16[2,4,4,32], index: 1, kind: input, shape index: {}]
  %s2 = inlined_call_operand.vmem [shape: bf16[2,8,8,16], index: 2, kind: input, shape index: {}]
  %s3 = inlined_call_operand.vmem [shape: bf16[2,16,16,8], index: 3, kind: input, shape index: {}]
  %s4 = inlined_call_operand.vmem [shape: bf16[16,4], index: 4, kind: input, shape index: {}]
  %s5 = inlined_call_operand.vmem [shape: bf16[64,16], index: 5, kind: input, shape index: {}]
  %s6 = inlined_call_operand.vmem [shape: bf16[256,64], index: 6, kind: input, shape index: {}]
  %s7 = inlined_call_operand.vmem [shape: bf16[288,32], index: 7, kind: input, shape index: {}]
  %s8 = inlined_call_operand.vmem [shape: bf16[576,32], index: 8, kind: input, shape index: {}]
  %s9 = inlined_call_operand.vmem [shape: f32[1,32], index: 9, kind: input, shape index: {}]
  %s10 = inlined_call_operand.vmem [shape: bf16[288,32], index: 10, kind: input, shape index: {}]
  %s11 = inlined_call_operand.vmem [shape: f32[1,32], index: 11, kind: input, shape index: {}]
  %s12 = inlined_call_operand.vmem [shape: bf16[144,16], index: 12, kind: input, shape index: {}]
  %s13 = inlined_call_operand.vmem [shape: bf16[288,16], index: 13, kind: input, shape index: {}]
  %s14 = inlined_call_operand.vmem [shape: f32[1,16], index: 14, kind: input, shape index: {}]
  %s15 = inlined_call_operand.vmem [shape: bf16[144,16], index: 15, kind: input, shape index: {}]
  %s16 = inlined_call_operand.vmem [shape: f32[1,16], index: 16, kind: input, shape index: {}]
  %s17 = inlined_call_operand.vmem [shape: bf16[72,8], index: 17, kind: input, shape index: {}]
  %s18 = inlined_call_operand.vmem [shape: bf16[144,8], index: 18, kind: input, shape index: {}]
  %s19 = inlined_call_operand.vmem [shape: f32[1,8], index: 19, kind: input, shape index: {}]
  %s20 = inlined_call_operand.vmem [shape: bf16[72,8], index: 20, kind: input, shape index: {}]
  %s21 = inlined_call_operand.vmem [shape: f32[1,8], index: 21, kind: input, shape index: {}]
  %s22 = inlined_call_operand.vmem [shape: bf16[8,4], index: 22, kind: input, shape index: {}]
  %s23 = inlined_call_operand.vmem [shape: f32[1,4], index: 23, kind: input, shape index: {}]
  %s24 = inlined_call_operand.vmem [shape: f32[2,256,8], index: 24, kind: output, shape index: {0}]
  %s25 = inlined_call_operand.vmem [shape: f32[2,256,4], index: 25, kind: output, shape index: {1}]
  %26 = xla_tuple %s24, %s25
  %s27 = sld [smem:[#allocation0]]
  $region137: #{unet_decoder_forward.1} parent=0
    _
  %s29 = ssub.s32 1, %s27
  %s30 = scalar_select 0, %s29, %s27
  loop: start=0, step=1, limit=4
  $region2: #{unet_decoder_forward.1} parent=0 // loop_pre_header
    _
  $region3: #{unet_decoder_forward.1} parent=0 // loop_header
    %s32 = sphi 0, %s36
    %p33 = scmp.ge.s32.totalorder %s32, 4
    %s42 = sphi 0, %s44
    %s45 = sphi 0, %s42
    %s46 = sphi 0, %s45
    %s62 = sphi 0, %s46
    %s68 = sphi 0, %s70
    %s71 = sphi 0, %s68
    %s72 = sphi 0, %s71
    %s88 = sphi 0, %s72
    %s94 = sphi 0, %s96
    %s97 = sphi 0, %s94
    %s98 = sphi 0, %s97
    %s114 = sphi 0, %s98
    %s120 = sphi 0, %s122
    %s123 = sphi 0, %s120
    %s124 = sphi 0, %s123
    %s140 = sphi 0, %s124
    %s144 = sphi 0, %s144
    %s146 = sphi 0, %s144
    %s147 = sphi 0, %s146
    %s161 = sphi 0, %s147
    %s165 = sphi 0, %s165
    %s167 = sphi 0, %s165
    %s168 = sphi 0, %s167
    %s182 = sphi 0, %s168
    %s186 = sphi 0, %s186
    %s188 = sphi 0, %s186
    %s189 = sphi 0, %s188
    %s203 = sphi 0, %s189
    %s207 = sphi 0, %s207
    %s209 = sphi 0, %s207
    %s210 = sphi 0, %s209
    %s224 = sphi 0, %s210
    %s228 = sphi 0, %s228
    %s230 = sphi 0, %s228
    %s231 = sphi 0, %s230
    %s245 = sphi 0, %s231
    %s249 = sphi 0, %s249
    %s251 = sphi 0, %s249
    %s252 = sphi 0, %s251
    %s266 = sphi 0, %s252
    %s270 = sphi 0, %s270
    %s272 = sphi 0, %s270
    %s273 = sphi 0, %s272
    %s287 = sphi 0, %s273
    %s291 = sphi 0, %s291
    %s293 = sphi 0, %s291
    %s294 = sphi 0, %s293
    %s308 = sphi 0, %s294
    %s312 = sphi 0, %s312
    %s314 = sphi 0, %s312
    %s315 = sphi 0, %s314
    %s329 = sphi 0, %s315
    %s333 = sphi 0, %s333
    %s335 = sphi 0, %s333
    %s336 = sphi 0, %s335
    %s350 = sphi 0, %s336
    %s354 = sphi 0, %s354
    %s356 = sphi 0, %s354
    %s357 = sphi 0, %s356
    %s371 = sphi 0, %s357
    %s375 = sphi 0, %s375
    %s377 = sphi 0, %s375
    %s378 = sphi 0, %s377
    %s392 = sphi 0, %s378
    %s396 = sphi 0, %s396
    %s398 = sphi 0, %s396
    %s399 = sphi 0, %s398
    %s413 = sphi 0, %s399
    %s417 = sphi 0, %s417
    %s419 = sphi 0, %s417
    %s420 = sphi 0, %s419
    %s434 = sphi 0, %s420
    %s438 = sphi 0, %s438
    %s440 = sphi 0, %s438
    %s441 = sphi 0, %s440
    %s455 = sphi 0, %s441
    %s459 = sphi 0, %s459
    %s461 = sphi 0, %s459
    %s462 = sphi 0, %s461
    %s476 = sphi 0, %s462
    %s480 = sphi 0, %s480
    %s482 = sphi 0, %s480
    %s483 = sphi 0, %s482
    %s497 = sphi 0, %s483
    %s501 = sphi 0, %s501
    %s503 = sphi 0, %s501
    %s504 = sphi 0, %s503
    %s518 = sphi 0, %s504
    %s522 = sphi 0, %s522
    %s524 = sphi 0, %s522
    %s525 = sphi 0, %s524
    %s539 = sphi 0, %s525
    %s543 = sphi 0, %s543
    %s545 = sphi 0, %s543
    %s546 = sphi 0, %s545
    %s560 = sphi 0, %s546
    %s566 = sphi 0, %s568
    %s569 = sphi 0, %s566
    %s570 = sphi 0, %s569
    %s586 = sphi 0, %s570
    %s592 = sphi 0, %s594
    %s595 = sphi 0, %s592
    %s596 = sphi 0, %s595
    %s612 = sphi 0, %s596
  $region4: #{unet_decoder_forward.1} parent=0 // loop_header_branch
    %35 = sbr.rel (%p33) target = $region8
  $region5: #{unet_decoder_forward.1} parent=0 // loop_body
    %s37 = ssub.s32 %s32, 1
    %s38 = ssub.s32 %s32, 2
    %s39 = sadd.s32 %s32, 1
    %s40 = ssub.s32 %s32, %s39
    %p41 = scmp.eq.s32.totalorder %s40, 0
    %s43 = sadd.s32 %s42, 1
    %s44 = scalar_select %p41, %s42, %s43
    %p47 = pneg %p41
    %p48 = scmp.eq.s32.totalorder %s32, 1
    %p49 = por %p47, %p48
    %p50 = scmp.ne.s32.totalorder %s42, %s45
    %p51 = scmp.eq.s32.totalorder %s32, 0
    %p52 = por %p50, %p51
    %p53 = scmp.ne.s32.totalorder %s42, %s45
    %p54 = scmp.eq.s32.totalorder %s37, 1
    %p55 = por %p53, %p54
    %p56 = scmp.ne.s32.totalorder %s45, %s46
    %p57 = scmp.eq.s32.totalorder %s37, 0
    %p58 = por %p56, %p57
    %p59 = scmp.ne.s32.totalorder %s45, %s46
    %p60 = scmp.eq.s32.totalorder %s38, 1
    %p61 = por %p59, %p60
    %p63 = scmp.ne.s32.totalorder %s46, %s62
    %p64 = scmp.eq.s32.totalorder %s38, 0
    %p65 = por %p63, %p64
    %s66 = ssub.s32 %s32, %s39
    %p67 = scmp.eq.s32.totalorder %s66, 0
    %s69 = sadd.s32 %s68, 1
    %s70 = scalar_select %p67, %s68, %s69
    %p73 = pneg %p67
    %p74 = scmp.eq.s32.totalorder %s32, 1
    %p75 = por %p73, %p74
    %p76 = scmp.ne.s32.totalorder %s68, %s71
    %p77 = scmp.eq.s32.totalorder %s32, 0
    %p78 = por %p76, %p77
    %p79 = scmp.ne.s32.totalorder %s68, %s71
    %p80 = scmp.eq.s32.totalorder %s37, 1
    %p81 = por %p79, %p80
    %p82 = scmp.ne.s32.totalorder %s71, %s72
    %p83 = scmp.eq.s32.totalorder %s37, 0
    %p84 = por %p82, %p83
    %p85 = scmp.ne.s32.totalorder %s71, %s72
    %p86 = scmp.eq.s32.totalorder %s38, 1
    %p87 = por %p85, %p86
    %p89 = scmp.ne.s32.totalorder %s72, %s88
    %p90 = scmp.eq.s32.totalorder %s38, 0
    %p91 = por %p89, %p90
    %s92 = ssub.s32 %s32, %s39
    %p93 = scmp.eq.s32.totalorder %s92, 0
    %s95 = sadd.s32 %s94, 1
    %s96 = scalar_select %p93, %s94, %s95
    %p99 = pneg %p93
    %p100 = scmp.eq.s32.totalorder %s32, 1
    %p101 = por %p99, %p100
    %p102 = scmp.ne.s32.totalorder %s94, %s97
    %p103 = scmp.eq.s32.totalorder %s32, 0
    %p104 = por %p102, %p103
    %p105 = scmp.ne.s32.totalorder %s94, %s97
    %p106 = scmp.eq.s32.totalorder %s37, 1
    %p107 = por %p105, %p106
    %p108 = scmp.ne.s32.totalorder %s97, %s98
    %p109 = scmp.eq.s32.totalorder %s37, 0
    %p110 = por %p108, %p109
    %p111 = scmp.ne.s32.totalorder %s97, %s98
    %p112 = scmp.eq.s32.totalorder %s38, 1
    %p113 = por %p111, %p112
    %p115 = scmp.ne.s32.totalorder %s98, %s114
    %p116 = scmp.eq.s32.totalorder %s38, 0
    %p117 = por %p115, %p116
    %s118 = ssub.s32 %s32, %s39
    %p119 = scmp.eq.s32.totalorder %s118, 0
    %s121 = sadd.s32 %s120, 1
    %s122 = scalar_select %p119, %s120, %s121
    %p125 = pneg %p119
    %p126 = scmp.eq.s32.totalorder %s32, 1
    %p127 = por %p125, %p126
    %p128 = scmp.ne.s32.totalorder %s120, %s123
    %p129 = scmp.eq.s32.totalorder %s32, 0
    %p130 = por %p128, %p129
    %p131 = scmp.ne.s32.totalorder %s120, %s123
    %p132 = scmp.eq.s32.totalorder %s37, 1
    %p133 = por %p131, %p132
    %p134 = scmp.ne.s32.totalorder %s123, %s124
    %p135 = scmp.eq.s32.totalorder %s37, 0
    %p136 = por %p134, %p135
    %p137 = scmp.ne.s32.totalorder %s123, %s124
    %p138 = scmp.eq.s32.totalorder %s38, 1
    %p139 = por %p137, %p138
    %p141 = scmp.ne.s32.totalorder %s124, %s140
    %p142 = scmp.eq.s32.totalorder %s38, 0
    %p143 = por %p141, %p142
    %s145 = sadd.s32 %s144, 1
    %p148 = scmp.eq.s32.totalorder %s32, 1
    %p149 = scmp.ne.s32.totalorder %s144, %s146
    %p150 = scmp.eq.s32.totalorder %s32, 0
    %p151 = por %p149, %p150
    %p152 = scmp.ne.s32.totalorder %s144, %s146
    %p153 = scmp.eq.s32.totalorder %s37, 1
    %p154 = por %p152, %p153
    %p155 = scmp.ne.s32.totalorder %s146, %s147
    %p156 = scmp.eq.s32.totalorder %s37, 0
    %p157 = por %p155, %p156
    %p158 = scmp.ne.s32.totalorder %s146, %s147
    %p159 = scmp.eq.s32.totalorder %s38, 1
    %p160 = por %p158, %p159
    %p162 = scmp.ne.s32.totalorder %s147, %s161
    %p163 = scmp.eq.s32.totalorder %s38, 0
    %p164 = por %p162, %p163
    %s166 = sadd.s32 %s165, 1
    %p169 = scmp.eq.s32.totalorder %s32, 1
    %p170 = scmp.ne.s32.totalorder %s165, %s167
    %p171 = scmp.eq.s32.totalorder %s32, 0
    %p172 = por %p170, %p171
    %p173 = scmp.ne.s32.totalorder %s165, %s167
    %p174 = scmp.eq.s32.totalorder %s37, 1
    %p175 = por %p173, %p174
    %p176 = scmp.ne.s32.totalorder %s167, %s168
    %p177 = scmp.eq.s32.totalorder %s37, 0
    %p178 = por %p176, %p177
    %p179 = scmp.ne.s32.totalorder %s167, %s168
    %p180 = scmp.eq.s32.totalorder %s38, 1
    %p181 = por %p179, %p180
    %p183 = scmp.ne.s32.totalorder %s168, %s182
    %p184 = scmp.eq.s32.totalorder %s38, 0
    %p185 = por %p183, %p184
    %s187 = sadd.s32 %s186, 1
    %p190 = scmp.eq.s32.totalorder %s32, 1
    %p191 = scmp.ne.s32.totalorder %s186, %s188
    %p192 = scmp.eq.s32.totalorder %s32, 0
    %p193 = por %p191, %p192
    %p194 = scmp.ne.s32.totalorder %s186, %s188
    %p195 = scmp.eq.s32.totalorder %s37, 1
    %p196 = por %p194, %p195
    %p197 = scmp.ne.s32.totalorder %s188, %s189
    %p198 = scmp.eq.s32.totalorder %s37, 0
    %p199 = por %p197, %p198
    %p200 = scmp.ne.s32.totalorder %s188, %s189
    %p201 = scmp.eq.s32.totalorder %s38, 1
    %p202 = por %p200, %p201
    %p204 = scmp.ne.s32.totalorder %s189, %s203
    %p205 = scmp.eq.s32.totalorder %s38, 0
    %p206 = por %p204, %p205
    %s208 = sadd.s32 %s207, 1
    %p211 = scmp.eq.s32.totalorder %s32, 1
    %p212 = scmp.ne.s32.totalorder %s207, %s209
    %p213 = scmp.eq.s32.totalorder %s32, 0
    %p214 = por %p212, %p213
    %p215 = scmp.ne.s32.totalorder %s207, %s209
    %p216 = scmp.eq.s32.totalorder %s37, 1
    %p217 = por %p215, %p216
    %p218 = scmp.ne.s32.totalorder %s209, %s210
    %p219 = scmp.eq.s32.totalorder %s37, 0
    %p220 = por %p218, %p219
    %p221 = scmp.ne.s32.totalorder %s209, %s210
    %p222 = scmp.eq.s32.totalorder %s38, 1
    %p223 = por %p221, %p222
    %p225 = scmp.ne.s32.totalorder %s210, %s224
    %p226 = scmp.eq.s32.totalorder %s38, 0
    %p227 = por %p225, %p226
    %s229 = sadd.s32 %s228, 1
    %p232 = scmp.eq.s32.totalorder %s32, 1
    %p233 = scmp.ne.s32.totalorder %s228, %s230
    %p234 = scmp.eq.s32.totalorder %s32, 0
    %p235 = por %p233, %p234
    %p236 = scmp.ne.s32.totalorder %s228, %s230
    %p237 = scmp.eq.s32.totalorder %s37, 1
    %p238 = por %p236, %p237
    %p239 = scmp.ne.s32.totalorder %s230, %s231
    %p240 = scmp.eq.s32.totalorder %s37, 0
    %p241 = por %p239, %p240
    %p242 = scmp.ne.s32.totalorder %s230, %s231
    %p243 = scmp.eq.s32.totalorder %s38, 1
    %p244 = por %p242, %p243
    %p246 = scmp.ne.s32.totalorder %s231, %s245
    %p247 = scmp.eq.s32.totalorder %s38, 0
    %p248 = por %p246, %p247
    %s250 = sadd.s32 %s249, 1
    %p253 = scmp.eq.s32.totalorder %s32, 1
    %p254 = scmp.ne.s32.totalorder %s249, %s251
    %p255 = scmp.eq.s32.totalorder %s32, 0
    %p256 = por %p254, %p255
    %p257 = scmp.ne.s32.totalorder %s249, %s251
    %p258 = scmp.eq.s32.totalorder %s37, 1
    %p259 = por %p257, %p258
    %p260 = scmp.ne.s32.totalorder %s251, %s252
    %p261 = scmp.eq.s32.totalorder %s37, 0
    %p262 = por %p260, %p261
    %p263 = scmp.ne.s32.totalorder %s251, %s252
    %p264 = scmp.eq.s32.totalorder %s38, 1
    %p265 = por %p263, %p264
    %p267 = scmp.ne.s32.totalorder %s252, %s266
    %p268 = scmp.eq.s32.totalorder %s38, 0
    %p269 = por %p267, %p268
    %s271 = sadd.s32 %s270, 1
    %p274 = scmp.eq.s32.totalorder %s32, 1
    %p275 = scmp.ne.s32.totalorder %s270, %s272
    %p276 = scmp.eq.s32.totalorder %s32, 0
    %p277 = por %p275, %p276
    %p278 = scmp.ne.s32.totalorder %s270, %s272
    %p279 = scmp.eq.s32.totalorder %s37, 1
    %p280 = por %p278, %p279
    %p281 = scmp.ne.s32.totalorder %s272, %s273
    %p282 = scmp.eq.s32.totalorder %s37, 0
    %p283 = por %p281, %p282
    %p284 = scmp.ne.s32.totalorder %s272, %s273
    %p285 = scmp.eq.s32.totalorder %s38, 1
    %p286 = por %p284, %p285
    %p288 = scmp.ne.s32.totalorder %s273, %s287
    %p289 = scmp.eq.s32.totalorder %s38, 0
    %p290 = por %p288, %p289
    %s292 = sadd.s32 %s291, 1
    %p295 = scmp.eq.s32.totalorder %s32, 1
    %p296 = scmp.ne.s32.totalorder %s291, %s293
    %p297 = scmp.eq.s32.totalorder %s32, 0
    %p298 = por %p296, %p297
    %p299 = scmp.ne.s32.totalorder %s291, %s293
    %p300 = scmp.eq.s32.totalorder %s37, 1
    %p301 = por %p299, %p300
    %p302 = scmp.ne.s32.totalorder %s293, %s294
    %p303 = scmp.eq.s32.totalorder %s37, 0
    %p304 = por %p302, %p303
    %p305 = scmp.ne.s32.totalorder %s293, %s294
    %p306 = scmp.eq.s32.totalorder %s38, 1
    %p307 = por %p305, %p306
    %p309 = scmp.ne.s32.totalorder %s294, %s308
    %p310 = scmp.eq.s32.totalorder %s38, 0
    %p311 = por %p309, %p310
    %s313 = sadd.s32 %s312, 1
    %p316 = scmp.eq.s32.totalorder %s32, 1
    %p317 = scmp.ne.s32.totalorder %s312, %s314
    %p318 = scmp.eq.s32.totalorder %s32, 0
    %p319 = por %p317, %p318
    %p320 = scmp.ne.s32.totalorder %s312, %s314
    %p321 = scmp.eq.s32.totalorder %s37, 1
    %p322 = por %p320, %p321
    %p323 = scmp.ne.s32.totalorder %s314, %s315
    %p324 = scmp.eq.s32.totalorder %s37, 0
    %p325 = por %p323, %p324
    %p326 = scmp.ne.s32.totalorder %s314, %s315
    %p327 = scmp.eq.s32.totalorder %s38, 1
    %p328 = por %p326, %p327
    %p330 = scmp.ne.s32.totalorder %s315, %s329
    %p331 = scmp.eq.s32.totalorder %s38, 0
    %p332 = por %p330, %p331
    %s334 = sadd.s32 %s333, 1
    %p337 = scmp.eq.s32.totalorder %s32, 1
    %p338 = scmp.ne.s32.totalorder %s333, %s335
    %p339 = scmp.eq.s32.totalorder %s32, 0
    %p340 = por %p338, %p339
    %p341 = scmp.ne.s32.totalorder %s333, %s335
    %p342 = scmp.eq.s32.totalorder %s37, 1
    %p343 = por %p341, %p342
    %p344 = scmp.ne.s32.totalorder %s335, %s336
    %p345 = scmp.eq.s32.totalorder %s37, 0
    %p346 = por %p344, %p345
    %p347 = scmp.ne.s32.totalorder %s335, %s336
    %p348 = scmp.eq.s32.totalorder %s38, 1
    %p349 = por %p347, %p348
    %p351 = scmp.ne.s32.totalorder %s336, %s350
    %p352 = scmp.eq.s32.totalorder %s38, 0
    %p353 = por %p351, %p352
    %s355 = sadd.s32 %s354, 1
    %p358 = scmp.eq.s32.totalorder %s32, 1
    %p359 = scmp.ne.s32.totalorder %s354, %s356
    %p360 = scmp.eq.s32.totalorder %s32, 0
    %p361 = por %p359, %p360
    %p362 = scmp.ne.s32.totalorder %s354, %s356
    %p363 = scmp.eq.s32.totalorder %s37, 1
    %p364 = por %p362, %p363
    %p365 = scmp.ne.s32.totalorder %s356, %s357
    %p366 = scmp.eq.s32.totalorder %s37, 0
    %p367 = por %p365, %p366
    %p368 = scmp.ne.s32.totalorder %s356, %s357
    %p369 = scmp.eq.s32.totalorder %s38, 1
    %p370 = por %p368, %p369
    %p372 = scmp.ne.s32.totalorder %s357, %s371
    %p373 = scmp.eq.s32.totalorder %s38, 0
    %p374 = por %p372, %p373
    %s376 = sadd.s32 %s375, 1
    %p379 = scmp.eq.s32.totalorder %s32, 1
    %p380 = scmp.ne.s32.totalorder %s375, %s377
    %p381 = scmp.eq.s32.totalorder %s32, 0
    %p382 = por %p380, %p381
    %p383 = scmp.ne.s32.totalorder %s375, %s377
    %p384 = scmp.eq.s32.totalorder %s37, 1
    %p385 = por %p383, %p384
    %p386 = scmp.ne.s32.totalorder %s377, %s378
    %p387 = scmp.eq.s32.totalorder %s37, 0
    %p388 = por %p386, %p387
    %p389 = scmp.ne.s32.totalorder %s377, %s378
    %p390 = scmp.eq.s32.totalorder %s38, 1
    %p391 = por %p389, %p390
    %p393 = scmp.ne.s32.totalorder %s378, %s392
    %p394 = scmp.eq.s32.totalorder %s38, 0
    %p395 = por %p393, %p394
    %s397 = sadd.s32 %s396, 1
    %p400 = scmp.eq.s32.totalorder %s32, 1
    %p401 = scmp.ne.s32.totalorder %s396, %s398
    %p402 = scmp.eq.s32.totalorder %s32, 0
    %p403 = por %p401, %p402
    %p404 = scmp.ne.s32.totalorder %s396, %s398
    %p405 = scmp.eq.s32.totalorder %s37, 1
    %p406 = por %p404, %p405
    %p407 = scmp.ne.s32.totalorder %s398, %s399
    %p408 = scmp.eq.s32.totalorder %s37, 0
    %p409 = por %p407, %p408
    %p410 = scmp.ne.s32.totalorder %s398, %s399
    %p411 = scmp.eq.s32.totalorder %s38, 1
    %p412 = por %p410, %p411
    %p414 = scmp.ne.s32.totalorder %s399, %s413
    %p415 = scmp.eq.s32.totalorder %s38, 0
    %p416 = por %p414, %p415
    %s418 = sadd.s32 %s417, 1
    %p421 = scmp.eq.s32.totalorder %s32, 1
    %p422 = scmp.ne.s32.totalorder %s417, %s419
    %p423 = scmp.eq.s32.totalorder %s32, 0
    %p424 = por %p422, %p423
    %p425 = scmp.ne.s32.totalorder %s417, %s419
    %p426 = scmp.eq.s32.totalorder %s37, 1
    %p427 = por %p425, %p426
    %p428 = scmp.ne.s32.totalorder %s419, %s420
    %p429 = scmp.eq.s32.totalorder %s37, 0
    %p430 = por %p428, %p429
    %p431 = scmp.ne.s32.totalorder %s419, %s420
    %p432 = scmp.eq.s32.totalorder %s38, 1
    %p433 = por %p431, %p432
    %p435 = scmp.ne.s32.totalorder %s420, %s434
    %p436 = scmp.eq.s32.totalorder %s38, 0
    %p437 = por %p435, %p436
    %s439 = sadd.s32 %s438, 1
    %p442 = scmp.eq.s32.totalorder %s32, 1
    %p443 = scmp.ne.s32.totalorder %s438, %s440
    %p444 = scmp.eq.s32.totalorder %s32, 0
    %p445 = por %p443, %p444
    %p446 = scmp.ne.s32.totalorder %s438, %s440
    %p447 = scmp.eq.s32.totalorder %s37, 1
    %p448 = por %p446, %p447
    %p449 = scmp.ne.s32.totalorder %s440, %s441
    %p450 = scmp.eq.s32.totalorder %s37, 0
    %p451 = por %p449, %p450
    %p452 = scmp.ne.s32.totalorder %s440, %s441
    %p453 = scmp.eq.s32.totalorder %s38, 1
    %p454 = por %p452, %p453
    %p456 = scmp.ne.s32.totalorder %s441, %s455
    %p457 = scmp.eq.s32.totalorder %s38, 0
    %p458 = por %p456, %p457
    %s460 = sadd.s32 %s459, 1
    %p463 = scmp.eq.s32.totalorder %s32, 1
    %p464 = scmp.ne.s32.totalorder %s459, %s461
    %p465 = scmp.eq.s32.totalorder %s32, 0
    %p466 = por %p464, %p465
    %p467 = scmp.ne.s32.totalorder %s459, %s461
    %p468 = scmp.eq.s32.totalorder %s37, 1
    %p469 = por %p467, %p468
    %p470 = scmp.ne.s32.totalorder %s461, %s462
    %p471 = scmp.eq.s32.totalorder %s37, 0
    %p472 = por %p470, %p471
    %p473 = scmp.ne.s32.totalorder %s461, %s462
    %p474 = scmp.eq.s32.totalorder %s38, 1
    %p475 = por %p473, %p474
    %p477 = scmp.ne.s32.totalorder %s462, %s476
    %p478 = scmp.eq.s32.totalorder %s38, 0
    %p479 = por %p477, %p478
    %s481 = sadd.s32 %s480, 1
    %p484 = scmp.eq.s32.totalorder %s32, 1
    %p485 = scmp.ne.s32.totalorder %s480, %s482
    %p486 = scmp.eq.s32.totalorder %s32, 0
    %p487 = por %p485, %p486
    %p488 = scmp.ne.s32.totalorder %s480, %s482
    %p489 = scmp.eq.s32.totalorder %s37, 1
    %p490 = por %p488, %p489
    %p491 = scmp.ne.s32.totalorder %s482, %s483
    %p492 = scmp.eq.s32.totalorder %s37, 0
    %p493 = por %p491, %p492
    %p494 = scmp.ne.s32.totalorder %s482, %s483
    %p495 = scmp.eq.s32.totalorder %s38, 1
    %p496 = por %p494, %p495
    %p498 = scmp.ne.s32.totalorder %s483, %s497
    %p499 = scmp.eq.s32.totalorder %s38, 0
    %p500 = por %p498, %p499
    %s502 = sadd.s32 %s501, 1
    %p505 = scmp.eq.s32.totalorder %s32, 1
    %p506 = scmp.ne.s32.totalorder %s501, %s503
    %p507 = scmp.eq.s32.totalorder %s32, 0
    %p508 = por %p506, %p507
    %p509 = scmp.ne.s32.totalorder %s501, %s503
    %p510 = scmp.eq.s32.totalorder %s37, 1
    %p511 = por %p509, %p510
    %p512 = scmp.ne.s32.totalorder %s503, %s504
    %p513 = scmp.eq.s32.totalorder %s37, 0
    %p514 = por %p512, %p513
    %p515 = scmp.ne.s32.totalorder %s503, %s504
    %p516 = scmp.eq.s32.totalorder %s38, 1
    %p517 = por %p515, %p516
    %p519 = scmp.ne.s32.totalorder %s504, %s518
    %p520 = scmp.eq.s32.totalorder %s38, 0
    %p521 = por %p519, %p520
    %s523 = sadd.s32 %s522, 1
    %p526 = scmp.eq.s32.totalorder %s32, 1
    %p527 = scmp.ne.s32.totalorder %s522, %s524
    %p528 = scmp.eq.s32.totalorder %s32, 0
    %p529 = por %p527, %p528
    %p530 = scmp.ne.s32.totalorder %s522, %s524
    %p531 = scmp.eq.s32.totalorder %s37, 1
    %p532 = por %p530, %p531
    %p533 = scmp.ne.s32.totalorder %s524, %s525
    %p534 = scmp.eq.s32.totalorder %s37, 0
    %p535 = por %p533, %p534
    %p536 = scmp.ne.s32.totalorder %s524, %s525
    %p537 = scmp.eq.s32.totalorder %s38, 1
    %p538 = por %p536, %p537
    %p540 = scmp.ne.s32.totalorder %s525, %s539
    %p541 = scmp.eq.s32.totalorder %s38, 0
    %p542 = por %p540, %p541
    %s544 = sadd.s32 %s543, 1
    %p547 = scmp.eq.s32.totalorder %s32, 1
    %p548 = scmp.ne.s32.totalorder %s543, %s545
    %p549 = scmp.eq.s32.totalorder %s32, 0
    %p550 = por %p548, %p549
    %p551 = scmp.ne.s32.totalorder %s543, %s545
    %p552 = scmp.eq.s32.totalorder %s37, 1
    %p553 = por %p551, %p552
    %p554 = scmp.ne.s32.totalorder %s545, %s546
    %p555 = scmp.eq.s32.totalorder %s37, 0
    %p556 = por %p554, %p555
    %p557 = scmp.ne.s32.totalorder %s545, %s546
    %p558 = scmp.eq.s32.totalorder %s38, 1
    %p559 = por %p557, %p558
    %p561 = scmp.ne.s32.totalorder %s546, %s560
    %p562 = scmp.eq.s32.totalorder %s38, 0
    %p563 = por %p561, %p562
    %s564 = ssub.s32 %s32, %s39
    %p565 = scmp.eq.s32.totalorder %s564, 0
    %s567 = sadd.s32 %s566, 1
    %s568 = scalar_select %p565, %s566, %s567
    %p571 = pneg %p565
    %p572 = scmp.eq.s32.totalorder %s32, 1
    %p573 = por %p571, %p572
    %p574 = scmp.ne.s32.totalorder %s566, %s569
    %p575 = scmp.eq.s32.totalorder %s32, 0
    %p576 = por %p574, %p575
    %p577 = scmp.ne.s32.totalorder %s566, %s569
    %p578 = scmp.eq.s32.totalorder %s37, 1
    %p579 = por %p577, %p578
    %p580 = scmp.ne.s32.totalorder %s569, %s570
    %p581 = scmp.eq.s32.totalorder %s37, 0
    %p582 = por %p580, %p581
    %p583 = scmp.ne.s32.totalorder %s569, %s570
    %p584 = scmp.eq.s32.totalorder %s38, 1
    %p585 = por %p583, %p584
    %p587 = scmp.ne.s32.totalorder %s570, %s586
    %p588 = scmp.eq.s32.totalorder %s38, 0
    %p589 = por %p587, %p588
    %s590 = ssub.s32 %s32, %s39
    %p591 = scmp.eq.s32.totalorder %s590, 0
    %s593 = sadd.s32 %s592, 1
    %s594 = scalar_select %p591, %s592, %s593
    %p597 = pneg %p591
    %p598 = scmp.eq.s32.totalorder %s32, 1
    %p599 = por %p597, %p598
    %p600 = scmp.ne.s32.totalorder %s592, %s595
    %p601 = scmp.eq.s32.totalorder %s32, 0
    %p602 = por %p600, %p601
    %p603 = scmp.ne.s32.totalorder %s592, %s595
    %p604 = scmp.eq.s32.totalorder %s37, 1
    %p605 = por %p603, %p604
    %p606 = scmp.ne.s32.totalorder %s595, %s596
    %p607 = scmp.eq.s32.totalorder %s37, 0
    %p608 = por %p606, %p607
    %p609 = scmp.ne.s32.totalorder %s595, %s596
    %p610 = scmp.eq.s32.totalorder %s38, 1
    %p611 = por %p609, %p610
    %p613 = scmp.ne.s32.totalorder %s596, %s612
    %p614 = scmp.eq.s32.totalorder %s38, 0
    %p615 = por %p613, %p614
    %p616 = scmp.le.s32.totalorder 1, %s32
    %p617 = scmp.lt.s32.totalorder %s32, 3
    %p618 = pnand %p616, %p617
    %p619 = pneg %p618
    // Predicated region
    $region9: #{unet_decoder_forward.1} parent=5 // pred_check
      _
    $region10: #{unet_decoder_forward.1} parent=5 // pred_check_branch
      %621 = sbr.rel (%p618) target = $region12
    $region11: #{unet_decoder_forward.1} parent=5 // pred_region
      %s622 = ssub.s32 %s32, 1
      // Predicated region
      $region13: #{unet_decoder_forward.1} parent=11 // pred_check
        %p623 = pneg %p157
      $region14: #{unet_decoder_forward.1} parent=11 // pred_check_branch
        %625 = sbr.rel (%p623) target = $region16
      $region15: #{unet_decoder_forward.1} parent=11 // pred_region
        _
      $region16: #{unet_decoder_forward.1} parent=11 // pred_fallthru
        _
      // Predicated region
      $region17: #{unet_decoder_forward.1} parent=11 // pred_check
        %p626 = pneg %p178
      $region18: #{unet_decoder_forward.1} parent=11 // pred_check_branch
        %628 = sbr.rel (%p626) target = $region20
      $region19: #{unet_decoder_forward.1} parent=11 // pred_region
        _
      $region20: #{unet_decoder_forward.1} parent=11 // pred_fallthru
        _
      // Predicated region
      $region21: #{unet_decoder_forward.1} parent=11 // pred_check
        %p629 = pneg %p199
      $region22: #{unet_decoder_forward.1} parent=11 // pred_check_branch
        %631 = sbr.rel (%p629) target = $region24
      $region23: #{unet_decoder_forward.1} parent=11 // pred_region
        _
      $region24: #{unet_decoder_forward.1} parent=11 // pred_fallthru
        _
      // Predicated region
      $region25: #{unet_decoder_forward.1} parent=11 // pred_check
        %p632 = pneg %p220
      $region26: #{unet_decoder_forward.1} parent=11 // pred_check_branch
        %634 = sbr.rel (%p632) target = $region28
      $region27: #{unet_decoder_forward.1} parent=11 // pred_region
        _
      $region28: #{unet_decoder_forward.1} parent=11 // pred_fallthru
        _
      // Predicated region
      $region29: #{unet_decoder_forward.1} parent=11 // pred_check
        %p635 = pneg %p241
      $region30: #{unet_decoder_forward.1} parent=11 // pred_check_branch
        %637 = sbr.rel (%p635) target = $region32
      $region31: #{unet_decoder_forward.1} parent=11 // pred_region
        _
      $region32: #{unet_decoder_forward.1} parent=11 // pred_fallthru
        _
      // Predicated region
      $region33: #{unet_decoder_forward.1} parent=11 // pred_check
        %p638 = pneg %p262
      $region34: #{unet_decoder_forward.1} parent=11 // pred_check_branch
        %640 = sbr.rel (%p638) target = $region36
      $region35: #{unet_decoder_forward.1} parent=11 // pred_region
        _
      $region36: #{unet_decoder_forward.1} parent=11 // pred_fallthru
        _
      // Predicated region
      $region37: #{unet_decoder_forward.1} parent=11 // pred_check
        %p641 = pneg %p283
      $region38: #{unet_decoder_forward.1} parent=11 // pred_check_branch
        %643 = sbr.rel (%p641) target = $region40
      $region39: #{unet_decoder_forward.1} parent=11 // pred_region
        _
      $region40: #{unet_decoder_forward.1} parent=11 // pred_fallthru
        _
      // Predicated region
      $region41: #{unet_decoder_forward.1} parent=11 // pred_check
        %p644 = pneg %p304
      $region42: #{unet_decoder_forward.1} parent=11 // pred_check_branch
        %646 = sbr.rel (%p644) target = $region44
      $region43: #{unet_decoder_forward.1} parent=11 // pred_region
        _
      $region44: #{unet_decoder_forward.1} parent=11 // pred_fallthru
        _
      // Predicated region
      $region45: #{unet_decoder_forward.1} parent=11 // pred_check
        %p647 = pneg %p325
      $region46: #{unet_decoder_forward.1} parent=11 // pred_check_branch
        %649 = sbr.rel (%p647) target = $region48
      $region47: #{unet_decoder_forward.1} parent=11 // pred_region
        _
      $region48: #{unet_decoder_forward.1} parent=11 // pred_fallthru
        _
      // Predicated region
      $region49: #{unet_decoder_forward.1} parent=11 // pred_check
        %p650 = pneg %p346
      $region50: #{unet_decoder_forward.1} parent=11 // pred_check_branch
        %652 = sbr.rel (%p650) target = $region52
      $region51: #{unet_decoder_forward.1} parent=11 // pred_region
        _
      $region52: #{unet_decoder_forward.1} parent=11 // pred_fallthru
        _
      // Predicated region
      $region53: #{unet_decoder_forward.1} parent=11 // pred_check
        %p653 = pneg %p367
      $region54: #{unet_decoder_forward.1} parent=11 // pred_check_branch
        %655 = sbr.rel (%p653) target = $region56
      $region55: #{unet_decoder_forward.1} parent=11 // pred_region
        _
      $region56: #{unet_decoder_forward.1} parent=11 // pred_fallthru
        _
      // Predicated region
      $region57: #{unet_decoder_forward.1} parent=11 // pred_check
        %p656 = pneg %p388
      $region58: #{unet_decoder_forward.1} parent=11 // pred_check_branch
        %658 = sbr.rel (%p656) target = $region60
      $region59: #{unet_decoder_forward.1} parent=11 // pred_region
        _
      $region60: #{unet_decoder_forward.1} parent=11 // pred_fallthru
        _
      // Predicated region
      $region61: #{unet_decoder_forward.1} parent=11 // pred_check
        %p659 = pneg %p409
      $region62: #{unet_decoder_forward.1} parent=11 // pred_check_branch
        %661 = sbr.rel (%p659) target = $region64
      $region63: #{unet_decoder_forward.1} parent=11 // pred_region
        _
      $region64: #{unet_decoder_forward.1} parent=11 // pred_fallthru
        _
      // Predicated region
      $region65: #{unet_decoder_forward.1} parent=11 // pred_check
        %p662 = pneg %p430
      $region66: #{unet_decoder_forward.1} parent=11 // pred_check_branch
        %664 = sbr.rel (%p662) target = $region68
      $region67: #{unet_decoder_forward.1} parent=11 // pred_region
        _
      $region68: #{unet_decoder_forward.1} parent=11 // pred_fallthru
        _
      // Predicated region
      $region69: #{unet_decoder_forward.1} parent=11 // pred_check
        %p665 = pneg %p451
      $region70: #{unet_decoder_forward.1} parent=11 // pred_check_branch
        %667 = sbr.rel (%p665) target = $region72
      $region71: #{unet_decoder_forward.1} parent=11 // pred_region
        _
      $region72: #{unet_decoder_forward.1} parent=11 // pred_fallthru
        _
      // Predicated region
      $region73: #{unet_decoder_forward.1} parent=11 // pred_check
        %p668 = pneg %p472
      $region74: #{unet_decoder_forward.1} parent=11 // pred_check_branch
        %670 = sbr.rel (%p668) target = $region76
      $region75: #{unet_decoder_forward.1} parent=11 // pred_region
        _
      $region76: #{unet_decoder_forward.1} parent=11 // pred_fallthru
        _
      // Predicated region
      $region77: #{unet_decoder_forward.1} parent=11 // pred_check
        %p671 = pneg %p493
      $region78: #{unet_decoder_forward.1} parent=11 // pred_check_branch
        %673 = sbr.rel (%p671) target = $region80
      $region79: #{unet_decoder_forward.1} parent=11 // pred_region
        _
      $region80: #{unet_decoder_forward.1} parent=11 // pred_fallthru
        _
      // Predicated region
      $region81: #{unet_decoder_forward.1} parent=11 // pred_check
        %p674 = pneg %p514
      $region82: #{unet_decoder_forward.1} parent=11 // pred_check_branch
        %676 = sbr.rel (%p674) target = $region84
      $region83: #{unet_decoder_forward.1} parent=11 // pred_region
        _
      $region84: #{unet_decoder_forward.1} parent=11 // pred_fallthru
        _
      // Predicated region
      $region85: #{unet_decoder_forward.1} parent=11 // pred_check
        %p677 = pneg %p535
      $region86: #{unet_decoder_forward.1} parent=11 // pred_check_branch
        %679 = sbr.rel (%p677) target = $region88
      $region87: #{unet_decoder_forward.1} parent=11 // pred_region
        _
      $region88: #{unet_decoder_forward.1} parent=11 // pred_fallthru
        _
      // Predicated region
      $region89: #{unet_decoder_forward.1} parent=11 // pred_check
        %p680 = pneg %p556
      $region90: #{unet_decoder_forward.1} parent=11 // pred_check_branch
        %682 = sbr.rel (%p680) target = $region92
      $region91: #{unet_decoder_forward.1} parent=11 // pred_region
        _
      $region92: #{unet_decoder_forward.1} parent=11 // pred_fallthru
        _
    $region12: #{unet_decoder_forward.1} parent=5 // pred_fallthru
      _
    %p683 = scmp.lt.s32.totalorder %s32, 2
    // Predicated region
    $region93: #{unet_decoder_forward.1} parent=5 // pred_check
      %p684 = pneg %p683
    $region94: #{unet_decoder_forward.1} parent=5 // pred_check_branch
      %686 = sbr.rel (%p684) target = $region96
    $region95: #{unet_decoder_forward.1} parent=5 // pred_region
      // Predicated region
      $region97: #{unet_decoder_forward.1} parent=95 // pred_check
        %p687 = pneg %p52
      $region98: #{unet_decoder_forward.1} parent=95 // pred_check_branch
        %689 = sbr.rel (%p687) target = $region100
      $region99: #{unet_decoder_forward.1} parent=95 // pred_region
        %p690 = scmp.lt.s32.totalorder %s32, 1
        %s691 = scalar_select %p690, %s32, 1
        %s692 = smul.addr %s691, 2
        %s693 = scalar_lea.vmem %s0, %s692
      $region100: #{unet_decoder_forward.1} parent=95 // pred_fallthru
        _
      // Predicated region
      $region101: #{unet_decoder_forward.1} parent=95 // pred_check
        %p694 = pneg %p78
      $region102: #{unet_decoder_forward.1} parent=95 // pred_check_branch
        %696 = sbr.rel (%p694) target = $region104
      $region103: #{unet_decoder_forward.1} parent=95 // pred_region
        %p697 = scmp.lt.s32.totalorder %s32, 1
        %s698 = scalar_select %p697, %s32, 1
        %s699 = smul.addr %s698, 4
        %s700 = smul.addr %s699, 2
        %s701 = scalar_lea.vmem %s1, %s700
      $region104: #{unet_decoder_forward.1} parent=95 // pred_fallthru
        _
      // Predicated region
      $region105: #{unet_decoder_forward.1} parent=95 // pred_check
        %p702 = pneg %p104
      $region106: #{unet_decoder_forward.1} parent=95 // pred_check_branch
        %704 = sbr.rel (%p702) target = $region108
      $region107: #{unet_decoder_forward.1} parent=95 // pred_region
        %p705 = scmp.lt.s32.totalorder %s32, 1
        %s706 = scalar_select %p705, %s32, 1
        %s707 = smul.addr %s706, 8
        %s708 = smul.addr %s707, 4
        %s709 = scalar_lea.vmem %s2, %s708
      $region108: #{unet_decoder_forward.1} parent=95 // pred_fallthru
        _
      // Predicated region
      $region109: #{unet_decoder_forward.1} parent=95 // pred_check
        %p710 = pneg %p130
      $region110: #{unet_decoder_forward.1} parent=95 // pred_check_branch
        %712 = sbr.rel (%p710) target = $region112
      $region111: #{unet_decoder_forward.1} parent=95 // pred_region
        %p713 = scmp.lt.s32.totalorder %s32, 1
        %s714 = scalar_select %p713, %s32, 1
        %s715 = smul.addr %s714, 32
        %s716 = smul.addr %s715, 4
        %s717 = scalar_lea.vmem %s3, %s716
      $region112: #{unet_decoder_forward.1} parent=95 // pred_fallthru
        _
    $region96: #{unet_decoder_forward.1} parent=5 // pred_fallthru
      _
    %p718 = scmp.le.s32.totalorder 1, %s32
    %p719 = scmp.lt.s32.totalorder %s32, 3
    %p720 = pnand %p718, %p719
    %p721 = pneg %p720
    // Predicated region
    $region113: #{unet_decoder_forward.1} parent=5 // pred_check
      _
    $region114: #{unet_decoder_forward.1} parent=5 // pred_check_branch
      %723 = sbr.rel (%p720) target = $region116
    $region115: #{unet_decoder_forward.1} parent=5 // pred_region
      %s724 = ssub.s32 %s32, 1
      %p725 = scmp.lt.s32.totalorder %s37, 1
      %s726 = scalar_select %p725, %s37, 1
      %s727 = smul.addr %s726, 2
      %s728 = scalar_lea.vmem %s0, %s727
      %p729 = pneg %p58
      %p730 = pneg %p55
      %p731 = scmp.lt.s32.totalorder %s37, 1
      %s732 = scalar_select %p731, %s37, 1
      %s733 = smul.addr %s732, 4
      %s734 = smul.addr %s733, 2
      %s735 = scalar_lea.vmem %s1, %s734
      %p736 = pneg %p84
      %p737 = pneg %p81
      %p738 = scmp.lt.s32.totalorder %s37, 1
      %s739 = scalar_select %p738, %s37, 1
      %s740 = smul.addr %s739, 8
      %s741 = smul.addr %s740, 4
      %s742 = scalar_lea.vmem %s2, %s741
      %p743 = pneg %p110
      %p744 = pneg %p107
      %p745 = scmp.lt.s32.totalorder %s37, 1
      %s746 = scalar_select %p745, %s37, 1
      %s747 = smul.addr %s746, 32
      %s748 = smul.addr %s747, 4
      %s749 = scalar_lea.vmem %s3, %s748
      %p750 = pneg %p136
      %p751 = pneg %p133
      %p752 = pneg %p157
      %p753 = pneg %p154
      %p754 = pneg %p178
      %p755 = pneg %p175
      %p756 = pneg %p199
      %p757 = pneg %p196
      %p758 = pneg %p220
      %p759 = pneg %p217
      %p760 = pneg %p241
      %p761 = pneg %p238
      %p762 = pneg %p262
      %p763 = pneg %p259
      %p764 = pneg %p283
      %p765 = pneg %p280
      %p766 = pneg %p304
      %p767 = pneg %p301
      %p768 = pneg %p325
      %p769 = pneg %p322
      %p770 = pneg %p346
      %p771 = pneg %p343
      %p772 = pneg %p367
      %p773 = pneg %p364
      %p774 = pneg %p388
      %p775 = pneg %p385
      %p776 = pneg %p409
      %p777 = pneg %p406
      %p778 = pneg %p430
      %p779 = pneg %p427
      %p780 = pneg %p451
      %p781 = pneg %p448
      %p782 = pneg %p472
      %p783 = pneg %p469
      %p784 = pneg %p493
      %p785 = pneg %p490
      %p786 = pneg %p514
      %p787 = pneg %p511
      %p788 = pneg %p535
      %p789 = pneg %p532
      %p790 = pneg %p556
      %p791 = pneg %p553
      %p792 = pneg %p582
      %p793 = pneg %p579
      %p794 = scmp.lt.s32.totalorder %s37, 1
      %s795 = scalar_select %p794, %s37, 1
      %s796 = smul.addr %s795, 32
      %s797 = smul.addr %s796, 8
      %s798 = scalar_lea.vmem %s24, %s797
      %p799 = pneg %p608
      %p800 = pneg %p605
      %p801 = scmp.lt.s32.totalorder %s37, 1
      %s802 = scalar_select %p801, %s37, 1
      %s803 = smul.addr %s802, 32
      %s804 = smul.addr %s803, 8
      %s805 = scalar_lea.vmem %s25, %s804
      %p806 = scmp.lt.s32.totalorder %s37, 1
      %s807 = scalar_select %p806, %s37, 1
      %s808 = smul.addr %s807, 2
      %s809 = scalar_lea.vmem %s0, %s808
      %p810 = scmp.lt.s32.totalorder %s37, 1
      %s811 = scalar_select %p810, %s37, 1
      %s812 = smul.addr %s811, 4
      %s813 = smul.addr %s812, 2
      %s814 = scalar_lea.vmem %s1, %s813
      %p815 = scmp.lt.s32.totalorder %s37, 1
      %s816 = scalar_select %p815, %s37, 1
      %s817 = smul.addr %s816, 8
      %s818 = smul.addr %s817, 4
      %s819 = scalar_lea.vmem %s2, %s818
      %p820 = scmp.lt.s32.totalorder %s37, 1
      %s821 = scalar_select %p820, %s37, 1
      %s822 = smul.addr %s821, 32
      %s823 = smul.addr %s822, 4
      %s824 = scalar_lea.vmem %s3, %s823
      %p825 = scmp.lt.s32.totalorder %s37, 1
      %s826 = scalar_select %p825, %s37, 1
      %s827 = smul.addr %s826, 32
      %s828 = smul.addr %s827, 8
      %s829 = scalar_lea.vmem %s24, %s828
      %p830 = scmp.lt.s32.totalorder %s37, 1
      %s831 = scalar_select %p830, %s37, 1
      %s832 = smul.addr %s831, 32
      %s833 = smul.addr %s832, 8
      %s834 = scalar_lea.vmem %s25, %s833
      %v836 = vld [vmem:[%s809] sm:$0x1]
      %v837 = vld [vmem:[%s809 + $0x1] sm:$0x1]
      %v838 = vld [vmem:[%s814] sm:$0x3]
      %v839 = vld [vmem:[%s814 + $0x2] sm:$0x3]
      %v840 = vld [vmem:[%s814 + $0x4] sm:$0x3]
      %v841 = vld [vmem:[%s814 + $0x6] sm:$0x3]
      %v842 = vld [vmem:[%s4] sm:$0xf]
      %v843 = vld [vmem:[%s4 + $0x4] sm:$0xf]
      %v844 = vld [vmem:[%s7] sm:$0xf]
      %v845 = vld [vmem:[%s7 + $0x4] sm:$0xf]
      %v846 = vld [vmem:[%s7 + $0x8] sm:$0xf]
      %v847 = vld [vmem:[%s7 + $0xc] sm:$0xf]
      %v848 = vld [vmem:[%s7 + $0x10] sm:$0xf]
      %v849 = vld [vmem:[%s7 + $0x14] sm:$0xf]
      %v850 = vld [vmem:[%s7 + $0x18] sm:$0xf]
      %v851 = vld [vmem:[%s7 + $0x1c] sm:$0xf]
      %v852 = vld [vmem:[%s7 + $0x20] sm:$0xf]
      %v853 = vld [vmem:[%s7 + $0x24] sm:$0xf]
      %v854 = vld [vmem:[%s7 + $0x28] sm:$0xf]
      %v855 = vld [vmem:[%s7 + $0x2c] sm:$0xf]
      %v856 = vld [vmem:[%s7 + $0x30] sm:$0xf]
      %v857 = vld [vmem:[%s7 + $0x34] sm:$0xf]
      %v858 = vld [vmem:[%s7 + $0x38] sm:$0xf]
      %v859 = vld [vmem:[%s7 + $0x3c] sm:$0xf]
      %v860 = vld [vmem:[%s7 + $0x40] sm:$0xf]
      %v861 = vld [vmem:[%s7 + $0x44] sm:$0xf]
      %v862 = vld [vmem:[%s7 + $0x48] sm:$0xf]
      %v863 = vld [vmem:[%s7 + $0x4c] sm:$0xf]
      %v864 = vld [vmem:[%s7 + $0x50] sm:$0xf]
      %v865 = vld [vmem:[%s7 + $0x54] sm:$0xf]
      %v866 = vld [vmem:[%s7 + $0x58] sm:$0xf]
      %v867 = vld [vmem:[%s7 + $0x5c] sm:$0xf]
      %v868 = vld [vmem:[%s7 + $0x60] sm:$0xf]
      %v869 = vld [vmem:[%s7 + $0x64] sm:$0xf]
      %v870 = vld [vmem:[%s7 + $0x68] sm:$0xf]
      %v871 = vld [vmem:[%s7 + $0x6c] sm:$0xf]
      %v872 = vld [vmem:[%s7 + $0x70] sm:$0xf]
      %v873 = vld [vmem:[%s7 + $0x74] sm:$0xf]
      %v874 = vld [vmem:[%s7 + $0x78] sm:$0xf]
      %v875 = vld [vmem:[%s7 + $0x7c] sm:$0xf]
      %v876 = vld [vmem:[%s7 + $0x80] sm:$0xf]
      %v877 = vld [vmem:[%s7 + $0x84] sm:$0xf]
      %v878 = vld [vmem:[%s7 + $0x88] sm:$0xf]
      %v879 = vld [vmem:[%s7 + $0x8c] sm:$0xf]
      %v880 = vld [vmem:[%s8] sm:$0xf]
      %v881 = vld [vmem:[%s8 + $0x4] sm:$0xf]
      %v882 = vld [vmem:[%s8 + $0x8] sm:$0xf]
      %v883 = vld [vmem:[%s8 + $0xc] sm:$0xf]
      %v884 = vld [vmem:[%s8 + $0x10] sm:$0xf]
      %v885 = vld [vmem:[%s8 + $0x14] sm:$0xf]
      %v886 = vld [vmem:[%s8 + $0x18] sm:$0xf]
      %v887 = vld [vmem:[%s8 + $0x1c] sm:$0xf]
      %v888 = vld [vmem:[%s8 + $0x20] sm:$0xf]
      %v889 = vld [vmem:[%s8 + $0x24] sm:$0xf]
      %v890 = vld [vmem:[%s8 + $0x28] sm:$0xf]
      %v891 = vld [vmem:[%s8 + $0x2c] sm:$0xf]
      %v892 = vld [vmem:[%s8 + $0x30] sm:$0xf]
      %v893 = vld [vmem:[%s8 + $0x34] sm:$0xf]
      %v894 = vld [vmem:[%s8 + $0x38] sm:$0xf]
      %v895 = vld [vmem:[%s8 + $0x3c] sm:$0xf]
      %v896 = vld [vmem:[%s8 + $0x40] sm:$0xf]
      %v897 = vld [vmem:[%s8 + $0x44] sm:$0xf]
      %v898 = vld [vmem:[%s8 + $0x48] sm:$0xf]
      %v899 = vld [vmem:[%s8 + $0x4c] sm:$0xf]
      %v900 = vld [vmem:[%s8 + $0x50] sm:$0xf]
      %v901 = vld [vmem:[%s8 + $0x54] sm:$0xf]
      %v902 = vld [vmem:[%s8 + $0x58] sm:$0xf]
      %v903 = vld [vmem:[%s8 + $0x5c] sm:$0xf]
      %v904 = vld [vmem:[%s8 + $0x60] sm:$0xf]
      %v905 = vld [vmem:[%s8 + $0x64] sm:$0xf]
      %v906 = vld [vmem:[%s8 + $0x68] sm:$0xf]
      %v907 = vld [vmem:[%s8 + $0x6c] sm:$0xf]
      %v908 = vld [vmem:[%s8 + $0x70] sm:$0xf]
      %v909 = vld [vmem:[%s8 + $0x74] sm:$0xf]
      %v910 = vld [vmem:[%s8 + $0x78] sm:$0xf]
      %v911 = vld [vmem:[%s8 + $0x7c] sm:$0xf]
      %v912 = vld [vmem:[%s8 + $0x80] sm:$0xf]
      %v913 = vld [vmem:[%s8 + $0x84] sm:$0xf]
      %v914 = vld [vmem:[%s8 + $0x88] sm:$0xf]
      %v915 = vld [vmem:[%s8 + $0x8c] sm:$0xf]
      %v916 = vld [vmem:[%s8 + $0x90] sm:$0xf]
      %v917 = vld [vmem:[%s8 + $0x94] sm:$0xf]
      %v918 = vld [vmem:[%s8 + $0x98] sm:$0xf]
      %v919 = vld [vmem:[%s8 + $0x9c] sm:$0xf]
      %v920 = vld [vmem:[%s8 + $0xa0] sm:$0xf]
      %v921 = vld [vmem:[%s8 + $0xa4] sm:$0xf]
      %v922 = vld [vmem:[%s8 + $0xa8] sm:$0xf]
      %v923 = vld [vmem:[%s8 + $0xac] sm:$0xf]
      %v924 = vld [vmem:[%s8 + $0xb0] sm:$0xf]
      %v925 = vld [vmem:[%s8 + $0xb4] sm:$0xf]
      %v926 = vld [vmem:[%s8 + $0xb8] sm:$0xf]
      %v927 = vld [vmem:[%s8 + $0xbc] sm:$0xf]
      %v928 = vld [vmem:[%s8 + $0xc0] sm:$0xf]
      %v929 = vld [vmem:[%s8 + $0xc4] sm:$0xf]
      %v930 = vld [vmem:[%s8 + $0xc8] sm:$0xf]
      %v931 = vld [vmem:[%s8 + $0xcc] sm:$0xf]
      %v932 = vld [vmem:[%s8 + $0xd0] sm:$0xf]
      %v933 = vld [vmem:[%s8 + $0xd4] sm:$0xf]
      %v934 = vld [vmem:[%s8 + $0xd8] sm:$0xf]
      %v935 = vld [vmem:[%s8 + $0xdc] sm:$0xf]
      %v936 = vld [vmem:[%s8 + $0xe0] sm:$0xf]
      %v937 = vld [vmem:[%s8 + $0xe4] sm:$0xf]
      %v938 = vld [vmem:[%s8 + $0xe8] sm:$0xf]
      %v939 = vld [vmem:[%s8 + $0xec] sm:$0xf]
      %v940 = vld [vmem:[%s8 + $0xf0] sm:$0xf]
      %v941 = vld [vmem:[%s8 + $0xf4] sm:$0xf]
      %v942 = vld [vmem:[%s8 + $0xf8] sm:$0xf]
      %v943 = vld [vmem:[%s8 + $0xfc] sm:$0xf]
      %v944 = vld [vmem:[%s8 + $0x100] sm:$0xf]
      %v945 = vld [vmem:[%s8 + $0x104] sm:$0xf]
      %v946 = vld [vmem:[%s8 + $0x108] sm:$0xf]
      %v947 = vld [vmem:[%s8 + $0x10c] sm:$0xf]
      %v948 = vld [vmem:[%s8 + $0x110] sm:$0xf]
      %v949 = vld [vmem:[%s8 + $0x114] sm:$0xf]
      %v950 = vld [vmem:[%s8 + $0x118] sm:$0xf]
      %v951 = vld [vmem:[%s8 + $0x11c] sm:$0xf]
      %v952 = vld [vmem:[%s9] sm:$0x1]
      %v953 = vld [vmem:[%s10] sm:$0xf]
      %v954 = vld [vmem:[%s10 + $0x4] sm:$0xf]
      %v955 = vld [vmem:[%s10 + $0x8] sm:$0xf]
      %v956 = vld [vmem:[%s10 + $0xc] sm:$0xf]
      %v957 = vld [vmem:[%s10 + $0x10] sm:$0xf]
      %v958 = vld [vmem:[%s10 + $0x14] sm:$0xf]
      %v959 = vld [vmem:[%s10 + $0x18] sm:$0xf]
      %v960 = vld [vmem:[%s10 + $0x1c] sm:$0xf]
      %v961 = vld [vmem:[%s10 + $0x20] sm:$0xf]
      %v962 = vld [vmem:[%s10 + $0x24] sm:$0xf]
      %v963 = vld [vmem:[%s10 + $0x28] sm:$0xf]
      %v964 = vld [vmem:[%s10 + $0x2c] sm:$0xf]
      %v965 = vld [vmem:[%s10 + $0x30] sm:$0xf]
      %v966 = vld [vmem:[%s10 + $0x34] sm:$0xf]
      %v967 = vld [vmem:[%s10 + $0x38] sm:$0xf]
      %v968 = vld [vmem:[%s10 + $0x3c] sm:$0xf]
      %v969 = vld [vmem:[%s10 + $0x40] sm:$0xf]
      %v970 = vld [vmem:[%s10 + $0x44] sm:$0xf]
      %v971 = vld [vmem:[%s10 + $0x48] sm:$0xf]
      %v972 = vld [vmem:[%s10 + $0x4c] sm:$0xf]
      %v973 = vld [vmem:[%s10 + $0x50] sm:$0xf]
      %v974 = vld [vmem:[%s10 + $0x54] sm:$0xf]
      %v975 = vld [vmem:[%s10 + $0x58] sm:$0xf]
      %v976 = vld [vmem:[%s10 + $0x5c] sm:$0xf]
      %v977 = vld [vmem:[%s10 + $0x60] sm:$0xf]
      %v978 = vld [vmem:[%s10 + $0x64] sm:$0xf]
      %v979 = vld [vmem:[%s10 + $0x68] sm:$0xf]
      %v980 = vld [vmem:[%s10 + $0x6c] sm:$0xf]
      %v981 = vld [vmem:[%s10 + $0x70] sm:$0xf]
      %v982 = vld [vmem:[%s10 + $0x74] sm:$0xf]
      %v983 = vld [vmem:[%s10 + $0x78] sm:$0xf]
      %v984 = vld [vmem:[%s10 + $0x7c] sm:$0xf]
      %v985 = vld [vmem:[%s10 + $0x80] sm:$0xf]
      %v986 = vld [vmem:[%s10 + $0x84] sm:$0xf]
      %v987 = vld [vmem:[%s10 + $0x88] sm:$0xf]
      %v988 = vld [vmem:[%s10 + $0x8c] sm:$0xf]
      %v989 = vld [vmem:[%s11] sm:$0x1]
      %v992 = vunpack.c.l.b16 %v842
      %v993 = vunpack.c.l.b16 %v843
      %v994 = vpack.c.b16 %v993, %v992
      %v997 = vcombine.low %v836, %v837
      %v999 = vunpack.c.l.s4 1966171168
      %v1000 = vunpack.c.0.s8 %v999
      %v1001 = vlaneseq
      %v1002 = vshrl.u32 %v1001, 7
      %v1003 = vsub.s32 %v1000, %v1002
      %v1004 = vrot.slane %v997, %v1003
      %v1006 = vunpack.c.l.s4 1966171168
      %v1007 = vunpack.c.0.s8 %v1006
      %v1008 = vlaneseq
      %v1009 = vshrl.u32 %v1008, 7
      %v1010 = vsub.s32 %v1007, %v1009
      %v1011 = vrot.slane %v1004, %v1010
      %vm1012 = vcmask 31744
      %v1014 = vsel %vm1012, %v994, 0
      %vm1016 = vcmask 1041408
      %v1018 = vsel %vm1016, %v1011, 0
      %1020 = vmatprep.subr.bf16.mxu0 0
      %1021 = vmatpush1.bf16.msra.mxu0 %v1018
      %1022 = vmatprep.subr.bf16.mxu0 0
      %1023 = vmatpush1.bf16.msra.mxu0 0
      %1024 = vmatprep.subr.bf16.mxu0 0
      %1025 = vmatpush1.bf16.msra.mxu0 0
      %1026 = vmatprep.subr.bf16.mxu0 0
      %1027 = vmatpush1.bf16.msra.mxu0 0
      %1028 = vmatprep.subr.bf16.mxu0 0
      %1029 = vmatpush1.bf16.msra.mxu0 0
      %1030 = vmatprep.subr.bf16.mxu0 0
      %1031 = vmatpush1.bf16.msra.mxu0 0
      %1032 = vmatprep.subr.bf16.mxu0 0
      %1033 = vmatpush1.bf16.msra.mxu0 0
      %1034 = vmatprep.subr.bf16.mxu0 0
      %1035 = vmatpush1.bf16.msra.mxu0 0
      %1036 = vmatprep.subr.bf16.mxu0 0
      %1037 = vmatpush1.bf16.msra.mxu0 0
      %1038 = vmatprep.subr.bf16.mxu0 0
      %1039 = vmatpush1.bf16.msra.mxu0 0
      %1040 = vmatprep.subr.bf16.mxu0 0
      %1041 = vmatpush1.bf16.msra.mxu0 0
      %1042 = vmatprep.subr.bf16.mxu0 0
      %1043 = vmatpush1.bf16.msra.mxu0 0
      %1044 = vmatprep.subr.bf16.mxu0 0
      %1045 = vmatpush1.bf16.msra.mxu0 0
      %1046 = vmatprep.subr.bf16.mxu0 0
      %1047 = vmatpush1.bf16.msra.mxu0 0
      %1048 = vmatprep.subr.bf16.mxu0 0
      %1049 = vmatpush1.bf16.msra.mxu0 0
      %1050 = vmatprep.subr.bf16.mxu0 0
      %1051 = vmatpush1.bf16.msra.mxu0 0
      %1052 = vmatprep.mubr.bf16.mxu0 0
      %1053 = vmatmul.mubr.bf16.gmra.mrb[0].mxu0 %v1014
      %v1054 = vpop.f32.mrb[0].mxu0
      %v1055 = vadd.f32 0.0, %v1054
      %v1056 = vpop.f32.mrb[0].mxu0
      %v1057 = vpop.f32.mrb[0].mxu0
      %v1058 = vadd.f32 0.0, %v1057
      %v1059 = vpop.f32.mrb[0].mxu0
      %1060 = vdwg.mxu0
      %v1061 = vpack.c.bf16 %v1058, %v1055
      %v1063 = vcombine.high %v1061, %v1061
      %v1065 = vunpack.c.l.s4 1983009808
      %v1066 = vunpack.c.0.s8 %v1065
      %v1067 = vlaneseq
      %v1068 = vshrl.u32 %v1067, 7
      %v1069 = vsub.s32 %v1066, %v1068
      %v1070 = vrot.slane %v1061, %v1069
      %v1072 = vunpack.c.l.s4 1983009808
      %v1073 = vunpack.c.0.s8 %v1072
      %v1074 = vlaneseq
      %v1075 = vshrl.u32 %v1074, 7
      %v1076 = vsub.s32 %v1073, %v1075
      %v1077 = vrot.slane %v1063, %v1076
      %v1078 = vcombine.high %v1070, %v1070
      %v1079 = vcombine.high %v1077, %v1077
      %v1081 = vshrl.u32 0, 16
      %v1083 = vrot.slane %v1081, 7
      %v1084 = vshll.u32 0, 16
      %v1086 = vor.u32 %v1083, %v1084
      %v1088 = vshrl.u32 %v838, 16
      %v1090 = vrot.slane %v1088, 7
      %v1091 = vshll.u32 %v838, 16
      %v1093 = vor.u32 %v1090, %v1091
      %v1095 = vshrl.u32 %v839, 16
      %v1097 = vrot.slane %v1095, 7
      %v1098 = vshll.u32 %v839, 16
      %v1100 = vor.u32 %v1097, %v1098
      %v1102 = vshrl.u32 %v840, 16
      %v1104 = vrot.slane %v1102, 7
      %v1105 = vshll.u32 %v840, 16
      %v1107 = vor.u32 %v1104, %v1105
      %v1109 = vshrl.u32 %v841, 16
      %v1111 = vrot.slane %v1109, 7
      %v1112 = vshll.u32 %v841, 16
      %v1114 = vor.u32 %v1111, %v1112
      %vm1120 = vcmask 1040384
      %vm1121 = vsmask.f32 256
      %vm1122 = vmand %vm1120, %vm1121
      %v1123 = vsel %vm1122, 0, %v1086
      %v1124 = vsel %vm1122, 0, %v1093
      %v1125 = vsel %vm1122, 0, %v1100
      %v1126 = vsel %vm1122, 0, %v1107
      %v1127 = vsel %vm1122, 0, %v1114
      %vm1128 = vcmask 1042432
      %vm1129 = vsmask.f32 2304
      %vm1130 = vmand %vm1128, %vm1129
      %v1131 = vsel %vm1130, %v1123, 0
      %v1132 = vsel %vm1130, %v1124, 0
      %v1133 = vsel %vm1130, %v1125, 0
      %v1134 = vsel %vm1130, %v1126, 0
      %v1135 = vsel %vm1130, %v1127, 0
      %v1137 = vshrl.u32 %v1131, 16
      %v1139 = vshll.u32 %v1131, 16
      %v1141 = vrot.slane %v1139, 1
      %v1142 = vor.u32 %v1137, %v1141
      %v1144 = vshrl.u32 %v1132, 16
      %v1146 = vshll.u32 %v1132, 16
      %v1148 = vrot.slane %v1146, 1
      %v1149 = vor.u32 %v1144, %v1148
      %v1151 = vshrl.u32 %v1133, 16
      %v1153 = vshll.u32 %v1133, 16
      %v1155 = vrot.slane %v1153, 1
      %v1156 = vor.u32 %v1151, %v1155
      %v1158 = vshrl.u32 %v1134, 16
      %v1160 = vshll.u32 %v1134, 16
      %v1162 = vrot.slane %v1160, 1
      %v1163 = vor.u32 %v1158, %v1162
      %1164 = vrot.lane.b32.xlu0 %v1142, 32
      %v1165 = vpop.permute.xlu0 %1164
      %1166 = vrot.lane.b32.xlu0 %v1149, 32
      %v1167 = vpop.permute.xlu0 %1166
      %1168 = vrot.lane.b32.xlu0 %v1156, 32
      %v1169 = vpop.permute.xlu0 %1168
      %1170 = vrot.lane.b32.xlu0 %v1163, 32
      %v1171 = vpop.permute.xlu0 %1170
      %v1176 = vrot.slane %v1131, 1
      %v1177 = vrot.slane %v1132, 1
      %v1178 = vrot.slane %v1133, 1
      %v1179 = vrot.slane %v1134, 1
      %1180 = vrot.lane.b32.xlu0 %v1176, 64
      %v1181 = vpop.permute.xlu0 %1180
      %1182 = vrot.lane.b32.xlu0 %v1177, 64
      %v1183 = vpop.permute.xlu0 %1182
      %1184 = vrot.lane.b32.xlu0 %v1178, 64
      %v1185 = vpop.permute.xlu0 %1184
      %1186 = vrot.lane.b32.xlu0 %v1179, 64
      %v1187 = vpop.permute.xlu0 %1186
      %1189 = vrot.lane.b32.xlu0 %v1132, 96
      %v1190 = vpop.permute.xlu0 %1189
      %1191 = vrot.lane.b32.xlu0 %v1133, 96
      %v1192 = vpop.permute.xlu0 %1191
      %1193 = vrot.lane.b32.xlu0 %v1134, 96
      %v1194 = vpop.permute.xlu0 %1193
      %1195 = vrot.lane.b32.xlu0 %v1135, 96
      %v1196 = vpop.permute.xlu0 %1195
      %v1198 = vshrl.u32 %v1135, 16
      %v1200 = vshll.u32 %v1135, 16
      %v1202 = vrot.slane %v1200, 1
      %v1203 = vor.u32 %v1198, %v1202
      %v1204 = vrot.slane %v1135, 1
      %1205 = vrot.lane.b32.xlu0 %v1177, 32
      %v1206 = vpop.permute.xlu0 %1205
      %1207 = vrot.lane.b32.xlu0 %v1178, 32
      %v1208 = vpop.permute.xlu0 %1207
      %1209 = vrot.lane.b32.xlu0 %v1179, 32
      %v1210 = vpop.permute.xlu0 %1209
      %1211 = vrot.lane.b32.xlu0 %v1204, 32
      %v1212 = vpop.permute.xlu0 %1211
      %1213 = vrot.lane.b32.xlu0 %v1133, 64
      %v1214 = vpop.permute.xlu0 %1213
      %1215 = vrot.lane.b32.xlu0 %v1134, 64
      %v1216 = vpop.permute.xlu0 %1215
      %1217 = vrot.lane.b32.xlu0 %v1135, 64
      %v1218 = vpop.permute.xlu0 %1217
      %1219 = vrot.lane.b32.xlu0 %v1131, 64
      %v1220 = vpop.permute.xlu0 %1219
      %1221 = vrot.lane.b32.xlu0 %v1156, 96
      %v1222 = vpop.permute.xlu0 %1221
      %1223 = vrot.lane.b32.xlu0 %v1163, 96
      %v1224 = vpop.permute.xlu0 %1223
      %1225 = vrot.lane.b32.xlu0 %v1203, 96
      %v1226 = vpop.permute.xlu0 %1225
      %1227 = vrot.lane.b32.xlu0 %v1142, 96
      %v1228 = vpop.permute.xlu0 %1227
      %vm1229 = vcmask 261120
      %v1231 = vsel %vm1229, %v1131, %v1165
      %v1233 = vsel %vm1229, %v1132, %v1167
      %v1235 = vsel %vm1229, %v1133, %v1169
      %v1237 = vsel %vm1229, %v1134, %v1171
      %vm1238 = vcmask 523264
      %v1240 = vsel %vm1238, %v1231, %v1181
      %v1242 = vsel %vm1238, %v1233, %v1183
      %v1244 = vsel %vm1238, %v1235, %v1185
      %v1246 = vsel %vm1238, %v1237, %v1187
      %vm1247 = vcmask 785408
      %v1249 = vsel %vm1247, %v1240, %v1190
      %v1251 = vsel %vm1247, %v1242, %v1192
      %v1253 = vsel %vm1247, %v1244, %v1194
      %v1255 = vsel %vm1247, %v1246, %v1196
      %v1258 = vsel %vm1229, %v1149, %v1206
      %v1261 = vsel %vm1229, %v1156, %v1208
      %v1264 = vsel %vm1229, %v1163, %v1210
      %v1267 = vsel %vm1229, %v1203, %v1212
      %v1269 = vsel %vm1238, %v1258, %v1214
      %v1271 = vsel %vm1238, %v1261, %v1216
      %v1273 = vsel %vm1238, %v1264, %v1218
      %v1275 = vsel %vm1238, %v1267, %v1220
      %v1277 = vsel %vm1247, %v1269, %v1222
      %v1279 = vsel %vm1247, %v1271, %v1224
      %v1281 = vsel %vm1247, %v1273, %v1226
      %v1283 = vsel %vm1247, %v1275, %v1228
      %v1292 = vcombine.low %v1249, %v1277
      %v1294 = vunpack.c.l.s4 1983009808
      %v1295 = vunpack.c.0.s8 %v1294
      %v1296 = vlaneseq
      %v1297 = vshrl.u32 %v1296, 7
      %v1298 = vsub.s32 %v1295, %v1297
      %v1299 = vrot.slane %v1292, %v1298
      %v1301 = vunpack.c.l.s4 1983009808
      %v1302 = vunpack.c.0.s8 %v1301
      %v1303 = vlaneseq
      %v1304 = vshrl.u32 %v1303, 7
      %v1305 = vsub.s32 %v1302, %v1304
      %v1306 = vrot.slane %v1178, %v1305
      %v1307 = vcombine.low %v1299, %v1306
      %v1308 = vcombine.low %v1251, %v1279
      %v1310 = vunpack.c.l.s4 1983009808
      %v1311 = vunpack.c.0.s8 %v1310
      %v1312 = vlaneseq
      %v1313 = vshrl.u32 %v1312, 7
      %v1314 = vsub.s32 %v1311, %v1313
      %v1315 = vrot.slane %v1308, %v1314
      %v1317 = vunpack.c.l.s4 1983009808
      %v1318 = vunpack.c.0.s8 %v1317
      %v1319 = vlaneseq
      %v1320 = vshrl.u32 %v1319, 7
      %v1321 = vsub.s32 %v1318, %v1320
      %v1322 = vrot.slane %v1179, %v1321
      %v1323 = vcombine.low %v1315, %v1322
      %v1324 = vcombine.low %v1253, %v1281
      %v1326 = vunpack.c.l.s4 1983009808
      %v1327 = vunpack.c.0.s8 %v1326
      %v1328 = vlaneseq
      %v1329 = vshrl.u32 %v1328, 7
      %v1330 = vsub.s32 %v1327, %v1329
      %v1331 = vrot.slane %v1324, %v1330
      %v1333 = vunpack.c.l.s4 1983009808
      %v1334 = vunpack.c.0.s8 %v1333
      %v1335 = vlaneseq
      %v1336 = vshrl.u32 %v1335, 7
      %v1337 = vsub.s32 %v1334, %v1336
      %v1338 = vrot.slane %v1204, %v1337
      %v1339 = vcombine.low %v1331, %v1338
      %v1340 = vcombine.low %v1255, %v1283
      %v1342 = vunpack.c.l.s4 1983009808
      %v1343 = vunpack.c.0.s8 %v1342
      %v1344 = vlaneseq
      %v1345 = vshrl.u32 %v1344, 7
      %v1346 = vsub.s32 %v1343, %v1345
      %v1347 = vrot.slane %v1340, %v1346
      %v1349 = vunpack.c.l.s4 1983009808
      %v1350 = vunpack.c.0.s8 %v1349
      %v1351 = vlaneseq
      %v1352 = vshrl.u32 %v1351, 7
      %v1353 = vsub.s32 %v1350, %v1352
      %v1354 = vrot.slane %v1176, %v1353
      %v1355 = vcombine.low %v1347, %v1354
      %v1357 = vshrl.u32 %v1070, 16
      %v1359 = vrot.slane %v1357, 7
      %v1360 = vshll.u32 %v1070, 16
      %v1362 = vor.u32 %v1359, %v1360
      %v1364 = vshrl.u32 %v1078, 16
      %v1366 = vrot.slane %v1364, 7
      %v1367 = vshll.u32 %v1078, 16
      %v1369 = vor.u32 %v1366, %v1367
      %v1371 = vshrl.u32 %v1077, 16
      %v1373 = vrot.slane %v1371, 7
      %v1374 = vshll.u32 %v1077, 16
      %v1376 = vor.u32 %v1373, %v1374
      %v1378 = vshrl.u32 %v1079, 16
      %v1380 = vrot.slane %v1378, 7
      %v1381 = vshll.u32 %v1079, 16
      %v1383 = vor.u32 %v1380, %v1381
      %v1388 = vsel %vm1122, 0, %v1362
      %v1389 = vsel %vm1122, 0, %v1369
      %v1390 = vsel %vm1122, 0, %v1376
      %v1391 = vsel %vm1122, 0, %v1383
      %v1392 = vsel %vm1130, %v1388, 0
      %v1393 = vsel %vm1130, %v1389, 0
      %v1394 = vsel %vm1130, %v1390, 0
      %v1395 = vsel %vm1130, %v1391, 0
      %v1397 = vshrl.u32 %v1392, 16
      %v1399 = vshll.u32 %v1392, 16
      %v1401 = vrot.slane %v1399, 1
      %v1402 = vor.u32 %v1397, %v1401
      %v1404 = vshrl.u32 %v1393, 16
      %v1406 = vshll.u32 %v1393, 16
      %v1408 = vrot.slane %v1406, 1
      %v1409 = vor.u32 %v1404, %v1408
      %v1411 = vshrl.u32 %v1394, 16
      %v1413 = vshll.u32 %v1394, 16
      %v1415 = vrot.slane %v1413, 1
      %v1416 = vor.u32 %v1411, %v1415
      %1417 = vrot.lane.b32.xlu0 %v1142, 64
      %v1418 = vpop.permute.xlu0 %1417
      %1419 = vrot.lane.b32.xlu0 %v1402, 64
      %v1420 = vpop.permute.xlu0 %1419
      %1421 = vrot.lane.b32.xlu0 %v1409, 64
      %v1422 = vpop.permute.xlu0 %1421
      %1423 = vrot.lane.b32.xlu0 %v1416, 64
      %v1424 = vpop.permute.xlu0 %1423
      %v1428 = vrot.slane %v1392, 1
      %v1429 = vrot.slane %v1393, 1
      %v1430 = vrot.slane %v1394, 1
      %1432 = vrot.lane.b32.xlu0 %v1392, 64
      %v1433 = vpop.permute.xlu0 %1432
      %1434 = vrot.lane.b32.xlu0 %v1393, 64
      %v1435 = vpop.permute.xlu0 %1434
      %1436 = vrot.lane.b32.xlu0 %v1394, 64
      %v1437 = vpop.permute.xlu0 %1436
      %1438 = vrot.lane.b32.xlu0 %v1395, 64
      %v1439 = vpop.permute.xlu0 %1438
      %v1441 = vshrl.u32 %v1395, 16
      %v1443 = vshll.u32 %v1395, 16
      %v1445 = vrot.slane %v1443, 1
      %v1446 = vor.u32 %v1441, %v1445
      %v1447 = vrot.slane %v1395, 1
      %1448 = vrot.lane.b32.xlu0 %v1428, 64
      %v1449 = vpop.permute.xlu0 %1448
      %1450 = vrot.lane.b32.xlu0 %v1429, 64
      %v1451 = vpop.permute.xlu0 %1450
      %1452 = vrot.lane.b32.xlu0 %v1430, 64
      %v1453 = vpop.permute.xlu0 %1452
      %1454 = vrot.lane.b32.xlu0 %v1447, 64
      %v1455 = vpop.permute.xlu0 %1454
      %1456 = vrot.lane.b32.xlu0 %v1446, 64
      %v1457 = vpop.permute.xlu0 %1456
      %v1459 = vsel %vm1238, %v1131, %v1418
      %v1461 = vsel %vm1238, %v1392, %v1420
      %v1463 = vsel %vm1238, %v1393, %v1422
      %v1465 = vsel %vm1238, %v1394, %v1424
      %v1468 = vsel %vm1238, %v1176, %v1433
      %v1471 = vsel %vm1238, %v1428, %v1435
      %v1474 = vsel %vm1238, %v1429, %v1437
      %v1477 = vsel %vm1238, %v1430, %v1439
      %v1480 = vsel %vm1238, %v1402, %v1449
      %v1483 = vsel %vm1238, %v1409, %v1451
      %v1486 = vsel %vm1238, %v1416, %v1453
      %v1489 = vsel %vm1238, %v1446, %v1455
      %v1491 = vsel %vm1238, %v1395, %v1457
      %v1505 = vcombine.low %v1459, %v1468
      %v1506 = vcombine.low %v1480, %v1463
      %v1508 = vunpack.c.l.s4 1983009808
      %v1509 = vunpack.c.0.s8 %v1508
      %v1510 = vlaneseq
      %v1511 = vshrl.u32 %v1510, 7
      %v1512 = vsub.s32 %v1509, %v1511
      %v1513 = vrot.slane %v1505, %v1512
      %v1515 = vunpack.c.l.s4 1983009808
      %v1516 = vunpack.c.0.s8 %v1515
      %v1517 = vlaneseq
      %v1518 = vshrl.u32 %v1517, 7
      %v1519 = vsub.s32 %v1516, %v1518
      %v1520 = vrot.slane %v1506, %v1519
      %v1521 = vcombine.low %v1513, %v1520
      %v1523 = vunpack.c.l.s4 1983009808
      %v1524 = vunpack.c.0.s8 %v1523
      %v1525 = vlaneseq
      %v1526 = vshrl.u32 %v1525, 7
      %v1527 = vsub.s32 %v1524, %v1526
      %v1528 = vrot.slane %v1429, %v1527
      %v1529 = vcombine.low %v1461, %v1471
      %v1530 = vcombine.low %v1483, %v1465
      %v1532 = vunpack.c.l.s4 1983009808
      %v1533 = vunpack.c.0.s8 %v1532
      %v1534 = vlaneseq
      %v1535 = vshrl.u32 %v1534, 7
      %v1536 = vsub.s32 %v1533, %v1535
      %v1537 = vrot.slane %v1529, %v1536
      %v1539 = vunpack.c.l.s4 1983009808
      %v1540 = vunpack.c.0.s8 %v1539
      %v1541 = vlaneseq
      %v1542 = vshrl.u32 %v1541, 7
      %v1543 = vsub.s32 %v1540, %v1542
      %v1544 = vrot.slane %v1530, %v1543
      %v1545 = vcombine.low %v1537, %v1544
      %v1547 = vunpack.c.l.s4 1983009808
      %v1548 = vunpack.c.0.s8 %v1547
      %v1549 = vlaneseq
      %v1550 = vshrl.u32 %v1549, 7
      %v1551 = vsub.s32 %v1548, %v1550
      %v1552 = vrot.slane %v1430, %v1551
      %v1553 = vcombine.low %v1463, %v1474
      %v1554 = vcombine.low %v1486, %v1491
      %v1556 = vunpack.c.l.s4 1983009808
      %v1557 = vunpack.c.0.s8 %v1556
      %v1558 = vlaneseq
      %v1559 = vshrl.u32 %v1558, 7
      %v1560 = vsub.s32 %v1557, %v1559
      %v1561 = vrot.slane %v1553, %v1560
      %v1563 = vunpack.c.l.s4 1983009808
      %v1564 = vunpack.c.0.s8 %v1563
      %v1565 = vlaneseq
      %v1566 = vshrl.u32 %v1565, 7
      %v1567 = vsub.s32 %v1564, %v1566
      %v1568 = vrot.slane %v1554, %v1567
      %v1569 = vcombine.low %v1561, %v1568
      %v1571 = vunpack.c.l.s4 1983009808
      %v1572 = vunpack.c.0.s8 %v1571
      %v1573 = vlaneseq
      %v1574 = vshrl.u32 %v1573, 7
      %v1575 = vsub.s32 %v1572, %v1574
      %v1576 = vrot.slane %v1447, %v1575
      %v1577 = vcombine.low %v1465, %v1477
      %v1578 = vcombine.low %v1489, %v1459
      %v1580 = vunpack.c.l.s4 1983009808
      %v1581 = vunpack.c.0.s8 %v1580
      %v1582 = vlaneseq
      %v1583 = vshrl.u32 %v1582, 7
      %v1584 = vsub.s32 %v1581, %v1583
      %v1585 = vrot.slane %v1577, %v1584
      %v1587 = vunpack.c.l.s4 1983009808
      %v1588 = vunpack.c.0.s8 %v1587
      %v1589 = vlaneseq
      %v1590 = vshrl.u32 %v1589, 7
      %v1591 = vsub.s32 %v1588, %v1590
      %v1592 = vrot.slane %v1578, %v1591
      %v1593 = vcombine.low %v1585, %v1592
      %v1594 = vcombine.low %v1521, %v1545
      %v1595 = vcombine.high %v1521, %v1545
      %v1596 = vcombine.low %v1569, %v1593
      %v1597 = vcombine.high %v1569, %v1593
      %v1599 = vunpack.c.l.s4 1983009808
      %v1600 = vunpack.c.0.s8 %v1599
      %v1601 = vlaneseq
      %v1602 = vshrl.u32 %v1601, 7
      %v1603 = vsub.s32 %v1600, %v1602
      %v1604 = vrot.slane %v1594, %v1603
      %v1606 = vunpack.c.l.s4 1983009808
      %v1607 = vunpack.c.0.s8 %v1606
      %v1608 = vlaneseq
      %v1609 = vshrl.u32 %v1608, 7
      %v1610 = vsub.s32 %v1607, %v1609
      %v1611 = vrot.slane %v1595, %v1610
      %v1613 = vunpack.c.l.s4 1983009808
      %v1614 = vunpack.c.0.s8 %v1613
      %v1615 = vlaneseq
      %v1616 = vshrl.u32 %v1615, 7
      %v1617 = vsub.s32 %v1614, %v1616
      %v1618 = vrot.slane %v1596, %v1617
      %v1620 = vunpack.c.l.s4 1983009808
      %v1621 = vunpack.c.0.s8 %v1620
      %v1622 = vlaneseq
      %v1623 = vshrl.u32 %v1622, 7
      %v1624 = vsub.s32 %v1621, %v1623
      %v1625 = vrot.slane %v1597, %v1624
      %v1626 = vcombine.low %v1604, %v1618
      %v1627 = vcombine.high %v1604, %v1618
      %v1628 = vcombine.low %v1611, %v1625
      %v1629 = vcombine.high %v1611, %v1625
      %v1630 = vcombine.low %v1528, %v1552
      %v1631 = vcombine.low %v1576, %v1354
      %v1633 = vunpack.c.l.s4 1983009808
      %v1634 = vunpack.c.0.s8 %v1633
      %v1635 = vlaneseq
      %v1636 = vshrl.u32 %v1635, 7
      %v1637 = vsub.s32 %v1634, %v1636
      %v1638 = vrot.slane %v1630, %v1637
      %v1640 = vunpack.c.l.s4 1983009808
      %v1641 = vunpack.c.0.s8 %v1640
      %v1642 = vlaneseq
      %v1643 = vshrl.u32 %v1642, 7
      %v1644 = vsub.s32 %v1641, %v1643
      %v1645 = vrot.slane %v1631, %v1644
      %v1646 = vcombine.low %v1638, %v1645
      %v1723 = vunpack.c.l.b16 %v880
      %v1724 = vunpack.c.l.b16 %v881
      %v1725 = vunpack.c.l.b16 %v882
      %v1726 = vunpack.c.l.b16 %v883
      %v1727 = vunpack.c.l.b16 %v884
      %v1728 = vunpack.c.l.b16 %v885
      %v1729 = vunpack.c.l.b16 %v886
      %v1730 = vunpack.c.l.b16 %v887
      %v1731 = vunpack.c.l.b16 %v888
      %v1732 = vunpack.c.l.b16 %v889
      %v1733 = vunpack.c.l.b16 %v890
      %v1734 = vunpack.c.l.b16 %v891
      %v1735 = vunpack.c.l.b16 %v892
      %v1736 = vunpack.c.l.b16 %v893
      %v1737 = vunpack.c.l.b16 %v894
      %v1738 = vunpack.c.l.b16 %v895
      %v1739 = vunpack.c.l.b16 %v896
      %v1740 = vunpack.c.l.b16 %v897
      %v1741 = vunpack.c.l.b16 %v898
      %v1742 = vunpack.c.l.b16 %v899
      %v1743 = vunpack.c.l.b16 %v900
      %v1744 = vunpack.c.l.b16 %v901
      %v1745 = vunpack.c.l.b16 %v902
      %v1746 = vunpack.c.l.b16 %v903
      %v1747 = vunpack.c.l.b16 %v904
      %v1748 = vunpack.c.l.b16 %v905
      %v1749 = vunpack.c.l.b16 %v906
      %v1750 = vunpack.c.l.b16 %v907
      %v1751 = vunpack.c.l.b16 %v908
      %v1752 = vunpack.c.l.b16 %v909
      %v1753 = vunpack.c.l.b16 %v910
      %v1754 = vunpack.c.l.b16 %v911
      %v1755 = vunpack.c.l.b16 %v912
      %v1756 = vunpack.c.l.b16 %v913
      %v1757 = vunpack.c.l.b16 %v914
      %v1758 = vunpack.c.l.b16 %v915
      %v1759 = vunpack.c.l.b16 %v916
      %v1760 = vunpack.c.l.b16 %v917
      %v1761 = vunpack.c.l.b16 %v918
      %v1762 = vunpack.c.l.b16 %v919
      %v1763 = vunpack.c.l.b16 %v920
      %v1764 = vunpack.c.l.b16 %v921
      %v1765 = vunpack.c.l.b16 %v922
      %v1766 = vunpack.c.l.b16 %v923
      %v1767 = vunpack.c.l.b16 %v924
      %v1768 = vunpack.c.l.b16 %v925
      %v1769 = vunpack.c.l.b16 %v926
      %v1770 = vunpack.c.l.b16 %v927
      %v1771 = vunpack.c.l.b16 %v928
      %v1772 = vunpack.c.l.b16 %v929
      %v1773 = vunpack.c.l.b16 %v930
      %v1774 = vunpack.c.l.b16 %v931
      %v1775 = vunpack.c.l.b16 %v932
      %v1776 = vunpack.c.l.b16 %v933
      %v1777 = vunpack.c.l.b16 %v934
      %v1778 = vunpack.c.l.b16 %v935
      %v1779 = vunpack.c.l.b16 %v936
      %v1780 = vunpack.c.l.b16 %v937
      %v1781 = vunpack.c.l.b16 %v938
      %v1782 = vunpack.c.l.b16 %v939
      %v1783 = vunpack.c.l.b16 %v940
      %v1784 = vunpack.c.l.b16 %v941
      %v1785 = vunpack.c.l.b16 %v942
      %v1786 = vunpack.c.l.b16 %v943
      %v1787 = vunpack.c.l.b16 %v944
      %v1788 = vunpack.c.l.b16 %v945
      %v1789 = vunpack.c.l.b16 %v946
      %v1790 = vunpack.c.l.b16 %v947
      %v1791 = vunpack.c.l.b16 %v948
      %v1792 = vunpack.c.l.b16 %v949
      %v1793 = vunpack.c.l.b16 %v950
      %v1794 = vunpack.c.l.b16 %v951
      %v1795 = vpack.c.b16 %v1724, %v1723
      %v1796 = vpack.c.b16 %v1726, %v1725
      %v1797 = vpack.c.b16 %v1728, %v1727
      %v1798 = vpack.c.b16 %v1730, %v1729
      %v1799 = vpack.c.b16 %v1732, %v1731
      %v1800 = vpack.c.b16 %v1734, %v1733
      %v1801 = vpack.c.b16 %v1736, %v1735
      %v1802 = vpack.c.b16 %v1738, %v1737
      %v1803 = vpack.c.b16 %v1740, %v1739
      %v1804 = vpack.c.b16 %v1742, %v1741
      %v1805 = vpack.c.b16 %v1744, %v1743
      %v1806 = vpack.c.b16 %v1746, %v1745
      %v1807 = vpack.c.b16 %v1748, %v1747
      %v1808 = vpack.c.b16 %v1750, %v1749
      %v1809 = vpack.c.b16 %v1752, %v1751
      %v1810 = vpack.c.b16 %v1754, %v1753
      %v1811 = vpack.c.b16 %v1756, %v1755
      %v1812 = vpack.c.b16 %v1758, %v1757
      %v1813 = vpack.c.b16 %v1760, %v1759
      %v1814 = vpack.c.b16 %v1762, %v1761
      %v1815 = vpack.c.b16 %v1764, %v1763
      %v1816 = vpack.c.b16 %v1766, %v1765
      %v1817 = vpack.c.b16 %v1768, %v1767
      %v1818 = vpack.c.b16 %v1770, %v1769
      %v1819 = vpack.c.b16 %v1772, %v1771
      %v1820 = vpack.c.b16 %v1774, %v1773
      %v1821 = vpack.c.b16 %v1776, %v1775
      %v1822 = vpack.c.b16 %v1778, %v1777
      %v1823 = vpack.c.b16 %v1780, %v1779
      %v1824 = vpack.c.b16 %v1782, %v1781
      %v1825 = vpack.c.b16 %v1784, %v1783
      %v1826 = vpack.c.b16 %v1786, %v1785
      %v1827 = vpack.c.b16 %v1788, %v1787
      %v1828 = vpack.c.b16 %v1790, %v1789
      %v1829 = vpack.c.b16 %v1792, %v1791
      %v1830 = vpack.c.b16 %v1794, %v1793
      %v1868 = vsel %vm1238, %v1646, 0
      %1870 = vmatprep.subr.bf16.mxu0 0
      %1871 = vmatpush1.bf16.msra.mxu0 %v1795
      %1872 = vmatprep.subr.bf16.mxu0 0
      %1873 = vmatpush1.bf16.msra.mxu0 %v1796
      %1874 = vmatprep.subr.bf16.mxu0 0
      %1875 = vmatpush1.bf16.msra.mxu0 %v1797
      %1876 = vmatprep.subr.bf16.mxu0 0
      %1877 = vmatpush1.bf16.msra.mxu0 %v1798
      %1878 = vmatprep.subr.bf16.mxu0 0
      %1879 = vmatpush1.bf16.msra.mxu0 %v1799
      %1880 = vmatprep.subr.bf16.mxu0 0
      %1881 = vmatpush1.bf16.msra.mxu0 %v1800
      %1882 = vmatprep.subr.bf16.mxu0 0
      %1883 = vmatpush1.bf16.msra.mxu0 %v1801
      %1884 = vmatprep.subr.bf16.mxu0 0
      %1885 = vmatpush1.bf16.msra.mxu0 %v1802
      %1886 = vmatprep.subr.bf16.mxu0 0
      %1887 = vmatpush1.bf16.msra.mxu0 %v1803
      %1888 = vmatprep.subr.bf16.mxu0 0
      %1889 = vmatpush1.bf16.msra.mxu0 %v1804
      %1890 = vmatprep.subr.bf16.mxu0 0
      %1891 = vmatpush1.bf16.msra.mxu0 %v1805
      %1892 = vmatprep.subr.bf16.mxu0 0
      %1893 = vmatpush1.bf16.msra.mxu0 %v1806
      %1894 = vmatprep.subr.bf16.mxu0 0
      %1895 = vmatpush1.bf16.msra.mxu0 %v1807
      %1896 = vmatprep.subr.bf16.mxu0 0
      %1897 = vmatpush1.bf16.msra.mxu0 %v1808
      %1898 = vmatprep.subr.bf16.mxu0 0
      %1899 = vmatpush1.bf16.msra.mxu0 %v1809
      %1900 = vmatprep.subr.bf16.mxu0 0
      %1901 = vmatpush1.bf16.msra.mxu0 %v1810
      %1902 = vmatprep.mubr.bf16.mxu0 %v1627
      %1903 = vmatmul.mubr.bf16.gmra.mrb[0].mxu0 %v1626
      %v1904 = vpop.f32.mrb[0].mxu0
      %v1905 = vadd.f32 0.0, %v1904
      %v1906 = vpop.f32.mrb[0].mxu0
      %v1907 = vpop.f32.mrb[0].mxu0
      %v1908 = vadd.f32 0.0, %v1907
      %v1909 = vpop.f32.mrb[0].mxu0
      %1910 = vdwg.mxu0
      %1911 = vmatprep.subr.bf16.mxu0 0
      %1912 = vmatpush1.bf16.msra.mxu0 %v1811
      %1913 = vmatprep.subr.bf16.mxu0 0
      %1914 = vmatpush1.bf16.msra.mxu0 %v1812
      %1915 = vmatprep.subr.bf16.mxu0 0
      %1916 = vmatpush1.bf16.msra.mxu0 %v1813
      %1917 = vmatprep.subr.bf16.mxu0 0
      %1918 = vmatpush1.bf16.msra.mxu0 %v1814
      %1919 = vmatprep.subr.bf16.mxu0 0
      %1920 = vmatpush1.bf16.msra.mxu0 %v1815
      %1921 = vmatprep.subr.bf16.mxu0 0
      %1922 = vmatpush1.bf16.msra.mxu0 %v1816
      %1923 = vmatprep.subr.bf16.mxu0 0
      %1924 = vmatpush1.bf16.msra.mxu0 %v1817
      %1925 = vmatprep.subr.bf16.mxu0 0
      %1926 = vmatpush1.bf16.msra.mxu0 %v1818
      %1927 = vmatprep.subr.bf16.mxu0 0
      %1928 = vmatpush1.bf16.msra.mxu0 %v1819
      %1929 = vmatprep.subr.bf16.mxu0 0
      %1930 = vmatpush1.bf16.msra.mxu0 %v1820
      %1931 = vmatprep.subr.bf16.mxu0 0
      %1932 = vmatpush1.bf16.msra.mxu0 %v1821
      %1933 = vmatprep.subr.bf16.mxu0 0
      %1934 = vmatpush1.bf16.msra.mxu0 %v1822
      %1935 = vmatprep.subr.bf16.mxu0 0
      %1936 = vmatpush1.bf16.msra.mxu0 %v1823
      %1937 = vmatprep.subr.bf16.mxu0 0
      %1938 = vmatpush1.bf16.msra.mxu0 %v1824
      %1939 = vmatprep.subr.bf16.mxu0 0
      %1940 = vmatpush1.bf16.msra.mxu0 %v1825
      %1941 = vmatprep.subr.bf16.mxu0 0
      %1942 = vmatpush1.bf16.msra.mxu0 %v1826
      %1943 = vmatprep.mubr.bf16.mxu0 %v1629
      %1944 = vmatmul.mubr.bf16.gmra.mrb[0].mxu0 %v1628
      %v1945 = vpop.f32.mrb[0].mxu0
      %v1946 = vadd.f32 %v1905, %v1945
      %v1947 = vpop.f32.mrb[0].mxu0
      %v1948 = vpop.f32.mrb[0].mxu0
      %v1949 = vadd.f32 %v1908, %v1948
      %v1950 = vpop.f32.mrb[0].mxu0
      %1951 = vdwg.mxu0
      %1952 = vmatprep.subr.bf16.mxu0 0
      %1953 = vmatpush1.bf16.msra.mxu0 %v1827
      %1954 = vmatprep.subr.bf16.mxu0 0
      %1955 = vmatpush1.bf16.msra.mxu0 %v1828
      %1956 = vmatprep.subr.bf16.mxu0 0
      %1957 = vmatpush1.bf16.msra.mxu0 %v1829
      %1958 = vmatprep.subr.bf16.mxu0 0
      %1959 = vmatpush1.bf16.msra.mxu0 %v1830
      %1960 = vmatprep.subr.bf16.mxu0 0
      %1961 = vmatpush1.bf16.msra.mxu0 0
      %1962 = vmatprep.subr.bf16.mxu0 0
      %1963 = vmatpush1.bf16.msra.mxu0 0
      %1964 = vmatprep.subr.bf16.mxu0 0
      %1965 = vmatpush1.bf16.msra.mxu0 0
      %1966 = vmatprep.subr.bf16.mxu0 0
      %1967 = vmatpush1.bf16.msra.mxu0 0
      %1968 = vmatprep.subr.bf16.mxu0 0
      %1969 = vmatpush1.bf16.msra.mxu0 0
      %1970 = vmatprep.subr.bf16.mxu0 0
      %1971 = vmatpush1.bf16.msra.mxu0 0
      %1972 = vmatprep.subr.bf16.mxu0 0
      %1973 = vmatpush1.bf16.msra.mxu0 0
      %1974 = vmatprep.subr.bf16.mxu0 0
      %1975 = vmatpush1.bf16.msra.mxu0 0
      %1976 = vmatprep.subr.bf16.mxu0 0
      %1977 = vmatpush1.bf16.msra.mxu0 0
      %1978 = vmatprep.subr.bf16.mxu0 0
      %1979 = vmatpush1.bf16.msra.mxu0 0
      %1980 = vmatprep.subr.bf16.mxu0 0
      %1981 = vmatpush1.bf16.msra.mxu0 0
      %1982 = vmatprep.subr.bf16.mxu0 0
      %1983 = vmatpush1.bf16.msra.mxu0 0
      %1984 = vmatprep.mubr.bf16.mxu0 0
      %1985 = vmatmul.mubr.bf16.gmra.mrb[0].mxu0 %v1868
      %v1986 = vpop.f32.mrb[0].mxu0
      %v1987 = vadd.f32 %v1946, %v1986
      %v1988 = vpop.f32.mrb[0].mxu0
      %v1989 = vpop.f32.mrb[0].mxu0
      %v1990 = vadd.f32 %v1949, %v1989
      %v1991 = vpop.f32.mrb[0].mxu0
      %1992 = vdwg.mxu0
      %v1993 = vcombine.low %v1307, %v1323
      %v1994 = vcombine.high %v1307, %v1323
      %v1995 = vcombine.low %v1339, %v1355
      %v1996 = vcombine.high %v1339, %v1355
      %v1998 = vunpack.c.l.s4 1983009808
      %v1999 = vunpack.c.0.s8 %v1998
      %v2000 = vlaneseq
      %v2001 = vshrl.u32 %v2000, 7
      %v2002 = vsub.s32 %v1999, %v2001
      %v2003 = vrot.slane %v1993, %v2002
      %v2005 = vunpack.c.l.s4 1983009808
      %v2006 = vunpack.c.0.s8 %v2005
      %v2007 = vlaneseq
      %v2008 = vshrl.u32 %v2007, 7
      %v2009 = vsub.s32 %v2006, %v2008
      %v2010 = vrot.slane %v1994, %v2009
      %v2012 = vunpack.c.l.s4 1983009808
      %v2013 = vunpack.c.0.s8 %v2012
      %v2014 = vlaneseq
      %v2015 = vshrl.u32 %v2014, 7
      %v2016 = vsub.s32 %v2013, %v2015
      %v2017 = vrot.slane %v1995, %v2016
      %v2019 = vunpack.c.l.s4 1983009808
      %v2020 = vunpack.c.0.s8 %v2019
      %v2021 = vlaneseq
      %v2022 = vshrl.u32 %v2021, 7
      %v2023 = vsub.s32 %v2020, %v2022
      %v2024 = vrot.slane %v1996, %v2023
      %v2025 = vcombine.low %v2003, %v2017
      %v2026 = vcombine.high %v2003, %v2017
      %v2027 = vcombine.low %v2010, %v2024
      %v2066 = vunpack.c.l.b16 %v844
      %v2067 = vunpack.c.l.b16 %v845
      %v2068 = vunpack.c.l.b16 %v846
      %v2069 = vunpack.c.l.b16 %v847
      %v2070 = vunpack.c.l.b16 %v848
      %v2071 = vunpack.c.l.b16 %v849
      %v2072 = vunpack.c.l.b16 %v850
      %v2073 = vunpack.c.l.b16 %v851
      %v2074 = vunpack.c.l.b16 %v852
      %v2075 = vunpack.c.l.b16 %v853
      %v2076 = vunpack.c.l.b16 %v854
      %v2077 = vunpack.c.l.b16 %v855
      %v2078 = vunpack.c.l.b16 %v856
      %v2079 = vunpack.c.l.b16 %v857
      %v2080 = vunpack.c.l.b16 %v858
      %v2081 = vunpack.c.l.b16 %v859
      %v2082 = vunpack.c.l.b16 %v860
      %v2083 = vunpack.c.l.b16 %v861
      %v2084 = vunpack.c.l.b16 %v862
      %v2085 = vunpack.c.l.b16 %v863
      %v2086 = vunpack.c.l.b16 %v864
      %v2087 = vunpack.c.l.b16 %v865
      %v2088 = vunpack.c.l.b16 %v866
      %v2089 = vunpack.c.l.b16 %v867
      %v2090 = vunpack.c.l.b16 %v868
      %v2091 = vunpack.c.l.b16 %v869
      %v2092 = vunpack.c.l.b16 %v870
      %v2093 = vunpack.c.l.b16 %v871
      %v2094 = vunpack.c.l.b16 %v872
      %v2095 = vunpack.c.l.b16 %v873
      %v2096 = vunpack.c.l.b16 %v874
      %v2097 = vunpack.c.l.b16 %v875
      %v2098 = vunpack.c.l.b16 %v876
      %v2099 = vunpack.c.l.b16 %v877
      %v2100 = vunpack.c.l.b16 %v878
      %v2101 = vunpack.c.l.b16 %v879
      %v2102 = vpack.c.b16 %v2067, %v2066
      %v2103 = vpack.c.b16 %v2069, %v2068
      %v2104 = vpack.c.b16 %v2071, %v2070
      %v2105 = vpack.c.b16 %v2073, %v2072
      %v2106 = vpack.c.b16 %v2075, %v2074
      %v2107 = vpack.c.b16 %v2077, %v2076
      %v2108 = vpack.c.b16 %v2079, %v2078
      %v2109 = vpack.c.b16 %v2081, %v2080
      %v2110 = vpack.c.b16 %v2083, %v2082
      %v2111 = vpack.c.b16 %v2085, %v2084
      %v2112 = vpack.c.b16 %v2087, %v2086
      %v2113 = vpack.c.b16 %v2089, %v2088
      %v2114 = vpack.c.b16 %v2091, %v2090
      %v2115 = vpack.c.b16 %v2093, %v2092
      %v2116 = vpack.c.b16 %v2095, %v2094
      %v2117 = vpack.c.b16 %v2097, %v2096
      %v2118 = vpack.c.b16 %v2099, %v2098
      %v2119 = vpack.c.b16 %v2101, %v2100
      %v2139 = vsel %vm1229, %v2027, 0
      %2141 = vmatprep.subr.bf16.mxu0 0
      %2142 = vmatpush1.bf16.msra.mxu0 %v2102
      %2143 = vmatprep.subr.bf16.mxu0 0
      %2144 = vmatpush1.bf16.msra.mxu0 %v2103
      %2145 = vmatprep.subr.bf16.mxu0 0
      %2146 = vmatpush1.bf16.msra.mxu0 %v2104
      %2147 = vmatprep.subr.bf16.mxu0 0
      %2148 = vmatpush1.bf16.msra.mxu0 %v2105
      %2149 = vmatprep.subr.bf16.mxu0 0
      %2150 = vmatpush1.bf16.msra.mxu0 %v2106
      %2151 = vmatprep.subr.bf16.mxu0 0
      %2152 = vmatpush1.bf16.msra.mxu0 %v2107
      %2153 = vmatprep.subr.bf16.mxu0 0
      %2154 = vmatpush1.bf16.msra.mxu0 %v2108
      %2155 = vmatprep.subr.bf16.mxu0 0
      %2156 = vmatpush1.bf16.msra.mxu0 %v2109
      %2157 = vmatprep.subr.bf16.mxu0 0
      %2158 = vmatpush1.bf16.msra.mxu0 %v2110
      %2159 = vmatprep.subr.bf16.mxu0 0
      %2160 = vmatpush1.bf16.msra.mxu0 %v2111
      %2161 = vmatprep.subr.bf16.mxu0 0
      %2162 = vmatpush1.bf16.msra.mxu0 %v2112
      %2163 = vmatprep.subr.bf16.mxu0 0
      %2164 = vmatpush1.bf16.msra.mxu0 %v2113
      %2165 = vmatprep.subr.bf16.mxu0 0
      %2166 = vmatpush1.bf16.msra.mxu0 %v2114
      %2167 = vmatprep.subr.bf16.mxu0 0
      %2168 = vmatpush1.bf16.msra.mxu0 %v2115
      %2169 = vmatprep.subr.bf16.mxu0 0
      %2170 = vmatpush1.bf16.msra.mxu0 %v2116
      %2171 = vmatprep.subr.bf16.mxu0 0
      %2172 = vmatpush1.bf16.msra.mxu0 %v2117
      %2173 = vmatprep.mubr.bf16.mxu0 %v2026
      %2174 = vmatmul.mubr.bf16.gmra.mrb[0].mxu0 %v2025
      %v2175 = vpop.f32.mrb[0].mxu0
      %v2176 = vadd.f32 %v1987, %v2175
      %v2177 = vpop.f32.mrb[0].mxu0
      %v2178 = vpop.f32.mrb[0].mxu0
      %v2179 = vadd.f32 %v1990, %v2178
      %v2180 = vpop.f32.mrb[0].mxu0
      %2181 = vdwg.mxu0
      %2182 = vmatprep.subr.bf16.mxu0 0
      %2183 = vmatpush1.bf16.msra.mxu0 %v2118
      %2184 = vmatprep.subr.bf16.mxu0 0
      %2185 = vmatpush1.bf16.msra.mxu0 %v2119
      %2186 = vmatprep.subr.bf16.mxu0 0
      %2187 = vmatpush1.bf16.msra.mxu0 0
      %2188 = vmatprep.subr.bf16.mxu0 0
      %2189 = vmatpush1.bf16.msra.mxu0 0
      %2190 = vmatprep.subr.bf16.mxu0 0
      %2191 = vmatpush1.bf16.msra.mxu0 0
      %2192 = vmatprep.subr.bf16.mxu0 0
      %2193 = vmatpush1.bf16.msra.mxu0 0
      %2194 = vmatprep.subr.bf16.mxu0 0
      %2195 = vmatpush1.bf16.msra.mxu0 0
      %2196 = vmatprep.subr.bf16.mxu0 0
      %2197 = vmatpush1.bf16.msra.mxu0 0
      %2198 = vmatprep.subr.bf16.mxu0 0
      %2199 = vmatpush1.bf16.msra.mxu0 0
      %2200 = vmatprep.subr.bf16.mxu0 0
      %2201 = vmatpush1.bf16.msra.mxu0 0
      %2202 = vmatprep.subr.bf16.mxu0 0
      %2203 = vmatpush1.bf16.msra.mxu0 0
      %2204 = vmatprep.subr.bf16.mxu0 0
      %2205 = vmatpush1.bf16.msra.mxu0 0
      %2206 = vmatprep.subr.bf16.mxu0 0
      %2207 = vmatpush1.bf16.msra.mxu0 0
      %2208 = vmatprep.subr.bf16.mxu0 0
      %2209 = vmatpush1.bf16.msra.mxu0 0
      %2210 = vmatprep.subr.bf16.mxu0 0
      %2211 = vmatpush1.bf16.msra.mxu0 0
      %2212 = vmatprep.subr.bf16.mxu0 0
      %2213 = vmatpush1.bf16.msra.mxu0 0
      %2214 = vmatprep.mubr.bf16.mxu0 0
      %2215 = vmatmul.mubr.bf16.gmra.mrb[0].mxu0 %v2139
      %v2216 = vpop.f32.mrb[0].mxu0
      %v2217 = vadd.f32 %v2176, %v2216
      %v2218 = vpop.f32.mrb[0].mxu0
      %v2219 = vpop.f32.mrb[0].mxu0
      %v2220 = vadd.f32 %v2179, %v2219
      %v2221 = vpop.f32.mrb[0].mxu0
      %2222 = vdwg.mxu0
      %v2224 = vlaneseq
      %v2225 = vshrl.u32 %v2224, 7
      %v2226 = vsub.s32 0, %v2225
      %v2227 = vrot.slane %v952, %v2226
      %v2229 = vadd.f32 %v2217, %v2227
      %v2230 = vadd.f32 %v2220, %v2227
      %v2231 = vmax.f32 %v2229, 0.0
      %v2232 = vmax.f32 %v2230, 0.0
      %v2233 = vpack.c.bf16 %v2232, %v2231
      %v2235 = vcombine.high %v2233, %v2233
      %v2237 = vunpack.c.l.s4 1983009808
      %v2238 = vunpack.c.0.s8 %v2237
      %v2239 = vlaneseq
      %v2240 = vshrl.u32 %v2239, 7
      %v2241 = vsub.s32 %v2238, %v2240
      %v2242 = vrot.slane %v2233, %v2241
      %v2244 = vunpack.c.l.s4 1983009808
      %v2245 = vunpack.c.0.s8 %v2244
      %v2246 = vlaneseq
      %v2247 = vshrl.u32 %v2246, 7
      %v2248 = vsub.s32 %v2245, %v2247
      %v2249 = vrot.slane %v2235, %v2248
      %v2250 = vcombine.high %v2242, %v2242
      %v2251 = vcombine.high %v2249, %v2249
      %v2253 = vshrl.u32 %v2242, 16
      %v2255 = vrot.slane %v2253, 7
      %v2256 = vshll.u32 %v2242, 16
      %v2258 = vor.u32 %v2255, %v2256
      %v2260 = vshrl.u32 %v2250, 16
      %v2262 = vrot.slane %v2260, 7
      %v2263 = vshll.u32 %v2250, 16
      %v2265 = vor.u32 %v2262, %v2263
      %v2267 = vshrl.u32 %v2249, 16
      %v2269 = vrot.slane %v2267, 7
      %v2270 = vshll.u32 %v2249, 16
      %v2272 = vor.u32 %v2269, %v2270
      %v2274 = vshrl.u32 %v2251, 16
      %v2276 = vrot.slane %v2274, 7
      %v2277 = vshll.u32 %v2251, 16
      %v2279 = vor.u32 %v2276, %v2277
      %v2284 = vsel %vm1122, 0, %v2258
      %v2285 = vsel %vm1122, 0, %v2265
      %v2286 = vsel %vm1122, 0, %v2272
      %v2287 = vsel %vm1122, 0, %v2279
      %v2288 = vsel %vm1130, %v2284, 0
      %v2289 = vsel %vm1130, %v2285, 0
      %v2290 = vsel %vm1130, %v2286, 0
      %v2291 = vsel %vm1130, %v2287, 0
      %v2293 = vshrl.u32 %v2288, 16
      %v2295 = vshll.u32 %v2288, 16
      %v2297 = vrot.slane %v2295, 1
      %v2298 = vor.u32 %v2293, %v2297
      %v2300 = vshrl.u32 %v2289, 16
      %v2302 = vshll.u32 %v2289, 16
      %v2304 = vrot.slane %v2302, 1
      %v2305 = vor.u32 %v2300, %v2304
      %v2307 = vshrl.u32 %v2290, 16
      %v2309 = vshll.u32 %v2290, 16
      %v2311 = vrot.slane %v2309, 1
      %v2312 = vor.u32 %v2307, %v2311
      %2313 = vrot.lane.b32.xlu0 %v2298, 32
      %v2314 = vpop.permute.xlu0 %2313
      %2315 = vrot.lane.b32.xlu0 %v2305, 32
      %v2316 = vpop.permute.xlu0 %2315
      %2317 = vrot.lane.b32.xlu0 %v2312, 32
      %v2318 = vpop.permute.xlu0 %2317
      %v2322 = vrot.slane %v2288, 1
      %v2323 = vrot.slane %v2289, 1
      %v2324 = vrot.slane %v2290, 1
      %2325 = vrot.lane.b32.xlu0 %v2322, 64
      %v2326 = vpop.permute.xlu0 %2325
      %2327 = vrot.lane.b32.xlu0 %v2323, 64
      %v2328 = vpop.permute.xlu0 %2327
      %2329 = vrot.lane.b32.xlu0 %v2324, 64
      %v2330 = vpop.permute.xlu0 %2329
      %2332 = vrot.lane.b32.xlu0 %v2288, 96
      %v2333 = vpop.permute.xlu0 %2332
      %2334 = vrot.lane.b32.xlu0 %v2289, 96
      %v2335 = vpop.permute.xlu0 %2334
      %2336 = vrot.lane.b32.xlu0 %v2290, 96
      %v2337 = vpop.permute.xlu0 %2336
      %2338 = vrot.lane.b32.xlu0 %v2291, 96
      %v2339 = vpop.permute.xlu0 %2338
      %v2341 = vshrl.u32 %v2291, 16
      %v2343 = vshll.u32 %v2291, 16
      %v2345 = vrot.slane %v2343, 1
      %v2346 = vor.u32 %v2341, %v2345
      %v2347 = vrot.slane %v2291, 1
      %2348 = vrot.lane.b32.xlu0 %v2322, 32
      %v2349 = vpop.permute.xlu0 %2348
      %2350 = vrot.lane.b32.xlu0 %v2323, 32
      %v2351 = vpop.permute.xlu0 %2350
      %2352 = vrot.lane.b32.xlu0 %v2324, 32
      %v2353 = vpop.permute.xlu0 %2352
      %2354 = vrot.lane.b32.xlu0 %v2347, 32
      %v2355 = vpop.permute.xlu0 %2354
      %2356 = vrot.lane.b32.xlu0 %v2289, 64
      %v2357 = vpop.permute.xlu0 %2356
      %2358 = vrot.lane.b32.xlu0 %v2290, 64
      %v2359 = vpop.permute.xlu0 %2358
      %2360 = vrot.lane.b32.xlu0 %v2291, 64
      %v2361 = vpop.permute.xlu0 %2360
      %2362 = vrot.lane.b32.xlu0 %v2305, 96
      %v2363 = vpop.permute.xlu0 %2362
      %2364 = vrot.lane.b32.xlu0 %v2312, 96
      %v2365 = vpop.permute.xlu0 %2364
      %2366 = vrot.lane.b32.xlu0 %v2346, 96
      %v2367 = vpop.permute.xlu0 %2366
      %v2369 = vsel %vm1229, %v2288, %v2314
      %v2371 = vsel %vm1229, %v2289, %v2316
      %v2373 = vsel %vm1229, %v2290, %v2318
      %v2375 = vsel %vm1238, %v2369, %v2326
      %v2377 = vsel %vm1238, %v2371, %v2328
      %v2379 = vsel %vm1238, %v2373, %v2330
      %v2381 = vsel %vm1247, %v1240, %v2333
      %v2383 = vsel %vm1247, %v2375, %v2335
      %v2385 = vsel %vm1247, %v2377, %v2337
      %v2387 = vsel %vm1247, %v2379, %v2339
      %v2390 = vsel %vm1229, %v2298, %v2349
      %v2393 = vsel %vm1229, %v2305, %v2351
      %v2396 = vsel %vm1229, %v2312, %v2353
      %v2399 = vsel %vm1229, %v2346, %v2355
      %v2401 = vsel %vm1238, %v2390, %v2357
      %v2403 = vsel %vm1238, %v2393, %v2359
      %v2405 = vsel %vm1238, %v2396, %v2361
      %v2406 = vsel %vm1238, %v2399, %v1220
      %v2408 = vsel %vm1247, %v2401, %v2363
      %v2410 = vsel %vm1247, %v2403, %v2365
      %v2412 = vsel %vm1247, %v2405, %v2367
      %v2413 = vsel %vm1247, %v2406, %v1228
      %v2422 = vcombine.low %v2381, %v2408
      %v2424 = vunpack.c.l.s4 1983009808
      %v2425 = vunpack.c.0.s8 %v2424
      %v2426 = vlaneseq
      %v2427 = vshrl.u32 %v2426, 7
      %v2428 = vsub.s32 %v2425, %v2427
      %v2429 = vrot.slane %v2422, %v2428
      %v2431 = vunpack.c.l.s4 1983009808
      %v2432 = vunpack.c.0.s8 %v2431
      %v2433 = vlaneseq
      %v2434 = vshrl.u32 %v2433, 7
      %v2435 = vsub.s32 %v2432, %v2434
      %v2436 = vrot.slane %v2323, %v2435
      %v2437 = vcombine.low %v2429, %v2436
      %v2438 = vcombine.low %v2383, %v2410
      %v2440 = vunpack.c.l.s4 1983009808
      %v2441 = vunpack.c.0.s8 %v2440
      %v2442 = vlaneseq
      %v2443 = vshrl.u32 %v2442, 7
      %v2444 = vsub.s32 %v2441, %v2443
      %v2445 = vrot.slane %v2438, %v2444
      %v2447 = vunpack.c.l.s4 1983009808
      %v2448 = vunpack.c.0.s8 %v2447
      %v2449 = vlaneseq
      %v2450 = vshrl.u32 %v2449, 7
      %v2451 = vsub.s32 %v2448, %v2450
      %v2452 = vrot.slane %v2324, %v2451
      %v2453 = vcombine.low %v2445, %v2452
      %v2454 = vcombine.low %v2385, %v2412
      %v2456 = vunpack.c.l.s4 1983009808
      %v2457 = vunpack.c.0.s8 %v2456
      %v2458 = vlaneseq
      %v2459 = vshrl.u32 %v2458, 7
      %v2460 = vsub.s32 %v2457, %v2459
      %v2461 = vrot.slane %v2454, %v2460
      %v2463 = vunpack.c.l.s4 1983009808
      %v2464 = vunpack.c.0.s8 %v2463
      %v2465 = vlaneseq
      %v2466 = vshrl.u32 %v2465, 7
      %v2467 = vsub.s32 %v2464, %v2466
      %v2468 = vrot.slane %v2347, %v2467
      %v2469 = vcombine.low %v2461, %v2468
      %v2470 = vcombine.low %v2387, %v2413
      %v2472 = vunpack.c.l.s4 1983009808
      %v2473 = vunpack.c.0.s8 %v2472
      %v2474 = vlaneseq
      %v2475 = vshrl.u32 %v2474, 7
      %v2476 = vsub.s32 %v2473, %v2475
      %v2477 = vrot.slane %v2470, %v2476
      %v2478 = vcombine.low %v2477, %v1354
      %v2480 = vlaneseq
      %v2481 = vshrl.u32 %v2480, 7
      %v2482 = vsub.s32 0, %v2481
      %v2483 = vrot.slane %v989, %v2482
      %v2485 = vcombine.low %v2437, %v2453
      %v2486 = vcombine.high %v2437, %v2453
      %v2487 = vcombine.low %v2469, %v2478
      %v2488 = vcombine.high %v2469, %v2478
      %v2490 = vunpack.c.l.s4 1983009808
      %v2491 = vunpack.c.0.s8 %v2490
      %v2492 = vlaneseq
      %v2493 = vshrl.u32 %v2492, 7
      %v2494 = vsub.s32 %v2491, %v2493
      %v2495 = vrot.slane %v2485, %v2494
      %v2497 = vunpack.c.l.s4 1983009808
      %v2498 = vunpack.c.0.s8 %v2497
      %v2499 = vlaneseq
      %v2500 = vshrl.u32 %v2499, 7
      %v2501 = vsub.s32 %v2498, %v2500
      %v2502 = vrot.slane %v2486, %v2501
      %v2504 = vunpack.c.l.s4 1983009808
      %v2505 = vunpack.c.0.s8 %v2504
      %v2506 = vlaneseq
      %v2507 = vshrl.u32 %v2506, 7
      %v2508 = vsub.s32 %v2505, %v2507
      %v2509 = vrot.slane %v2487, %v2508
      %v2511 = vunpack.c.l.s4 1983009808
      %v2512 = vunpack.c.0.s8 %v2511
      %v2513 = vlaneseq
      %v2514 = vshrl.u32 %v2513, 7
      %v2515 = vsub.s32 %v2512, %v2514
      %v2516 = vrot.slane %v2488, %v2515
      %v2517 = vcombine.low %v2495, %v2509
      %v2518 = vcombine.high %v2495, %v2509
      %v2519 = vcombine.low %v2502, %v2516
      %v2558 = vunpack.c.l.b16 %v953
      %v2559 = vunpack.c.l.b16 %v954
      %v2560 = vunpack.c.l.b16 %v955
      %v2561 = vunpack.c.l.b16 %v956
      %v2562 = vunpack.c.l.b16 %v957
      %v2563 = vunpack.c.l.b16 %v958
      %v2564 = vunpack.c.l.b16 %v959
      %v2565 = vunpack.c.l.b16 %v960
      %v2566 = vunpack.c.l.b16 %v961
      %v2567 = vunpack.c.l.b16 %v962
      %v2568 = vunpack.c.l.b16 %v963
      %v2569 = vunpack.c.l.b16 %v964
      %v2570 = vunpack.c.l.b16 %v965
      %v2571 = vunpack.c.l.b16 %v966
      %v2572 = vunpack.c.l.b16 %v967
      %v2573 = vunpack.c.l.b16 %v968
      %v2574 = vunpack.c.l.b16 %v969
      %v2575 = vunpack.c.l.b16 %v970
      %v2576 = vunpack.c.l.b16 %v971
      %v2577 = vunpack.c.l.b16 %v972
      %v2578 = vunpack.c.l.b16 %v973
      %v2579 = vunpack.c.l.b16 %v974
      %v2580 = vunpack.c.l.b16 %v975
      %v2581 = vunpack.c.l.b16 %v976
      %v2582 = vunpack.c.l.b16 %v977
      %v2583 = vunpack.c.l.b16 %v978
      %v2584 = vunpack.c.l.b16 %v979
      %v2585 = vunpack.c.l.b16 %v980
      %v2586 = vunpack.c.l.b16 %v981
      %v2587 = vunpack.c.l.b16 %v982
      %v2588 = vunpack.c.l.b16 %v983
      %v2589 = vunpack.c.l.b16 %v984
      %v2590 = vunpack.c.l.b16 %v985
      %v2591 = vunpack.c.l.b16 %v986
      %v2592 = vunpack.c.l.b16 %v987
      %v2593 = vunpack.c.l.b16 %v988
      %v2594 = vpack.c.b16 %v2559, %v2558
      %v2595 = vpack.c.b16 %v2561, %v2560
      %v2596 = vpack.c.b16 %v2563, %v2562
      %v2597 = vpack.c.b16 %v2565, %v2564
      %v2598 = vpack.c.b16 %v2567, %v2566
      %v2599 = vpack.c.b16 %v2569, %v2568
      %v2600 = vpack.c.b16 %v2571, %v2570
      %v2601 = vpack.c.b16 %v2573, %v2572
      %v2602 = vpack.c.b16 %v2575, %v2574
      %v2603 = vpack.c.b16 %v2577, %v2576
      %v2604 = vpack.c.b16 %v2579, %v2578
      %v2605 = vpack.c.b16 %v2581, %v2580
      %v2606 = vpack.c.b16 %v2583, %v2582
      %v2607 = vpack.c.b16 %v2585, %v2584
      %v2608 = vpack.c.b16 %v2587, %v2586
      %v2609 = vpack.c.b16 %v2589, %v2588
      %v2610 = vpack.c.b16 %v2591, %v2590
      %v2611 = vpack.c.b16 %v2593, %v2592
      %v2631 = vsel %vm1229, %v2519, 0
      %2633 = vmatprep.subr.bf16.mxu0 0
      %2634 = vmatpush1.bf16.msra.mxu0 %v2594
      %2635 = vmatprep.subr.bf16.mxu0 0
      %2636 = vmatpush1.bf16.msra.mxu0 %v2595
      %2637 = vmatprep.subr.bf16.mxu0 0
      %2638 = vmatpush1.bf16.msra.mxu0 %v2596
      %2639 = vmatprep.subr.bf16.mxu0 0
      %2640 = vmatpush1.bf16.msra.mxu0 %v2597
      %2641 = vmatprep.subr.bf16.mxu0 0
      %2642 = vmatpush1.bf16.msra.mxu0 %v2598
      %2643 = vmatprep.subr.bf16.mxu0 0
      %2644 = vmatpush1.bf16.msra.mxu0 %v2599
      %2645 = vmatprep.subr.bf16.mxu0 0
      %2646 = vmatpush1.bf16.msra.mxu0 %v2600
      %2647 = vmatprep.subr.bf16.mxu0 0
      %2648 = vmatpush1.bf16.msra.mxu0 %v2601
      %2649 = vmatprep.subr.bf16.mxu0 0
      %2650 = vmatpush1.bf16.msra.mxu0 %v2602
      %2651 = vmatprep.subr.bf16.mxu0 0
      %2652 = vmatpush1.bf16.msra.mxu0 %v2603
      %2653 = vmatprep.subr.bf16.mxu0 0
      %2654 = vmatpush1.bf16.msra.mxu0 %v2604
      %2655 = vmatprep.subr.bf16.mxu0 0
      %2656 = vmatpush1.bf16.msra.mxu0 %v2605
      %2657 = vmatprep.subr.bf16.mxu0 0
      %2658 = vmatpush1.bf16.msra.mxu0 %v2606
      %2659 = vmatprep.subr.bf16.mxu0 0
      %2660 = vmatpush1.bf16.msra.mxu0 %v2607
      %2661 = vmatprep.subr.bf16.mxu0 0
      %2662 = vmatpush1.bf16.msra.mxu0 %v2608
      %2663 = vmatprep.subr.bf16.mxu0 0
      %2664 = vmatpush1.bf16.msra.mxu0 %v2609
      %2665 = vmatprep.mubr.bf16.mxu0 %v2518
      %2666 = vmatmul.mubr.bf16.gmra.mrb[0].mxu0 %v2517
      %v2667 = vpop.f32.mrb[0].mxu0
      %v2668 = vadd.f32 %v2483, %v2667
      %v2669 = vpop.f32.mrb[0].mxu0
      %v2670 = vpop.f32.mrb[0].mxu0
      %v2671 = vadd.f32 %v2483, %v2670
      %v2672 = vpop.f32.mrb[0].mxu0
      %2673 = vdwg.mxu0
      %2674 = vmatprep.subr.bf16.mxu0 0
      %2675 = vmatpush1.bf16.msra.mxu0 %v2610
      %2676 = vmatprep.subr.bf16.mxu0 0
      %2677 = vmatpush1.bf16.msra.mxu0 %v2611
      %2678 = vmatprep.subr.bf16.mxu0 0
      %2679 = vmatpush1.bf16.msra.mxu0 0
      %2680 = vmatprep.subr.bf16.mxu0 0
      %2681 = vmatpush1.bf16.msra.mxu0 0
      %2682 = vmatprep.subr.bf16.mxu0 0
      %2683 = vmatpush1.bf16.msra.mxu0 0
      %2684 = vmatprep.subr.bf16.mxu0 0
      %2685 = vmatpush1.bf16.msra.mxu0 0
      %2686 = vmatprep.subr.bf16.mxu0 0
      %2687 = vmatpush1.bf16.msra.mxu0 0
      %2688 = vmatprep.subr.bf16.mxu0 0
      %2689 = vmatpush1.bf16.msra.mxu0 0
      %2690 = vmatprep.subr.bf16.mxu0 0
      %2691 = vmatpush1.bf16.msra.mxu0 0
      %2692 = vmatprep.subr.bf16.mxu0 0
      %2693 = vmatpush1.bf16.msra.mxu0 0
      %2694 = vmatprep.subr.bf16.mxu0 0
      %2695 = vmatpush1.bf16.msra.mxu0 0
      %2696 = vmatprep.subr.bf16.mxu0 0
      %2697 = vmatpush1.bf16.msra.mxu0 0
      %2698 = vmatprep.subr.bf16.mxu0 0
      %2699 = vmatpush1.bf16.msra.mxu0 0
      %2700 = vmatprep.subr.bf16.mxu0 0
      %2701 = vmatpush1.bf16.msra.mxu0 0
      %2702 = vmatprep.subr.bf16.mxu0 0
      %2703 = vmatpush1.bf16.msra.mxu0 0
      %2704 = vmatprep.subr.bf16.mxu0 0
      %2705 = vmatpush1.bf16.msra.mxu0 0
      %2706 = vmatprep.mubr.bf16.mxu0 0
      %2707 = vmatmul.mubr.bf16.gmra.mrb[0].mxu0 %v2631
      %v2708 = vpop.f32.mrb[0].mxu0
      %v2709 = vadd.f32 %v2668, %v2708
      %v2710 = vpop.f32.mrb[0].mxu0
      %v2711 = vpop.f32.mrb[0].mxu0
      %v2712 = vadd.f32 %v2671, %v2711
      %v2713 = vpop.f32.mrb[0].mxu0
      %2714 = vdwg.mxu0
      %v2715 = vmax.f32 %v2709, 0.0
      %v2716 = vmax.f32 %v2712, 0.0
      %v2717 = vpack.c.bf16 %v2716, %v2715
      %v2718 = vld [vmem:[%s819] sm:$0xf]
      %v2719 = vld [vmem:[%s819 + $0x4] sm:$0xf]
      %v2720 = vld [vmem:[%s819 + $0x8] sm:$0xf]
      %v2721 = vld [vmem:[%s819 + $0xc] sm:$0xf]
      %v2722 = vld [vmem:[%s819 + $0x10] sm:$0xf]
      %v2723 = vld [vmem:[%s819 + $0x14] sm:$0xf]
      %v2724 = vld [vmem:[%s819 + $0x18] sm:$0xf]
      %v2725 = vld [vmem:[%s819 + $0x1c] sm:$0xf]
      %v2726 = vld [vmem:[%s5] sm:$0xf]
      %v2727 = vld [vmem:[%s5 + $0x4] sm:$0xf]
      %v2728 = vld [vmem:[%s5 + $0x8] sm:$0xf]
      %v2729 = vld [vmem:[%s5 + $0xc] sm:$0xf]
      %v2730 = vld [vmem:[%s5 + $0x10] sm:$0xf]
      %v2731 = vld [vmem:[%s5 + $0x14] sm:$0xf]
      %v2732 = vld [vmem:[%s5 + $0x18] sm:$0xf]
      %v2733 = vld [vmem:[%s5 + $0x1c] sm:$0xf]
      %v2734 = vld [vmem:[%s12] sm:$0xf]
      %v2735 = vld [vmem:[%s12 + $0x4] sm:$0xf]
      %v2736 = vld [vmem:[%s12 + $0x8] sm:$0xf]
      %v2737 = vld [vmem:[%s12 + $0xc] sm:$0xf]
      %v2738 = vld [vmem:[%s12 + $0x10] sm:$0xf]
      %v2739 = vld [vmem:[%s12 + $0x14] sm:$0xf]
      %v2740 = vld [vmem:[%s12 + $0x18] sm:$0xf]
      %v2741 = vld [vmem:[%s12 + $0x1c] sm:$0xf]
      %v2742 = vld [vmem:[%s12 + $0x20] sm:$0xf]
      %v2743 = vld [vmem:[%s12 + $0x24] sm:$0xf]
      %v2744 = vld [vmem:[%s12 + $0x28] sm:$0xf]
      %v2745 = vld [vmem:[%s12 + $0x2c] sm:$0xf]
      %v2746 = vld [vmem:[%s12 + $0x30] sm:$0xf]
      %v2747 = vld [vmem:[%s12 + $0x34] sm:$0xf]
      %v2748 = vld [vmem:[%s12 + $0x38] sm:$0xf]
      %v2749 = vld [vmem:[%s12 + $0x3c] sm:$0xf]
      %v2750 = vld [vmem:[%s12 + $0x40] sm:$0xf]
      %v2751 = vld [vmem:[%s12 + $0x44] sm:$0xf]
      %v2752 = vld [vmem:[%s13] sm:$0xf]
      %v2753 = vld [vmem:[%s13 + $0x4] sm:$0xf]
      %v2754 = vld [vmem:[%s13 + $0x8] sm:$0xf]
      %v2755 = vld [vmem:[%s13 + $0xc] sm:$0xf]
      %v2756 = vld [vmem:[%s13 + $0x10] sm:$0xf]
      %v2757 = vld [vmem:[%s13 + $0x14] sm:$0xf]
      %v2758 = vld [vmem:[%s13 + $0x18] sm:$0xf]
      %v2759 = vld [vmem:[%s13 + $0x1c] sm:$0xf]
      %v2760 = vld [vmem:[%s13 + $0x20] sm:$0xf]
      %v2761 = vld [vmem:[%s13 + $0x24] sm:$0xf]
      %v2762 = vld [vmem:[%s13 + $0x28] sm:$0xf]
      %v2763 = vld [vmem:[%s13 + $0x2c] sm:$0xf]
      %v2764 = vld [vmem:[%s13 + $0x30] sm:$0xf]
      %v2765 = vld [vmem:[%s13 + $0x34] sm:$0xf]
      %v2766 = vld [vmem:[%s13 + $0x38] sm:$0xf]
      %v2767 = vld [vmem:[%s13 + $0x3c] sm:$0xf]
      %v2768 = vld [vmem:[%s13 + $0x40] sm:$0xf]
      %v2769 = vld [vmem:[%s13 + $0x44] sm:$0xf]
      %v2770 = vld [vmem:[%s13 + $0x48] sm:$0xf]
      %v2771 = vld [vmem:[%s13 + $0x4c] sm:$0xf]
      %v2772 = vld [vmem:[%s13 + $0x50] sm:$0xf]
      %v2773 = vld [vmem:[%s13 + $0x54] sm:$0xf]
      %v2774 = vld [vmem:[%s13 + $0x58] sm:$0xf]
      %v2775 = vld [vmem:[%s13 + $0x5c] sm:$0xf]
      %v2776 = vld [vmem:[%s13 + $0x60] sm:$0xf]
      %v2777 = vld [vmem:[%s13 + $0x64] sm:$0xf]
      %v2778 = vld [vmem:[%s13 + $0x68] sm:$0xf]
      %v2779 = vld [vmem:[%s13 + $0x6c] sm:$0xf]
      %v2780 = vld [vmem:[%s13 + $0x70] sm:$0xf]
      %v2781 = vld [vmem:[%s13 + $0x74] sm:$0xf]
      %v2782 = vld [vmem:[%s13 + $0x78] sm:$0xf]
      %v2783 = vld [vmem:[%s13 + $0x7c] sm:$0xf]
      %v2784 = vld [vmem:[%s13 + $0x80] sm:$0xf]
      %v2785 = vld [vmem:[%s13 + $0x84] sm:$0xf]
      %v2786 = vld [vmem:[%s13 + $0x88] sm:$0xf]
      %v2787 = vld [vmem:[%s13 + $0x8c] sm:$0xf]
      %v2788 = vld [vmem:[%s14] sm:$0x1]
      %v2789 = vld [vmem:[%s15] sm:$0xf]
      %v2790 = vld [vmem:[%s15 + $0x4] sm:$0xf]
      %v2791 = vld [vmem:[%s15 + $0x8] sm:$0xf]
      %v2792 = vld [vmem:[%s15 + $0xc] sm:$0xf]
      %v2793 = vld [vmem:[%s15 + $0x10] sm:$0xf]
      %v2794 = vld [vmem:[%s15 + $0x14] sm:$0xf]
      %v2795 = vld [vmem:[%s15 + $0x18] sm:$0xf]
      %v2796 = vld [vmem:[%s15 + $0x1c] sm:$0xf]
      %v2797 = vld [vmem:[%s15 + $0x20] sm:$0xf]
      %v2798 = vld [vmem:[%s15 + $0x24] sm:$0xf]
      %v2799 = vld [vmem:[%s15 + $0x28] sm:$0xf]
      %v2800 = vld [vmem:[%s15 + $0x2c] sm:$0xf]
      %v2801 = vld [vmem:[%s15 + $0x30] sm:$0xf]
      %v2802 = vld [vmem:[%s15 + $0x34] sm:$0xf]
      %v2803 = vld [vmem:[%s15 + $0x38] sm:$0xf]
      %v2804 = vld [vmem:[%s15 + $0x3c] sm:$0xf]
      %v2805 = vld [vmem:[%s15 + $0x40] sm:$0xf]
      %v2806 = vld [vmem:[%s15 + $0x44] sm:$0xf]
      %v2807 = vld [vmem:[%s16] sm:$0x1]
      %v2816 = vunpack.c.l.b16 %v2726
      %v2817 = vunpack.c.l.b16 %v2727
      %v2818 = vunpack.c.l.b16 %v2728
      %v2819 = vunpack.c.l.b16 %v2729
      %v2820 = vunpack.c.l.b16 %v2730
      %v2821 = vunpack.c.l.b16 %v2731
      %v2822 = vunpack.c.l.b16 %v2732
      %v2823 = vunpack.c.l.b16 %v2733
      %v2824 = vpack.c.b16 %v2817, %v2816
      %v2825 = vpack.c.b16 %v2819, %v2818
      %v2826 = vpack.c.b16 %v2821, %v2820
      %v2827 = vpack.c.b16 %v2823, %v2822
      %vm2828 = vcmask 130048
      %v2830 = vsel %vm2828, %v2824, 0
      %v2833 = vsel %vm2828, %v2825, 0
      %v2836 = vsel %vm2828, %v2826, 0
      %v2839 = vsel %vm2828, %v2827, 0
      %2841 = vmatprep.subr.bf16.mxu0 0
      %2842 = vmatpush1.bf16.msra.mxu0 %v2717
      %2843 = vmatprep.subr.bf16.mxu0 0
      %2844 = vmatpush1.bf16.msra.mxu0 0
      %2845 = vmatprep.subr.bf16.mxu0 0
      %2846 = vmatpush1.bf16.msra.mxu0 0
      %2847 = vmatprep.subr.bf16.mxu0 0
      %2848 = vmatpush1.bf16.msra.mxu0 0
      %2849 = vmatprep.subr.bf16.mxu0 0
      %2850 = vmatpush1.bf16.msra.mxu0 0
      %2851 = vmatprep.subr.bf16.mxu0 0
      %2852 = vmatpush1.bf16.msra.mxu0 0
      %2853 = vmatprep.subr.bf16.mxu0 0
      %2854 = vmatpush1.bf16.msra.mxu0 0
      %2855 = vmatprep.subr.bf16.mxu0 0
      %2856 = vmatpush1.bf16.msra.mxu0 0
      %2857 = vmatprep.subr.bf16.mxu0 0
      %2858 = vmatpush1.bf16.msra.mxu0 0
      %2859 = vmatprep.subr.bf16.mxu0 0
      %2860 = vmatpush1.bf16.msra.mxu0 0
      %2861 = vmatprep.subr.bf16.mxu0 0
      %2862 = vmatpush1.bf16.msra.mxu0 0
      %2863 = vmatprep.subr.bf16.mxu0 0
      %2864 = vmatpush1.bf16.msra.mxu0 0
      %2865 = vmatprep.subr.bf16.mxu0 0
      %2866 = vmatpush1.bf16.msra.mxu0 0
      %2867 = vmatprep.subr.bf16.mxu0 0
      %2868 = vmatpush1.bf16.msra.mxu0 0
      %2869 = vmatprep.subr.bf16.mxu0 0
      %2870 = vmatpush1.bf16.msra.mxu0 0
      %2871 = vmatprep.subr.bf16.mxu0 0
      %2872 = vmatpush1.bf16.msra.mxu0 0
      %2873 = vmatprep.mubr.bf16.mxu0 0
      %2874 = vmatmul.mubr.bf16.gmra.mrb[0].mxu0 %v2830
      %v2875 = vpop.f32.mrb[0].mxu0
      %v2876 = vadd.f32 0.0, %v2875
      %v2877 = vpop.f32.mrb[0].mxu0
      %v2878 = vpop.f32.mrb[0].mxu0
      %v2879 = vadd.f32 0.0, %v2878
      %v2880 = vpop.f32.mrb[0].mxu0
      %2881 = vmatprep.mubr.bf16.mxu0 0
      %2882 = vmatmul.mubr.bf16.gmra.mrb[0].mxu0 %v2833
      %v2883 = vpop.f32.mrb[0].mxu0
      %v2884 = vadd.f32 0.0, %v2883
      %v2885 = vpop.f32.mrb[0].mxu0
      %v2886 = vpop.f32.mrb[0].mxu0
      %v2887 = vadd.f32 0.0, %v2886
      %v2888 = vpop.f32.mrb[0].mxu0
      %2889 = vmatprep.mubr.bf16.mxu0 0
      %2890 = vmatmul.mubr.bf16.gmra.mrb[0].mxu0 %v2836
      %v2891 = vpop.f32.mrb[0].mxu0
      %v2892 = vadd.f32 0.0, %v2891
      %v2893 = vpop.f32.mrb[0].mxu0
      %v2894 = vpop.f32.mrb[0].mxu0
      %v2895 = vadd.f32 0.0, %v2894
      %v2896 = vpop.f32.mrb[0].mxu0
      %2897 = vmatprep.mubr.bf16.mxu0 0
      %2898 = vmatmul.mubr.bf16.gmra.mrb[0].mxu0 %v2839
      %v2899 = vpop.f32.mrb[0].mxu0
      %v2900 = vadd.f32 0.0, %v2899
      %v2901 = vpop.f32.mrb[0].mxu0
      %v2902 = vpop.f32.mrb[0].mxu0
      %v2903 = vadd.f32 0.0, %v2902
      %v2904 = vpop.f32.mrb[0].mxu0
      %2905 = vdwg.mxu0
      %v2906 = vpack.c.bf16 %v2879, %v2876
      %v2907 = vpack.c.bf16 %v2887, %v2884
      %v2908 = vpack.c.bf16 %v2895, %v2892
      %v2909 = vpack.c.bf16 %v2903, %v2900
      %v2914 = vunpack.c.l.b16 %v2906
      %v2915 = vunpack.c.h.b16 %v2906
      %v2916 = vunpack.c.l.b16 %v2907
      %v2917 = vunpack.c.h.b16 %v2907
      %v2918 = vunpack.c.l.b16 %v2908
      %v2919 = vunpack.c.h.b16 %v2908
      %v2920 = vunpack.c.l.b16 %v2909
      %v2921 = vunpack.c.h.b16 %v2909
      %v2922 = vpack.c.b16 %v2914, %v2914
      %v2923 = vpack.c.b16 %v2915, %v2915
      %v2924 = vpack.c.b16 %v2916, %v2916
      %v2925 = vpack.c.b16 %v2917, %v2917
      %v2926 = vpack.c.b16 %v2918, %v2918
      %v2927 = vpack.c.b16 %v2919, %v2919
      %v2928 = vpack.c.b16 %v2920, %v2920
      %v2929 = vpack.c.b16 %v2921, %v2921
      %v2931 = vshrl.u32 %v2718, 16
      %v2933 = vrot.slane %v2931, 7
      %v2934 = vshll.u32 %v2718, 16
      %v2936 = vor.u32 %v2933, %v2934
      %v2938 = vshrl.u32 %v2719, 16
      %v2940 = vrot.slane %v2938, 7
      %v2941 = vshll.u32 %v2719, 16
      %v2943 = vor.u32 %v2940, %v2941
      %v2945 = vshrl.u32 %v2720, 16
      %v2947 = vrot.slane %v2945, 7
      %v2948 = vshll.u32 %v2720, 16
      %v2950 = vor.u32 %v2947, %v2948
      %v2952 = vshrl.u32 %v2721, 16
      %v2954 = vrot.slane %v2952, 7
      %v2955 = vshll.u32 %v2721, 16
      %v2957 = vor.u32 %v2954, %v2955
      %v2959 = vshrl.u32 %v2722, 16
      %v2961 = vrot.slane %v2959, 7
      %v2962 = vshll.u32 %v2722, 16
      %v2964 = vor.u32 %v2961, %v2962
      %v2966 = vshrl.u32 %v2723, 16
      %v2968 = vrot.slane %v2966, 7
      %v2969 = vshll.u32 %v2723, 16
      %v2971 = vor.u32 %v2968, %v2969
      %v2973 = vshrl.u32 %v2724, 16
      %v2975 = vrot.slane %v2973, 7
      %v2976 = vshll.u32 %v2724, 16
      %v2978 = vor.u32 %v2975, %v2976
      %v2980 = vshrl.u32 %v2725, 16
      %v2982 = vrot.slane %v2980, 7
      %v2983 = vshll.u32 %v2725, 16
      %v2985 = vor.u32 %v2982, %v2983
      %v2994 = vsel %vm1122, 0, %v2936
      %v2995 = vsel %vm1122, 0, %v2943
      %v2996 = vsel %vm1122, 0, %v2950
      %v2997 = vsel %vm1122, 0, %v2957
      %v2998 = vsel %vm1122, 0, %v2964
      %v2999 = vsel %vm1122, 0, %v2971
      %v3000 = vsel %vm1122, 0, %v2978
      %v3001 = vsel %vm1122, 0, %v2985
      %vm3002 = vcmask 1044480
      %vm3003 = vsmask.f32 4352
      %vm3004 = vmand %vm3002, %vm3003
      %v3005 = vsel %vm3004, %v1123, 0
      %v3006 = vsel %vm3004, %v2994, 0
      %v3007 = vsel %vm3004, %v2995, 0
      %v3008 = vsel %vm3004, %v2996, 0
      %v3009 = vsel %vm3004, %v2997, 0
      %v3010 = vsel %vm3004, %v2998, 0
      %v3011 = vsel %vm3004, %v2999, 0
      %v3012 = vsel %vm3004, %v3000, 0
      %v3013 = vsel %vm3004, %v3001, 0
      %v3015 = vshrl.u32 %v3005, 16
      %v3017 = vshll.u32 %v3005, 16
      %v3019 = vrot.slane %v3017, 1
      %v3020 = vor.u32 %v3015, %v3019
      %v3022 = vshrl.u32 %v3006, 16
      %v3024 = vshll.u32 %v3006, 16
      %v3026 = vrot.slane %v3024, 1
      %v3027 = vor.u32 %v3022, %v3026
      %v3029 = vshrl.u32 %v3007, 16
      %v3031 = vshll.u32 %v3007, 16
      %v3033 = vrot.slane %v3031, 1
      %v3034 = vor.u32 %v3029, %v3033
      %v3036 = vshrl.u32 %v3008, 16
      %v3038 = vshll.u32 %v3008, 16
      %v3040 = vrot.slane %v3038, 1
      %v3041 = vor.u32 %v3036, %v3040
      %v3043 = vshrl.u32 %v3009, 16
      %v3045 = vshll.u32 %v3009, 16
      %v3047 = vrot.slane %v3045, 1
      %v3048 = vor.u32 %v3043, %v3047
      %v3050 = vshrl.u32 %v3010, 16
      %v3052 = vshll.u32 %v3010, 16
      %v3054 = vrot.slane %v3052, 1
      %v3055 = vor.u32 %v3050, %v3054
      %v3057 = vshrl.u32 %v3011, 16
      %v3059 = vshll.u32 %v3011, 16
      %v3061 = vrot.slane %v3059, 1
      %v3062 = vor.u32 %v3057, %v3061
      %v3064 = vshrl.u32 %v3012, 16
      %v3066 = vshll.u32 %v3012, 16
      %v3068 = vrot.slane %v3066, 1
      %v3069 = vor.u32 %v3064, %v3068
      %3070 = vrot.lane.b32.xlu0 %v3020, 16
      %v3071 = vpop.permute.xlu0 %3070
      %3072 = vrot.lane.b32.xlu0 %v3027, 16
      %v3073 = vpop.permute.xlu0 %3072
      %3074 = vrot.lane.b32.xlu0 %v3034, 16
      %v3075 = vpop.permute.xlu0 %3074
      %3076 = vrot.lane.b32.xlu0 %v3041, 16
      %v3077 = vpop.permute.xlu0 %3076
      %3078 = vrot.lane.b32.xlu0 %v3048, 16
      %v3079 = vpop.permute.xlu0 %3078
      %3080 = vrot.lane.b32.xlu0 %v3055, 16
      %v3081 = vpop.permute.xlu0 %3080
      %3082 = vrot.lane.b32.xlu0 %v3062, 16
      %v3083 = vpop.permute.xlu0 %3082
      %3084 = vrot.lane.b32.xlu0 %v3069, 16
      %v3085 = vpop.permute.xlu0 %3084
      %v3094 = vrot.slane %v3005, 1
      %v3095 = vrot.slane %v3006, 1
      %v3096 = vrot.slane %v3007, 1
      %v3097 = vrot.slane %v3008, 1
      %v3098 = vrot.slane %v3009, 1
      %v3099 = vrot.slane %v3010, 1
      %v3100 = vrot.slane %v3011, 1
      %v3101 = vrot.slane %v3012, 1
      %3102 = vrot.lane.b32.xlu0 %v3094, 32
      %v3103 = vpop.permute.xlu0 %3102
      %3104 = vrot.lane.b32.xlu0 %v3095, 32
      %v3105 = vpop.permute.xlu0 %3104
      %3106 = vrot.lane.b32.xlu0 %v3096, 32
      %v3107 = vpop.permute.xlu0 %3106
      %3108 = vrot.lane.b32.xlu0 %v3097, 32
      %v3109 = vpop.permute.xlu0 %3108
      %3110 = vrot.lane.b32.xlu0 %v3098, 32
      %v3111 = vpop.permute.xlu0 %3110
      %3112 = vrot.lane.b32.xlu0 %v3099, 32
      %v3113 = vpop.permute.xlu0 %3112
      %3114 = vrot.lane.b32.xlu0 %v3100, 32
      %v3115 = vpop.permute.xlu0 %3114
      %3116 = vrot.lane.b32.xlu0 %v3101, 32
      %v3117 = vpop.permute.xlu0 %3116
      %3119 = vrot.lane.b32.xlu0 %v3006, 48
      %v3120 = vpop.permute.xlu0 %3119
      %3121 = vrot.lane.b32.xlu0 %v3007, 48
      %v3122 = vpop.permute.xlu0 %3121
      %3123 = vrot.lane.b32.xlu0 %v3008, 48
      %v3124 = vpop.permute.xlu0 %3123
      %3125 = vrot.lane.b32.xlu0 %v3009, 48
      %v3126 = vpop.permute.xlu0 %3125
      %3127 = vrot.lane.b32.xlu0 %v3010, 48
      %v3128 = vpop.permute.xlu0 %3127
      %3129 = vrot.lane.b32.xlu0 %v3011, 48
      %v3130 = vpop.permute.xlu0 %3129
      %3131 = vrot.lane.b32.xlu0 %v3012, 48
      %v3132 = vpop.permute.xlu0 %3131
      %3133 = vrot.lane.b32.xlu0 %v3013, 48
      %v3134 = vpop.permute.xlu0 %3133
      %v3136 = vshrl.u32 %v3013, 16
      %v3138 = vshll.u32 %v3013, 16
      %v3140 = vrot.slane %v3138, 1
      %v3141 = vor.u32 %v3136, %v3140
      %3142 = vrot.lane.b32.xlu0 %v3027, 64
      %v3143 = vpop.permute.xlu0 %3142
      %3144 = vrot.lane.b32.xlu0 %v3034, 64
      %v3145 = vpop.permute.xlu0 %3144
      %3146 = vrot.lane.b32.xlu0 %v3041, 64
      %v3147 = vpop.permute.xlu0 %3146
      %3148 = vrot.lane.b32.xlu0 %v3048, 64
      %v3149 = vpop.permute.xlu0 %3148
      %3150 = vrot.lane.b32.xlu0 %v3055, 64
      %v3151 = vpop.permute.xlu0 %3150
      %3152 = vrot.lane.b32.xlu0 %v3062, 64
      %v3153 = vpop.permute.xlu0 %3152
      %3154 = vrot.lane.b32.xlu0 %v3069, 64
      %v3155 = vpop.permute.xlu0 %3154
      %3156 = vrot.lane.b32.xlu0 %v3141, 64
      %v3157 = vpop.permute.xlu0 %3156
      %v3158 = vrot.slane %v3013, 1
      %3159 = vrot.lane.b32.xlu0 %v3095, 80
      %v3160 = vpop.permute.xlu0 %3159
      %3161 = vrot.lane.b32.xlu0 %v3096, 80
      %v3162 = vpop.permute.xlu0 %3161
      %3163 = vrot.lane.b32.xlu0 %v3097, 80
      %v3164 = vpop.permute.xlu0 %3163
      %3165 = vrot.lane.b32.xlu0 %v3098, 80
      %v3166 = vpop.permute.xlu0 %3165
      %3167 = vrot.lane.b32.xlu0 %v3099, 80
      %v3168 = vpop.permute.xlu0 %3167
      %3169 = vrot.lane.b32.xlu0 %v3100, 80
      %v3170 = vpop.permute.xlu0 %3169
      %3171 = vrot.lane.b32.xlu0 %v3101, 80
      %v3172 = vpop.permute.xlu0 %3171
      %3173 = vrot.lane.b32.xlu0 %v3158, 80
      %v3174 = vpop.permute.xlu0 %3173
      %3175 = vrot.lane.b32.xlu0 %v3007, 96
      %v3176 = vpop.permute.xlu0 %3175
      %3177 = vrot.lane.b32.xlu0 %v3008, 96
      %v3178 = vpop.permute.xlu0 %3177
      %3179 = vrot.lane.b32.xlu0 %v3009, 96
      %v3180 = vpop.permute.xlu0 %3179
      %3181 = vrot.lane.b32.xlu0 %v3010, 96
      %v3182 = vpop.permute.xlu0 %3181
      %3183 = vrot.lane.b32.xlu0 %v3011, 96
      %v3184 = vpop.permute.xlu0 %3183
      %3185 = vrot.lane.b32.xlu0 %v3012, 96
      %v3186 = vpop.permute.xlu0 %3185
      %3187 = vrot.lane.b32.xlu0 %v3013, 96
      %v3188 = vpop.permute.xlu0 %3187
      %3189 = vrot.lane.b32.xlu0 %v3005, 96
      %v3190 = vpop.permute.xlu0 %3189
      %3191 = vrot.lane.b32.xlu0 %v3034, 112
      %v3192 = vpop.permute.xlu0 %3191
      %3193 = vrot.lane.b32.xlu0 %v3041, 112
      %v3194 = vpop.permute.xlu0 %3193
      %3195 = vrot.lane.b32.xlu0 %v3048, 112
      %v3196 = vpop.permute.xlu0 %3195
      %3197 = vrot.lane.b32.xlu0 %v3055, 112
      %v3198 = vpop.permute.xlu0 %3197
      %3199 = vrot.lane.b32.xlu0 %v3062, 112
      %v3200 = vpop.permute.xlu0 %3199
      %3201 = vrot.lane.b32.xlu0 %v3069, 112
      %v3202 = vpop.permute.xlu0 %3201
      %3203 = vrot.lane.b32.xlu0 %v3141, 112
      %v3204 = vpop.permute.xlu0 %3203
      %3205 = vrot.lane.b32.xlu0 %v3020, 112
      %v3206 = vpop.permute.xlu0 %3205
      %v3208 = vsel %vm2828, %v3005, %v3071
      %v3210 = vsel %vm2828, %v3006, %v3073
      %v3212 = vsel %vm2828, %v3007, %v3075
      %v3214 = vsel %vm2828, %v3008, %v3077
      %v3216 = vsel %vm2828, %v3009, %v3079
      %v3218 = vsel %vm2828, %v3010, %v3081
      %v3220 = vsel %vm2828, %v3011, %v3083
      %v3222 = vsel %vm2828, %v3012, %v3085
      %v3224 = vsel %vm1229, %v3208, %v3103
      %v3226 = vsel %vm1229, %v3210, %v3105
      %v3228 = vsel %vm1229, %v3212, %v3107
      %v3230 = vsel %vm1229, %v3214, %v3109
      %v3232 = vsel %vm1229, %v3216, %v3111
      %v3234 = vsel %vm1229, %v3218, %v3113
      %v3236 = vsel %vm1229, %v3220, %v3115
      %v3238 = vsel %vm1229, %v3222, %v3117
      %vm3239 = vcmask 392192
      %v3241 = vsel %vm3239, %v3224, %v3120
      %v3243 = vsel %vm3239, %v3226, %v3122
      %v3245 = vsel %vm3239, %v3228, %v3124
      %v3247 = vsel %vm3239, %v3230, %v3126
      %v3249 = vsel %vm3239, %v3232, %v3128
      %v3251 = vsel %vm3239, %v3234, %v3130
      %v3253 = vsel %vm3239, %v3236, %v3132
      %v3255 = vsel %vm3239, %v3238, %v3134
      %v3257 = vsel %vm1238, %v3241, %v3143
      %v3259 = vsel %vm1238, %v3243, %v3145
      %v3261 = vsel %vm1238, %v3245, %v3147
      %v3263 = vsel %vm1238, %v3247, %v3149
      %v3265 = vsel %vm1238, %v3249, %v3151
      %v3267 = vsel %vm1238, %v3251, %v3153
      %v3269 = vsel %vm1238, %v3253, %v3155
      %v3271 = vsel %vm1238, %v3255, %v3157
      %vm3272 = vcmask 654336
      %v3274 = vsel %vm3272, %v3257, %v3160
      %v3276 = vsel %vm3272, %v3259, %v3162
      %v3278 = vsel %vm3272, %v3261, %v3164
      %v3280 = vsel %vm3272, %v3263, %v3166
      %v3282 = vsel %vm3272, %v3265, %v3168
      %v3284 = vsel %vm3272, %v3267, %v3170
      %v3286 = vsel %vm3272, %v3269, %v3172
      %v3288 = vsel %vm3272, %v3271, %v3174
      %v3290 = vsel %vm1247, %v3274, %v3176
      %v3292 = vsel %vm1247, %v3276, %v3178
      %v3294 = vsel %vm1247, %v3278, %v3180
      %v3296 = vsel %vm1247, %v3280, %v3182
      %v3298 = vsel %vm1247, %v3282, %v3184
      %v3300 = vsel %vm1247, %v3284, %v3186
      %v3302 = vsel %vm1247, %v3286, %v3188
      %v3304 = vsel %vm1247, %v3288, %v3190
      %vm3305 = vcmask 916480
      %v3307 = vsel %vm3305, %v3290, %v3192
      %v3309 = vsel %vm3305, %v3292, %v3194
      %v3311 = vsel %vm3305, %v3294, %v3196
      %v3313 = vsel %vm3305, %v3296, %v3198
      %v3315 = vsel %vm3305, %v3298, %v3200
      %v3317 = vsel %vm3305, %v3300, %v3202
      %v3319 = vsel %vm3305, %v3302, %v3204
      %v3321 = vsel %vm3305, %v3304, %v3206
      %v3330 = vunpack.c.l.b16 %v3307
      %v3331 = vunpack.c.l.b16 %v3096
      %v3332 = vunpack.c.l.b16 %v3309
      %v3333 = vunpack.c.l.b16 %v3097
      %v3334 = vunpack.c.l.b16 %v3311
      %v3335 = vunpack.c.l.b16 %v3098
      %v3336 = vunpack.c.l.b16 %v3313
      %v3337 = vunpack.c.l.b16 %v3099
      %v3338 = vunpack.c.l.b16 %v3315
      %v3339 = vunpack.c.l.b16 %v3100
      %v3340 = vunpack.c.l.b16 %v3317
      %v3341 = vunpack.c.l.b16 %v3101
      %v3342 = vunpack.c.l.b16 %v3319
      %v3343 = vunpack.c.l.b16 %v3158
      %v3344 = vunpack.c.l.b16 %v3321
      %v3345 = vunpack.c.l.b16 %v3094
      %v3347 = vshrl.u32 %v2922, 16
      %v3349 = vrot.slane %v3347, 7
      %v3350 = vshll.u32 %v2922, 16
      %v3352 = vor.u32 %v3349, %v3350
      %v3354 = vshrl.u32 %v2923, 16
      %v3356 = vrot.slane %v3354, 7
      %v3357 = vshll.u32 %v2923, 16
      %v3359 = vor.u32 %v3356, %v3357
      %v3361 = vshrl.u32 %v2924, 16
      %v3363 = vrot.slane %v3361, 7
      %v3364 = vshll.u32 %v2924, 16
      %v3366 = vor.u32 %v3363, %v3364
      %v3368 = vshrl.u32 %v2925, 16
      %v3370 = vrot.slane %v3368, 7
      %v3371 = vshll.u32 %v2925, 16
      %v3373 = vor.u32 %v3370, %v3371
      %v3375 = vshrl.u32 %v2926, 16
      %v3377 = vrot.slane %v3375, 7
      %v3378 = vshll.u32 %v2926, 16
      %v3380 = vor.u32 %v3377, %v3378
      %v3382 = vshrl.u32 %v2927, 16
      %v3384 = vrot.slane %v3382, 7
      %v3385 = vshll.u32 %v2927, 16
      %v3387 = vor.u32 %v3384, %v3385
      %v3389 = vshrl.u32 %v2928, 16
      %v3391 = vrot.slane %v3389, 7
      %v3392 = vshll.u32 %v2928, 16
      %v3394 = vor.u32 %v3391, %v3392
      %v3396 = vshrl.u32 %v2929, 16
      %v3398 = vrot.slane %v3396, 7
      %v3399 = vshll.u32 %v2929, 16
      %v3401 = vor.u32 %v3398, %v3399
      %v3410 = vsel %vm1122, 0, %v3352
      %v3411 = vsel %vm1122, 0, %v3359
      %v3412 = vsel %vm1122, 0, %v3366
      %v3413 = vsel %vm1122, 0, %v3373
      %v3414 = vsel %vm1122, 0, %v3380
      %v3415 = vsel %vm1122, 0, %v3387
      %v3416 = vsel %vm1122, 0, %v3394
      %v3417 = vsel %vm1122, 0, %v3401
      %v3418 = vsel %vm3004, %v3410, 0
      %v3419 = vsel %vm3004, %v3411, 0
      %v3420 = vsel %vm3004, %v3412, 0
      %v3421 = vsel %vm3004, %v3413, 0
      %v3422 = vsel %vm3004, %v3414, 0
      %v3423 = vsel %vm3004, %v3415, 0
      %v3424 = vsel %vm3004, %v3416, 0
      %v3425 = vsel %vm3004, %v3417, 0
      %v3427 = vshrl.u32 %v3418, 16
      %v3429 = vshll.u32 %v3418, 16
      %v3431 = vrot.slane %v3429, 1
      %v3432 = vor.u32 %v3427, %v3431
      %v3434 = vshrl.u32 %v3419, 16
      %v3436 = vshll.u32 %v3419, 16
      %v3438 = vrot.slane %v3436, 1
      %v3439 = vor.u32 %v3434, %v3438
      %v3441 = vshrl.u32 %v3420, 16
      %v3443 = vshll.u32 %v3420, 16
      %v3445 = vrot.slane %v3443, 1
      %v3446 = vor.u32 %v3441, %v3445
      %v3448 = vshrl.u32 %v3421, 16
      %v3450 = vshll.u32 %v3421, 16
      %v3452 = vrot.slane %v3450, 1
      %v3453 = vor.u32 %v3448, %v3452
      %v3455 = vshrl.u32 %v3422, 16
      %v3457 = vshll.u32 %v3422, 16
      %v3459 = vrot.slane %v3457, 1
      %v3460 = vor.u32 %v3455, %v3459
      %v3462 = vshrl.u32 %v3423, 16
      %v3464 = vshll.u32 %v3423, 16
      %v3466 = vrot.slane %v3464, 1
      %v3467 = vor.u32 %v3462, %v3466
      %v3469 = vshrl.u32 %v3424, 16
      %v3471 = vshll.u32 %v3424, 16
      %v3473 = vrot.slane %v3471, 1
      %v3474 = vor.u32 %v3469, %v3473
      %3475 = vrot.lane.b32.xlu0 %v3020, 32
      %v3476 = vpop.permute.xlu0 %3475
      %3477 = vrot.lane.b32.xlu0 %v3432, 32
      %v3478 = vpop.permute.xlu0 %3477
      %3479 = vrot.lane.b32.xlu0 %v3439, 32
      %v3480 = vpop.permute.xlu0 %3479
      %3481 = vrot.lane.b32.xlu0 %v3446, 32
      %v3482 = vpop.permute.xlu0 %3481
      %3483 = vrot.lane.b32.xlu0 %v3453, 32
      %v3484 = vpop.permute.xlu0 %3483
      %3485 = vrot.lane.b32.xlu0 %v3460, 32
      %v3486 = vpop.permute.xlu0 %3485
      %3487 = vrot.lane.b32.xlu0 %v3467, 32
      %v3488 = vpop.permute.xlu0 %3487
      %3489 = vrot.lane.b32.xlu0 %v3474, 32
      %v3490 = vpop.permute.xlu0 %3489
      %v3498 = vrot.slane %v3418, 1
      %v3499 = vrot.slane %v3419, 1
      %v3500 = vrot.slane %v3420, 1
      %v3501 = vrot.slane %v3421, 1
      %v3502 = vrot.slane %v3422, 1
      %v3503 = vrot.slane %v3423, 1
      %v3504 = vrot.slane %v3424, 1
      %3505 = vrot.lane.b32.xlu0 %v3094, 64
      %v3506 = vpop.permute.xlu0 %3505
      %3507 = vrot.lane.b32.xlu0 %v3498, 64
      %v3508 = vpop.permute.xlu0 %3507
      %3509 = vrot.lane.b32.xlu0 %v3499, 64
      %v3510 = vpop.permute.xlu0 %3509
      %3511 = vrot.lane.b32.xlu0 %v3500, 64
      %v3512 = vpop.permute.xlu0 %3511
      %3513 = vrot.lane.b32.xlu0 %v3501, 64
      %v3514 = vpop.permute.xlu0 %3513
      %3515 = vrot.lane.b32.xlu0 %v3502, 64
      %v3516 = vpop.permute.xlu0 %3515
      %3517 = vrot.lane.b32.xlu0 %v3503, 64
      %v3518 = vpop.permute.xlu0 %3517
      %3519 = vrot.lane.b32.xlu0 %v3504, 64
      %v3520 = vpop.permute.xlu0 %3519
      %3522 = vrot.lane.b32.xlu0 %v3418, 96
      %v3523 = vpop.permute.xlu0 %3522
      %3524 = vrot.lane.b32.xlu0 %v3419, 96
      %v3525 = vpop.permute.xlu0 %3524
      %3526 = vrot.lane.b32.xlu0 %v3420, 96
      %v3527 = vpop.permute.xlu0 %3526
      %3528 = vrot.lane.b32.xlu0 %v3421, 96
      %v3529 = vpop.permute.xlu0 %3528
      %3530 = vrot.lane.b32.xlu0 %v3422, 96
      %v3531 = vpop.permute.xlu0 %3530
      %3532 = vrot.lane.b32.xlu0 %v3423, 96
      %v3533 = vpop.permute.xlu0 %3532
      %3534 = vrot.lane.b32.xlu0 %v3424, 96
      %v3535 = vpop.permute.xlu0 %3534
      %3536 = vrot.lane.b32.xlu0 %v3425, 96
      %v3537 = vpop.permute.xlu0 %3536
      %v3539 = vshrl.u32 %v3425, 16
      %v3541 = vshll.u32 %v3425, 16
      %v3543 = vrot.slane %v3541, 1
      %v3544 = vor.u32 %v3539, %v3543
      %v3545 = vrot.slane %v3425, 1
      %3546 = vrot.lane.b32.xlu0 %v3498, 32
      %v3547 = vpop.permute.xlu0 %3546
      %3548 = vrot.lane.b32.xlu0 %v3499, 32
      %v3549 = vpop.permute.xlu0 %3548
      %3550 = vrot.lane.b32.xlu0 %v3500, 32
      %v3551 = vpop.permute.xlu0 %3550
      %3552 = vrot.lane.b32.xlu0 %v3501, 32
      %v3553 = vpop.permute.xlu0 %3552
      %3554 = vrot.lane.b32.xlu0 %v3502, 32
      %v3555 = vpop.permute.xlu0 %3554
      %3556 = vrot.lane.b32.xlu0 %v3503, 32
      %v3557 = vpop.permute.xlu0 %3556
      %3558 = vrot.lane.b32.xlu0 %v3504, 32
      %v3559 = vpop.permute.xlu0 %3558
      %3560 = vrot.lane.b32.xlu0 %v3545, 32
      %v3561 = vpop.permute.xlu0 %3560
      %3562 = vrot.lane.b32.xlu0 %v3419, 64
      %v3563 = vpop.permute.xlu0 %3562
      %3564 = vrot.lane.b32.xlu0 %v3420, 64
      %v3565 = vpop.permute.xlu0 %3564
      %3566 = vrot.lane.b32.xlu0 %v3421, 64
      %v3567 = vpop.permute.xlu0 %3566
      %3568 = vrot.lane.b32.xlu0 %v3422, 64
      %v3569 = vpop.permute.xlu0 %3568
      %3570 = vrot.lane.b32.xlu0 %v3423, 64
      %v3571 = vpop.permute.xlu0 %3570
      %3572 = vrot.lane.b32.xlu0 %v3424, 64
      %v3573 = vpop.permute.xlu0 %3572
      %3574 = vrot.lane.b32.xlu0 %v3425, 64
      %v3575 = vpop.permute.xlu0 %3574
      %3576 = vrot.lane.b32.xlu0 %v3005, 64
      %v3577 = vpop.permute.xlu0 %3576
      %3578 = vrot.lane.b32.xlu0 %v3439, 96
      %v3579 = vpop.permute.xlu0 %3578
      %3580 = vrot.lane.b32.xlu0 %v3446, 96
      %v3581 = vpop.permute.xlu0 %3580
      %3582 = vrot.lane.b32.xlu0 %v3453, 96
      %v3583 = vpop.permute.xlu0 %3582
      %3584 = vrot.lane.b32.xlu0 %v3460, 96
      %v3585 = vpop.permute.xlu0 %3584
      %3586 = vrot.lane.b32.xlu0 %v3467, 96
      %v3587 = vpop.permute.xlu0 %3586
      %3588 = vrot.lane.b32.xlu0 %v3474, 96
      %v3589 = vpop.permute.xlu0 %3588
      %3590 = vrot.lane.b32.xlu0 %v3544, 96
      %v3591 = vpop.permute.xlu0 %3590
      %3592 = vrot.lane.b32.xlu0 %v3020, 96
      %v3593 = vpop.permute.xlu0 %3592
      %v3595 = vsel %vm1229, %v3005, %v3476
      %v3597 = vsel %vm1229, %v3418, %v3478
      %v3599 = vsel %vm1229, %v3419, %v3480
      %v3601 = vsel %vm1229, %v3420, %v3482
      %v3603 = vsel %vm1229, %v3421, %v3484
      %v3605 = vsel %vm1229, %v3422, %v3486
      %v3607 = vsel %vm1229, %v3423, %v3488
      %v3609 = vsel %vm1229, %v3424, %v3490
      %v3611 = vsel %vm1238, %v3595, %v3506
      %v3613 = vsel %vm1238, %v3597, %v3508
      %v3615 = vsel %vm1238, %v3599, %v3510
      %v3617 = vsel %vm1238, %v3601, %v3512
      %v3619 = vsel %vm1238, %v3603, %v3514
      %v3621 = vsel %vm1238, %v3605, %v3516
      %v3623 = vsel %vm1238, %v3607, %v3518
      %v3625 = vsel %vm1238, %v3609, %v3520
      %v3627 = vsel %vm1247, %v3611, %v3523
      %v3629 = vsel %vm1247, %v3613, %v3525
      %v3631 = vsel %vm1247, %v3615, %v3527
      %v3633 = vsel %vm1247, %v3617, %v3529
      %v3635 = vsel %vm1247, %v3619, %v3531
      %v3637 = vsel %vm1247, %v3621, %v3533
      %v3639 = vsel %vm1247, %v3623, %v3535
      %v3641 = vsel %vm1247, %v3625, %v3537
      %v3644 = vsel %vm1229, %v3432, %v3547
      %v3647 = vsel %vm1229, %v3439, %v3549
      %v3650 = vsel %vm1229, %v3446, %v3551
      %v3653 = vsel %vm1229, %v3453, %v3553
      %v3656 = vsel %vm1229, %v3460, %v3555
      %v3659 = vsel %vm1229, %v3467, %v3557
      %v3662 = vsel %vm1229, %v3474, %v3559
      %v3665 = vsel %vm1229, %v3544, %v3561
      %v3667 = vsel %vm1238, %v3644, %v3563
      %v3669 = vsel %vm1238, %v3647, %v3565
      %v3671 = vsel %vm1238, %v3650, %v3567
      %v3673 = vsel %vm1238, %v3653, %v3569
      %v3675 = vsel %vm1238, %v3656, %v3571
      %v3677 = vsel %vm1238, %v3659, %v3573
      %v3679 = vsel %vm1238, %v3662, %v3575
      %v3681 = vsel %vm1238, %v3665, %v3577
      %v3683 = vsel %vm1247, %v3667, %v3579
      %v3685 = vsel %vm1247, %v3669, %v3581
      %v3687 = vsel %vm1247, %v3671, %v3583
      %v3689 = vsel %vm1247, %v3673, %v3585
      %v3691 = vsel %vm1247, %v3675, %v3587
      %v3693 = vsel %vm1247, %v3677, %v3589
      %v3695 = vsel %vm1247, %v3679, %v3591
      %v3697 = vsel %vm1247, %v3681, %v3593
      %v3714 = vunpack.c.l.b16 %v3627
      %v3715 = vunpack.c.l.b16 %v3683
      %v3716 = vunpack.c.l.b16 %v3499
      %v3717 = vunpack.c.l.b16 %v3629
      %v3718 = vunpack.c.l.b16 %v3685
      %v3719 = vunpack.c.l.b16 %v3500
      %v3720 = vunpack.c.l.b16 %v3631
      %v3721 = vunpack.c.l.b16 %v3687
      %v3722 = vunpack.c.l.b16 %v3501
      %v3723 = vunpack.c.l.b16 %v3633
      %v3724 = vunpack.c.l.b16 %v3689
      %v3725 = vunpack.c.l.b16 %v3502
      %v3726 = vunpack.c.l.b16 %v3635
      %v3727 = vunpack.c.l.b16 %v3691
      %v3728 = vunpack.c.l.b16 %v3503
      %v3729 = vunpack.c.l.b16 %v3637
      %v3730 = vunpack.c.l.b16 %v3693
      %v3731 = vunpack.c.l.b16 %v3504
      %v3732 = vunpack.c.l.b16 %v3639
      %v3733 = vunpack.c.l.b16 %v3695
      %v3734 = vunpack.c.l.b16 %v3545
      %v3735 = vunpack.c.l.b16 %v3641
      %v3736 = vunpack.c.l.b16 %v3697
      %v3737 = vpack.c.b16 %v3717, %v3714
      %v3738 = vpack.c.b16 %v3718, %v3715
      %v3739 = vpack.c.b16 %v3719, %v3716
      %v3740 = vpack.c.b16 %v3723, %v3720
      %v3741 = vpack.c.b16 %v3724, %v3721
      %v3742 = vpack.c.b16 %v3725, %v3722
      %v3743 = vpack.c.b16 %v3729, %v3726
      %v3744 = vpack.c.b16 %v3730, %v3727
      %v3745 = vpack.c.b16 %v3731, %v3728
      %v3746 = vpack.c.b16 %v3735, %v3732
      %v3747 = vpack.c.b16 %v3736, %v3733
      %v3748 = vpack.c.b16 %v3345, %v3734
      %v3793 = vunpack.c.l.b16 %v2752
      %v3794 = vunpack.c.l.b16 %v2753
      %v3795 = vunpack.c.l.b16 %v2754
      %v3796 = vunpack.c.l.b16 %v2755
      %v3797 = vunpack.c.l.b16 %v2756
      %v3798 = vunpack.c.l.b16 %v2757
      %v3799 = vunpack.c.l.b16 %v2758
      %v3800 = vunpack.c.l.b16 %v2759
      %v3801 = vunpack.c.l.b16 %v2760
      %v3802 = vunpack.c.l.b16 %v2761
      %v3803 = vunpack.c.l.b16 %v2762
      %v3804 = vunpack.c.l.b16 %v2763
      %v3805 = vunpack.c.l.b16 %v2764
      %v3806 = vunpack.c.l.b16 %v2765
      %v3807 = vunpack.c.l.b16 %v2766
      %v3808 = vunpack.c.l.b16 %v2767
      %v3809 = vunpack.c.l.b16 %v2768
      %v3810 = vunpack.c.l.b16 %v2769
      %v3811 = vunpack.c.l.b16 %v2770
      %v3812 = vunpack.c.l.b16 %v2771
      %v3813 = vunpack.c.l.b16 %v2772
      %v3814 = vunpack.c.l.b16 %v2773
      %v3815 = vunpack.c.l.b16 %v2774
      %v3816 = vunpack.c.l.b16 %v2775
      %v3817 = vunpack.c.l.b16 %v2776
      %v3818 = vunpack.c.l.b16 %v2777
      %v3819 = vunpack.c.l.b16 %v2778
      %v3820 = vunpack.c.l.b16 %v2779
      %v3821 = vunpack.c.l.b16 %v2780
      %v3822 = vunpack.c.l.b16 %v2781
      %v3823 = vunpack.c.l.b16 %v2782
      %v3824 = vunpack.c.l.b16 %v2783
      %v3825 = vunpack.c.l.b16 %v2784
      %v3826 = vunpack.c.l.b16 %v2785
      %v3827 = vunpack.c.l.b16 %v2786
      %v3828 = vunpack.c.l.b16 %v2787
      %v3829 = vpack.c.b16 %v3794, %v3793
      %v3830 = vpack.c.b16 %v3796, %v3795
      %v3831 = vpack.c.b16 %v3798, %v3797
      %v3832 = vpack.c.b16 %v3800, %v3799
      %v3833 = vpack.c.b16 %v3802, %v3801
      %v3834 = vpack.c.b16 %v3804, %v3803
      %v3835 = vpack.c.b16 %v3806, %v3805
      %v3836 = vpack.c.b16 %v3808, %v3807
      %v3837 = vpack.c.b16 %v3810, %v3809
      %v3838 = vpack.c.b16 %v3812, %v3811
      %v3839 = vpack.c.b16 %v3814, %v3813
      %v3840 = vpack.c.b16 %v3816, %v3815
      %v3841 = vpack.c.b16 %v3818, %v3817
      %v3842 = vpack.c.b16 %v3820, %v3819
      %v3843 = vpack.c.b16 %v3822, %v3821
      %v3844 = vpack.c.b16 %v3824, %v3823
      %v3845 = vpack.c.b16 %v3826, %v3825
      %v3846 = vpack.c.b16 %v3828, %v3827
      %v3866 = vsel %vm1229, %v3739, 0
      %v3869 = vsel %vm1229, %v3742, 0
      %v3872 = vsel %vm1229, %v3745, 0
      %v3875 = vsel %vm1229, %v3748, 0
      %3877 = vmatprep.subr.bf16.mxu0 0
      %3878 = vmatpush1.bf16.msra.mxu0 %v3829
      %3879 = vmatprep.subr.bf16.mxu0 0
      %3880 = vmatpush1.bf16.msra.mxu0 %v3830
      %3881 = vmatprep.subr.bf16.mxu0 0
      %3882 = vmatpush1.bf16.msra.mxu0 %v3831
      %3883 = vmatprep.subr.bf16.mxu0 0
      %3884 = vmatpush1.bf16.msra.mxu0 %v3832
      %3885 = vmatprep.subr.bf16.mxu0 0
      %3886 = vmatpush1.bf16.msra.mxu0 %v3833
      %3887 = vmatprep.subr.bf16.mxu0 0
      %3888 = vmatpush1.bf16.msra.mxu0 %v3834
      %3889 = vmatprep.subr.bf16.mxu0 0
      %3890 = vmatpush1.bf16.msra.mxu0 %v3835
      %3891 = vmatprep.subr.bf16.mxu0 0
      %3892 = vmatpush1.bf16.msra.mxu0 %v3836
      %3893 = vmatprep.subr.bf16.mxu0 0
      %3894 = vmatpush1.bf16.msra.mxu0 %v3837
      %3895 = vmatprep.subr.bf16.mxu0 0
      %3896 = vmatpush1.bf16.msra.mxu0 %v3838
      %3897 = vmatprep.subr.bf16.mxu0 0
      %3898 = vmatpush1.bf16.msra.mxu0 %v3839
      %3899 = vmatprep.subr.bf16.mxu0 0
      %3900 = vmatpush1.bf16.msra.mxu0 %v3840
      %3901 = vmatprep.subr.bf16.mxu0 0
      %3902 = vmatpush1.bf16.msra.mxu0 %v3841
      %3903 = vmatprep.subr.bf16.mxu0 0
      %3904 = vmatpush1.bf16.msra.mxu0 %v3842
      %3905 = vmatprep.subr.bf16.mxu0 0
      %3906 = vmatpush1.bf16.msra.mxu0 %v3843
      %3907 = vmatprep.subr.bf16.mxu0 0
      %3908 = vmatpush1.bf16.msra.mxu0 %v3844
      %3909 = vmatprep.mubr.bf16.mxu0 %v3738
      %3910 = vmatmul.mubr.bf16.gmra.mrb[0].mxu0 %v3737
      %v3911 = vpop.f32.mrb[0].mxu0
      %v3912 = vadd.f32 0.0, %v3911
      %v3913 = vpop.f32.mrb[0].mxu0
      %v3914 = vpop.f32.mrb[0].mxu0
      %v3915 = vadd.f32 0.0, %v3914
      %v3916 = vpop.f32.mrb[0].mxu0
      %3917 = vmatprep.mubr.bf16.mxu0 %v3741
      %3918 = vmatmul.mubr.bf16.gmra.mrb[0].mxu0 %v3740
      %v3919 = vpop.f32.mrb[0].mxu0
      %v3920 = vadd.f32 0.0, %v3919
      %v3921 = vpop.f32.mrb[0].mxu0
      %v3922 = vpop.f32.mrb[0].mxu0
      %v3923 = vadd.f32 0.0, %v3922
      %v3924 = vpop.f32.mrb[0].mxu0
      %3925 = vmatprep.mubr.bf16.mxu0 %v3744
      %3926 = vmatmul.mubr.bf16.gmra.mrb[0].mxu0 %v3743
      %v3927 = vpop.f32.mrb[0].mxu0
      %v3928 = vadd.f32 0.0, %v3927
      %v3929 = vpop.f32.mrb[0].mxu0
      %v3930 = vpop.f32.mrb[0].mxu0
      %v3931 = vadd.f32 0.0, %v3930
      %v3932 = vpop.f32.mrb[0].mxu0
      %3933 = vmatprep.mubr.bf16.mxu0 %v3747
      %3934 = vmatmul.mubr.bf16.gmra.mrb[0].mxu0 %v3746
      %v3935 = vpop.f32.mrb[0].mxu0
      %v3936 = vadd.f32 0.0, %v3935
      %v3937 = vpop.f32.mrb[0].mxu0
      %v3938 = vpop.f32.mrb[0].mxu0
      %v3939 = vadd.f32 0.0, %v3938
      %v3940 = vpop.f32.mrb[0].mxu0
      %3941 = vdwg.mxu0
      %3942 = vmatprep.subr.bf16.mxu0 0
      %3943 = vmatpush1.bf16.msra.mxu0 %v3845
      %3944 = vmatprep.subr.bf16.mxu0 0
      %3945 = vmatpush1.bf16.msra.mxu0 %v3846
      %3946 = vmatprep.subr.bf16.mxu0 0
      %3947 = vmatpush1.bf16.msra.mxu0 0
      %3948 = vmatprep.subr.bf16.mxu0 0
      %3949 = vmatpush1.bf16.msra.mxu0 0
      %3950 = vmatprep.subr.bf16.mxu0 0
      %3951 = vmatpush1.bf16.msra.mxu0 0
      %3952 = vmatprep.subr.bf16.mxu0 0
      %3953 = vmatpush1.bf16.msra.mxu0 0
      %3954 = vmatprep.subr.bf16.mxu0 0
      %3955 = vmatpush1.bf16.msra.mxu0 0
      %3956 = vmatprep.subr.bf16.mxu0 0
      %3957 = vmatpush1.bf16.msra.mxu0 0
      %3958 = vmatprep.subr.bf16.mxu0 0
      %3959 = vmatpush1.bf16.msra.mxu0 0
      %3960 = vmatprep.subr.bf16.mxu0 0
      %3961 = vmatpush1.bf16.msra.mxu0 0
      %3962 = vmatprep.subr.bf16.mxu0 0
      %3963 = vmatpush1.bf16.msra.mxu0 0
      %3964 = vmatprep.subr.bf16.mxu0 0
      %3965 = vmatpush1.bf16.msra.mxu0 0
      %3966 = vmatprep.subr.bf16.mxu0 0
      %3967 = vmatpush1.bf16.msra.mxu0 0
      %3968 = vmatprep.subr.bf16.mxu0 0
      %3969 = vmatpush1.bf16.msra.mxu0 0
      %3970 = vmatprep.subr.bf16.mxu0 0
      %3971 = vmatpush1.bf16.msra.mxu0 0
      %3972 = vmatprep.subr.bf16.mxu0 0
      %3973 = vmatpush1.bf16.msra.mxu0 0
      %3974 = vmatprep.mubr.bf16.mxu0 0
      %3975 = vmatmul.mubr.bf16.gmra.mrb[0].mxu0 %v3866
      %v3976 = vpop.f32.mrb[0].mxu0
      %v3977 = vadd.f32 %v3912, %v3976
      %v3978 = vpop.f32.mrb[0].mxu0
      %v3979 = vpop.f32.mrb[0].mxu0
      %v3980 = vadd.f32 %v3915, %v3979
      %v3981 = vpop.f32.mrb[0].mxu0
      %3982 = vmatprep.mubr.bf16.mxu0 0
      %3983 = vmatmul.mubr.bf16.gmra.mrb[0].mxu0 %v3869
      %v3984 = vpop.f32.mrb[0].mxu0
      %v3985 = vadd.f32 %v3920, %v3984
      %v3986 = vpop.f32.mrb[0].mxu0
      %v3987 = vpop.f32.mrb[0].mxu0
      %v3988 = vadd.f32 %v3923, %v3987
      %v3989 = vpop.f32.mrb[0].mxu0
      %3990 = vmatprep.mubr.bf16.mxu0 0
      %3991 = vmatmul.mubr.bf16.gmra.mrb[0].mxu0 %v3872
      %v3992 = vpop.f32.mrb[0].mxu0
      %v3993 = vadd.f32 %v3928, %v3992
      %v3994 = vpop.f32.mrb[0].mxu0
      %v3995 = vpop.f32.mrb[0].mxu0
      %v3996 = vadd.f32 %v3931, %v3995
      %v3997 = vpop.f32.mrb[0].mxu0
      %3998 = vmatprep.mubr.bf16.mxu0 0
      %3999 = vmatmul.mubr.bf16.gmra.mrb[0].mxu0 %v3875
      %v4000 = vpop.f32.mrb[0].mxu0
      %v4001 = vadd.f32 %v3936, %v4000
      %v4002 = vpop.f32.mrb[0].mxu0
      %v4003 = vpop.f32.mrb[0].mxu0
      %v4004 = vadd.f32 %v3939, %v4003
      %v4005 = vpop.f32.mrb[0].mxu0
      %4006 = vdwg.mxu0
      %v4007 = vpack.c.b16 %v3332, %v3330
      %v4008 = vpack.c.b16 %v3333, %v3331
      %v4009 = vpack.c.b16 %v3336, %v3334
      %v4010 = vpack.c.b16 %v3337, %v3335
      %v4011 = vpack.c.b16 %v3340, %v3338
      %v4012 = vpack.c.b16 %v3341, %v3339
      %v4013 = vpack.c.b16 %v3344, %v3342
      %v4014 = vpack.c.b16 %v3345, %v3343
      %v4037 = vunpack.c.l.b16 %v2734
      %v4038 = vunpack.c.l.b16 %v2735
      %v4039 = vunpack.c.l.b16 %v2736
      %v4040 = vunpack.c.l.b16 %v2737
      %v4041 = vunpack.c.l.b16 %v2738
      %v4042 = vunpack.c.l.b16 %v2739
      %v4043 = vunpack.c.l.b16 %v2740
      %v4044 = vunpack.c.l.b16 %v2741
      %v4045 = vunpack.c.l.b16 %v2742
      %v4046 = vunpack.c.l.b16 %v2743
      %v4047 = vunpack.c.l.b16 %v2744
      %v4048 = vunpack.c.l.b16 %v2745
      %v4049 = vunpack.c.l.b16 %v2746
      %v4050 = vunpack.c.l.b16 %v2747
      %v4051 = vunpack.c.l.b16 %v2748
      %v4052 = vunpack.c.l.b16 %v2749
      %v4053 = vunpack.c.l.b16 %v2750
      %v4054 = vunpack.c.l.b16 %v2751
      %v4055 = vpack.c.b16 %v4038, %v4037
      %v4056 = vpack.c.b16 %v4040, %v4039
      %v4057 = vpack.c.b16 %v4042, %v4041
      %v4058 = vpack.c.b16 %v4044, %v4043
      %v4059 = vpack.c.b16 %v4046, %v4045
      %v4060 = vpack.c.b16 %v4048, %v4047
      %v4061 = vpack.c.b16 %v4050, %v4049
      %v4062 = vpack.c.b16 %v4052, %v4051
      %v4063 = vpack.c.b16 %v4054, %v4053
      %v4074 = vsel %vm2828, %v4008, 0
      %v4077 = vsel %vm2828, %v4010, 0
      %v4080 = vsel %vm2828, %v4012, 0
      %v4083 = vsel %vm2828, %v4014, 0
      %4085 = vmatprep.subr.bf16.mxu0 0
      %4086 = vmatpush1.bf16.msra.mxu0 %v4055
      %4087 = vmatprep.subr.bf16.mxu0 0
      %4088 = vmatpush1.bf16.msra.mxu0 %v4056
      %4089 = vmatprep.subr.bf16.mxu0 0
      %4090 = vmatpush1.bf16.msra.mxu0 %v4057
      %4091 = vmatprep.subr.bf16.mxu0 0
      %4092 = vmatpush1.bf16.msra.mxu0 %v4058
      %4093 = vmatprep.subr.bf16.mxu0 0
      %4094 = vmatpush1.bf16.msra.mxu0 %v4059
      %4095 = vmatprep.subr.bf16.mxu0 0
      %4096 = vmatpush1.bf16.msra.mxu0 %v4060
      %4097 = vmatprep.subr.bf16.mxu0 0
      %4098 = vmatpush1.bf16.msra.mxu0 %v4061
      %4099 = vmatprep.subr.bf16.mxu0 0
      %4100 = vmatpush1.bf16.msra.mxu0 %v4062
      %4101 = vmatprep.subr.bf16.mxu0 0
      %4102 = vmatpush1.bf16.msra.mxu0 %v4063
      %4103 = vmatprep.subr.bf16.mxu0 0
      %4104 = vmatpush1.bf16.msra.mxu0 0
      %4105 = vmatprep.subr.bf16.mxu0 0
      %4106 = vmatpush1.bf16.msra.mxu0 0
      %4107 = vmatprep.subr.bf16.mxu0 0
      %4108 = vmatpush1.bf16.msra.mxu0 0
      %4109 = vmatprep.subr.bf16.mxu0 0
      %4110 = vmatpush1.bf16.msra.mxu0 0
      %4111 = vmatprep.subr.bf16.mxu0 0
      %4112 = vmatpush1.bf16.msra.mxu0 0
      %4113 = vmatprep.subr.bf16.mxu0 0
      %4114 = vmatpush1.bf16.msra.mxu0 0
      %4115 = vmatprep.subr.bf16.mxu0 0
      %4116 = vmatpush1.bf16.msra.mxu0 0
      %4117 = vmatprep.mubr.bf16.mxu0 %v4074
      %4118 = vmatmul.mubr.bf16.gmra.mrb[0].mxu0 %v4007
      %v4119 = vpop.f32.mrb[0].mxu0
      %v4120 = vadd.f32 %v3977, %v4119
      %v4121 = vpop.f32.mrb[0].mxu0
      %v4122 = vpop.f32.mrb[0].mxu0
      %v4123 = vadd.f32 %v3980, %v4122
      %v4124 = vpop.f32.mrb[0].mxu0
      %4125 = vmatprep.mubr.bf16.mxu0 %v4077
      %4126 = vmatmul.mubr.bf16.gmra.mrb[0].mxu0 %v4009
      %v4127 = vpop.f32.mrb[0].mxu0
      %v4128 = vadd.f32 %v3985, %v4127
      %v4129 = vpop.f32.mrb[0].mxu0
      %v4130 = vpop.f32.mrb[0].mxu0
      %v4131 = vadd.f32 %v3988, %v4130
      %v4132 = vpop.f32.mrb[0].mxu0
      %4133 = vmatprep.mubr.bf16.mxu0 %v4080
      %4134 = vmatmul.mubr.bf16.gmra.mrb[0].mxu0 %v4011
      %v4135 = vpop.f32.mrb[0].mxu0
      %v4136 = vadd.f32 %v3993, %v4135
      %v4137 = vpop.f32.mrb[0].mxu0
      %v4138 = vpop.f32.mrb[0].mxu0
      %v4139 = vadd.f32 %v3996, %v4138
      %v4140 = vpop.f32.mrb[0].mxu0
      %4141 = vmatprep.mubr.bf16.mxu0 %v4083
      %4142 = vmatmul.mubr.bf16.gmra.mrb[0].mxu0 %v4013
      %v4143 = vpop.f32.mrb[0].mxu0
      %v4144 = vadd.f32 %v4001, %v4143
      %v4145 = vpop.f32.mrb[0].mxu0
      %v4146 = vpop.f32.mrb[0].mxu0
      %v4147 = vadd.f32 %v4004, %v4146
      %v4148 = vpop.f32.mrb[0].mxu0
      %4149 = vdwg.mxu0
      %v4151 = vlaneseq
      %v4152 = vshrl.u32 %v4151, 7
      %v4153 = vsub.s32 0, %v4152
      %v4154 = vrot.slane %v2788, %v4153
      %v4156 = vadd.f32 %v4120, %v4154
      %v4157 = vadd.f32 %v4123, %v4154
      %v4158 = vadd.f32 %v4128, %v4154
      %v4159 = vadd.f32 %v4131, %v4154
      %v4160 = vadd.f32 %v4136, %v4154
      %v4161 = vadd.f32 %v4139, %v4154
      %v4162 = vadd.f32 %v4144, %v4154
      %v4163 = vadd.f32 %v4147, %v4154
      %v4164 = vmax.f32 %v4156, 0.0
      %v4165 = vmax.f32 %v4157, 0.0
      %v4166 = vmax.f32 %v4158, 0.0
      %v4167 = vmax.f32 %v4159, 0.0
      %v4168 = vmax.f32 %v4160, 0.0
      %v4169 = vmax.f32 %v4161, 0.0
      %v4170 = vmax.f32 %v4162, 0.0
      %v4171 = vmax.f32 %v4163, 0.0
      %v4172 = vpack.c.bf16 %v4165, %v4164
      %v4173 = vpack.c.bf16 %v4167, %v4166
      %v4174 = vpack.c.bf16 %v4169, %v4168
      %v4175 = vpack.c.bf16 %v4171, %v4170
      %v4180 = vunpack.c.l.b16 %v4172
      %v4181 = vunpack.c.h.b16 %v4172
      %v4182 = vunpack.c.l.b16 %v4173
      %v4183 = vunpack.c.h.b16 %v4173
      %v4184 = vunpack.c.l.b16 %v4174
      %v4185 = vunpack.c.h.b16 %v4174
      %v4186 = vunpack.c.l.b16 %v4175
      %v4187 = vunpack.c.h.b16 %v4175
      %v4188 = vpack.c.b16 %v4180, %v4180
      %v4189 = vpack.c.b16 %v4181, %v4181
      %v4190 = vpack.c.b16 %v4182, %v4182
      %v4191 = vpack.c.b16 %v4183, %v4183
      %v4192 = vpack.c.b16 %v4184, %v4184
      %v4193 = vpack.c.b16 %v4185, %v4185
      %v4194 = vpack.c.b16 %v4186, %v4186
      %v4195 = vpack.c.b16 %v4187, %v4187
      %v4197 = vshrl.u32 %v4188, 16
      %v4199 = vrot.slane %v4197, 7
      %v4200 = vshll.u32 %v4188, 16
      %v4202 = vor.u32 %v4199, %v4200
      %v4204 = vshrl.u32 %v4189, 16
      %v4206 = vrot.slane %v4204, 7
      %v4207 = vshll.u32 %v4189, 16
      %v4209 = vor.u32 %v4206, %v4207
      %v4211 = vshrl.u32 %v4190, 16
      %v4213 = vrot.slane %v4211, 7
      %v4214 = vshll.u32 %v4190, 16
      %v4216 = vor.u32 %v4213, %v4214
      %v4218 = vshrl.u32 %v4191, 16
      %v4220 = vrot.slane %v4218, 7
      %v4221 = vshll.u32 %v4191, 16
      %v4223 = vor.u32 %v4220, %v4221
      %v4225 = vshrl.u32 %v4192, 16
      %v4227 = vrot.slane %v4225, 7
      %v4228 = vshll.u32 %v4192, 16
      %v4230 = vor.u32 %v4227, %v4228
      %v4232 = vshrl.u32 %v4193, 16
      %v4234 = vrot.slane %v4232, 7
      %v4235 = vshll.u32 %v4193, 16
      %v4237 = vor.u32 %v4234, %v4235
      %v4239 = vshrl.u32 %v4194, 16
      %v4241 = vrot.slane %v4239, 7
      %v4242 = vshll.u32 %v4194, 16
      %v4244 = vor.u32 %v4241, %v4242
      %v4246 = vshrl.u32 %v4195, 16
      %v4248 = vrot.slane %v4246, 7
      %v4249 = vshll.u32 %v4195, 16
      %v4251 = vor.u32 %v4248, %v4249
      %v4260 = vsel %vm1122, 0, %v4202
      %v4261 = vsel %vm1122, 0, %v4209
      %v4262 = vsel %vm1122, 0, %v4216
      %v4263 = vsel %vm1122, 0, %v4223
      %v4264 = vsel %vm1122, 0, %v4230
      %v4265 = vsel %vm1122, 0, %v4237
      %v4266 = vsel %vm1122, 0, %v4244
      %v4267 = vsel %vm1122, 0, %v4251
      %v4268 = vsel %vm3004, %v4260, 0
      %v4269 = vsel %vm3004, %v4261, 0
      %v4270 = vsel %vm3004, %v4262, 0
      %v4271 = vsel %vm3004, %v4263, 0
      %v4272 = vsel %vm3004, %v4264, 0
      %v4273 = vsel %vm3004, %v4265, 0
      %v4274 = vsel %vm3004, %v4266, 0
      %v4275 = vsel %vm3004, %v4267, 0
      %v4277 = vshrl.u32 %v4268, 16
      %v4279 = vshll.u32 %v4268, 16
      %v4281 = vrot.slane %v4279, 1
      %v4282 = vor.u32 %v4277, %v4281
      %v4284 = vshrl.u32 %v4269, 16
      %v4286 = vshll.u32 %v4269, 16
      %v4288 = vrot.slane %v4286, 1
      %v4289 = vor.u32 %v4284, %v4288
      %v4291 = vshrl.u32 %v4270, 16
      %v4293 = vshll.u32 %v4270, 16
      %v4295 = vrot.slane %v4293, 1
      %v4296 = vor.u32 %v4291, %v4295
      %v4298 = vshrl.u32 %v4271, 16
      %v4300 = vshll.u32 %v4271, 16
      %v4302 = vrot.slane %v4300, 1
      %v4303 = vor.u32 %v4298, %v4302
      %v4305 = vshrl.u32 %v4272, 16
      %v4307 = vshll.u32 %v4272, 16
      %v4309 = vrot.slane %v4307, 1
      %v4310 = vor.u32 %v4305, %v4309
      %v4312 = vshrl.u32 %v4273, 16
      %v4314 = vshll.u32 %v4273, 16
      %v4316 = vrot.slane %v4314, 1
      %v4317 = vor.u32 %v4312, %v4316
      %v4319 = vshrl.u32 %v4274, 16
      %v4321 = vshll.u32 %v4274, 16
      %v4323 = vrot.slane %v4321, 1
      %v4324 = vor.u32 %v4319, %v4323
      %4325 = vrot.lane.b32.xlu0 %v4282, 16
      %v4326 = vpop.permute.xlu0 %4325
      %4327 = vrot.lane.b32.xlu0 %v4289, 16
      %v4328 = vpop.permute.xlu0 %4327
      %4329 = vrot.lane.b32.xlu0 %v4296, 16
      %v4330 = vpop.permute.xlu0 %4329
      %4331 = vrot.lane.b32.xlu0 %v4303, 16
      %v4332 = vpop.permute.xlu0 %4331
      %4333 = vrot.lane.b32.xlu0 %v4310, 16
      %v4334 = vpop.permute.xlu0 %4333
      %4335 = vrot.lane.b32.xlu0 %v4317, 16
      %v4336 = vpop.permute.xlu0 %4335
      %4337 = vrot.lane.b32.xlu0 %v4324, 16
      %v4338 = vpop.permute.xlu0 %4337
      %v4346 = vrot.slane %v4268, 1
      %v4347 = vrot.slane %v4269, 1
      %v4348 = vrot.slane %v4270, 1
      %v4349 = vrot.slane %v4271, 1
      %v4350 = vrot.slane %v4272, 1
      %v4351 = vrot.slane %v4273, 1
      %v4352 = vrot.slane %v4274, 1
      %4353 = vrot.lane.b32.xlu0 %v4346, 32
      %v4354 = vpop.permute.xlu0 %4353
      %4355 = vrot.lane.b32.xlu0 %v4347, 32
      %v4356 = vpop.permute.xlu0 %4355
      %4357 = vrot.lane.b32.xlu0 %v4348, 32
      %v4358 = vpop.permute.xlu0 %4357
      %4359 = vrot.lane.b32.xlu0 %v4349, 32
      %v4360 = vpop.permute.xlu0 %4359
      %4361 = vrot.lane.b32.xlu0 %v4350, 32
      %v4362 = vpop.permute.xlu0 %4361
      %4363 = vrot.lane.b32.xlu0 %v4351, 32
      %v4364 = vpop.permute.xlu0 %4363
      %4365 = vrot.lane.b32.xlu0 %v4352, 32
      %v4366 = vpop.permute.xlu0 %4365
      %4368 = vrot.lane.b32.xlu0 %v4268, 48
      %v4369 = vpop.permute.xlu0 %4368
      %4370 = vrot.lane.b32.xlu0 %v4269, 48
      %v4371 = vpop.permute.xlu0 %4370
      %4372 = vrot.lane.b32.xlu0 %v4270, 48
      %v4373 = vpop.permute.xlu0 %4372
      %4374 = vrot.lane.b32.xlu0 %v4271, 48
      %v4375 = vpop.permute.xlu0 %4374
      %4376 = vrot.lane.b32.xlu0 %v4272, 48
      %v4377 = vpop.permute.xlu0 %4376
      %4378 = vrot.lane.b32.xlu0 %v4273, 48
      %v4379 = vpop.permute.xlu0 %4378
      %4380 = vrot.lane.b32.xlu0 %v4274, 48
      %v4381 = vpop.permute.xlu0 %4380
      %4382 = vrot.lane.b32.xlu0 %v4275, 48
      %v4383 = vpop.permute.xlu0 %4382
      %v4385 = vshrl.u32 %v4275, 16
      %v4387 = vshll.u32 %v4275, 16
      %v4389 = vrot.slane %v4387, 1
      %v4390 = vor.u32 %v4385, %v4389
      %4391 = vrot.lane.b32.xlu0 %v4282, 64
      %v4392 = vpop.permute.xlu0 %4391
      %4393 = vrot.lane.b32.xlu0 %v4289, 64
      %v4394 = vpop.permute.xlu0 %4393
      %4395 = vrot.lane.b32.xlu0 %v4296, 64
      %v4396 = vpop.permute.xlu0 %4395
      %4397 = vrot.lane.b32.xlu0 %v4303, 64
      %v4398 = vpop.permute.xlu0 %4397
      %4399 = vrot.lane.b32.xlu0 %v4310, 64
      %v4400 = vpop.permute.xlu0 %4399
      %4401 = vrot.lane.b32.xlu0 %v4317, 64
      %v4402 = vpop.permute.xlu0 %4401
      %4403 = vrot.lane.b32.xlu0 %v4324, 64
      %v4404 = vpop.permute.xlu0 %4403
      %4405 = vrot.lane.b32.xlu0 %v4390, 64
      %v4406 = vpop.permute.xlu0 %4405
      %v4407 = vrot.slane %v4275, 1
      %4408 = vrot.lane.b32.xlu0 %v4346, 80
      %v4409 = vpop.permute.xlu0 %4408
      %4410 = vrot.lane.b32.xlu0 %v4347, 80
      %v4411 = vpop.permute.xlu0 %4410
      %4412 = vrot.lane.b32.xlu0 %v4348, 80
      %v4413 = vpop.permute.xlu0 %4412
      %4414 = vrot.lane.b32.xlu0 %v4349, 80
      %v4415 = vpop.permute.xlu0 %4414
      %4416 = vrot.lane.b32.xlu0 %v4350, 80
      %v4417 = vpop.permute.xlu0 %4416
      %4418 = vrot.lane.b32.xlu0 %v4351, 80
      %v4419 = vpop.permute.xlu0 %4418
      %4420 = vrot.lane.b32.xlu0 %v4352, 80
      %v4421 = vpop.permute.xlu0 %4420
      %4422 = vrot.lane.b32.xlu0 %v4407, 80
      %v4423 = vpop.permute.xlu0 %4422
      %4424 = vrot.lane.b32.xlu0 %v4269, 96
      %v4425 = vpop.permute.xlu0 %4424
      %4426 = vrot.lane.b32.xlu0 %v4270, 96
      %v4427 = vpop.permute.xlu0 %4426
      %4428 = vrot.lane.b32.xlu0 %v4271, 96
      %v4429 = vpop.permute.xlu0 %4428
      %4430 = vrot.lane.b32.xlu0 %v4272, 96
      %v4431 = vpop.permute.xlu0 %4430
      %4432 = vrot.lane.b32.xlu0 %v4273, 96
      %v4433 = vpop.permute.xlu0 %4432
      %4434 = vrot.lane.b32.xlu0 %v4274, 96
      %v4435 = vpop.permute.xlu0 %4434
      %4436 = vrot.lane.b32.xlu0 %v4275, 96
      %v4437 = vpop.permute.xlu0 %4436
      %4438 = vrot.lane.b32.xlu0 %v4289, 112
      %v4439 = vpop.permute.xlu0 %4438
      %4440 = vrot.lane.b32.xlu0 %v4296, 112
      %v4441 = vpop.permute.xlu0 %4440
      %4442 = vrot.lane.b32.xlu0 %v4303, 112
      %v4443 = vpop.permute.xlu0 %4442
      %4444 = vrot.lane.b32.xlu0 %v4310, 112
      %v4445 = vpop.permute.xlu0 %4444
      %4446 = vrot.lane.b32.xlu0 %v4317, 112
      %v4447 = vpop.permute.xlu0 %4446
      %4448 = vrot.lane.b32.xlu0 %v4324, 112
      %v4449 = vpop.permute.xlu0 %4448
      %4450 = vrot.lane.b32.xlu0 %v4390, 112
      %v4451 = vpop.permute.xlu0 %4450
      %v4453 = vsel %vm2828, %v4268, %v4326
      %v4455 = vsel %vm2828, %v4269, %v4328
      %v4457 = vsel %vm2828, %v4270, %v4330
      %v4459 = vsel %vm2828, %v4271, %v4332
      %v4461 = vsel %vm2828, %v4272, %v4334
      %v4463 = vsel %vm2828, %v4273, %v4336
      %v4465 = vsel %vm2828, %v4274, %v4338
      %v4467 = vsel %vm1229, %v4453, %v4354
      %v4469 = vsel %vm1229, %v4455, %v4356
      %v4471 = vsel %vm1229, %v4457, %v4358
      %v4473 = vsel %vm1229, %v4459, %v4360
      %v4475 = vsel %vm1229, %v4461, %v4362
      %v4477 = vsel %vm1229, %v4463, %v4364
      %v4479 = vsel %vm1229, %v4465, %v4366
      %v4481 = vsel %vm3239, %v3224, %v4369
      %v4483 = vsel %vm3239, %v4467, %v4371
      %v4485 = vsel %vm3239, %v4469, %v4373
      %v4487 = vsel %vm3239, %v4471, %v4375
      %v4489 = vsel %vm3239, %v4473, %v4377
      %v4491 = vsel %vm3239, %v4475, %v4379
      %v4493 = vsel %vm3239, %v4477, %v4381
      %v4495 = vsel %vm3239, %v4479, %v4383
      %v4497 = vsel %vm1238, %v4481, %v4392
      %v4499 = vsel %vm1238, %v4483, %v4394
      %v4501 = vsel %vm1238, %v4485, %v4396
      %v4503 = vsel %vm1238, %v4487, %v4398
      %v4505 = vsel %vm1238, %v4489, %v4400
      %v4507 = vsel %vm1238, %v4491, %v4402
      %v4509 = vsel %vm1238, %v4493, %v4404
      %v4511 = vsel %vm1238, %v4495, %v4406
      %v4513 = vsel %vm3272, %v4497, %v4409
      %v4515 = vsel %vm3272, %v4499, %v4411
      %v4517 = vsel %vm3272, %v4501, %v4413
      %v4519 = vsel %vm3272, %v4503, %v4415
      %v4521 = vsel %vm3272, %v4505, %v4417
      %v4523 = vsel %vm3272, %v4507, %v4419
      %v4525 = vsel %vm3272, %v4509, %v4421
      %v4527 = vsel %vm3272, %v4511, %v4423
      %v4529 = vsel %vm1247, %v4513, %v4425
      %v4531 = vsel %vm1247, %v4515, %v4427
      %v4533 = vsel %vm1247, %v4517, %v4429
      %v4535 = vsel %vm1247, %v4519, %v4431
      %v4537 = vsel %vm1247, %v4521, %v4433
      %v4539 = vsel %vm1247, %v4523, %v4435
      %v4541 = vsel %vm1247, %v4525, %v4437
      %v4542 = vsel %vm1247, %v4527, %v3190
      %v4544 = vsel %vm3305, %v4529, %v4439
      %v4546 = vsel %vm3305, %v4531, %v4441
      %v4548 = vsel %vm3305, %v4533, %v4443
      %v4550 = vsel %vm3305, %v4535, %v4445
      %v4552 = vsel %vm3305, %v4537, %v4447
      %v4554 = vsel %vm3305, %v4539, %v4449
      %v4556 = vsel %vm3305, %v4541, %v4451
      %v4557 = vsel %vm3305, %v4542, %v3206
      %v4566 = vunpack.c.l.b16 %v4544
      %v4567 = vunpack.c.l.b16 %v4347
      %v4568 = vunpack.c.l.b16 %v4546
      %v4569 = vunpack.c.l.b16 %v4348
      %v4570 = vunpack.c.l.b16 %v4548
      %v4571 = vunpack.c.l.b16 %v4349
      %v4572 = vunpack.c.l.b16 %v4550
      %v4573 = vunpack.c.l.b16 %v4350
      %v4574 = vunpack.c.l.b16 %v4552
      %v4575 = vunpack.c.l.b16 %v4351
      %v4576 = vunpack.c.l.b16 %v4554
      %v4577 = vunpack.c.l.b16 %v4352
      %v4578 = vunpack.c.l.b16 %v4556
      %v4579 = vunpack.c.l.b16 %v4407
      %v4580 = vunpack.c.l.b16 %v4557
      %v4582 = vlaneseq
      %v4583 = vshrl.u32 %v4582, 7
      %v4584 = vsub.s32 0, %v4583
      %v4585 = vrot.slane %v2807, %v4584
      %v4587 = vpack.c.b16 %v4568, %v4566
      %v4588 = vpack.c.b16 %v4569, %v4567
      %v4589 = vpack.c.b16 %v4572, %v4570
      %v4590 = vpack.c.b16 %v4573, %v4571
      %v4591 = vpack.c.b16 %v4576, %v4574
      %v4592 = vpack.c.b16 %v4577, %v4575
      %v4593 = vpack.c.b16 %v4580, %v4578
      %v4594 = vpack.c.b16 %v3345, %v4579
      %v4617 = vunpack.c.l.b16 %v2789
      %v4618 = vunpack.c.l.b16 %v2790
      %v4619 = vunpack.c.l.b16 %v2791
      %v4620 = vunpack.c.l.b16 %v2792
      %v4621 = vunpack.c.l.b16 %v2793
      %v4622 = vunpack.c.l.b16 %v2794
      %v4623 = vunpack.c.l.b16 %v2795
      %v4624 = vunpack.c.l.b16 %v2796
      %v4625 = vunpack.c.l.b16 %v2797
      %v4626 = vunpack.c.l.b16 %v2798
      %v4627 = vunpack.c.l.b16 %v2799
      %v4628 = vunpack.c.l.b16 %v2800
      %v4629 = vunpack.c.l.b16 %v2801
      %v4630 = vunpack.c.l.b16 %v2802
      %v4631 = vunpack.c.l.b16 %v2803
      %v4632 = vunpack.c.l.b16 %v2804
      %v4633 = vunpack.c.l.b16 %v2805
      %v4634 = vunpack.c.l.b16 %v2806
      %v4635 = vpack.c.b16 %v4618, %v4617
      %v4636 = vpack.c.b16 %v4620, %v4619
      %v4637 = vpack.c.b16 %v4622, %v4621
      %v4638 = vpack.c.b16 %v4624, %v4623
      %v4639 = vpack.c.b16 %v4626, %v4625
      %v4640 = vpack.c.b16 %v4628, %v4627
      %v4641 = vpack.c.b16 %v4630, %v4629
      %v4642 = vpack.c.b16 %v4632, %v4631
      %v4643 = vpack.c.b16 %v4634, %v4633
      %v4654 = vsel %vm2828, %v4588, 0
      %v4657 = vsel %vm2828, %v4590, 0
      %v4660 = vsel %vm2828, %v4592, 0
      %v4663 = vsel %vm2828, %v4594, 0
      %4665 = vmatprep.subr.bf16.mxu0 0
      %4666 = vmatpush1.bf16.msra.mxu0 %v4635
      %4667 = vmatprep.subr.bf16.mxu0 0
      %4668 = vmatpush1.bf16.msra.mxu0 %v4636
      %4669 = vmatprep.subr.bf16.mxu0 0
      %4670 = vmatpush1.bf16.msra.mxu0 %v4637
      %4671 = vmatprep.subr.bf16.mxu0 0
      %4672 = vmatpush1.bf16.msra.mxu0 %v4638
      %4673 = vmatprep.subr.bf16.mxu0 0
      %4674 = vmatpush1.bf16.msra.mxu0 %v4639
      %4675 = vmatprep.subr.bf16.mxu0 0
      %4676 = vmatpush1.bf16.msra.mxu0 %v4640
      %4677 = vmatprep.subr.bf16.mxu0 0
      %4678 = vmatpush1.bf16.msra.mxu0 %v4641
      %4679 = vmatprep.subr.bf16.mxu0 0
      %4680 = vmatpush1.bf16.msra.mxu0 %v4642
      %4681 = vmatprep.subr.bf16.mxu0 0
      %4682 = vmatpush1.bf16.msra.mxu0 %v4643
      %4683 = vmatprep.subr.bf16.mxu0 0
      %4684 = vmatpush1.bf16.msra.mxu0 0
      %4685 = vmatprep.subr.bf16.mxu0 0
      %4686 = vmatpush1.bf16.msra.mxu0 0
      %4687 = vmatprep.subr.bf16.mxu0 0
      %4688 = vmatpush1.bf16.msra.mxu0 0
      %4689 = vmatprep.subr.bf16.mxu0 0
      %4690 = vmatpush1.bf16.msra.mxu0 0
      %4691 = vmatprep.subr.bf16.mxu0 0
      %4692 = vmatpush1.bf16.msra.mxu0 0
      %4693 = vmatprep.subr.bf16.mxu0 0
      %4694 = vmatpush1.bf16.msra.mxu0 0
      %4695 = vmatprep.subr.bf16.mxu0 0
      %4696 = vmatpush1.bf16.msra.mxu0 0
      %4697 = vmatprep.mubr.bf16.mxu0 %v4654
      %4698 = vmatmul.mubr.bf16.gmra.mrb[0].mxu0 %v4587
      %v4699 = vpop.f32.mrb[0].mxu0
      %v4700 = vadd.f32 %v4585, %v4699
      %v4701 = vpop.f32.mrb[0].mxu0
      %v4702 = vpop.f32.mrb[0].mxu0
      %v4703 = vadd.f32 %v4585, %v4702
      %v4704 = vpop.f32.mrb[0].mxu0
      %4705 = vmatprep.mubr.bf16.mxu0 %v4657
      %4706 = vmatmul.mubr.bf16.gmra.mrb[0].mxu0 %v4589
      %v4707 = vpop.f32.mrb[0].mxu0
      %v4708 = vadd.f32 %v4585, %v4707
      %v4709 = vpop.f32.mrb[0].mxu0
      %v4710 = vpop.f32.mrb[0].mxu0
      %v4711 = vadd.f32 %v4585, %v4710
      %v4712 = vpop.f32.mrb[0].mxu0
      %4713 = vmatprep.mubr.bf16.mxu0 %v4660
      %4714 = vmatmul.mubr.bf16.gmra.mrb[0].mxu0 %v4591
      %v4715 = vpop.f32.mrb[0].mxu0
      %v4716 = vadd.f32 %v4585, %v4715
      %v4717 = vpop.f32.mrb[0].mxu0
      %v4718 = vpop.f32.mrb[0].mxu0
      %v4719 = vadd.f32 %v4585, %v4718
      %v4720 = vpop.f32.mrb[0].mxu0
      %4721 = vmatprep.mubr.bf16.mxu0 %v4663
      %4722 = vmatmul.mubr.bf16.gmra.mrb[0].mxu0 %v4593
      %v4723 = vpop.f32.mrb[0].mxu0
      %v4724 = vadd.f32 %v4585, %v4723
      %v4725 = vpop.f32.mrb[0].mxu0
      %v4726 = vpop.f32.mrb[0].mxu0
      %v4727 = vadd.f32 %v4585, %v4726
      %v4728 = vpop.f32.mrb[0].mxu0
      %4729 = vdwg.mxu0
      %v4730 = vmax.f32 %v4700, 0.0
      %v4731 = vmax.f32 %v4703, 0.0
      %v4732 = vmax.f32 %v4708, 0.0
      %v4733 = vmax.f32 %v4711, 0.0
      %v4734 = vmax.f32 %v4716, 0.0
      %v4735 = vmax.f32 %v4719, 0.0
      %v4736 = vmax.f32 %v4724, 0.0
      %v4737 = vmax.f32 %v4727, 0.0
      %v4738 = vpack.c.bf16 %v4731, %v4730
      %v4739 = vpack.c.bf16 %v4733, %v4732
      %v4740 = vpack.c.bf16 %v4735, %v4734
      %v4741 = vpack.c.bf16 %v4737, %v4736
      %v4742 = vld [vmem:[%s824] sm:$0xf]
      %v4743 = vld [vmem:[%s824 + $0x4] sm:$0xf]
      %v4744 = vld [vmem:[%s824 + $0x8] sm:$0xf]
      %v4745 = vld [vmem:[%s824 + $0xc] sm:$0xf]
      %v4746 = vld [vmem:[%s824 + $0x10] sm:$0xf]
      %v4747 = vld [vmem:[%s824 + $0x14] sm:$0xf]
      %v4748 = vld [vmem:[%s824 + $0x18] sm:$0xf]
      %v4749 = vld [vmem:[%s824 + $0x1c] sm:$0xf]
      %v4750 = vld [vmem:[%s824 + $0x20] sm:$0xf]
      %v4751 = vld [vmem:[%s824 + $0x24] sm:$0xf]
      %v4752 = vld [vmem:[%s824 + $0x28] sm:$0xf]
      %v4753 = vld [vmem:[%s824 + $0x2c] sm:$0xf]
      %v4754 = vld [vmem:[%s824 + $0x30] sm:$0xf]
      %v4755 = vld [vmem:[%s824 + $0x34] sm:$0xf]
      %v4756 = vld [vmem:[%s824 + $0x38] sm:$0xf]
      %v4757 = vld [vmem:[%s824 + $0x3c] sm:$0xf]
      %v4758 = vld [vmem:[%s824 + $0x40] sm:$0xf]
      %v4759 = vld [vmem:[%s824 + $0x44] sm:$0xf]
      %v4760 = vld [vmem:[%s824 + $0x48] sm:$0xf]
      %v4761 = vld [vmem:[%s824 + $0x4c] sm:$0xf]
      %v4762 = vld [vmem:[%s824 + $0x50] sm:$0xf]
      %v4763 = vld [vmem:[%s824 + $0x54] sm:$0xf]
      %v4764 = vld [vmem:[%s824 + $0x58] sm:$0xf]
      %v4765 = vld [vmem:[%s824 + $0x5c] sm:$0xf]
      %v4766 = vld [vmem:[%s824 + $0x60] sm:$0xf]
      %v4767 = vld [vmem:[%s824 + $0x64] sm:$0xf]
      %v4768 = vld [vmem:[%s824 + $0x68] sm:$0xf]
      %v4769 = vld [vmem:[%s824 + $0x6c] sm:$0xf]
      %v4770 = vld [vmem:[%s824 + $0x70] sm:$0xf]
      %v4771 = vld [vmem:[%s824 + $0x74] sm:$0xf]
      %v4772 = vld [vmem:[%s824 + $0x78] sm:$0xf]
      %v4773 = vld [vmem:[%s824 + $0x7c] sm:$0xf]
      %v4774 = vld [vmem:[%s6] sm:$0xf]
      %v4775 = vld [vmem:[%s6 + $0x4] sm:$0xf]
      %v4776 = vld [vmem:[%s6 + $0x8] sm:$0xf]
      %v4777 = vld [vmem:[%s6 + $0xc] sm:$0xf]
      %v4778 = vld [vmem:[%s6 + $0x10] sm:$0xf]
      %v4779 = vld [vmem:[%s6 + $0x14] sm:$0xf]
      %v4780 = vld [vmem:[%s6 + $0x18] sm:$0xf]
      %v4781 = vld [vmem:[%s6 + $0x1c] sm:$0xf]
      %v4782 = vld [vmem:[%s6 + $0x20] sm:$0xf]
      %v4783 = vld [vmem:[%s6 + $0x24] sm:$0xf]
      %v4784 = vld [vmem:[%s6 + $0x28] sm:$0xf]
      %v4785 = vld [vmem:[%s6 + $0x2c] sm:$0xf]
      %v4786 = vld [vmem:[%s6 + $0x30] sm:$0xf]
      %v4787 = vld [vmem:[%s6 + $0x34] sm:$0xf]
      %v4788 = vld [vmem:[%s6 + $0x38] sm:$0xf]
      %v4789 = vld [vmem:[%s6 + $0x3c] sm:$0xf]
      %v4790 = vld [vmem:[%s6 + $0x40] sm:$0xf]
      %v4791 = vld [vmem:[%s6 + $0x44] sm:$0xf]
      %v4792 = vld [vmem:[%s6 + $0x48] sm:$0xf]
      %v4793 = vld [vmem:[%s6 + $0x4c] sm:$0xf]
      %v4794 = vld [vmem:[%s6 + $0x50] sm:$0xf]
      %v4795 = vld [vmem:[%s6 + $0x54] sm:$0xf]
      %v4796 = vld [vmem:[%s6 + $0x58] sm:$0xf]
      %v4797 = vld [vmem:[%s6 + $0x5c] sm:$0xf]
      %v4798 = vld [vmem:[%s6 + $0x60] sm:$0xf]
      %v4799 = vld [vmem:[%s6 + $0x64] sm:$0xf]
      %v4800 = vld [vmem:[%s6 + $0x68] sm:$0xf]
      %v4801 = vld [vmem:[%s6 + $0x6c] sm:$0xf]
      %v4802 = vld [vmem:[%s6 + $0x70] sm:$0xf]
      %v4803 = vld [vmem:[%s6 + $0x74] sm:$0xf]
      %v4804 = vld [vmem:[%s6 + $0x78] sm:$0xf]
      %v4805 = vld [vmem:[%s6 + $0x7c] sm:$0xf]
      %v4806 = vld [vmem:[%s17] sm:$0xf]
      %v4807 = vld [vmem:[%s17 + $0x4] sm:$0xf]
      %v4808 = vld [vmem:[%s17 + $0x8] sm:$0xf]
      %v4809 = vld [vmem:[%s17 + $0xc] sm:$0xf]
      %v4810 = vld [vmem:[%s17 + $0x10] sm:$0xf]
      %v4811 = vld [vmem:[%s17 + $0x14] sm:$0xf]
      %v4812 = vld [vmem:[%s17 + $0x18] sm:$0xf]
      %v4813 = vld [vmem:[%s17 + $0x1c] sm:$0xf]
      %v4814 = vld [vmem:[%s17 + $0x20] sm:$0xf]
      %v4815 = vld [vmem:[%s18] sm:$0xf]
      %v4816 = vld [vmem:[%s18 + $0x4] sm:$0xf]
      %v4817 = vld [vmem:[%s18 + $0x8] sm:$0xf]
      %v4818 = vld [vmem:[%s18 + $0xc] sm:$0xf]
      %v4819 = vld [vmem:[%s18 + $0x10] sm:$0xf]
      %v4820 = vld [vmem:[%s18 + $0x14] sm:$0xf]
      %v4821 = vld [vmem:[%s18 + $0x18] sm:$0xf]
      %v4822 = vld [vmem:[%s18 + $0x1c] sm:$0xf]
      %v4823 = vld [vmem:[%s18 + $0x20] sm:$0xf]
      %v4824 = vld [vmem:[%s18 + $0x24] sm:$0xf]
      %v4825 = vld [vmem:[%s18 + $0x28] sm:$0xf]
      %v4826 = vld [vmem:[%s18 + $0x2c] sm:$0xf]
      %v4827 = vld [vmem:[%s18 + $0x30] sm:$0xf]
      %v4828 = vld [vmem:[%s18 + $0x34] sm:$0xf]
      %v4829 = vld [vmem:[%s18 + $0x38] sm:$0xf]
      %v4830 = vld [vmem:[%s18 + $0x3c] sm:$0xf]
      %v4831 = vld [vmem:[%s18 + $0x40] sm:$0xf]
      %v4832 = vld [vmem:[%s18 + $0x44] sm:$0xf]
      %v4833 = vld [vmem:[%s19] sm:$0x1]
      %v4834 = vld [vmem:[%s20] sm:$0xf]
      %v4835 = vld [vmem:[%s20 + $0x4] sm:$0xf]
      %v4836 = vld [vmem:[%s20 + $0x8] sm:$0xf]
      %v4837 = vld [vmem:[%s20 + $0xc] sm:$0xf]
      %v4838 = vld [vmem:[%s20 + $0x10] sm:$0xf]
      %v4839 = vld [vmem:[%s20 + $0x14] sm:$0xf]
      %v4840 = vld [vmem:[%s20 + $0x18] sm:$0xf]
      %v4841 = vld [vmem:[%s20 + $0x1c] sm:$0xf]
      %v4842 = vld [vmem:[%s20 + $0x20] sm:$0xf]
      %v4843 = vld [vmem:[%s21] sm:$0x1]
      %v4876 = vunpack.c.l.b16 %v4774
      %v4877 = vunpack.c.l.b16 %v4775
      %v4878 = vunpack.c.l.b16 %v4776
      %v4879 = vunpack.c.l.b16 %v4777
      %v4880 = vunpack.c.l.b16 %v4778
      %v4881 = vunpack.c.l.b16 %v4779
      %v4882 = vunpack.c.l.b16 %v4780
      %v4883 = vunpack.c.l.b16 %v4781
      %v4884 = vunpack.c.l.b16 %v4782
      %v4885 = vunpack.c.l.b16 %v4783
      %v4886 = vunpack.c.l.b16 %v4784
      %v4887 = vunpack.c.l.b16 %v4785
      %v4888 = vunpack.c.l.b16 %v4786
      %v4889 = vunpack.c.l.b16 %v4787
      %v4890 = vunpack.c.l.b16 %v4788
      %v4891 = vunpack.c.l.b16 %v4789
      %v4892 = vunpack.c.l.b16 %v4790
      %v4893 = vunpack.c.l.b16 %v4791
      %v4894 = vunpack.c.l.b16 %v4792
      %v4895 = vunpack.c.l.b16 %v4793
      %v4896 = vunpack.c.l.b16 %v4794
      %v4897 = vunpack.c.l.b16 %v4795
      %v4898 = vunpack.c.l.b16 %v4796
      %v4899 = vunpack.c.l.b16 %v4797
      %v4900 = vunpack.c.l.b16 %v4798
      %v4901 = vunpack.c.l.b16 %v4799
      %v4902 = vunpack.c.l.b16 %v4800
      %v4903 = vunpack.c.l.b16 %v4801
      %v4904 = vunpack.c.l.b16 %v4802
      %v4905 = vunpack.c.l.b16 %v4803
      %v4906 = vunpack.c.l.b16 %v4804
      %v4907 = vunpack.c.l.b16 %v4805
      %v4908 = vpack.c.b16 %v4877, %v4876
      %v4909 = vpack.c.b16 %v4879, %v4878
      %v4910 = vpack.c.b16 %v4881, %v4880
      %v4911 = vpack.c.b16 %v4883, %v4882
      %v4912 = vpack.c.b16 %v4885, %v4884
      %v4913 = vpack.c.b16 %v4887, %v4886
      %v4914 = vpack.c.b16 %v4889, %v4888
      %v4915 = vpack.c.b16 %v4891, %v4890
      %v4916 = vpack.c.b16 %v4893, %v4892
      %v4917 = vpack.c.b16 %v4895, %v4894
      %v4918 = vpack.c.b16 %v4897, %v4896
      %v4919 = vpack.c.b16 %v4899, %v4898
      %v4920 = vpack.c.b16 %v4901, %v4900
      %v4921 = vpack.c.b16 %v4903, %v4902
      %v4922 = vpack.c.b16 %v4905, %v4904
      %v4923 = vpack.c.b16 %v4907, %v4906
      %v4925 = vsel %vm1238, %v4908, 0
      %v4928 = vsel %vm1238, %v4909, 0
      %v4931 = vsel %vm1238, %v4910, 0
      %v4934 = vsel %vm1238, %v4911, 0
      %v4937 = vsel %vm1238, %v4912, 0
      %v4940 = vsel %vm1238, %v4913, 0
      %v4943 = vsel %vm1238, %v4914, 0
      %v4946 = vsel %vm1238, %v4915, 0
      %v4949 = vsel %vm1238, %v4916, 0
      %v4952 = vsel %vm1238, %v4917, 0
      %v4955 = vsel %vm1238, %v4918, 0
      %v4958 = vsel %vm1238, %v4919, 0
      %v4961 = vsel %vm1238, %v4920, 0
      %v4964 = vsel %vm1238, %v4921, 0
      %v4967 = vsel %vm1238, %v4922, 0
      %v4970 = vsel %vm1238, %v4923, 0
      %4972 = vmatprep.subr.bf16.mxu0 0
      %4973 = vmatpush1.bf16.msra.mxu0 %v4738
      %4974 = vmatprep.subr.bf16.mxu0 0
      %4975 = vmatpush1.bf16.msra.mxu0 %v4739
      %4976 = vmatprep.subr.bf16.mxu0 0
      %4977 = vmatpush1.bf16.msra.mxu0 %v4740
      %4978 = vmatprep.subr.bf16.mxu0 0
      %4979 = vmatpush1.bf16.msra.mxu0 %v4741
      %4980 = vmatprep.subr.bf16.mxu0 0
      %4981 = vmatpush1.bf16.msra.mxu0 0
      %4982 = vmatprep.subr.bf16.mxu0 0
      %4983 = vmatpush1.bf16.msra.mxu0 0
      %4984 = vmatprep.subr.bf16.mxu0 0
      %4985 = vmatpush1.bf16.msra.mxu0 0
      %4986 = vmatprep.subr.bf16.mxu0 0
      %4987 = vmatpush1.bf16.msra.mxu0 0
      %4988 = vmatprep.subr.bf16.mxu0 0
      %4989 = vmatpush1.bf16.msra.mxu0 0
      %4990 = vmatprep.subr.bf16.mxu0 0
      %4991 = vmatpush1.bf16.msra.mxu0 0
      %4992 = vmatprep.subr.bf16.mxu0 0
      %4993 = vmatpush1.bf16.msra.mxu0 0
      %4994 = vmatprep.subr.bf16.mxu0 0
      %4995 = vmatpush1.bf16.msra.mxu0 0
      %4996 = vmatprep.subr.bf16.mxu0 0
      %4997 = vmatpush1.bf16.msra.mxu0 0
      %4998 = vmatprep.subr.bf16.mxu0 0
      %4999 = vmatpush1.bf16.msra.mxu0 0
      %5000 = vmatprep.subr.bf16.mxu0 0
      %5001 = vmatpush1.bf16.msra.mxu0 0
      %5002 = vmatprep.subr.bf16.mxu0 0
      %5003 = vmatpush1.bf16.msra.mxu0 0
      %5004 = vmatprep.mubr.bf16.mxu0 0
      %5005 = vmatmul.mubr.bf16.gmra.mrb[0].mxu0 %v4925
      %v5006 = vpop.f32.mrb[0].mxu0
      %v5007 = vadd.f32 0.0, %v5006
      %v5008 = vpop.f32.mrb[0].mxu0
      %v5009 = vpop.f32.mrb[0].mxu0
      %v5010 = vadd.f32 0.0, %v5009
      %v5011 = vpop.f32.mrb[0].mxu0
      %5012 = vmatprep.mubr.bf16.mxu0 0
      %5013 = vmatmul.mubr.bf16.gmra.mrb[0].mxu0 %v4928
      %v5014 = vpop.f32.mrb[0].mxu0
      %v5015 = vadd.f32 0.0, %v5014
      %v5016 = vpop.f32.mrb[0].mxu0
      %v5017 = vpop.f32.mrb[0].mxu0
      %v5018 = vadd.f32 0.0, %v5017
      %v5019 = vpop.f32.mrb[0].mxu0
      %5020 = vmatprep.mubr.bf16.mxu0 0
      %5021 = vmatmul.mubr.bf16.gmra.mrb[0].mxu0 %v4931
      %v5022 = vpop.f32.mrb[0].mxu0
      %v5023 = vadd.f32 0.0, %v5022
      %v5024 = vpop.f32.mrb[0].mxu0
      %v5025 = vpop.f32.mrb[0].mxu0
      %v5026 = vadd.f32 0.0, %v5025
      %v5027 = vpop.f32.mrb[0].mxu0
      %5028 = vmatprep.mubr.bf16.mxu0 0
      %5029 = vmatmul.mubr.bf16.gmra.mrb[0].mxu0 %v4934
      %v5030 = vpop.f32.mrb[0].mxu0
      %v5031 = vadd.f32 0.0, %v5030
      %v5032 = vpop.f32.mrb[0].mxu0
      %v5033 = vpop.f32.mrb[0].mxu0
      %v5034 = vadd.f32 0.0, %v5033
      %v5035 = vpop.f32.mrb[0].mxu0
      %5036 = vmatprep.mubr.bf16.mxu0 0
      %5037 = vmatmul.mubr.bf16.gmra.mrb[0].mxu0 %v4937
      %v5038 = vpop.f32.mrb[0].mxu0
      %v5039 = vadd.f32 0.0, %v5038
      %v5040 = vpop.f32.mrb[0].mxu0
      %v5041 = vpop.f32.mrb[0].mxu0
      %v5042 = vadd.f32 0.0, %v5041
      %v5043 = vpop.f32.mrb[0].mxu0
      %5044 = vmatprep.mubr.bf16.mxu0 0
      %5045 = vmatmul.mubr.bf16.gmra.mrb[0].mxu0 %v4940
      %v5046 = vpop.f32.mrb[0].mxu0
      %v5047 = vadd.f32 0.0, %v5046
      %v5048 = vpop.f32.mrb[0].mxu0
      %v5049 = vpop.f32.mrb[0].mxu0
      %v5050 = vadd.f32 0.0, %v5049
      %v5051 = vpop.f32.mrb[0].mxu0
      %5052 = vmatprep.mubr.bf16.mxu0 0
      %5053 = vmatmul.mubr.bf16.gmra.mrb[0].mxu0 %v4943
      %v5054 = vpop.f32.mrb[0].mxu0
      %v5055 = vadd.f32 0.0, %v5054
      %v5056 = vpop.f32.mrb[0].mxu0
      %v5057 = vpop.f32.mrb[0].mxu0
      %v5058 = vadd.f32 0.0, %v5057
      %v5059 = vpop.f32.mrb[0].mxu0
      %5060 = vmatprep.mubr.bf16.mxu0 0
      %5061 = vmatmul.mubr.bf16.gmra.mrb[0].mxu0 %v4946
      %v5062 = vpop.f32.mrb[0].mxu0
      %v5063 = vadd.f32 0.0, %v5062
      %v5064 = vpop.f32.mrb[0].mxu0
      %v5065 = vpop.f32.mrb[0].mxu0
      %v5066 = vadd.f32 0.0, %v5065
      %v5067 = vpop.f32.mrb[0].mxu0
      %5068 = vmatprep.mubr.bf16.mxu0 0
      %5069 = vmatmul.mubr.bf16.gmra.mrb[0].mxu0 %v4949
      %v5070 = vpop.f32.mrb[0].mxu0
      %v5071 = vadd.f32 0.0, %v5070
      %v5072 = vpop.f32.mrb[0].mxu0
      %v5073 = vpop.f32.mrb[0].mxu0
      %v5074 = vadd.f32 0.0, %v5073
      %v5075 = vpop.f32.mrb[0].mxu0
      %5076 = vmatprep.mubr.bf16.mxu0 0
      %5077 = vmatmul.mubr.bf16.gmra.mrb[0].mxu0 %v4952
      %v5078 = vpop.f32.mrb[0].mxu0
      %v5079 = vadd.f32 0.0, %v5078
      %v5080 = vpop.f32.mrb[0].mxu0
      %v5081 = vpop.f32.mrb[0].mxu0
      %v5082 = vadd.f32 0.0, %v5081
      %v5083 = vpop.f32.mrb[0].mxu0
      %5084 = vmatprep.mubr.bf16.mxu0 0
      %5085 = vmatmul.mubr.bf16.gmra.mrb[0].mxu0 %v4955
      %v5086 = vpop.f32.mrb[0].mxu0
      %v5087 = vadd.f32 0.0, %v5086
      %v5088 = vpop.f32.mrb[0].mxu0
      %v5089 = vpop.f32.mrb[0].mxu0
      %v5090 = vadd.f32 0.0, %v5089
      %v5091 = vpop.f32.mrb[0].mxu0
      %5092 = vmatprep.mubr.bf16.mxu0 0
      %5093 = vmatmul.mubr.bf16.gmra.mrb[0].mxu0 %v4958
      %v5094 = vpop.f32.mrb[0].mxu0
      %v5095 = vadd.f32 0.0, %v5094
      %v5096 = vpop.f32.mrb[0].mxu0
      %v5097 = vpop.f32.mrb[0].mxu0
      %v5098 = vadd.f32 0.0, %v5097
      %v5099 = vpop.f32.mrb[0].mxu0
      %5100 = vmatprep.mubr.bf16.mxu0 0
      %5101 = vmatmul.mubr.bf16.gmra.mrb[0].mxu0 %v4961
      %v5102 = vpop.f32.mrb[0].mxu0
      %v5103 = vadd.f32 0.0, %v5102
      %v5104 = vpop.f32.mrb[0].mxu0
      %v5105 = vpop.f32.mrb[0].mxu0
      %v5106 = vadd.f32 0.0, %v5105
      %v5107 = vpop.f32.mrb[0].mxu0
      %5108 = vmatprep.mubr.bf16.mxu0 0
      %5109 = vmatmul.mubr.bf16.gmra.mrb[0].mxu0 %v4964
      %v5110 = vpop.f32.mrb[0].mxu0
      %v5111 = vadd.f32 0.0, %v5110
      %v5112 = vpop.f32.mrb[0].mxu0
      %v5113 = vpop.f32.mrb[0].mxu0
      %v5114 = vadd.f32 0.0, %v5113
      %v5115 = vpop.f32.mrb[0].mxu0
      %5116 = vmatprep.mubr.bf16.mxu0 0
      %5117 = vmatmul.mubr.bf16.gmra.mrb[0].mxu0 %v4967
      %v5118 = vpop.f32.mrb[0].mxu0
      %v5119 = vadd.f32 0.0, %v5118
      %v5120 = vpop.f32.mrb[0].mxu0
      %v5121 = vpop.f32.mrb[0].mxu0
      %v5122 = vadd.f32 0.0, %v5121
      %v5123 = vpop.f32.mrb[0].mxu0
      %5124 = vmatprep.mubr.bf16.mxu0 0
      %5125 = vmatmul.mubr.bf16.gmra.mrb[0].mxu0 %v4970
      %v5126 = vpop.f32.mrb[0].mxu0
      %v5127 = vadd.f32 0.0, %v5126
      %v5128 = vpop.f32.mrb[0].mxu0
      %v5129 = vpop.f32.mrb[0].mxu0
      %v5130 = vadd.f32 0.0, %v5129
      %v5131 = vpop.f32.mrb[0].mxu0
      %5132 = vdwg.mxu0
      %v5133 = vpack.c.bf16 %v5010, %v5007
      %v5134 = vpack.c.bf16 %v5018, %v5015
      %v5135 = vpack.c.bf16 %v5026, %v5023
      %v5136 = vpack.c.bf16 %v5034, %v5031
      %v5137 = vpack.c.bf16 %v5042, %v5039
      %v5138 = vpack.c.bf16 %v5050, %v5047
      %v5139 = vpack.c.bf16 %v5058, %v5055
      %v5140 = vpack.c.bf16 %v5066, %v5063
      %v5141 = vpack.c.bf16 %v5074, %v5071
      %v5142 = vpack.c.bf16 %v5082, %v5079
      %v5143 = vpack.c.bf16 %v5090, %v5087
      %v5144 = vpack.c.bf16 %v5098, %v5095
      %v5145 = vpack.c.bf16 %v5106, %v5103
      %v5146 = vpack.c.bf16 %v5114, %v5111
      %v5147 = vpack.c.bf16 %v5122, %v5119
      %v5148 = vpack.c.bf16 %v5130, %v5127
      %v5181 = vunpack.c.l.b16 %v4742
      %v5182 = vunpack.c.l.b16 %v4743
      %v5183 = vunpack.c.l.b16 %v4744
      %v5184 = vunpack.c.l.b16 %v4745
      %v5185 = vunpack.c.l.b16 %v4746
      %v5186 = vunpack.c.l.b16 %v4747
      %v5187 = vunpack.c.l.b16 %v4748
      %v5188 = vunpack.c.l.b16 %v4749
      %v5189 = vunpack.c.l.b16 %v4750
      %v5190 = vunpack.c.l.b16 %v4751
      %v5191 = vunpack.c.l.b16 %v4752
      %v5192 = vunpack.c.l.b16 %v4753
      %v5193 = vunpack.c.l.b16 %v4754
      %v5194 = vunpack.c.l.b16 %v4755
      %v5195 = vunpack.c.l.b16 %v4756
      %v5196 = vunpack.c.l.b16 %v4757
      %v5197 = vunpack.c.l.b16 %v4758
      %v5198 = vunpack.c.l.b16 %v4759
      %v5199 = vunpack.c.l.b16 %v4760
      %v5200 = vunpack.c.l.b16 %v4761
      %v5201 = vunpack.c.l.b16 %v4762
      %v5202 = vunpack.c.l.b16 %v4763
      %v5203 = vunpack.c.l.b16 %v4764
      %v5204 = vunpack.c.l.b16 %v4765
      %v5205 = vunpack.c.l.b16 %v4766
      %v5206 = vunpack.c.l.b16 %v4767
      %v5207 = vunpack.c.l.b16 %v4768
      %v5208 = vunpack.c.l.b16 %v4769
      %v5209 = vunpack.c.l.b16 %v4770
      %v5210 = vunpack.c.l.b16 %v4771
      %v5211 = vunpack.c.l.b16 %v4772
      %v5212 = vunpack.c.l.b16 %v4773
      %v5213 = vpack.c.b16 %v5182, %v5181
      %v5214 = vpack.c.b16 %v5184, %v5183
      %v5215 = vpack.c.b16 %v5186, %v5185
      %v5216 = vpack.c.b16 %v5188, %v5187
      %v5217 = vpack.c.b16 %v5190, %v5189
      %v5218 = vpack.c.b16 %v5192, %v5191
      %v5219 = vpack.c.b16 %v5194, %v5193
      %v5220 = vpack.c.b16 %v5196, %v5195
      %v5221 = vpack.c.b16 %v5198, %v5197
      %v5222 = vpack.c.b16 %v5200, %v5199
      %v5223 = vpack.c.b16 %v5202, %v5201
      %v5224 = vpack.c.b16 %v5204, %v5203
      %v5225 = vpack.c.b16 %v5206, %v5205
      %v5226 = vpack.c.b16 %v5208, %v5207
      %v5227 = vpack.c.b16 %v5210, %v5209
      %v5228 = vpack.c.b16 %v5212, %v5211
      %v5230 = vshrl.u32 %v5213, 16
      %v5232 = vrot.slane %v5230, 7
      %v5233 = vshll.u32 %v5213, 16
      %v5235 = vor.u32 %v5232, %v5233
      %v5237 = vshrl.u32 %v5214, 16
      %v5239 = vrot.slane %v5237, 7
      %v5240 = vshll.u32 %v5214, 16
      %v5242 = vor.u32 %v5239, %v5240
      %v5244 = vshrl.u32 %v5215, 16
      %v5246 = vrot.slane %v5244, 7
      %v5247 = vshll.u32 %v5215, 16
      %v5249 = vor.u32 %v5246, %v5247
      %v5251 = vshrl.u32 %v5216, 16
      %v5253 = vrot.slane %v5251, 7
      %v5254 = vshll.u32 %v5216, 16
      %v5256 = vor.u32 %v5253, %v5254
      %v5258 = vshrl.u32 %v5217, 16
      %v5260 = vrot.slane %v5258, 7
      %v5261 = vshll.u32 %v5217, 16
      %v5263 = vor.u32 %v5260, %v5261
      %v5265 = vshrl.u32 %v5218, 16
      %v5267 = vrot.slane %v5265, 7
      %v5268 = vshll.u32 %v5218, 16
      %v5270 = vor.u32 %v5267, %v5268
      %v5272 = vshrl.u32 %v5219, 16
      %v5274 = vrot.slane %v5272, 7
      %v5275 = vshll.u32 %v5219, 16
      %v5277 = vor.u32 %v5274, %v5275
      %v5279 = vshrl.u32 %v5220, 16
      %v5281 = vrot.slane %v5279, 7
      %v5282 = vshll.u32 %v5220, 16
      %v5284 = vor.u32 %v5281, %v5282
      %v5286 = vshrl.u32 %v5221, 16
      %v5288 = vrot.slane %v5286, 7
      %v5289 = vshll.u32 %v5221, 16
      %v5291 = vor.u32 %v5288, %v5289
      %v5293 = vshrl.u32 %v5222, 16
      %v5295 = vrot.slane %v5293, 7
      %v5296 = vshll.u32 %v5222, 16
      %v5298 = vor.u32 %v5295, %v5296
      %v5300 = vshrl.u32 %v5223, 16
      %v5302 = vrot.slane %v5300, 7
      %v5303 = vshll.u32 %v5223, 16
      %v5305 = vor.u32 %v5302, %v5303
      %v5307 = vshrl.u32 %v5224, 16
      %v5309 = vrot.slane %v5307, 7
      %v5310 = vshll.u32 %v5224, 16
      %v5312 = vor.u32 %v5309, %v5310
      %v5314 = vshrl.u32 %v5225, 16
      %v5316 = vrot.slane %v5314, 7
      %v5317 = vshll.u32 %v5225, 16
      %v5319 = vor.u32 %v5316, %v5317
      %v5321 = vshrl.u32 %v5226, 16
      %v5323 = vrot.slane %v5321, 7
      %v5324 = vshll.u32 %v5226, 16
      %v5326 = vor.u32 %v5323, %v5324
      %v5328 = vshrl.u32 %v5227, 16
      %v5330 = vrot.slane %v5328, 7
      %v5331 = vshll.u32 %v5227, 16
      %v5333 = vor.u32 %v5330, %v5331
      %v5335 = vshrl.u32 %v5228, 16
      %v5337 = vrot.slane %v5335, 7
      %v5338 = vshll.u32 %v5228, 16
      %v5340 = vor.u32 %v5337, %v5338
      %v5374 = vsel %vm1122, 0, %v5235
      %v5375 = vsel %vm1122, 0, %v5242
      %v5376 = vsel %vm1122, 0, %v5249
      %v5377 = vsel %vm1122, 0, %v5256
      %v5378 = vsel %vm1122, 0, %v5263
      %v5379 = vsel %vm1122, 0, %v5270
      %v5380 = vsel %vm1122, 0, %v5277
      %v5381 = vsel %vm1122, 0, %v5284
      %v5382 = vsel %vm1122, 0, %v5291
      %v5383 = vsel %vm1122, 0, %v5298
      %v5384 = vsel %vm1122, 0, %v5305
      %v5385 = vsel %vm1122, 0, %v5312
      %v5386 = vsel %vm1122, 0, %v5319
      %v5387 = vsel %vm1122, 0, %v5326
      %v5388 = vsel %vm1122, 0, %v5333
      %v5389 = vsel %vm1122, 0, %v5340
      %v5390 = vsel %vm1122, %v1083, 0
      %v5391 = vsel %vm1122, %v5232, 0
      %v5392 = vsel %vm1122, %v5239, 0
      %v5393 = vsel %vm1122, %v5246, 0
      %v5394 = vsel %vm1122, %v5253, 0
      %v5395 = vsel %vm1122, %v5260, 0
      %v5396 = vsel %vm1122, %v5267, 0
      %v5397 = vsel %vm1122, %v5274, 0
      %v5398 = vsel %vm1122, %v5281, 0
      %v5399 = vsel %vm1122, %v5288, 0
      %v5400 = vsel %vm1122, %v5295, 0
      %v5401 = vsel %vm1122, %v5302, 0
      %v5402 = vsel %vm1122, %v5309, 0
      %v5403 = vsel %vm1122, %v5316, 0
      %v5404 = vsel %vm1122, %v5323, 0
      %v5405 = vsel %vm1122, %v5330, 0
      %v5406 = vsel %vm1122, %v5337, 0
      %vm5407 = vsmask.f32 7424
      %v5409 = vshrl.u32 %v1123, 16
      %v5411 = vshll.u32 %v1123, 16
      %v5413 = vrot.slane %v5411, 1
      %v5414 = vor.u32 %v5409, %v5413
      %v5416 = vshll.u32 %v5390, 16
      %v5418 = vrot.slane %v5416, 1
      %v5419 = vsel %vm5407, %v5414, %v5418
      %v5421 = vshrl.u32 %v5374, 16
      %v5423 = vshll.u32 %v5374, 16
      %v5425 = vrot.slane %v5423, 1
      %v5426 = vor.u32 %v5421, %v5425
      %v5428 = vshll.u32 %v5391, 16
      %v5430 = vrot.slane %v5428, 1
      %v5431 = vsel %vm5407, %v5426, %v5430
      %v5433 = vshrl.u32 %v5375, 16
      %v5435 = vshll.u32 %v5375, 16
      %v5437 = vrot.slane %v5435, 1
      %v5438 = vor.u32 %v5433, %v5437
      %v5440 = vshll.u32 %v5392, 16
      %v5442 = vrot.slane %v5440, 1
      %v5443 = vsel %vm5407, %v5438, %v5442
      %v5445 = vshrl.u32 %v5376, 16
      %v5447 = vshll.u32 %v5376, 16
      %v5449 = vrot.slane %v5447, 1
      %v5450 = vor.u32 %v5445, %v5449
      %v5452 = vshll.u32 %v5393, 16
      %v5454 = vrot.slane %v5452, 1
      %v5455 = vsel %vm5407, %v5450, %v5454
      %v5457 = vshrl.u32 %v5377, 16
      %v5459 = vshll.u32 %v5377, 16
      %v5461 = vrot.slane %v5459, 1
      %v5462 = vor.u32 %v5457, %v5461
      %v5464 = vshll.u32 %v5394, 16
      %v5466 = vrot.slane %v5464, 1
      %v5467 = vsel %vm5407, %v5462, %v5466
      %v5469 = vshrl.u32 %v5378, 16
      %v5471 = vshll.u32 %v5378, 16
      %v5473 = vrot.slane %v5471, 1
      %v5474 = vor.u32 %v5469, %v5473
      %v5476 = vshll.u32 %v5395, 16
      %v5478 = vrot.slane %v5476, 1
      %v5479 = vsel %vm5407, %v5474, %v5478
      %v5481 = vshrl.u32 %v5379, 16
      %v5483 = vshll.u32 %v5379, 16
      %v5485 = vrot.slane %v5483, 1
      %v5486 = vor.u32 %v5481, %v5485
      %v5488 = vshll.u32 %v5396, 16
      %v5490 = vrot.slane %v5488, 1
      %v5491 = vsel %vm5407, %v5486, %v5490
      %v5493 = vshrl.u32 %v5380, 16
      %v5495 = vshll.u32 %v5380, 16
      %v5497 = vrot.slane %v5495, 1
      %v5498 = vor.u32 %v5493, %v5497
      %v5500 = vshll.u32 %v5397, 16
      %v5502 = vrot.slane %v5500, 1
      %v5503 = vsel %vm5407, %v5498, %v5502
      %v5505 = vshrl.u32 %v5381, 16
      %v5507 = vshll.u32 %v5381, 16
      %v5509 = vrot.slane %v5507, 1
      %v5510 = vor.u32 %v5505, %v5509
      %v5512 = vshll.u32 %v5398, 16
      %v5514 = vrot.slane %v5512, 1
      %v5515 = vsel %vm5407, %v5510, %v5514
      %v5517 = vshrl.u32 %v5382, 16
      %v5519 = vshll.u32 %v5382, 16
      %v5521 = vrot.slane %v5519, 1
      %v5522 = vor.u32 %v5517, %v5521
      %v5524 = vshll.u32 %v5399, 16
      %v5526 = vrot.slane %v5524, 1
      %v5527 = vsel %vm5407, %v5522, %v5526
      %v5529 = vshrl.u32 %v5383, 16
      %v5531 = vshll.u32 %v5383, 16
      %v5533 = vrot.slane %v5531, 1
      %v5534 = vor.u32 %v5529, %v5533
      %v5536 = vshll.u32 %v5400, 16
      %v5538 = vrot.slane %v5536, 1
      %v5539 = vsel %vm5407, %v5534, %v5538
      %v5541 = vshrl.u32 %v5384, 16
      %v5543 = vshll.u32 %v5384, 16
      %v5545 = vrot.slane %v5543, 1
      %v5546 = vor.u32 %v5541, %v5545
      %v5548 = vshll.u32 %v5401, 16
      %v5550 = vrot.slane %v5548, 1
      %v5551 = vsel %vm5407, %v5546, %v5550
      %v5553 = vshrl.u32 %v5385, 16
      %v5555 = vshll.u32 %v5385, 16
      %v5557 = vrot.slane %v5555, 1
      %v5558 = vor.u32 %v5553, %v5557
      %v5560 = vshll.u32 %v5402, 16
      %v5562 = vrot.slane %v5560, 1
      %v5563 = vsel %vm5407, %v5558, %v5562
      %v5565 = vshrl.u32 %v5386, 16
      %v5567 = vshll.u32 %v5386, 16
      %v5569 = vrot.slane %v5567, 1
      %v5570 = vor.u32 %v5565, %v5569
      %v5572 = vshll.u32 %v5403, 16
      %v5574 = vrot.slane %v5572, 1
      %v5575 = vsel %vm5407, %v5570, %v5574
      %v5577 = vshrl.u32 %v5387, 16
      %v5579 = vshll.u32 %v5387, 16
      %v5581 = vrot.slane %v5579, 1
      %v5582 = vor.u32 %v5577, %v5581
      %v5584 = vshll.u32 %v5404, 16
      %v5586 = vrot.slane %v5584, 1
      %v5587 = vsel %vm5407, %v5582, %v5586
      %v5589 = vshrl.u32 %v5388, 16
      %v5591 = vshll.u32 %v5388, 16
      %v5593 = vrot.slane %v5591, 1
      %v5594 = vor.u32 %v5589, %v5593
      %v5596 = vshll.u32 %v5405, 16
      %v5598 = vrot.slane %v5596, 1
      %v5599 = vsel %vm5407, %v5594, %v5598
      %5600 = vrot.lane.b32.xlu0 %v5419, 8
      %v5601 = vpop.permute.xlu0 %5600
      %5602 = vrot.lane.b32.xlu0 %v5431, 8
      %v5603 = vpop.permute.xlu0 %5602
      %5604 = vrot.lane.b32.xlu0 %v5443, 8
      %v5605 = vpop.permute.xlu0 %5604
      %5606 = vrot.lane.b32.xlu0 %v5455, 8
      %v5607 = vpop.permute.xlu0 %5606
      %5608 = vrot.lane.b32.xlu0 %v5467, 8
      %v5609 = vpop.permute.xlu0 %5608
      %5610 = vrot.lane.b32.xlu0 %v5479, 8
      %v5611 = vpop.permute.xlu0 %5610
      %5612 = vrot.lane.b32.xlu0 %v5491, 8
      %v5613 = vpop.permute.xlu0 %5612
      %5614 = vrot.lane.b32.xlu0 %v5503, 8
      %v5615 = vpop.permute.xlu0 %5614
      %5616 = vrot.lane.b32.xlu0 %v5515, 8
      %v5617 = vpop.permute.xlu0 %5616
      %5618 = vrot.lane.b32.xlu0 %v5527, 8
      %v5619 = vpop.permute.xlu0 %5618
      %5620 = vrot.lane.b32.xlu0 %v5539, 8
      %v5621 = vpop.permute.xlu0 %5620
      %5622 = vrot.lane.b32.xlu0 %v5551, 8
      %v5623 = vpop.permute.xlu0 %5622
      %5624 = vrot.lane.b32.xlu0 %v5563, 8
      %v5625 = vpop.permute.xlu0 %5624
      %5626 = vrot.lane.b32.xlu0 %v5575, 8
      %v5627 = vpop.permute.xlu0 %5626
      %5628 = vrot.lane.b32.xlu0 %v5587, 8
      %v5629 = vpop.permute.xlu0 %5628
      %5630 = vrot.lane.b32.xlu0 %v5599, 8
      %v5631 = vpop.permute.xlu0 %5630
      %vm5664 = vcmask 1046528
      %v5665 = vrot.slane %v1123, 1
      %v5666 = vrot.slane %v5390, 1
      %v5667 = vsel %vm5664, %v5665, %v5666
      %v5668 = vrot.slane %v5374, 1
      %v5669 = vrot.slane %v5391, 1
      %v5670 = vsel %vm5664, %v5668, %v5669
      %v5671 = vrot.slane %v5375, 1
      %v5672 = vrot.slane %v5392, 1
      %v5673 = vsel %vm5664, %v5671, %v5672
      %v5674 = vrot.slane %v5376, 1
      %v5675 = vrot.slane %v5393, 1
      %v5676 = vsel %vm5664, %v5674, %v5675
      %v5677 = vrot.slane %v5377, 1
      %v5678 = vrot.slane %v5394, 1
      %v5679 = vsel %vm5664, %v5677, %v5678
      %v5680 = vrot.slane %v5378, 1
      %v5681 = vrot.slane %v5395, 1
      %v5682 = vsel %vm5664, %v5680, %v5681
      %v5683 = vrot.slane %v5379, 1
      %v5684 = vrot.slane %v5396, 1
      %v5685 = vsel %vm5664, %v5683, %v5684
      %v5686 = vrot.slane %v5380, 1
      %v5687 = vrot.slane %v5397, 1
      %v5688 = vsel %vm5664, %v5686, %v5687
      %v5689 = vrot.slane %v5381, 1
      %v5690 = vrot.slane %v5398, 1
      %v5691 = vsel %vm5664, %v5689, %v5690
      %v5692 = vrot.slane %v5382, 1
      %v5693 = vrot.slane %v5399, 1
      %v5694 = vsel %vm5664, %v5692, %v5693
      %v5695 = vrot.slane %v5383, 1
      %v5696 = vrot.slane %v5400, 1
      %v5697 = vsel %vm5664, %v5695, %v5696
      %v5698 = vrot.slane %v5384, 1
      %v5699 = vrot.slane %v5401, 1
      %v5700 = vsel %vm5664, %v5698, %v5699
      %v5701 = vrot.slane %v5385, 1
      %v5702 = vrot.slane %v5402, 1
      %v5703 = vsel %vm5664, %v5701, %v5702
      %v5704 = vrot.slane %v5386, 1
      %v5705 = vrot.slane %v5403, 1
      %v5706 = vsel %vm5664, %v5704, %v5705
      %v5707 = vrot.slane %v5387, 1
      %v5708 = vrot.slane %v5404, 1
      %v5709 = vsel %vm5664, %v5707, %v5708
      %v5710 = vrot.slane %v5388, 1
      %v5711 = vrot.slane %v5405, 1
      %v5712 = vsel %vm5664, %v5710, %v5711
      %5713 = vrot.lane.b32.xlu0 %v5667, 16
      %v5714 = vpop.permute.xlu0 %5713
      %5715 = vrot.lane.b32.xlu0 %v5670, 16
      %v5716 = vpop.permute.xlu0 %5715
      %5717 = vrot.lane.b32.xlu0 %v5673, 16
      %v5718 = vpop.permute.xlu0 %5717
      %5719 = vrot.lane.b32.xlu0 %v5676, 16
      %v5720 = vpop.permute.xlu0 %5719
      %5721 = vrot.lane.b32.xlu0 %v5679, 16
      %v5722 = vpop.permute.xlu0 %5721
      %5723 = vrot.lane.b32.xlu0 %v5682, 16
      %v5724 = vpop.permute.xlu0 %5723
      %5725 = vrot.lane.b32.xlu0 %v5685, 16
      %v5726 = vpop.permute.xlu0 %5725
      %5727 = vrot.lane.b32.xlu0 %v5688, 16
      %v5728 = vpop.permute.xlu0 %5727
      %5729 = vrot.lane.b32.xlu0 %v5691, 16
      %v5730 = vpop.permute.xlu0 %5729
      %5731 = vrot.lane.b32.xlu0 %v5694, 16
      %v5732 = vpop.permute.xlu0 %5731
      %5733 = vrot.lane.b32.xlu0 %v5697, 16
      %v5734 = vpop.permute.xlu0 %5733
      %5735 = vrot.lane.b32.xlu0 %v5700, 16
      %v5736 = vpop.permute.xlu0 %5735
      %5737 = vrot.lane.b32.xlu0 %v5703, 16
      %v5738 = vpop.permute.xlu0 %5737
      %5739 = vrot.lane.b32.xlu0 %v5706, 16
      %v5740 = vpop.permute.xlu0 %5739
      %5741 = vrot.lane.b32.xlu0 %v5709, 16
      %v5742 = vpop.permute.xlu0 %5741
      %5743 = vrot.lane.b32.xlu0 %v5712, 16
      %v5744 = vpop.permute.xlu0 %5743
      %5746 = vrot.lane.b32.xlu0 %v5374, 24
      %v5747 = vpop.permute.xlu0 %5746
      %5748 = vrot.lane.b32.xlu0 %v5375, 24
      %v5749 = vpop.permute.xlu0 %5748
      %5750 = vrot.lane.b32.xlu0 %v5376, 24
      %v5751 = vpop.permute.xlu0 %5750
      %5752 = vrot.lane.b32.xlu0 %v5377, 24
      %v5753 = vpop.permute.xlu0 %5752
      %5754 = vrot.lane.b32.xlu0 %v5378, 24
      %v5755 = vpop.permute.xlu0 %5754
      %5756 = vrot.lane.b32.xlu0 %v5379, 24
      %v5757 = vpop.permute.xlu0 %5756
      %5758 = vrot.lane.b32.xlu0 %v5380, 24
      %v5759 = vpop.permute.xlu0 %5758
      %5760 = vrot.lane.b32.xlu0 %v5381, 24
      %v5761 = vpop.permute.xlu0 %5760
      %5762 = vrot.lane.b32.xlu0 %v5382, 24
      %v5763 = vpop.permute.xlu0 %5762
      %5764 = vrot.lane.b32.xlu0 %v5383, 24
      %v5765 = vpop.permute.xlu0 %5764
      %5766 = vrot.lane.b32.xlu0 %v5384, 24
      %v5767 = vpop.permute.xlu0 %5766
      %5768 = vrot.lane.b32.xlu0 %v5385, 24
      %v5769 = vpop.permute.xlu0 %5768
      %5770 = vrot.lane.b32.xlu0 %v5386, 24
      %v5771 = vpop.permute.xlu0 %5770
      %5772 = vrot.lane.b32.xlu0 %v5387, 24
      %v5773 = vpop.permute.xlu0 %5772
      %5774 = vrot.lane.b32.xlu0 %v5388, 24
      %v5775 = vpop.permute.xlu0 %5774
      %5776 = vrot.lane.b32.xlu0 %v5389, 24
      %v5777 = vpop.permute.xlu0 %5776
      %v5779 = vshrl.u32 %v5389, 16
      %v5781 = vshll.u32 %v5389, 16
      %v5783 = vrot.slane %v5781, 1
      %v5784 = vor.u32 %v5779, %v5783
      %v5786 = vshll.u32 %v5406, 16
      %v5788 = vrot.slane %v5786, 1
      %v5789 = vsel %vm5407, %v5784, %v5788
      %5790 = vrot.lane.b32.xlu0 %v5431, 32
      %v5791 = vpop.permute.xlu0 %5790
      %5792 = vrot.lane.b32.xlu0 %v5443, 32
      %v5793 = vpop.permute.xlu0 %5792
      %5794 = vrot.lane.b32.xlu0 %v5455, 32
      %v5795 = vpop.permute.xlu0 %5794
      %5796 = vrot.lane.b32.xlu0 %v5467, 32
      %v5797 = vpop.permute.xlu0 %5796
      %5798 = vrot.lane.b32.xlu0 %v5479, 32
      %v5799 = vpop.permute.xlu0 %5798
      %5800 = vrot.lane.b32.xlu0 %v5491, 32
      %v5801 = vpop.permute.xlu0 %5800
      %5802 = vrot.lane.b32.xlu0 %v5503, 32
      %v5803 = vpop.permute.xlu0 %5802
      %5804 = vrot.lane.b32.xlu0 %v5515, 32
      %v5805 = vpop.permute.xlu0 %5804
      %5806 = vrot.lane.b32.xlu0 %v5527, 32
      %v5807 = vpop.permute.xlu0 %5806
      %5808 = vrot.lane.b32.xlu0 %v5539, 32
      %v5809 = vpop.permute.xlu0 %5808
      %5810 = vrot.lane.b32.xlu0 %v5551, 32
      %v5811 = vpop.permute.xlu0 %5810
      %5812 = vrot.lane.b32.xlu0 %v5563, 32
      %v5813 = vpop.permute.xlu0 %5812
      %5814 = vrot.lane.b32.xlu0 %v5575, 32
      %v5815 = vpop.permute.xlu0 %5814
      %5816 = vrot.lane.b32.xlu0 %v5587, 32
      %v5817 = vpop.permute.xlu0 %5816
      %5818 = vrot.lane.b32.xlu0 %v5599, 32
      %v5819 = vpop.permute.xlu0 %5818
      %5820 = vrot.lane.b32.xlu0 %v5789, 32
      %v5821 = vpop.permute.xlu0 %5820
      %v5823 = vrot.slane %v5389, 1
      %v5824 = vrot.slane %v5406, 1
      %v5825 = vsel %vm5664, %v5823, %v5824
      %5826 = vrot.lane.b32.xlu0 %v5670, 40
      %v5827 = vpop.permute.xlu0 %5826
      %5828 = vrot.lane.b32.xlu0 %v5673, 40
      %v5829 = vpop.permute.xlu0 %5828
      %5830 = vrot.lane.b32.xlu0 %v5676, 40
      %v5831 = vpop.permute.xlu0 %5830
      %5832 = vrot.lane.b32.xlu0 %v5679, 40
      %v5833 = vpop.permute.xlu0 %5832
      %5834 = vrot.lane.b32.xlu0 %v5682, 40
      %v5835 = vpop.permute.xlu0 %5834
      %5836 = vrot.lane.b32.xlu0 %v5685, 40
      %v5837 = vpop.permute.xlu0 %5836
      %5838 = vrot.lane.b32.xlu0 %v5688, 40
      %v5839 = vpop.permute.xlu0 %5838
      %5840 = vrot.lane.b32.xlu0 %v5691, 40
      %v5841 = vpop.permute.xlu0 %5840
      %5842 = vrot.lane.b32.xlu0 %v5694, 40
      %v5843 = vpop.permute.xlu0 %5842
      %5844 = vrot.lane.b32.xlu0 %v5697, 40
      %v5845 = vpop.permute.xlu0 %5844
      %5846 = vrot.lane.b32.xlu0 %v5700, 40
      %v5847 = vpop.permute.xlu0 %5846
      %5848 = vrot.lane.b32.xlu0 %v5703, 40
      %v5849 = vpop.permute.xlu0 %5848
      %5850 = vrot.lane.b32.xlu0 %v5706, 40
      %v5851 = vpop.permute.xlu0 %5850
      %5852 = vrot.lane.b32.xlu0 %v5709, 40
      %v5853 = vpop.permute.xlu0 %5852
      %5854 = vrot.lane.b32.xlu0 %v5712, 40
      %v5855 = vpop.permute.xlu0 %5854
      %5856 = vrot.lane.b32.xlu0 %v5825, 40
      %v5857 = vpop.permute.xlu0 %5856
      %5858 = vrot.lane.b32.xlu0 %v5375, 48
      %v5859 = vpop.permute.xlu0 %5858
      %5860 = vrot.lane.b32.xlu0 %v5376, 48
      %v5861 = vpop.permute.xlu0 %5860
      %5862 = vrot.lane.b32.xlu0 %v5377, 48
      %v5863 = vpop.permute.xlu0 %5862
      %5864 = vrot.lane.b32.xlu0 %v5378, 48
      %v5865 = vpop.permute.xlu0 %5864
      %5866 = vrot.lane.b32.xlu0 %v5379, 48
      %v5867 = vpop.permute.xlu0 %5866
      %5868 = vrot.lane.b32.xlu0 %v5380, 48
      %v5869 = vpop.permute.xlu0 %5868
      %5870 = vrot.lane.b32.xlu0 %v5381, 48
      %v5871 = vpop.permute.xlu0 %5870
      %5872 = vrot.lane.b32.xlu0 %v5382, 48
      %v5873 = vpop.permute.xlu0 %5872
      %5874 = vrot.lane.b32.xlu0 %v5383, 48
      %v5875 = vpop.permute.xlu0 %5874
      %5876 = vrot.lane.b32.xlu0 %v5384, 48
      %v5877 = vpop.permute.xlu0 %5876
      %5878 = vrot.lane.b32.xlu0 %v5385, 48
      %v5879 = vpop.permute.xlu0 %5878
      %5880 = vrot.lane.b32.xlu0 %v5386, 48
      %v5881 = vpop.permute.xlu0 %5880
      %5882 = vrot.lane.b32.xlu0 %v5387, 48
      %v5883 = vpop.permute.xlu0 %5882
      %5884 = vrot.lane.b32.xlu0 %v5388, 48
      %v5885 = vpop.permute.xlu0 %5884
      %5886 = vrot.lane.b32.xlu0 %v5389, 48
      %v5887 = vpop.permute.xlu0 %5886
      %5888 = vrot.lane.b32.xlu0 %v1123, 48
      %v5889 = vpop.permute.xlu0 %5888
      %5890 = vrot.lane.b32.xlu0 %v5443, 56
      %v5891 = vpop.permute.xlu0 %5890
      %5892 = vrot.lane.b32.xlu0 %v5455, 56
      %v5893 = vpop.permute.xlu0 %5892
      %5894 = vrot.lane.b32.xlu0 %v5467, 56
      %v5895 = vpop.permute.xlu0 %5894
      %5896 = vrot.lane.b32.xlu0 %v5479, 56
      %v5897 = vpop.permute.xlu0 %5896
      %5898 = vrot.lane.b32.xlu0 %v5491, 56
      %v5899 = vpop.permute.xlu0 %5898
      %5900 = vrot.lane.b32.xlu0 %v5503, 56
      %v5901 = vpop.permute.xlu0 %5900
      %5902 = vrot.lane.b32.xlu0 %v5515, 56
      %v5903 = vpop.permute.xlu0 %5902
      %5904 = vrot.lane.b32.xlu0 %v5527, 56
      %v5905 = vpop.permute.xlu0 %5904
      %5906 = vrot.lane.b32.xlu0 %v5539, 56
      %v5907 = vpop.permute.xlu0 %5906
      %5908 = vrot.lane.b32.xlu0 %v5551, 56
      %v5909 = vpop.permute.xlu0 %5908
      %5910 = vrot.lane.b32.xlu0 %v5563, 56
      %v5911 = vpop.permute.xlu0 %5910
      %5912 = vrot.lane.b32.xlu0 %v5575, 56
      %v5913 = vpop.permute.xlu0 %5912
      %5914 = vrot.lane.b32.xlu0 %v5587, 56
      %v5915 = vpop.permute.xlu0 %5914
      %5916 = vrot.lane.b32.xlu0 %v5599, 56
      %v5917 = vpop.permute.xlu0 %5916
      %5918 = vrot.lane.b32.xlu0 %v5789, 56
      %v5919 = vpop.permute.xlu0 %5918
      %5920 = vrot.lane.b32.xlu0 %v5419, 56
      %v5921 = vpop.permute.xlu0 %5920
      %5922 = vrot.lane.b32.xlu0 %v5673, 64
      %v5923 = vpop.permute.xlu0 %5922
      %5924 = vrot.lane.b32.xlu0 %v5676, 64
      %v5925 = vpop.permute.xlu0 %5924
      %5926 = vrot.lane.b32.xlu0 %v5679, 64
      %v5927 = vpop.permute.xlu0 %5926
      %5928 = vrot.lane.b32.xlu0 %v5682, 64
      %v5929 = vpop.permute.xlu0 %5928
      %5930 = vrot.lane.b32.xlu0 %v5685, 64
      %v5931 = vpop.permute.xlu0 %5930
      %5932 = vrot.lane.b32.xlu0 %v5688, 64
      %v5933 = vpop.permute.xlu0 %5932
      %5934 = vrot.lane.b32.xlu0 %v5691, 64
      %v5935 = vpop.permute.xlu0 %5934
      %5936 = vrot.lane.b32.xlu0 %v5694, 64
      %v5937 = vpop.permute.xlu0 %5936
      %5938 = vrot.lane.b32.xlu0 %v5697, 64
      %v5939 = vpop.permute.xlu0 %5938
      %5940 = vrot.lane.b32.xlu0 %v5700, 64
      %v5941 = vpop.permute.xlu0 %5940
      %5942 = vrot.lane.b32.xlu0 %v5703, 64
      %v5943 = vpop.permute.xlu0 %5942
      %5944 = vrot.lane.b32.xlu0 %v5706, 64
      %v5945 = vpop.permute.xlu0 %5944
      %5946 = vrot.lane.b32.xlu0 %v5709, 64
      %v5947 = vpop.permute.xlu0 %5946
      %5948 = vrot.lane.b32.xlu0 %v5712, 64
      %v5949 = vpop.permute.xlu0 %5948
      %5950 = vrot.lane.b32.xlu0 %v5825, 64
      %v5951 = vpop.permute.xlu0 %5950
      %5952 = vrot.lane.b32.xlu0 %v5667, 64
      %v5953 = vpop.permute.xlu0 %5952
      %vm5954 = vcmask 64512
      %v5956 = vsel %vm5954, %v1123, %v5601
      %v5958 = vsel %vm5954, %v5374, %v5603
      %v5960 = vsel %vm5954, %v5375, %v5605
      %v5962 = vsel %vm5954, %v5376, %v5607
      %v5964 = vsel %vm5954, %v5377, %v5609
      %v5966 = vsel %vm5954, %v5378, %v5611
      %v5968 = vsel %vm5954, %v5379, %v5613
      %v5970 = vsel %vm5954, %v5380, %v5615
      %v5972 = vsel %vm5954, %v5381, %v5617
      %v5974 = vsel %vm5954, %v5382, %v5619
      %v5976 = vsel %vm5954, %v5383, %v5621
      %v5978 = vsel %vm5954, %v5384, %v5623
      %v5980 = vsel %vm5954, %v5385, %v5625
      %v5982 = vsel %vm5954, %v5386, %v5627
      %v5984 = vsel %vm5954, %v5387, %v5629
      %v5986 = vsel %vm5954, %v5388, %v5631
      %v5988 = vsel %vm2828, %v5956, %v5714
      %v5990 = vsel %vm2828, %v5958, %v5716
      %v5992 = vsel %vm2828, %v5960, %v5718
      %v5994 = vsel %vm2828, %v5962, %v5720
      %v5996 = vsel %vm2828, %v5964, %v5722
      %v5998 = vsel %vm2828, %v5966, %v5724
      %v6000 = vsel %vm2828, %v5968, %v5726
      %v6002 = vsel %vm2828, %v5970, %v5728
      %v6004 = vsel %vm2828, %v5972, %v5730
      %v6006 = vsel %vm2828, %v5974, %v5732
      %v6008 = vsel %vm2828, %v5976, %v5734
      %v6010 = vsel %vm2828, %v5978, %v5736
      %v6012 = vsel %vm2828, %v5980, %v5738
      %v6014 = vsel %vm2828, %v5982, %v5740
      %v6016 = vsel %vm2828, %v5984, %v5742
      %v6018 = vsel %vm2828, %v5986, %v5744
      %vm6019 = vcmask 195584
      %v6021 = vsel %vm6019, %v5988, %v5747
      %v6023 = vsel %vm6019, %v5990, %v5749
      %v6025 = vsel %vm6019, %v5992, %v5751
      %v6027 = vsel %vm6019, %v5994, %v5753
      %v6029 = vsel %vm6019, %v5996, %v5755
      %v6031 = vsel %vm6019, %v5998, %v5757
      %v6033 = vsel %vm6019, %v6000, %v5759
      %v6035 = vsel %vm6019, %v6002, %v5761
      %v6037 = vsel %vm6019, %v6004, %v5763
      %v6039 = vsel %vm6019, %v6006, %v5765
      %v6041 = vsel %vm6019, %v6008, %v5767
      %v6043 = vsel %vm6019, %v6010, %v5769
      %v6045 = vsel %vm6019, %v6012, %v5771
      %v6047 = vsel %vm6019, %v6014, %v5773
      %v6049 = vsel %vm6019, %v6016, %v5775
      %v6051 = vsel %vm6019, %v6018, %v5777
      %v6053 = vsel %vm1229, %v6021, %v5791
      %v6055 = vsel %vm1229, %v6023, %v5793
      %v6057 = vsel %vm1229, %v6025, %v5795
      %v6059 = vsel %vm1229, %v6027, %v5797
      %v6061 = vsel %vm1229, %v6029, %v5799
      %v6063 = vsel %vm1229, %v6031, %v5801
      %v6065 = vsel %vm1229, %v6033, %v5803
      %v6067 = vsel %vm1229, %v6035, %v5805
      %v6069 = vsel %vm1229, %v6037, %v5807
      %v6071 = vsel %vm1229, %v6039, %v5809
      %v6073 = vsel %vm1229, %v6041, %v5811
      %v6075 = vsel %vm1229, %v6043, %v5813
      %v6077 = vsel %vm1229, %v6045, %v5815
      %v6079 = vsel %vm1229, %v6047, %v5817
      %v6081 = vsel %vm1229, %v6049, %v5819
      %v6083 = vsel %vm1229, %v6051, %v5821
      %vm6084 = vcmask 326656
      %v6086 = vsel %vm6084, %v6053, %v5827
      %v6088 = vsel %vm6084, %v6055, %v5829
      %v6090 = vsel %vm6084, %v6057, %v5831
      %v6092 = vsel %vm6084, %v6059, %v5833
      %v6094 = vsel %vm6084, %v6061, %v5835
      %v6096 = vsel %vm6084, %v6063, %v5837
      %v6098 = vsel %vm6084, %v6065, %v5839
      %v6100 = vsel %vm6084, %v6067, %v5841
      %v6102 = vsel %vm6084, %v6069, %v5843
      %v6104 = vsel %vm6084, %v6071, %v5845
      %v6106 = vsel %vm6084, %v6073, %v5847
      %v6108 = vsel %vm6084, %v6075, %v5849
      %v6110 = vsel %vm6084, %v6077, %v5851
      %v6112 = vsel %vm6084, %v6079, %v5853
      %v6114 = vsel %vm6084, %v6081, %v5855
      %v6116 = vsel %vm6084, %v6083, %v5857
      %v6118 = vsel %vm3239, %v6086, %v5859
      %v6120 = vsel %vm3239, %v6088, %v5861
      %v6122 = vsel %vm3239, %v6090, %v5863
      %v6124 = vsel %vm3239, %v6092, %v5865
      %v6126 = vsel %vm3239, %v6094, %v5867
      %v6128 = vsel %vm3239, %v6096, %v5869
      %v6130 = vsel %vm3239, %v6098, %v5871
      %v6132 = vsel %vm3239, %v6100, %v5873
      %v6134 = vsel %vm3239, %v6102, %v5875
      %v6136 = vsel %vm3239, %v6104, %v5877
      %v6138 = vsel %vm3239, %v6106, %v5879
      %v6140 = vsel %vm3239, %v6108, %v5881
      %v6142 = vsel %vm3239, %v6110, %v5883
      %v6144 = vsel %vm3239, %v6112, %v5885
      %v6146 = vsel %vm3239, %v6114, %v5887
      %v6148 = vsel %vm3239, %v6116, %v5889
      %vm6149 = vcmask 457728
      %v6151 = vsel %vm6149, %v6118, %v5891
      %v6153 = vsel %vm6149, %v6120, %v5893
      %v6155 = vsel %vm6149, %v6122, %v5895
      %v6157 = vsel %vm6149, %v6124, %v5897
      %v6159 = vsel %vm6149, %v6126, %v5899
      %v6161 = vsel %vm6149, %v6128, %v5901
      %v6163 = vsel %vm6149, %v6130, %v5903
      %v6165 = vsel %vm6149, %v6132, %v5905
      %v6167 = vsel %vm6149, %v6134, %v5907
      %v6169 = vsel %vm6149, %v6136, %v5909
      %v6171 = vsel %vm6149, %v6138, %v5911
      %v6173 = vsel %vm6149, %v6140, %v5913
      %v6175 = vsel %vm6149, %v6142, %v5915
      %v6177 = vsel %vm6149, %v6144, %v5917
      %v6179 = vsel %vm6149, %v6146, %v5919
      %v6181 = vsel %vm6149, %v6148, %v5921
      %v6183 = vsel %vm1238, %v6151, %v5923
      %v6185 = vsel %vm1238, %v6153, %v5925
      %v6187 = vsel %vm1238, %v6155, %v5927
      %v6189 = vsel %vm1238, %v6157, %v5929
      %v6191 = vsel %vm1238, %v6159, %v5931
      %v6193 = vsel %vm1238, %v6161, %v5933
      %v6195 = vsel %vm1238, %v6163, %v5935
      %v6197 = vsel %vm1238, %v6165, %v5937
      %v6199 = vsel %vm1238, %v6167, %v5939
      %v6201 = vsel %vm1238, %v6169, %v5941
      %v6203 = vsel %vm1238, %v6171, %v5943
      %v6205 = vsel %vm1238, %v6173, %v5945
      %v6207 = vsel %vm1238, %v6175, %v5947
      %v6209 = vsel %vm1238, %v6177, %v5949
      %v6211 = vsel %vm1238, %v6179, %v5951
      %v6213 = vsel %vm1238, %v6181, %v5953
      %v6215 = vshrl.u32 %v5133, 16
      %v6217 = vrot.slane %v6215, 7
      %v6218 = vshll.u32 %v5133, 16
      %v6220 = vor.u32 %v6217, %v6218
      %v6222 = vshrl.u32 %v5134, 16
      %v6224 = vrot.slane %v6222, 7
      %v6225 = vshll.u32 %v5134, 16
      %v6227 = vor.u32 %v6224, %v6225
      %v6229 = vshrl.u32 %v5135, 16
      %v6231 = vrot.slane %v6229, 7
      %v6232 = vshll.u32 %v5135, 16
      %v6234 = vor.u32 %v6231, %v6232
      %v6236 = vshrl.u32 %v5136, 16
      %v6238 = vrot.slane %v6236, 7
      %v6239 = vshll.u32 %v5136, 16
      %v6241 = vor.u32 %v6238, %v6239
      %v6243 = vshrl.u32 %v5137, 16
      %v6245 = vrot.slane %v6243, 7
      %v6246 = vshll.u32 %v5137, 16
      %v6248 = vor.u32 %v6245, %v6246
      %v6250 = vshrl.u32 %v5138, 16
      %v6252 = vrot.slane %v6250, 7
      %v6253 = vshll.u32 %v5138, 16
      %v6255 = vor.u32 %v6252, %v6253
      %v6257 = vshrl.u32 %v5139, 16
      %v6259 = vrot.slane %v6257, 7
      %v6260 = vshll.u32 %v5139, 16
      %v6262 = vor.u32 %v6259, %v6260
      %v6264 = vshrl.u32 %v5140, 16
      %v6266 = vrot.slane %v6264, 7
      %v6267 = vshll.u32 %v5140, 16
      %v6269 = vor.u32 %v6266, %v6267
      %v6271 = vshrl.u32 %v5141, 16
      %v6273 = vrot.slane %v6271, 7
      %v6274 = vshll.u32 %v5141, 16
      %v6276 = vor.u32 %v6273, %v6274
      %v6278 = vshrl.u32 %v5142, 16
      %v6280 = vrot.slane %v6278, 7
      %v6281 = vshll.u32 %v5142, 16
      %v6283 = vor.u32 %v6280, %v6281
      %v6285 = vshrl.u32 %v5143, 16
      %v6287 = vrot.slane %v6285, 7
      %v6288 = vshll.u32 %v5143, 16
      %v6290 = vor.u32 %v6287, %v6288
      %v6292 = vshrl.u32 %v5144, 16
      %v6294 = vrot.slane %v6292, 7
      %v6295 = vshll.u32 %v5144, 16
      %v6297 = vor.u32 %v6294, %v6295
      %v6299 = vshrl.u32 %v5145, 16
      %v6301 = vrot.slane %v6299, 7
      %v6302 = vshll.u32 %v5145, 16
      %v6304 = vor.u32 %v6301, %v6302
      %v6306 = vshrl.u32 %v5146, 16
      %v6308 = vrot.slane %v6306, 7
      %v6309 = vshll.u32 %v5146, 16
      %v6311 = vor.u32 %v6308, %v6309
      %v6313 = vshrl.u32 %v5147, 16
      %v6315 = vrot.slane %v6313, 7
      %v6316 = vshll.u32 %v5147, 16
      %v6318 = vor.u32 %v6315, %v6316
      %v6320 = vshrl.u32 %v5148, 16
      %v6322 = vrot.slane %v6320, 7
      %v6323 = vshll.u32 %v5148, 16
      %v6325 = vor.u32 %v6322, %v6323
      %v6358 = vsel %vm1122, 0, %v6220
      %v6359 = vsel %vm1122, 0, %v6227
      %v6360 = vsel %vm1122, 0, %v6234
      %v6361 = vsel %vm1122, 0, %v6241
      %v6362 = vsel %vm1122, 0, %v6248
      %v6363 = vsel %vm1122, 0, %v6255
      %v6364 = vsel %vm1122, 0, %v6262
      %v6365 = vsel %vm1122, 0, %v6269
      %v6366 = vsel %vm1122, 0, %v6276
      %v6367 = vsel %vm1122, 0, %v6283
      %v6368 = vsel %vm1122, 0, %v6290
      %v6369 = vsel %vm1122, 0, %v6297
      %v6370 = vsel %vm1122, 0, %v6304
      %v6371 = vsel %vm1122, 0, %v6311
      %v6372 = vsel %vm1122, 0, %v6318
      %v6373 = vsel %vm1122, 0, %v6325
      %v6374 = vsel %vm1122, %v6217, 0
      %v6375 = vsel %vm1122, %v6224, 0
      %v6376 = vsel %vm1122, %v6231, 0
      %v6377 = vsel %vm1122, %v6238, 0
      %v6378 = vsel %vm1122, %v6245, 0
      %v6379 = vsel %vm1122, %v6252, 0
      %v6380 = vsel %vm1122, %v6259, 0
      %v6381 = vsel %vm1122, %v6266, 0
      %v6382 = vsel %vm1122, %v6273, 0
      %v6383 = vsel %vm1122, %v6280, 0
      %v6384 = vsel %vm1122, %v6287, 0
      %v6385 = vsel %vm1122, %v6294, 0
      %v6386 = vsel %vm1122, %v6301, 0
      %v6387 = vsel %vm1122, %v6308, 0
      %v6388 = vsel %vm1122, %v6315, 0
      %v6389 = vsel %vm1122, %v6322, 0
      %v6391 = vshrl.u32 %v6358, 16
      %v6393 = vshll.u32 %v6358, 16
      %v6395 = vrot.slane %v6393, 1
      %v6396 = vor.u32 %v6391, %v6395
      %v6398 = vshll.u32 %v6374, 16
      %v6400 = vrot.slane %v6398, 1
      %v6401 = vsel %vm5407, %v6396, %v6400
      %v6403 = vshrl.u32 %v6359, 16
      %v6405 = vshll.u32 %v6359, 16
      %v6407 = vrot.slane %v6405, 1
      %v6408 = vor.u32 %v6403, %v6407
      %v6410 = vshll.u32 %v6375, 16
      %v6412 = vrot.slane %v6410, 1
      %v6413 = vsel %vm5407, %v6408, %v6412
      %v6415 = vshrl.u32 %v6360, 16
      %v6417 = vshll.u32 %v6360, 16
      %v6419 = vrot.slane %v6417, 1
      %v6420 = vor.u32 %v6415, %v6419
      %v6422 = vshll.u32 %v6376, 16
      %v6424 = vrot.slane %v6422, 1
      %v6425 = vsel %vm5407, %v6420, %v6424
      %v6427 = vshrl.u32 %v6361, 16
      %v6429 = vshll.u32 %v6361, 16
      %v6431 = vrot.slane %v6429, 1
      %v6432 = vor.u32 %v6427, %v6431
      %v6434 = vshll.u32 %v6377, 16
      %v6436 = vrot.slane %v6434, 1
      %v6437 = vsel %vm5407, %v6432, %v6436
      %v6439 = vshrl.u32 %v6362, 16
      %v6441 = vshll.u32 %v6362, 16
      %v6443 = vrot.slane %v6441, 1
      %v6444 = vor.u32 %v6439, %v6443
      %v6446 = vshll.u32 %v6378, 16
      %v6448 = vrot.slane %v6446, 1
      %v6449 = vsel %vm5407, %v6444, %v6448
      %v6451 = vshrl.u32 %v6363, 16
      %v6453 = vshll.u32 %v6363, 16
      %v6455 = vrot.slane %v6453, 1
      %v6456 = vor.u32 %v6451, %v6455
      %v6458 = vshll.u32 %v6379, 16
      %v6460 = vrot.slane %v6458, 1
      %v6461 = vsel %vm5407, %v6456, %v6460
      %v6463 = vshrl.u32 %v6364, 16
      %v6465 = vshll.u32 %v6364, 16
      %v6467 = vrot.slane %v6465, 1
      %v6468 = vor.u32 %v6463, %v6467
      %v6470 = vshll.u32 %v6380, 16
      %v6472 = vrot.slane %v6470, 1
      %v6473 = vsel %vm5407, %v6468, %v6472
      %v6475 = vshrl.u32 %v6365, 16
      %v6477 = vshll.u32 %v6365, 16
      %v6479 = vrot.slane %v6477, 1
      %v6480 = vor.u32 %v6475, %v6479
      %v6482 = vshll.u32 %v6381, 16
      %v6484 = vrot.slane %v6482, 1
      %v6485 = vsel %vm5407, %v6480, %v6484
      %v6487 = vshrl.u32 %v6366, 16
      %v6489 = vshll.u32 %v6366, 16
      %v6491 = vrot.slane %v6489, 1
      %v6492 = vor.u32 %v6487, %v6491
      %v6494 = vshll.u32 %v6382, 16
      %v6496 = vrot.slane %v6494, 1
      %v6497 = vsel %vm5407, %v6492, %v6496
      %v6499 = vshrl.u32 %v6367, 16
      %v6501 = vshll.u32 %v6367, 16
      %v6503 = vrot.slane %v6501, 1
      %v6504 = vor.u32 %v6499, %v6503
      %v6506 = vshll.u32 %v6383, 16
      %v6508 = vrot.slane %v6506, 1
      %v6509 = vsel %vm5407, %v6504, %v6508
      %v6511 = vshrl.u32 %v6368, 16
      %v6513 = vshll.u32 %v6368, 16
      %v6515 = vrot.slane %v6513, 1
      %v6516 = vor.u32 %v6511, %v6515
      %v6518 = vshll.u32 %v6384, 16
      %v6520 = vrot.slane %v6518, 1
      %v6521 = vsel %vm5407, %v6516, %v6520
      %v6523 = vshrl.u32 %v6369, 16
      %v6525 = vshll.u32 %v6369, 16
      %v6527 = vrot.slane %v6525, 1
      %v6528 = vor.u32 %v6523, %v6527
      %v6530 = vshll.u32 %v6385, 16
      %v6532 = vrot.slane %v6530, 1
      %v6533 = vsel %vm5407, %v6528, %v6532
      %v6535 = vshrl.u32 %v6370, 16
      %v6537 = vshll.u32 %v6370, 16
      %v6539 = vrot.slane %v6537, 1
      %v6540 = vor.u32 %v6535, %v6539
      %v6542 = vshll.u32 %v6386, 16
      %v6544 = vrot.slane %v6542, 1
      %v6545 = vsel %vm5407, %v6540, %v6544
      %v6547 = vshrl.u32 %v6371, 16
      %v6549 = vshll.u32 %v6371, 16
      %v6551 = vrot.slane %v6549, 1
      %v6552 = vor.u32 %v6547, %v6551
      %v6554 = vshll.u32 %v6387, 16
      %v6556 = vrot.slane %v6554, 1
      %v6557 = vsel %vm5407, %v6552, %v6556
      %v6559 = vshrl.u32 %v6372, 16
      %v6561 = vshll.u32 %v6372, 16
      %v6563 = vrot.slane %v6561, 1
      %v6564 = vor.u32 %v6559, %v6563
      %v6566 = vshll.u32 %v6388, 16
      %v6568 = vrot.slane %v6566, 1
      %v6569 = vsel %vm5407, %v6564, %v6568
      %6570 = vrot.lane.b32.xlu0 %v5419, 16
      %v6571 = vpop.permute.xlu0 %6570
      %6572 = vrot.lane.b32.xlu0 %v6401, 16
      %v6573 = vpop.permute.xlu0 %6572
      %6574 = vrot.lane.b32.xlu0 %v6413, 16
      %v6575 = vpop.permute.xlu0 %6574
      %6576 = vrot.lane.b32.xlu0 %v6425, 16
      %v6577 = vpop.permute.xlu0 %6576
      %6578 = vrot.lane.b32.xlu0 %v6437, 16
      %v6579 = vpop.permute.xlu0 %6578
      %6580 = vrot.lane.b32.xlu0 %v6449, 16
      %v6581 = vpop.permute.xlu0 %6580
      %6582 = vrot.lane.b32.xlu0 %v6461, 16
      %v6583 = vpop.permute.xlu0 %6582
      %6584 = vrot.lane.b32.xlu0 %v6473, 16
      %v6585 = vpop.permute.xlu0 %6584
      %6586 = vrot.lane.b32.xlu0 %v6485, 16
      %v6587 = vpop.permute.xlu0 %6586
      %6588 = vrot.lane.b32.xlu0 %v6497, 16
      %v6589 = vpop.permute.xlu0 %6588
      %6590 = vrot.lane.b32.xlu0 %v6509, 16
      %v6591 = vpop.permute.xlu0 %6590
      %6592 = vrot.lane.b32.xlu0 %v6521, 16
      %v6593 = vpop.permute.xlu0 %6592
      %6594 = vrot.lane.b32.xlu0 %v6533, 16
      %v6595 = vpop.permute.xlu0 %6594
      %6596 = vrot.lane.b32.xlu0 %v6545, 16
      %v6597 = vpop.permute.xlu0 %6596
      %6598 = vrot.lane.b32.xlu0 %v6557, 16
      %v6599 = vpop.permute.xlu0 %6598
      %6600 = vrot.lane.b32.xlu0 %v6569, 16
      %v6601 = vpop.permute.xlu0 %6600
      %v6632 = vrot.slane %v6358, 1
      %v6633 = vrot.slane %v6374, 1
      %v6634 = vsel %vm5664, %v6632, %v6633
      %v6635 = vrot.slane %v6359, 1
      %v6636 = vrot.slane %v6375, 1
      %v6637 = vsel %vm5664, %v6635, %v6636
      %v6638 = vrot.slane %v6360, 1
      %v6639 = vrot.slane %v6376, 1
      %v6640 = vsel %vm5664, %v6638, %v6639
      %v6641 = vrot.slane %v6361, 1
      %v6642 = vrot.slane %v6377, 1
      %v6643 = vsel %vm5664, %v6641, %v6642
      %v6644 = vrot.slane %v6362, 1
      %v6645 = vrot.slane %v6378, 1
      %v6646 = vsel %vm5664, %v6644, %v6645
      %v6647 = vrot.slane %v6363, 1
      %v6648 = vrot.slane %v6379, 1
      %v6649 = vsel %vm5664, %v6647, %v6648
      %v6650 = vrot.slane %v6364, 1
      %v6651 = vrot.slane %v6380, 1
      %v6652 = vsel %vm5664, %v6650, %v6651
      %v6653 = vrot.slane %v6365, 1
      %v6654 = vrot.slane %v6381, 1
      %v6655 = vsel %vm5664, %v6653, %v6654
      %v6656 = vrot.slane %v6366, 1
      %v6657 = vrot.slane %v6382, 1
      %v6658 = vsel %vm5664, %v6656, %v6657
      %v6659 = vrot.slane %v6367, 1
      %v6660 = vrot.slane %v6383, 1
      %v6661 = vsel %vm5664, %v6659, %v6660
      %v6662 = vrot.slane %v6368, 1
      %v6663 = vrot.slane %v6384, 1
      %v6664 = vsel %vm5664, %v6662, %v6663
      %v6665 = vrot.slane %v6369, 1
      %v6666 = vrot.slane %v6385, 1
      %v6667 = vsel %vm5664, %v6665, %v6666
      %v6668 = vrot.slane %v6370, 1
      %v6669 = vrot.slane %v6386, 1
      %v6670 = vsel %vm5664, %v6668, %v6669
      %v6671 = vrot.slane %v6371, 1
      %v6672 = vrot.slane %v6387, 1
      %v6673 = vsel %vm5664, %v6671, %v6672
      %v6674 = vrot.slane %v6372, 1
      %v6675 = vrot.slane %v6388, 1
      %v6676 = vsel %vm5664, %v6674, %v6675
      %6677 = vrot.lane.b32.xlu0 %v5667, 32
      %v6678 = vpop.permute.xlu0 %6677
      %6679 = vrot.lane.b32.xlu0 %v6634, 32
      %v6680 = vpop.permute.xlu0 %6679
      %6681 = vrot.lane.b32.xlu0 %v6637, 32
      %v6682 = vpop.permute.xlu0 %6681
      %6683 = vrot.lane.b32.xlu0 %v6640, 32
      %v6684 = vpop.permute.xlu0 %6683
      %6685 = vrot.lane.b32.xlu0 %v6643, 32
      %v6686 = vpop.permute.xlu0 %6685
      %6687 = vrot.lane.b32.xlu0 %v6646, 32
      %v6688 = vpop.permute.xlu0 %6687
      %6689 = vrot.lane.b32.xlu0 %v6649, 32
      %v6690 = vpop.permute.xlu0 %6689
      %6691 = vrot.lane.b32.xlu0 %v6652, 32
      %v6692 = vpop.permute.xlu0 %6691
      %6693 = vrot.lane.b32.xlu0 %v6655, 32
      %v6694 = vpop.permute.xlu0 %6693
      %6695 = vrot.lane.b32.xlu0 %v6658, 32
      %v6696 = vpop.permute.xlu0 %6695
      %6697 = vrot.lane.b32.xlu0 %v6661, 32
      %v6698 = vpop.permute.xlu0 %6697
      %6699 = vrot.lane.b32.xlu0 %v6664, 32
      %v6700 = vpop.permute.xlu0 %6699
      %6701 = vrot.lane.b32.xlu0 %v6667, 32
      %v6702 = vpop.permute.xlu0 %6701
      %6703 = vrot.lane.b32.xlu0 %v6670, 32
      %v6704 = vpop.permute.xlu0 %6703
      %6705 = vrot.lane.b32.xlu0 %v6673, 32
      %v6706 = vpop.permute.xlu0 %6705
      %6707 = vrot.lane.b32.xlu0 %v6676, 32
      %v6708 = vpop.permute.xlu0 %6707
      %6710 = vrot.lane.b32.xlu0 %v6358, 48
      %v6711 = vpop.permute.xlu0 %6710
      %6712 = vrot.lane.b32.xlu0 %v6359, 48
      %v6713 = vpop.permute.xlu0 %6712
      %6714 = vrot.lane.b32.xlu0 %v6360, 48
      %v6715 = vpop.permute.xlu0 %6714
      %6716 = vrot.lane.b32.xlu0 %v6361, 48
      %v6717 = vpop.permute.xlu0 %6716
      %6718 = vrot.lane.b32.xlu0 %v6362, 48
      %v6719 = vpop.permute.xlu0 %6718
      %6720 = vrot.lane.b32.xlu0 %v6363, 48
      %v6721 = vpop.permute.xlu0 %6720
      %6722 = vrot.lane.b32.xlu0 %v6364, 48
      %v6723 = vpop.permute.xlu0 %6722
      %6724 = vrot.lane.b32.xlu0 %v6365, 48
      %v6725 = vpop.permute.xlu0 %6724
      %6726 = vrot.lane.b32.xlu0 %v6366, 48
      %v6727 = vpop.permute.xlu0 %6726
      %6728 = vrot.lane.b32.xlu0 %v6367, 48
      %v6729 = vpop.permute.xlu0 %6728
      %6730 = vrot.lane.b32.xlu0 %v6368, 48
      %v6731 = vpop.permute.xlu0 %6730
      %6732 = vrot.lane.b32.xlu0 %v6369, 48
      %v6733 = vpop.permute.xlu0 %6732
      %6734 = vrot.lane.b32.xlu0 %v6370, 48
      %v6735 = vpop.permute.xlu0 %6734
      %6736 = vrot.lane.b32.xlu0 %v6371, 48
      %v6737 = vpop.permute.xlu0 %6736
      %6738 = vrot.lane.b32.xlu0 %v6372, 48
      %v6739 = vpop.permute.xlu0 %6738
      %6740 = vrot.lane.b32.xlu0 %v6373, 48
      %v6741 = vpop.permute.xlu0 %6740
      %v6743 = vshrl.u32 %v6373, 16
      %v6745 = vshll.u32 %v6373, 16
      %v6747 = vrot.slane %v6745, 1
      %v6748 = vor.u32 %v6743, %v6747
      %v6750 = vshll.u32 %v6389, 16
      %v6752 = vrot.slane %v6750, 1
      %v6753 = vsel %vm5407, %v6748, %v6752
      %6754 = vrot.lane.b32.xlu0 %v6401, 64
      %v6755 = vpop.permute.xlu0 %6754
      %6756 = vrot.lane.b32.xlu0 %v6413, 64
      %v6757 = vpop.permute.xlu0 %6756
      %6758 = vrot.lane.b32.xlu0 %v6425, 64
      %v6759 = vpop.permute.xlu0 %6758
      %6760 = vrot.lane.b32.xlu0 %v6437, 64
      %v6761 = vpop.permute.xlu0 %6760
      %6762 = vrot.lane.b32.xlu0 %v6449, 64
      %v6763 = vpop.permute.xlu0 %6762
      %6764 = vrot.lane.b32.xlu0 %v6461, 64
      %v6765 = vpop.permute.xlu0 %6764
      %6766 = vrot.lane.b32.xlu0 %v6473, 64
      %v6767 = vpop.permute.xlu0 %6766
      %6768 = vrot.lane.b32.xlu0 %v6485, 64
      %v6769 = vpop.permute.xlu0 %6768
      %6770 = vrot.lane.b32.xlu0 %v6497, 64
      %v6771 = vpop.permute.xlu0 %6770
      %6772 = vrot.lane.b32.xlu0 %v6509, 64
      %v6773 = vpop.permute.xlu0 %6772
      %6774 = vrot.lane.b32.xlu0 %v6521, 64
      %v6775 = vpop.permute.xlu0 %6774
      %6776 = vrot.lane.b32.xlu0 %v6533, 64
      %v6777 = vpop.permute.xlu0 %6776
      %6778 = vrot.lane.b32.xlu0 %v6545, 64
      %v6779 = vpop.permute.xlu0 %6778
      %6780 = vrot.lane.b32.xlu0 %v6557, 64
      %v6781 = vpop.permute.xlu0 %6780
      %6782 = vrot.lane.b32.xlu0 %v6569, 64
      %v6783 = vpop.permute.xlu0 %6782
      %6784 = vrot.lane.b32.xlu0 %v6753, 64
      %v6785 = vpop.permute.xlu0 %6784
      %v6787 = vrot.slane %v6373, 1
      %v6788 = vrot.slane %v6389, 1
      %v6789 = vsel %vm5664, %v6787, %v6788
      %6790 = vrot.lane.b32.xlu0 %v6634, 80
      %v6791 = vpop.permute.xlu0 %6790
      %6792 = vrot.lane.b32.xlu0 %v6637, 80
      %v6793 = vpop.permute.xlu0 %6792
      %6794 = vrot.lane.b32.xlu0 %v6640, 80
      %v6795 = vpop.permute.xlu0 %6794
      %6796 = vrot.lane.b32.xlu0 %v6643, 80
      %v6797 = vpop.permute.xlu0 %6796
      %6798 = vrot.lane.b32.xlu0 %v6646, 80
      %v6799 = vpop.permute.xlu0 %6798
      %6800 = vrot.lane.b32.xlu0 %v6649, 80
      %v6801 = vpop.permute.xlu0 %6800
      %6802 = vrot.lane.b32.xlu0 %v6652, 80
      %v6803 = vpop.permute.xlu0 %6802
      %6804 = vrot.lane.b32.xlu0 %v6655, 80
      %v6805 = vpop.permute.xlu0 %6804
      %6806 = vrot.lane.b32.xlu0 %v6658, 80
      %v6807 = vpop.permute.xlu0 %6806
      %6808 = vrot.lane.b32.xlu0 %v6661, 80
      %v6809 = vpop.permute.xlu0 %6808
      %6810 = vrot.lane.b32.xlu0 %v6664, 80
      %v6811 = vpop.permute.xlu0 %6810
      %6812 = vrot.lane.b32.xlu0 %v6667, 80
      %v6813 = vpop.permute.xlu0 %6812
      %6814 = vrot.lane.b32.xlu0 %v6670, 80
      %v6815 = vpop.permute.xlu0 %6814
      %6816 = vrot.lane.b32.xlu0 %v6673, 80
      %v6817 = vpop.permute.xlu0 %6816
      %6818 = vrot.lane.b32.xlu0 %v6676, 80
      %v6819 = vpop.permute.xlu0 %6818
      %6820 = vrot.lane.b32.xlu0 %v6789, 80
      %v6821 = vpop.permute.xlu0 %6820
      %6822 = vrot.lane.b32.xlu0 %v6359, 96
      %v6823 = vpop.permute.xlu0 %6822
      %6824 = vrot.lane.b32.xlu0 %v6360, 96
      %v6825 = vpop.permute.xlu0 %6824
      %6826 = vrot.lane.b32.xlu0 %v6361, 96
      %v6827 = vpop.permute.xlu0 %6826
      %6828 = vrot.lane.b32.xlu0 %v6362, 96
      %v6829 = vpop.permute.xlu0 %6828
      %6830 = vrot.lane.b32.xlu0 %v6363, 96
      %v6831 = vpop.permute.xlu0 %6830
      %6832 = vrot.lane.b32.xlu0 %v6364, 96
      %v6833 = vpop.permute.xlu0 %6832
      %6834 = vrot.lane.b32.xlu0 %v6365, 96
      %v6835 = vpop.permute.xlu0 %6834
      %6836 = vrot.lane.b32.xlu0 %v6366, 96
      %v6837 = vpop.permute.xlu0 %6836
      %6838 = vrot.lane.b32.xlu0 %v6367, 96
      %v6839 = vpop.permute.xlu0 %6838
      %6840 = vrot.lane.b32.xlu0 %v6368, 96
      %v6841 = vpop.permute.xlu0 %6840
      %6842 = vrot.lane.b32.xlu0 %v6369, 96
      %v6843 = vpop.permute.xlu0 %6842
      %6844 = vrot.lane.b32.xlu0 %v6370, 96
      %v6845 = vpop.permute.xlu0 %6844
      %6846 = vrot.lane.b32.xlu0 %v6371, 96
      %v6847 = vpop.permute.xlu0 %6846
      %6848 = vrot.lane.b32.xlu0 %v6372, 96
      %v6849 = vpop.permute.xlu0 %6848
      %6850 = vrot.lane.b32.xlu0 %v6373, 96
      %v6851 = vpop.permute.xlu0 %6850
      %6852 = vrot.lane.b32.xlu0 %v1123, 96
      %v6853 = vpop.permute.xlu0 %6852
      %6854 = vrot.lane.b32.xlu0 %v6413, 112
      %v6855 = vpop.permute.xlu0 %6854
      %6856 = vrot.lane.b32.xlu0 %v6425, 112
      %v6857 = vpop.permute.xlu0 %6856
      %6858 = vrot.lane.b32.xlu0 %v6437, 112
      %v6859 = vpop.permute.xlu0 %6858
      %6860 = vrot.lane.b32.xlu0 %v6449, 112
      %v6861 = vpop.permute.xlu0 %6860
      %6862 = vrot.lane.b32.xlu0 %v6461, 112
      %v6863 = vpop.permute.xlu0 %6862
      %6864 = vrot.lane.b32.xlu0 %v6473, 112
      %v6865 = vpop.permute.xlu0 %6864
      %6866 = vrot.lane.b32.xlu0 %v6485, 112
      %v6867 = vpop.permute.xlu0 %6866
      %6868 = vrot.lane.b32.xlu0 %v6497, 112
      %v6869 = vpop.permute.xlu0 %6868
      %6870 = vrot.lane.b32.xlu0 %v6509, 112
      %v6871 = vpop.permute.xlu0 %6870
      %6872 = vrot.lane.b32.xlu0 %v6521, 112
      %v6873 = vpop.permute.xlu0 %6872
      %6874 = vrot.lane.b32.xlu0 %v6533, 112
      %v6875 = vpop.permute.xlu0 %6874
      %6876 = vrot.lane.b32.xlu0 %v6545, 112
      %v6877 = vpop.permute.xlu0 %6876
      %6878 = vrot.lane.b32.xlu0 %v6557, 112
      %v6879 = vpop.permute.xlu0 %6878
      %6880 = vrot.lane.b32.xlu0 %v6569, 112
      %v6881 = vpop.permute.xlu0 %6880
      %6882 = vrot.lane.b32.xlu0 %v6753, 112
      %v6883 = vpop.permute.xlu0 %6882
      %6884 = vrot.lane.b32.xlu0 %v5419, 112
      %v6885 = vpop.permute.xlu0 %6884
      %v6887 = vsel %vm2828, %v1123, %v6571
      %v6889 = vsel %vm2828, %v6358, %v6573
      %v6891 = vsel %vm2828, %v6359, %v6575
      %v6893 = vsel %vm2828, %v6360, %v6577
      %v6895 = vsel %vm2828, %v6361, %v6579
      %v6897 = vsel %vm2828, %v6362, %v6581
      %v6899 = vsel %vm2828, %v6363, %v6583
      %v6901 = vsel %vm2828, %v6364, %v6585
      %v6903 = vsel %vm2828, %v6365, %v6587
      %v6905 = vsel %vm2828, %v6366, %v6589
      %v6907 = vsel %vm2828, %v6367, %v6591
      %v6909 = vsel %vm2828, %v6368, %v6593
      %v6911 = vsel %vm2828, %v6369, %v6595
      %v6913 = vsel %vm2828, %v6370, %v6597
      %v6915 = vsel %vm2828, %v6371, %v6599
      %v6917 = vsel %vm2828, %v6372, %v6601
      %v6919 = vsel %vm1229, %v6887, %v6678
      %v6921 = vsel %vm1229, %v6889, %v6680
      %v6923 = vsel %vm1229, %v6891, %v6682
      %v6925 = vsel %vm1229, %v6893, %v6684
      %v6927 = vsel %vm1229, %v6895, %v6686
      %v6929 = vsel %vm1229, %v6897, %v6688
      %v6931 = vsel %vm1229, %v6899, %v6690
      %v6933 = vsel %vm1229, %v6901, %v6692
      %v6935 = vsel %vm1229, %v6903, %v6694
      %v6937 = vsel %vm1229, %v6905, %v6696
      %v6939 = vsel %vm1229, %v6907, %v6698
      %v6941 = vsel %vm1229, %v6909, %v6700
      %v6943 = vsel %vm1229, %v6911, %v6702
      %v6945 = vsel %vm1229, %v6913, %v6704
      %v6947 = vsel %vm1229, %v6915, %v6706
      %v6949 = vsel %vm1229, %v6917, %v6708
      %v6951 = vsel %vm3239, %v6919, %v6711
      %v6953 = vsel %vm3239, %v6921, %v6713
      %v6955 = vsel %vm3239, %v6923, %v6715
      %v6957 = vsel %vm3239, %v6925, %v6717
      %v6959 = vsel %vm3239, %v6927, %v6719
      %v6961 = vsel %vm3239, %v6929, %v6721
      %v6963 = vsel %vm3239, %v6931, %v6723
      %v6965 = vsel %vm3239, %v6933, %v6725
      %v6967 = vsel %vm3239, %v6935, %v6727
      %v6969 = vsel %vm3239, %v6937, %v6729
      %v6971 = vsel %vm3239, %v6939, %v6731
      %v6973 = vsel %vm3239, %v6941, %v6733
      %v6975 = vsel %vm3239, %v6943, %v6735
      %v6977 = vsel %vm3239, %v6945, %v6737
      %v6979 = vsel %vm3239, %v6947, %v6739
      %v6981 = vsel %vm3239, %v6949, %v6741
      %v6983 = vsel %vm1238, %v6951, %v6755
      %v6985 = vsel %vm1238, %v6953, %v6757
      %v6987 = vsel %vm1238, %v6955, %v6759
      %v6989 = vsel %vm1238, %v6957, %v6761
      %v6991 = vsel %vm1238, %v6959, %v6763
      %v6993 = vsel %vm1238, %v6961, %v6765
      %v6995 = vsel %vm1238, %v6963, %v6767
      %v6997 = vsel %vm1238, %v6965, %v6769
      %v6999 = vsel %vm1238, %v6967, %v6771
      %v7001 = vsel %vm1238, %v6969, %v6773
      %v7003 = vsel %vm1238, %v6971, %v6775
      %v7005 = vsel %vm1238, %v6973, %v6777
      %v7007 = vsel %vm1238, %v6975, %v6779
      %v7009 = vsel %vm1238, %v6977, %v6781
      %v7011 = vsel %vm1238, %v6979, %v6783
      %v7013 = vsel %vm1238, %v6981, %v6785
      %v7015 = vsel %vm3272, %v6983, %v6791
      %v7017 = vsel %vm3272, %v6985, %v6793
      %v7019 = vsel %vm3272, %v6987, %v6795
      %v7021 = vsel %vm3272, %v6989, %v6797
      %v7023 = vsel %vm3272, %v6991, %v6799
      %v7025 = vsel %vm3272, %v6993, %v6801
      %v7027 = vsel %vm3272, %v6995, %v6803
      %v7029 = vsel %vm3272, %v6997, %v6805
      %v7031 = vsel %vm3272, %v6999, %v6807
      %v7033 = vsel %vm3272, %v7001, %v6809
      %v7035 = vsel %vm3272, %v7003, %v6811
      %v7037 = vsel %vm3272, %v7005, %v6813
      %v7039 = vsel %vm3272, %v7007, %v6815
      %v7041 = vsel %vm3272, %v7009, %v6817
      %v7043 = vsel %vm3272, %v7011, %v6819
      %v7045 = vsel %vm3272, %v7013, %v6821
      %v7047 = vsel %vm1247, %v7015, %v6823
      %v7049 = vsel %vm1247, %v7017, %v6825
      %v7051 = vsel %vm1247, %v7019, %v6827
      %v7053 = vsel %vm1247, %v7021, %v6829
      %v7055 = vsel %vm1247, %v7023, %v6831
      %v7057 = vsel %vm1247, %v7025, %v6833
      %v7059 = vsel %vm1247, %v7027, %v6835
      %v7061 = vsel %vm1247, %v7029, %v6837
      %v7063 = vsel %vm1247, %v7031, %v6839
      %v7065 = vsel %vm1247, %v7033, %v6841
      %v7067 = vsel %vm1247, %v7035, %v6843
      %v7069 = vsel %vm1247, %v7037, %v6845
      %v7071 = vsel %vm1247, %v7039, %v6847
      %v7073 = vsel %vm1247, %v7041, %v6849
      %v7075 = vsel %vm1247, %v7043, %v6851
      %v7077 = vsel %vm1247, %v7045, %v6853
      %v7079 = vsel %vm3305, %v7047, %v6855
      %v7082 = vsel %vm3305, %v7049, %v6857
      %v7085 = vsel %vm3305, %v7051, %v6859
      %v7088 = vsel %vm3305, %v7053, %v6861
      %v7091 = vsel %vm3305, %v7055, %v6863
      %v7094 = vsel %vm3305, %v7057, %v6865
      %v7097 = vsel %vm3305, %v7059, %v6867
      %v7100 = vsel %vm3305, %v7061, %v6869
      %v7103 = vsel %vm3305, %v7063, %v6871
      %v7106 = vsel %vm3305, %v7065, %v6873
      %v7109 = vsel %vm3305, %v7067, %v6875
      %v7112 = vsel %vm3305, %v7069, %v6877
      %v7115 = vsel %vm3305, %v7071, %v6879
      %v7118 = vsel %vm3305, %v7073, %v6881
      %v7121 = vsel %vm3305, %v7075, %v6883
      %v7124 = vsel %vm3305, %v7077, %v6885
      %v7144 = vunpack.c.l.b16 %v4815
      %v7145 = vunpack.c.l.b16 %v4816
      %v7146 = vunpack.c.l.b16 %v4817
      %v7147 = vunpack.c.l.b16 %v4818
      %v7148 = vunpack.c.l.b16 %v4819
      %v7149 = vunpack.c.l.b16 %v4820
      %v7150 = vunpack.c.l.b16 %v4821
      %v7151 = vunpack.c.l.b16 %v4822
      %v7152 = vunpack.c.l.b16 %v4823
      %v7153 = vunpack.c.l.b16 %v4824
      %v7154 = vunpack.c.l.b16 %v4825
      %v7155 = vunpack.c.l.b16 %v4826
      %v7156 = vunpack.c.l.b16 %v4827
      %v7157 = vunpack.c.l.b16 %v4828
      %v7158 = vunpack.c.l.b16 %v4829
      %v7159 = vunpack.c.l.b16 %v4830
      %v7160 = vunpack.c.l.b16 %v4831
      %v7161 = vunpack.c.l.b16 %v4832
      %v7162 = vpack.c.b16 %v7145, %v7144
      %v7163 = vpack.c.b16 %v7147, %v7146
      %v7164 = vpack.c.b16 %v7149, %v7148
      %v7165 = vpack.c.b16 %v7151, %v7150
      %v7166 = vpack.c.b16 %v7153, %v7152
      %v7167 = vpack.c.b16 %v7155, %v7154
      %v7168 = vpack.c.b16 %v7157, %v7156
      %v7169 = vpack.c.b16 %v7159, %v7158
      %v7170 = vpack.c.b16 %v7161, %v7160
      %v7181 = vsel %vm2828, %v6637, 0
      %v7184 = vsel %vm2828, %v6640, 0
      %v7187 = vsel %vm2828, %v6643, 0
      %v7190 = vsel %vm2828, %v6646, 0
      %v7193 = vsel %vm2828, %v6649, 0
      %v7196 = vsel %vm2828, %v6652, 0
      %v7199 = vsel %vm2828, %v6655, 0
      %v7202 = vsel %vm2828, %v6658, 0
      %v7205 = vsel %vm2828, %v6661, 0
      %v7208 = vsel %vm2828, %v6664, 0
      %v7211 = vsel %vm2828, %v6667, 0
      %v7214 = vsel %vm2828, %v6670, 0
      %v7217 = vsel %vm2828, %v6673, 0
      %v7220 = vsel %vm2828, %v6676, 0
      %v7223 = vsel %vm2828, %v6789, 0
      %v7226 = vsel %vm2828, %v5667, 0
      %7228 = vmatprep.subr.bf16.mxu0 0
      %7229 = vmatpush1.bf16.msra.mxu0 %v7162
      %7230 = vmatprep.subr.bf16.mxu0 0
      %7231 = vmatpush1.bf16.msra.mxu0 %v7163
      %7232 = vmatprep.subr.bf16.mxu0 0
      %7233 = vmatpush1.bf16.msra.mxu0 %v7164
      %7234 = vmatprep.subr.bf16.mxu0 0
      %7235 = vmatpush1.bf16.msra.mxu0 %v7165
      %7236 = vmatprep.subr.bf16.mxu0 0
      %7237 = vmatpush1.bf16.msra.mxu0 %v7166
      %7238 = vmatprep.subr.bf16.mxu0 0
      %7239 = vmatpush1.bf16.msra.mxu0 %v7167
      %7240 = vmatprep.subr.bf16.mxu0 0
      %7241 = vmatpush1.bf16.msra.mxu0 %v7168
      %7242 = vmatprep.subr.bf16.mxu0 0
      %7243 = vmatpush1.bf16.msra.mxu0 %v7169
      %7244 = vmatprep.subr.bf16.mxu0 0
      %7245 = vmatpush1.bf16.msra.mxu0 %v7170
      %7246 = vmatprep.subr.bf16.mxu0 0
      %7247 = vmatpush1.bf16.msra.mxu0 0
      %7248 = vmatprep.subr.bf16.mxu0 0
      %7249 = vmatpush1.bf16.msra.mxu0 0
      %7250 = vmatprep.subr.bf16.mxu0 0
      %7251 = vmatpush1.bf16.msra.mxu0 0
      %7252 = vmatprep.subr.bf16.mxu0 0
      %7253 = vmatpush1.bf16.msra.mxu0 0
      %7254 = vmatprep.subr.bf16.mxu0 0
      %7255 = vmatpush1.bf16.msra.mxu0 0
      %7256 = vmatprep.subr.bf16.mxu0 0
      %7257 = vmatpush1.bf16.msra.mxu0 0
      %7258 = vmatprep.subr.bf16.mxu0 0
      %7259 = vmatpush1.bf16.msra.mxu0 0
      %7260 = vmatprep.mubr.bf16.mxu0 %v7181
      %7261 = vmatmul.mubr.bf16.gmra.mrb[0].mxu0 %v7079
      %v7262 = vpop.f32.mrb[0].mxu0
      %v7263 = vadd.f32 0.0, %v7262
      %v7264 = vpop.f32.mrb[0].mxu0
      %v7265 = vpop.f32.mrb[0].mxu0
      %v7266 = vadd.f32 0.0, %v7265
      %v7267 = vpop.f32.mrb[0].mxu0
      %7268 = vmatprep.mubr.bf16.mxu0 %v7184
      %7269 = vmatmul.mubr.bf16.gmra.mrb[0].mxu0 %v7082
      %v7270 = vpop.f32.mrb[0].mxu0
      %v7271 = vadd.f32 0.0, %v7270
      %v7272 = vpop.f32.mrb[0].mxu0
      %v7273 = vpop.f32.mrb[0].mxu0
      %v7274 = vadd.f32 0.0, %v7273
      %v7275 = vpop.f32.mrb[0].mxu0
      %7276 = vmatprep.mubr.bf16.mxu0 %v7187
      %7277 = vmatmul.mubr.bf16.gmra.mrb[0].mxu0 %v7085
      %v7278 = vpop.f32.mrb[0].mxu0
      %v7279 = vadd.f32 0.0, %v7278
      %v7280 = vpop.f32.mrb[0].mxu0
      %v7281 = vpop.f32.mrb[0].mxu0
      %v7282 = vadd.f32 0.0, %v7281
      %v7283 = vpop.f32.mrb[0].mxu0
      %7284 = vmatprep.mubr.bf16.mxu0 %v7190
      %7285 = vmatmul.mubr.bf16.gmra.mrb[0].mxu0 %v7088
      %v7286 = vpop.f32.mrb[0].mxu0
      %v7287 = vadd.f32 0.0, %v7286
      %v7288 = vpop.f32.mrb[0].mxu0
      %v7289 = vpop.f32.mrb[0].mxu0
      %v7290 = vadd.f32 0.0, %v7289
      %v7291 = vpop.f32.mrb[0].mxu0
      %7292 = vmatprep.mubr.bf16.mxu0 %v7193
      %7293 = vmatmul.mubr.bf16.gmra.mrb[0].mxu0 %v7091
      %v7294 = vpop.f32.mrb[0].mxu0
      %v7295 = vadd.f32 0.0, %v7294
      %v7296 = vpop.f32.mrb[0].mxu0
      %v7297 = vpop.f32.mrb[0].mxu0
      %v7298 = vadd.f32 0.0, %v7297
      %v7299 = vpop.f32.mrb[0].mxu0
      %7300 = vmatprep.mubr.bf16.mxu0 %v7196
      %7301 = vmatmul.mubr.bf16.gmra.mrb[0].mxu0 %v7094
      %v7302 = vpop.f32.mrb[0].mxu0
      %v7303 = vadd.f32 0.0, %v7302
      %v7304 = vpop.f32.mrb[0].mxu0
      %v7305 = vpop.f32.mrb[0].mxu0
      %v7306 = vadd.f32 0.0, %v7305
      %v7307 = vpop.f32.mrb[0].mxu0
      %7308 = vmatprep.mubr.bf16.mxu0 %v7199
      %7309 = vmatmul.mubr.bf16.gmra.mrb[0].mxu0 %v7097
      %v7310 = vpop.f32.mrb[0].mxu0
      %v7311 = vadd.f32 0.0, %v7310
      %v7312 = vpop.f32.mrb[0].mxu0
      %v7313 = vpop.f32.mrb[0].mxu0
      %v7314 = vadd.f32 0.0, %v7313
      %v7315 = vpop.f32.mrb[0].mxu0
      %7316 = vmatprep.mubr.bf16.mxu0 %v7202
      %7317 = vmatmul.mubr.bf16.gmra.mrb[0].mxu0 %v7100
      %v7318 = vpop.f32.mrb[0].mxu0
      %v7319 = vadd.f32 0.0, %v7318
      %v7320 = vpop.f32.mrb[0].mxu0
      %v7321 = vpop.f32.mrb[0].mxu0
      %v7322 = vadd.f32 0.0, %v7321
      %v7323 = vpop.f32.mrb[0].mxu0
      %7324 = vmatprep.mubr.bf16.mxu0 %v7205
      %7325 = vmatmul.mubr.bf16.gmra.mrb[0].mxu0 %v7103
      %v7326 = vpop.f32.mrb[0].mxu0
      %v7327 = vadd.f32 0.0, %v7326
      %v7328 = vpop.f32.mrb[0].mxu0
      %v7329 = vpop.f32.mrb[0].mxu0
      %v7330 = vadd.f32 0.0, %v7329
      %v7331 = vpop.f32.mrb[0].mxu0
      %7332 = vmatprep.mubr.bf16.mxu0 %v7208
      %7333 = vmatmul.mubr.bf16.gmra.mrb[0].mxu0 %v7106
      %v7334 = vpop.f32.mrb[0].mxu0
      %v7335 = vadd.f32 0.0, %v7334
      %v7336 = vpop.f32.mrb[0].mxu0
      %v7337 = vpop.f32.mrb[0].mxu0
      %v7338 = vadd.f32 0.0, %v7337
      %v7339 = vpop.f32.mrb[0].mxu0
      %7340 = vmatprep.mubr.bf16.mxu0 %v7211
      %7341 = vmatmul.mubr.bf16.gmra.mrb[0].mxu0 %v7109
      %v7342 = vpop.f32.mrb[0].mxu0
      %v7343 = vadd.f32 0.0, %v7342
      %v7344 = vpop.f32.mrb[0].mxu0
      %v7345 = vpop.f32.mrb[0].mxu0
      %v7346 = vadd.f32 0.0, %v7345
      %v7347 = vpop.f32.mrb[0].mxu0
      %7348 = vmatprep.mubr.bf16.mxu0 %v7214
      %7349 = vmatmul.mubr.bf16.gmra.mrb[0].mxu0 %v7112
      %v7350 = vpop.f32.mrb[0].mxu0
      %v7351 = vadd.f32 0.0, %v7350
      %v7352 = vpop.f32.mrb[0].mxu0
      %v7353 = vpop.f32.mrb[0].mxu0
      %v7354 = vadd.f32 0.0, %v7353
      %v7355 = vpop.f32.mrb[0].mxu0
      %7356 = vmatprep.mubr.bf16.mxu0 %v7217
      %7357 = vmatmul.mubr.bf16.gmra.mrb[0].mxu0 %v7115
      %v7358 = vpop.f32.mrb[0].mxu0
      %v7359 = vadd.f32 0.0, %v7358
      %v7360 = vpop.f32.mrb[0].mxu0
      %v7361 = vpop.f32.mrb[0].mxu0
      %v7362 = vadd.f32 0.0, %v7361
      %v7363 = vpop.f32.mrb[0].mxu0
      %7364 = vmatprep.mubr.bf16.mxu0 %v7220
      %7365 = vmatmul.mubr.bf16.gmra.mrb[0].mxu0 %v7118
      %v7366 = vpop.f32.mrb[0].mxu0
      %v7367 = vadd.f32 0.0, %v7366
      %v7368 = vpop.f32.mrb[0].mxu0
      %v7369 = vpop.f32.mrb[0].mxu0
      %v7370 = vadd.f32 0.0, %v7369
      %v7371 = vpop.f32.mrb[0].mxu0
      %7372 = vmatprep.mubr.bf16.mxu0 %v7223
      %7373 = vmatmul.mubr.bf16.gmra.mrb[0].mxu0 %v7121
      %v7374 = vpop.f32.mrb[0].mxu0
      %v7375 = vadd.f32 0.0, %v7374
      %v7376 = vpop.f32.mrb[0].mxu0
      %v7377 = vpop.f32.mrb[0].mxu0
      %v7378 = vadd.f32 0.0, %v7377
      %v7379 = vpop.f32.mrb[0].mxu0
      %7380 = vmatprep.mubr.bf16.mxu0 %v7226
      %7381 = vmatmul.mubr.bf16.gmra.mrb[0].mxu0 %v7124
      %v7382 = vpop.f32.mrb[0].mxu0
      %v7383 = vadd.f32 0.0, %v7382
      %v7384 = vpop.f32.mrb[0].mxu0
      %v7385 = vpop.f32.mrb[0].mxu0
      %v7386 = vadd.f32 0.0, %v7385
      %v7387 = vpop.f32.mrb[0].mxu0
      %7388 = vdwg.mxu0
      %v7398 = vunpack.c.l.b16 %v4806
      %v7399 = vunpack.c.l.b16 %v4807
      %v7400 = vunpack.c.l.b16 %v4808
      %v7401 = vunpack.c.l.b16 %v4809
      %v7402 = vunpack.c.l.b16 %v4810
      %v7403 = vunpack.c.l.b16 %v4811
      %v7404 = vunpack.c.l.b16 %v4812
      %v7405 = vunpack.c.l.b16 %v4813
      %v7406 = vunpack.c.l.b16 %v4814
      %v7407 = vpack.c.b16 %v7399, %v7398
      %v7408 = vpack.c.b16 %v7401, %v7400
      %v7409 = vpack.c.b16 %v7403, %v7402
      %v7410 = vpack.c.b16 %v7405, %v7404
      %v7411 = vpack.c.b16 %v7406, %v7406
      %vm7416 = vcmask 588800
      %v7417 = vsel %vm7416, %v6183, 0
      %v7419 = vsel %vm7416, %v6185, 0
      %v7421 = vsel %vm7416, %v6187, 0
      %v7423 = vsel %vm7416, %v6189, 0
      %v7425 = vsel %vm7416, %v6191, 0
      %v7427 = vsel %vm7416, %v6193, 0
      %v7429 = vsel %vm7416, %v6195, 0
      %v7431 = vsel %vm7416, %v6197, 0
      %v7433 = vsel %vm7416, %v6199, 0
      %v7435 = vsel %vm7416, %v6201, 0
      %v7437 = vsel %vm7416, %v6203, 0
      %v7439 = vsel %vm7416, %v6205, 0
      %v7441 = vsel %vm7416, %v6207, 0
      %v7443 = vsel %vm7416, %v6209, 0
      %v7445 = vsel %vm7416, %v6211, 0
      %v7447 = vsel %vm7416, %v6213, 0
      %vm7449 = vcmask 1043456
      %v7451 = vsel %vm7449, %v7411, 0
      %7453 = vmatprep.subr.bf16.mxu0 0
      %7454 = vmatpush1.bf16.msra.mxu0 %v7407
      %7455 = vmatprep.subr.bf16.mxu0 0
      %7456 = vmatpush1.bf16.msra.mxu0 %v7408
      %7457 = vmatprep.subr.bf16.mxu0 0
      %7458 = vmatpush1.bf16.msra.mxu0 %v7409
      %7459 = vmatprep.subr.bf16.mxu0 0
      %7460 = vmatpush1.bf16.msra.mxu0 %v7410
      %7461 = vmatprep.subr.bf16.mxu0 0
      %7462 = vmatpush1.bf16.msra.mxu0 %v7451
      %7463 = vmatprep.subr.bf16.mxu0 0
      %7464 = vmatpush1.bf16.msra.mxu0 0
      %7465 = vmatprep.subr.bf16.mxu0 0
      %7466 = vmatpush1.bf16.msra.mxu0 0
      %7467 = vmatprep.subr.bf16.mxu0 0
      %7468 = vmatpush1.bf16.msra.mxu0 0
      %7469 = vmatprep.subr.bf16.mxu0 0
      %7470 = vmatpush1.bf16.msra.mxu0 0
      %7471 = vmatprep.subr.bf16.mxu0 0
      %7472 = vmatpush1.bf16.msra.mxu0 0
      %7473 = vmatprep.subr.bf16.mxu0 0
      %7474 = vmatpush1.bf16.msra.mxu0 0
      %7475 = vmatprep.subr.bf16.mxu0 0
      %7476 = vmatpush1.bf16.msra.mxu0 0
      %7477 = vmatprep.subr.bf16.mxu0 0
      %7478 = vmatpush1.bf16.msra.mxu0 0
      %7479 = vmatprep.subr.bf16.mxu0 0
      %7480 = vmatpush1.bf16.msra.mxu0 0
      %7481 = vmatprep.subr.bf16.mxu0 0
      %7482 = vmatpush1.bf16.msra.mxu0 0
      %7483 = vmatprep.subr.bf16.mxu0 0
      %7484 = vmatpush1.bf16.msra.mxu0 0
      %7485 = vmatprep.mubr.bf16.mxu0 0
      %7486 = vmatmul.mubr.bf16.gmra.mrb[0].mxu0 %v7417
      %v7487 = vpop.f32.mrb[0].mxu0
      %v7488 = vadd.f32 %v7263, %v7487
      %v7489 = vpop.f32.mrb[0].mxu0
      %v7490 = vpop.f32.mrb[0].mxu0
      %v7491 = vadd.f32 %v7266, %v7490
      %v7492 = vpop.f32.mrb[0].mxu0
      %7493 = vmatprep.mubr.bf16.mxu0 0
      %7494 = vmatmul.mubr.bf16.gmra.mrb[0].mxu0 %v7419
      %v7495 = vpop.f32.mrb[0].mxu0
      %v7496 = vadd.f32 %v7271, %v7495
      %v7497 = vpop.f32.mrb[0].mxu0
      %v7498 = vpop.f32.mrb[0].mxu0
      %v7499 = vadd.f32 %v7274, %v7498
      %v7500 = vpop.f32.mrb[0].mxu0
      %7501 = vmatprep.mubr.bf16.mxu0 0
      %7502 = vmatmul.mubr.bf16.gmra.mrb[0].mxu0 %v7421
      %v7503 = vpop.f32.mrb[0].mxu0
      %v7504 = vadd.f32 %v7279, %v7503
      %v7505 = vpop.f32.mrb[0].mxu0
      %v7506 = vpop.f32.mrb[0].mxu0
      %v7507 = vadd.f32 %v7282, %v7506
      %v7508 = vpop.f32.mrb[0].mxu0
      %7509 = vmatprep.mubr.bf16.mxu0 0
      %7510 = vmatmul.mubr.bf16.gmra.mrb[0].mxu0 %v7423
      %v7511 = vpop.f32.mrb[0].mxu0
      %v7512 = vadd.f32 %v7287, %v7511
      %v7513 = vpop.f32.mrb[0].mxu0
      %v7514 = vpop.f32.mrb[0].mxu0
      %v7515 = vadd.f32 %v7290, %v7514
      %v7516 = vpop.f32.mrb[0].mxu0
      %7517 = vmatprep.mubr.bf16.mxu0 0
      %7518 = vmatmul.mubr.bf16.gmra.mrb[0].mxu0 %v7425
      %v7519 = vpop.f32.mrb[0].mxu0
      %v7520 = vadd.f32 %v7295, %v7519
      %v7521 = vpop.f32.mrb[0].mxu0
      %v7522 = vpop.f32.mrb[0].mxu0
      %v7523 = vadd.f32 %v7298, %v7522
      %v7524 = vpop.f32.mrb[0].mxu0
      %7525 = vmatprep.mubr.bf16.mxu0 0
      %7526 = vmatmul.mubr.bf16.gmra.mrb[0].mxu0 %v7427
      %v7527 = vpop.f32.mrb[0].mxu0
      %v7528 = vadd.f32 %v7303, %v7527
      %v7529 = vpop.f32.mrb[0].mxu0
      %v7530 = vpop.f32.mrb[0].mxu0
      %v7531 = vadd.f32 %v7306, %v7530
      %v7532 = vpop.f32.mrb[0].mxu0
      %7533 = vmatprep.mubr.bf16.mxu0 0
      %7534 = vmatmul.mubr.bf16.gmra.mrb[0].mxu0 %v7429
      %v7535 = vpop.f32.mrb[0].mxu0
      %v7536 = vadd.f32 %v7311, %v7535
      %v7537 = vpop.f32.mrb[0].mxu0
      %v7538 = vpop.f32.mrb[0].mxu0
      %v7539 = vadd.f32 %v7314, %v7538
      %v7540 = vpop.f32.mrb[0].mxu0
      %7541 = vmatprep.mubr.bf16.mxu0 0
      %7542 = vmatmul.mubr.bf16.gmra.mrb[0].mxu0 %v7431
      %v7543 = vpop.f32.mrb[0].mxu0
      %v7544 = vadd.f32 %v7319, %v7543
      %v7545 = vpop.f32.mrb[0].mxu0
      %v7546 = vpop.f32.mrb[0].mxu0
      %v7547 = vadd.f32 %v7322, %v7546
      %v7548 = vpop.f32.mrb[0].mxu0
      %7549 = vmatprep.mubr.bf16.mxu0 0
      %7550 = vmatmul.mubr.bf16.gmra.mrb[0].mxu0 %v7433
      %v7551 = vpop.f32.mrb[0].mxu0
      %v7552 = vadd.f32 %v7327, %v7551
      %v7553 = vpop.f32.mrb[0].mxu0
      %v7554 = vpop.f32.mrb[0].mxu0
      %v7555 = vadd.f32 %v7330, %v7554
      %v7556 = vpop.f32.mrb[0].mxu0
      %7557 = vmatprep.mubr.bf16.mxu0 0
      %7558 = vmatmul.mubr.bf16.gmra.mrb[0].mxu0 %v7435
      %v7559 = vpop.f32.mrb[0].mxu0
      %v7560 = vadd.f32 %v7335, %v7559
      %v7561 = vpop.f32.mrb[0].mxu0
      %v7562 = vpop.f32.mrb[0].mxu0
      %v7563 = vadd.f32 %v7338, %v7562
      %v7564 = vpop.f32.mrb[0].mxu0
      %7565 = vmatprep.mubr.bf16.mxu0 0
      %7566 = vmatmul.mubr.bf16.gmra.mrb[0].mxu0 %v7437
      %v7567 = vpop.f32.mrb[0].mxu0
      %v7568 = vadd.f32 %v7343, %v7567
      %v7569 = vpop.f32.mrb[0].mxu0
      %v7570 = vpop.f32.mrb[0].mxu0
      %v7571 = vadd.f32 %v7346, %v7570
      %v7572 = vpop.f32.mrb[0].mxu0
      %7573 = vmatprep.mubr.bf16.mxu0 0
      %7574 = vmatmul.mubr.bf16.gmra.mrb[0].mxu0 %v7439
      %v7575 = vpop.f32.mrb[0].mxu0
      %v7576 = vadd.f32 %v7351, %v7575
      %v7577 = vpop.f32.mrb[0].mxu0
      %v7578 = vpop.f32.mrb[0].mxu0
      %v7579 = vadd.f32 %v7354, %v7578
      %v7580 = vpop.f32.mrb[0].mxu0
      %7581 = vmatprep.mubr.bf16.mxu0 0
      %7582 = vmatmul.mubr.bf16.gmra.mrb[0].mxu0 %v7441
      %v7583 = vpop.f32.mrb[0].mxu0
      %v7584 = vadd.f32 %v7359, %v7583
      %v7585 = vpop.f32.mrb[0].mxu0
      %v7586 = vpop.f32.mrb[0].mxu0
      %v7587 = vadd.f32 %v7362, %v7586
      %v7588 = vpop.f32.mrb[0].mxu0
      %7589 = vmatprep.mubr.bf16.mxu0 0
      %7590 = vmatmul.mubr.bf16.gmra.mrb[0].mxu0 %v7443
      %v7591 = vpop.f32.mrb[0].mxu0
      %v7592 = vadd.f32 %v7367, %v7591
      %v7593 = vpop.f32.mrb[0].mxu0
      %v7594 = vpop.f32.mrb[0].mxu0
      %v7595 = vadd.f32 %v7370, %v7594
      %v7596 = vpop.f32.mrb[0].mxu0
      %7597 = vmatprep.mubr.bf16.mxu0 0
      %7598 = vmatmul.mubr.bf16.gmra.mrb[0].mxu0 %v7445
      %v7599 = vpop.f32.mrb[0].mxu0
      %v7600 = vadd.f32 %v7375, %v7599
      %v7601 = vpop.f32.mrb[0].mxu0
      %v7602 = vpop.f32.mrb[0].mxu0
      %v7603 = vadd.f32 %v7378, %v7602
      %v7604 = vpop.f32.mrb[0].mxu0
      %7605 = vmatprep.mubr.bf16.mxu0 0
      %7606 = vmatmul.mubr.bf16.gmra.mrb[0].mxu0 %v7447
      %v7607 = vpop.f32.mrb[0].mxu0
      %v7608 = vadd.f32 %v7383, %v7607
      %v7609 = vpop.f32.mrb[0].mxu0
      %v7610 = vpop.f32.mrb[0].mxu0
      %v7611 = vadd.f32 %v7386, %v7610
      %v7612 = vpop.f32.mrb[0].mxu0
      %7613 = vdwg.mxu0
      %v7615 = vlaneseq
      %v7616 = vshrl.u32 %v7615, 7
      %v7617 = vsub.s32 0, %v7616
      %v7618 = vrot.slane %v4833, %v7617
      %v7620 = vadd.f32 %v7488, %v7618
      %v7621 = vadd.f32 %v7491, %v7618
      %v7622 = vadd.f32 %v7496, %v7618
      %v7623 = vadd.f32 %v7499, %v7618
      %v7624 = vadd.f32 %v7504, %v7618
      %v7625 = vadd.f32 %v7507, %v7618
      %v7626 = vadd.f32 %v7512, %v7618
      %v7627 = vadd.f32 %v7515, %v7618
      %v7628 = vadd.f32 %v7520, %v7618
      %v7629 = vadd.f32 %v7523, %v7618
      %v7630 = vadd.f32 %v7528, %v7618
      %v7631 = vadd.f32 %v7531, %v7618
      %v7632 = vadd.f32 %v7536, %v7618
      %v7633 = vadd.f32 %v7539, %v7618
      %v7634 = vadd.f32 %v7544, %v7618
      %v7635 = vadd.f32 %v7547, %v7618
      %v7636 = vadd.f32 %v7552, %v7618
      %v7637 = vadd.f32 %v7555, %v7618
      %v7638 = vadd.f32 %v7560, %v7618
      %v7639 = vadd.f32 %v7563, %v7618
      %v7640 = vadd.f32 %v7568, %v7618
      %v7641 = vadd.f32 %v7571, %v7618
      %v7642 = vadd.f32 %v7576, %v7618
      %v7643 = vadd.f32 %v7579, %v7618
      %v7644 = vadd.f32 %v7584, %v7618
      %v7645 = vadd.f32 %v7587, %v7618
      %v7646 = vadd.f32 %v7592, %v7618
      %v7647 = vadd.f32 %v7595, %v7618
      %v7648 = vadd.f32 %v7600, %v7618
      %v7649 = vadd.f32 %v7603, %v7618
      %v7650 = vadd.f32 %v7608, %v7618
      %v7651 = vadd.f32 %v7611, %v7618
      %v7652 = vmax.f32 %v7620, 0.0
      %v7653 = vmax.f32 %v7621, 0.0
      %v7654 = vmax.f32 %v7622, 0.0
      %v7655 = vmax.f32 %v7623, 0.0
      %v7656 = vmax.f32 %v7624, 0.0
      %v7657 = vmax.f32 %v7625, 0.0
      %v7658 = vmax.f32 %v7626, 0.0
      %v7659 = vmax.f32 %v7627, 0.0
      %v7660 = vmax.f32 %v7628, 0.0
      %v7661 = vmax.f32 %v7629, 0.0
      %v7662 = vmax.f32 %v7630, 0.0
      %v7663 = vmax.f32 %v7631, 0.0
      %v7664 = vmax.f32 %v7632, 0.0
      %v7665 = vmax.f32 %v7633, 0.0
      %v7666 = vmax.f32 %v7634, 0.0
      %v7667 = vmax.f32 %v7635, 0.0
      %v7668 = vmax.f32 %v7636, 0.0
      %v7669 = vmax.f32 %v7637, 0.0
      %v7670 = vmax.f32 %v7638, 0.0
      %v7671 = vmax.f32 %v7639, 0.0
      %v7672 = vmax.f32 %v7640, 0.0
      %v7673 = vmax.f32 %v7641, 0.0
      %v7674 = vmax.f32 %v7642, 0.0
      %v7675 = vmax.f32 %v7643, 0.0
      %v7676 = vmax.f32 %v7644, 0.0
      %v7677 = vmax.f32 %v7645, 0.0
      %v7678 = vmax.f32 %v7646, 0.0
      %v7679 = vmax.f32 %v7647, 0.0
      %v7680 = vmax.f32 %v7648, 0.0
      %v7681 = vmax.f32 %v7649, 0.0
      %v7682 = vmax.f32 %v7650, 0.0
      %v7683 = vmax.f32 %v7651, 0.0
      %v7684 = vpack.c.bf16 %v7653, %v7652
      %v7685 = vpack.c.bf16 %v7655, %v7654
      %v7686 = vpack.c.bf16 %v7657, %v7656
      %v7687 = vpack.c.bf16 %v7659, %v7658
      %v7688 = vpack.c.bf16 %v7661, %v7660
      %v7689 = vpack.c.bf16 %v7663, %v7662
      %v7690 = vpack.c.bf16 %v7665, %v7664
      %v7691 = vpack.c.bf16 %v7667, %v7666
      %v7692 = vpack.c.bf16 %v7669, %v7668
      %v7693 = vpack.c.bf16 %v7671, %v7670
      %v7694 = vpack.c.bf16 %v7673, %v7672
      %v7695 = vpack.c.bf16 %v7675, %v7674
      %v7696 = vpack.c.bf16 %v7677, %v7676
      %v7697 = vpack.c.bf16 %v7679, %v7678
      %v7698 = vpack.c.bf16 %v7681, %v7680
      %v7699 = vpack.c.bf16 %v7683, %v7682
      %v7701 = vshrl.u32 %v7684, 16
      %v7703 = vrot.slane %v7701, 7
      %v7704 = vshll.u32 %v7684, 16
      %v7706 = vor.u32 %v7703, %v7704
      %v7708 = vshrl.u32 %v7685, 16
      %v7710 = vrot.slane %v7708, 7
      %v7711 = vshll.u32 %v7685, 16
      %v7713 = vor.u32 %v7710, %v7711
      %v7715 = vshrl.u32 %v7686, 16
      %v7717 = vrot.slane %v7715, 7
      %v7718 = vshll.u32 %v7686, 16
      %v7720 = vor.u32 %v7717, %v7718
      %v7722 = vshrl.u32 %v7687, 16
      %v7724 = vrot.slane %v7722, 7
      %v7725 = vshll.u32 %v7687, 16
      %v7727 = vor.u32 %v7724, %v7725
      %v7729 = vshrl.u32 %v7688, 16
      %v7731 = vrot.slane %v7729, 7
      %v7732 = vshll.u32 %v7688, 16
      %v7734 = vor.u32 %v7731, %v7732
      %v7736 = vshrl.u32 %v7689, 16
      %v7738 = vrot.slane %v7736, 7
      %v7739 = vshll.u32 %v7689, 16
      %v7741 = vor.u32 %v7738, %v7739
      %v7743 = vshrl.u32 %v7690, 16
      %v7745 = vrot.slane %v7743, 7
      %v7746 = vshll.u32 %v7690, 16
      %v7748 = vor.u32 %v7745, %v7746
      %v7750 = vshrl.u32 %v7691, 16
      %v7752 = vrot.slane %v7750, 7
      %v7753 = vshll.u32 %v7691, 16
      %v7755 = vor.u32 %v7752, %v7753
      %v7757 = vshrl.u32 %v7692, 16
      %v7759 = vrot.slane %v7757, 7
      %v7760 = vshll.u32 %v7692, 16
      %v7762 = vor.u32 %v7759, %v7760
      %v7764 = vshrl.u32 %v7693, 16
      %v7766 = vrot.slane %v7764, 7
      %v7767 = vshll.u32 %v7693, 16
      %v7769 = vor.u32 %v7766, %v7767
      %v7771 = vshrl.u32 %v7694, 16
      %v7773 = vrot.slane %v7771, 7
      %v7774 = vshll.u32 %v7694, 16
      %v7776 = vor.u32 %v7773, %v7774
      %v7778 = vshrl.u32 %v7695, 16
      %v7780 = vrot.slane %v7778, 7
      %v7781 = vshll.u32 %v7695, 16
      %v7783 = vor.u32 %v7780, %v7781
      %v7785 = vshrl.u32 %v7696, 16
      %v7787 = vrot.slane %v7785, 7
      %v7788 = vshll.u32 %v7696, 16
      %v7790 = vor.u32 %v7787, %v7788
      %v7792 = vshrl.u32 %v7697, 16
      %v7794 = vrot.slane %v7792, 7
      %v7795 = vshll.u32 %v7697, 16
      %v7797 = vor.u32 %v7794, %v7795
      %v7799 = vshrl.u32 %v7698, 16
      %v7801 = vrot.slane %v7799, 7
      %v7802 = vshll.u32 %v7698, 16
      %v7804 = vor.u32 %v7801, %v7802
      %v7806 = vshrl.u32 %v7699, 16
      %v7808 = vrot.slane %v7806, 7
      %v7809 = vshll.u32 %v7699, 16
      %v7811 = vor.u32 %v7808, %v7809
      %v7844 = vsel %vm1122, 0, %v7706
      %v7845 = vsel %vm1122, 0, %v7713
      %v7846 = vsel %vm1122, 0, %v7720
      %v7847 = vsel %vm1122, 0, %v7727
      %v7848 = vsel %vm1122, 0, %v7734
      %v7849 = vsel %vm1122, 0, %v7741
      %v7850 = vsel %vm1122, 0, %v7748
      %v7851 = vsel %vm1122, 0, %v7755
      %v7852 = vsel %vm1122, 0, %v7762
      %v7853 = vsel %vm1122, 0, %v7769
      %v7854 = vsel %vm1122, 0, %v7776
      %v7855 = vsel %vm1122, 0, %v7783
      %v7856 = vsel %vm1122, 0, %v7790
      %v7857 = vsel %vm1122, 0, %v7797
      %v7858 = vsel %vm1122, 0, %v7804
      %v7859 = vsel %vm1122, 0, %v7811
      %v7860 = vsel %vm1122, %v7703, 0
      %v7861 = vsel %vm1122, %v7710, 0
      %v7862 = vsel %vm1122, %v7717, 0
      %v7863 = vsel %vm1122, %v7724, 0
      %v7864 = vsel %vm1122, %v7731, 0
      %v7865 = vsel %vm1122, %v7738, 0
      %v7866 = vsel %vm1122, %v7745, 0
      %v7867 = vsel %vm1122, %v7752, 0
      %v7868 = vsel %vm1122, %v7759, 0
      %v7869 = vsel %vm1122, %v7766, 0
      %v7870 = vsel %vm1122, %v7773, 0
      %v7871 = vsel %vm1122, %v7780, 0
      %v7872 = vsel %vm1122, %v7787, 0
      %v7873 = vsel %vm1122, %v7794, 0
      %v7874 = vsel %vm1122, %v7801, 0
      %v7875 = vsel %vm1122, %v7808, 0
      %v7877 = vshrl.u32 %v7844, 16
      %v7879 = vshll.u32 %v7844, 16
      %v7881 = vrot.slane %v7879, 1
      %v7882 = vor.u32 %v7877, %v7881
      %v7884 = vshll.u32 %v7860, 16
      %v7886 = vrot.slane %v7884, 1
      %v7887 = vsel %vm5407, %v7882, %v7886
      %v7889 = vshrl.u32 %v7845, 16
      %v7891 = vshll.u32 %v7845, 16
      %v7893 = vrot.slane %v7891, 1
      %v7894 = vor.u32 %v7889, %v7893
      %v7896 = vshll.u32 %v7861, 16
      %v7898 = vrot.slane %v7896, 1
      %v7899 = vsel %vm5407, %v7894, %v7898
      %v7901 = vshrl.u32 %v7846, 16
      %v7903 = vshll.u32 %v7846, 16
      %v7905 = vrot.slane %v7903, 1
      %v7906 = vor.u32 %v7901, %v7905
      %v7908 = vshll.u32 %v7862, 16
      %v7910 = vrot.slane %v7908, 1
      %v7911 = vsel %vm5407, %v7906, %v7910
      %v7913 = vshrl.u32 %v7847, 16
      %v7915 = vshll.u32 %v7847, 16
      %v7917 = vrot.slane %v7915, 1
      %v7918 = vor.u32 %v7913, %v7917
      %v7920 = vshll.u32 %v7863, 16
      %v7922 = vrot.slane %v7920, 1
      %v7923 = vsel %vm5407, %v7918, %v7922
      %v7925 = vshrl.u32 %v7848, 16
      %v7927 = vshll.u32 %v7848, 16
      %v7929 = vrot.slane %v7927, 1
      %v7930 = vor.u32 %v7925, %v7929
      %v7932 = vshll.u32 %v7864, 16
      %v7934 = vrot.slane %v7932, 1
      %v7935 = vsel %vm5407, %v7930, %v7934
      %v7937 = vshrl.u32 %v7849, 16
      %v7939 = vshll.u32 %v7849, 16
      %v7941 = vrot.slane %v7939, 1
      %v7942 = vor.u32 %v7937, %v7941
      %v7944 = vshll.u32 %v7865, 16
      %v7946 = vrot.slane %v7944, 1
      %v7947 = vsel %vm5407, %v7942, %v7946
      %v7949 = vshrl.u32 %v7850, 16
      %v7951 = vshll.u32 %v7850, 16
      %v7953 = vrot.slane %v7951, 1
      %v7954 = vor.u32 %v7949, %v7953
      %v7956 = vshll.u32 %v7866, 16
      %v7958 = vrot.slane %v7956, 1
      %v7959 = vsel %vm5407, %v7954, %v7958
      %v7961 = vshrl.u32 %v7851, 16
      %v7963 = vshll.u32 %v7851, 16
      %v7965 = vrot.slane %v7963, 1
      %v7966 = vor.u32 %v7961, %v7965
      %v7968 = vshll.u32 %v7867, 16
      %v7970 = vrot.slane %v7968, 1
      %v7971 = vsel %vm5407, %v7966, %v7970
      %v7973 = vshrl.u32 %v7852, 16
      %v7975 = vshll.u32 %v7852, 16
      %v7977 = vrot.slane %v7975, 1
      %v7978 = vor.u32 %v7973, %v7977
      %v7980 = vshll.u32 %v7868, 16
      %v7982 = vrot.slane %v7980, 1
      %v7983 = vsel %vm5407, %v7978, %v7982
      %v7985 = vshrl.u32 %v7853, 16
      %v7987 = vshll.u32 %v7853, 16
      %v7989 = vrot.slane %v7987, 1
      %v7990 = vor.u32 %v7985, %v7989
      %v7992 = vshll.u32 %v7869, 16
      %v7994 = vrot.slane %v7992, 1
      %v7995 = vsel %vm5407, %v7990, %v7994
      %v7997 = vshrl.u32 %v7854, 16
      %v7999 = vshll.u32 %v7854, 16
      %v8001 = vrot.slane %v7999, 1
      %v8002 = vor.u32 %v7997, %v8001
      %v8004 = vshll.u32 %v7870, 16
      %v8006 = vrot.slane %v8004, 1
      %v8007 = vsel %vm5407, %v8002, %v8006
      %v8009 = vshrl.u32 %v7855, 16
      %v8011 = vshll.u32 %v7855, 16
      %v8013 = vrot.slane %v8011, 1
      %v8014 = vor.u32 %v8009, %v8013
      %v8016 = vshll.u32 %v7871, 16
      %v8018 = vrot.slane %v8016, 1
      %v8019 = vsel %vm5407, %v8014, %v8018
      %v8021 = vshrl.u32 %v7856, 16
      %v8023 = vshll.u32 %v7856, 16
      %v8025 = vrot.slane %v8023, 1
      %v8026 = vor.u32 %v8021, %v8025
      %v8028 = vshll.u32 %v7872, 16
      %v8030 = vrot.slane %v8028, 1
      %v8031 = vsel %vm5407, %v8026, %v8030
      %v8033 = vshrl.u32 %v7857, 16
      %v8035 = vshll.u32 %v7857, 16
      %v8037 = vrot.slane %v8035, 1
      %v8038 = vor.u32 %v8033, %v8037
      %v8040 = vshll.u32 %v7873, 16
      %v8042 = vrot.slane %v8040, 1
      %v8043 = vsel %vm5407, %v8038, %v8042
      %v8045 = vshrl.u32 %v7858, 16
      %v8047 = vshll.u32 %v7858, 16
      %v8049 = vrot.slane %v8047, 1
      %v8050 = vor.u32 %v8045, %v8049
      %v8052 = vshll.u32 %v7874, 16
      %v8054 = vrot.slane %v8052, 1
      %v8055 = vsel %vm5407, %v8050, %v8054
      %8056 = vrot.lane.b32.xlu0 %v7887, 8
      %v8057 = vpop.permute.xlu0 %8056
      %8058 = vrot.lane.b32.xlu0 %v7899, 8
      %v8059 = vpop.permute.xlu0 %8058
      %8060 = vrot.lane.b32.xlu0 %v7911, 8
      %v8061 = vpop.permute.xlu0 %8060
      %8062 = vrot.lane.b32.xlu0 %v7923, 8
      %v8063 = vpop.permute.xlu0 %8062
      %8064 = vrot.lane.b32.xlu0 %v7935, 8
      %v8065 = vpop.permute.xlu0 %8064
      %8066 = vrot.lane.b32.xlu0 %v7947, 8
      %v8067 = vpop.permute.xlu0 %8066
      %8068 = vrot.lane.b32.xlu0 %v7959, 8
      %v8069 = vpop.permute.xlu0 %8068
      %8070 = vrot.lane.b32.xlu0 %v7971, 8
      %v8071 = vpop.permute.xlu0 %8070
      %8072 = vrot.lane.b32.xlu0 %v7983, 8
      %v8073 = vpop.permute.xlu0 %8072
      %8074 = vrot.lane.b32.xlu0 %v7995, 8
      %v8075 = vpop.permute.xlu0 %8074
      %8076 = vrot.lane.b32.xlu0 %v8007, 8
      %v8077 = vpop.permute.xlu0 %8076
      %8078 = vrot.lane.b32.xlu0 %v8019, 8
      %v8079 = vpop.permute.xlu0 %8078
      %8080 = vrot.lane.b32.xlu0 %v8031, 8
      %v8081 = vpop.permute.xlu0 %8080
      %8082 = vrot.lane.b32.xlu0 %v8043, 8
      %v8083 = vpop.permute.xlu0 %8082
      %8084 = vrot.lane.b32.xlu0 %v8055, 8
      %v8085 = vpop.permute.xlu0 %8084
      %v8116 = vrot.slane %v7844, 1
      %v8117 = vrot.slane %v7860, 1
      %v8118 = vsel %vm5664, %v8116, %v8117
      %v8119 = vrot.slane %v7845, 1
      %v8120 = vrot.slane %v7861, 1
      %v8121 = vsel %vm5664, %v8119, %v8120
      %v8122 = vrot.slane %v7846, 1
      %v8123 = vrot.slane %v7862, 1
      %v8124 = vsel %vm5664, %v8122, %v8123
      %v8125 = vrot.slane %v7847, 1
      %v8126 = vrot.slane %v7863, 1
      %v8127 = vsel %vm5664, %v8125, %v8126
      %v8128 = vrot.slane %v7848, 1
      %v8129 = vrot.slane %v7864, 1
      %v8130 = vsel %vm5664, %v8128, %v8129
      %v8131 = vrot.slane %v7849, 1
      %v8132 = vrot.slane %v7865, 1
      %v8133 = vsel %vm5664, %v8131, %v8132
      %v8134 = vrot.slane %v7850, 1
      %v8135 = vrot.slane %v7866, 1
      %v8136 = vsel %vm5664, %v8134, %v8135
      %v8137 = vrot.slane %v7851, 1
      %v8138 = vrot.slane %v7867, 1
      %v8139 = vsel %vm5664, %v8137, %v8138
      %v8140 = vrot.slane %v7852, 1
      %v8141 = vrot.slane %v7868, 1
      %v8142 = vsel %vm5664, %v8140, %v8141
      %v8143 = vrot.slane %v7853, 1
      %v8144 = vrot.slane %v7869, 1
      %v8145 = vsel %vm5664, %v8143, %v8144
      %v8146 = vrot.slane %v7854, 1
      %v8147 = vrot.slane %v7870, 1
      %v8148 = vsel %vm5664, %v8146, %v8147
      %v8149 = vrot.slane %v7855, 1
      %v8150 = vrot.slane %v7871, 1
      %v8151 = vsel %vm5664, %v8149, %v8150
      %v8152 = vrot.slane %v7856, 1
      %v8153 = vrot.slane %v7872, 1
      %v8154 = vsel %vm5664, %v8152, %v8153
      %v8155 = vrot.slane %v7857, 1
      %v8156 = vrot.slane %v7873, 1
      %v8157 = vsel %vm5664, %v8155, %v8156
      %v8158 = vrot.slane %v7858, 1
      %v8159 = vrot.slane %v7874, 1
      %v8160 = vsel %vm5664, %v8158, %v8159
      %8161 = vrot.lane.b32.xlu0 %v8118, 16
      %v8162 = vpop.permute.xlu0 %8161
      %8163 = vrot.lane.b32.xlu0 %v8121, 16
      %v8164 = vpop.permute.xlu0 %8163
      %8165 = vrot.lane.b32.xlu0 %v8124, 16
      %v8166 = vpop.permute.xlu0 %8165
      %8167 = vrot.lane.b32.xlu0 %v8127, 16
      %v8168 = vpop.permute.xlu0 %8167
      %8169 = vrot.lane.b32.xlu0 %v8130, 16
      %v8170 = vpop.permute.xlu0 %8169
      %8171 = vrot.lane.b32.xlu0 %v8133, 16
      %v8172 = vpop.permute.xlu0 %8171
      %8173 = vrot.lane.b32.xlu0 %v8136, 16
      %v8174 = vpop.permute.xlu0 %8173
      %8175 = vrot.lane.b32.xlu0 %v8139, 16
      %v8176 = vpop.permute.xlu0 %8175
      %8177 = vrot.lane.b32.xlu0 %v8142, 16
      %v8178 = vpop.permute.xlu0 %8177
      %8179 = vrot.lane.b32.xlu0 %v8145, 16
      %v8180 = vpop.permute.xlu0 %8179
      %8181 = vrot.lane.b32.xlu0 %v8148, 16
      %v8182 = vpop.permute.xlu0 %8181
      %8183 = vrot.lane.b32.xlu0 %v8151, 16
      %v8184 = vpop.permute.xlu0 %8183
      %8185 = vrot.lane.b32.xlu0 %v8154, 16
      %v8186 = vpop.permute.xlu0 %8185
      %8187 = vrot.lane.b32.xlu0 %v8157, 16
      %v8188 = vpop.permute.xlu0 %8187
      %8189 = vrot.lane.b32.xlu0 %v8160, 16
      %v8190 = vpop.permute.xlu0 %8189
      %8192 = vrot.lane.b32.xlu0 %v7844, 24
      %v8193 = vpop.permute.xlu0 %8192
      %8194 = vrot.lane.b32.xlu0 %v7845, 24
      %v8195 = vpop.permute.xlu0 %8194
      %8196 = vrot.lane.b32.xlu0 %v7846, 24
      %v8197 = vpop.permute.xlu0 %8196
      %8198 = vrot.lane.b32.xlu0 %v7847, 24
      %v8199 = vpop.permute.xlu0 %8198
      %8200 = vrot.lane.b32.xlu0 %v7848, 24
      %v8201 = vpop.permute.xlu0 %8200
      %8202 = vrot.lane.b32.xlu0 %v7849, 24
      %v8203 = vpop.permute.xlu0 %8202
      %8204 = vrot.lane.b32.xlu0 %v7850, 24
      %v8205 = vpop.permute.xlu0 %8204
      %8206 = vrot.lane.b32.xlu0 %v7851, 24
      %v8207 = vpop.permute.xlu0 %8206
      %8208 = vrot.lane.b32.xlu0 %v7852, 24
      %v8209 = vpop.permute.xlu0 %8208
      %8210 = vrot.lane.b32.xlu0 %v7853, 24
      %v8211 = vpop.permute.xlu0 %8210
      %8212 = vrot.lane.b32.xlu0 %v7854, 24
      %v8213 = vpop.permute.xlu0 %8212
      %8214 = vrot.lane.b32.xlu0 %v7855, 24
      %v8215 = vpop.permute.xlu0 %8214
      %8216 = vrot.lane.b32.xlu0 %v7856, 24
      %v8217 = vpop.permute.xlu0 %8216
      %8218 = vrot.lane.b32.xlu0 %v7857, 24
      %v8219 = vpop.permute.xlu0 %8218
      %8220 = vrot.lane.b32.xlu0 %v7858, 24
      %v8221 = vpop.permute.xlu0 %8220
      %8222 = vrot.lane.b32.xlu0 %v7859, 24
      %v8223 = vpop.permute.xlu0 %8222
      %v8225 = vshrl.u32 %v7859, 16
      %v8227 = vshll.u32 %v7859, 16
      %v8229 = vrot.slane %v8227, 1
      %v8230 = vor.u32 %v8225, %v8229
      %v8232 = vshll.u32 %v7875, 16
      %v8234 = vrot.slane %v8232, 1
      %v8235 = vsel %vm5407, %v8230, %v8234
      %8236 = vrot.lane.b32.xlu0 %v7887, 32
      %v8237 = vpop.permute.xlu0 %8236
      %8238 = vrot.lane.b32.xlu0 %v7899, 32
      %v8239 = vpop.permute.xlu0 %8238
      %8240 = vrot.lane.b32.xlu0 %v7911, 32
      %v8241 = vpop.permute.xlu0 %8240
      %8242 = vrot.lane.b32.xlu0 %v7923, 32
      %v8243 = vpop.permute.xlu0 %8242
      %8244 = vrot.lane.b32.xlu0 %v7935, 32
      %v8245 = vpop.permute.xlu0 %8244
      %8246 = vrot.lane.b32.xlu0 %v7947, 32
      %v8247 = vpop.permute.xlu0 %8246
      %8248 = vrot.lane.b32.xlu0 %v7959, 32
      %v8249 = vpop.permute.xlu0 %8248
      %8250 = vrot.lane.b32.xlu0 %v7971, 32
      %v8251 = vpop.permute.xlu0 %8250
      %8252 = vrot.lane.b32.xlu0 %v7983, 32
      %v8253 = vpop.permute.xlu0 %8252
      %8254 = vrot.lane.b32.xlu0 %v7995, 32
      %v8255 = vpop.permute.xlu0 %8254
      %8256 = vrot.lane.b32.xlu0 %v8007, 32
      %v8257 = vpop.permute.xlu0 %8256
      %8258 = vrot.lane.b32.xlu0 %v8019, 32
      %v8259 = vpop.permute.xlu0 %8258
      %8260 = vrot.lane.b32.xlu0 %v8031, 32
      %v8261 = vpop.permute.xlu0 %8260
      %8262 = vrot.lane.b32.xlu0 %v8043, 32
      %v8263 = vpop.permute.xlu0 %8262
      %8264 = vrot.lane.b32.xlu0 %v8055, 32
      %v8265 = vpop.permute.xlu0 %8264
      %8266 = vrot.lane.b32.xlu0 %v8235, 32
      %v8267 = vpop.permute.xlu0 %8266
      %v8269 = vrot.slane %v7859, 1
      %v8270 = vrot.slane %v7875, 1
      %v8271 = vsel %vm5664, %v8269, %v8270
      %8272 = vrot.lane.b32.xlu0 %v8118, 40
      %v8273 = vpop.permute.xlu0 %8272
      %8274 = vrot.lane.b32.xlu0 %v8121, 40
      %v8275 = vpop.permute.xlu0 %8274
      %8276 = vrot.lane.b32.xlu0 %v8124, 40
      %v8277 = vpop.permute.xlu0 %8276
      %8278 = vrot.lane.b32.xlu0 %v8127, 40
      %v8279 = vpop.permute.xlu0 %8278
      %8280 = vrot.lane.b32.xlu0 %v8130, 40
      %v8281 = vpop.permute.xlu0 %8280
      %8282 = vrot.lane.b32.xlu0 %v8133, 40
      %v8283 = vpop.permute.xlu0 %8282
      %8284 = vrot.lane.b32.xlu0 %v8136, 40
      %v8285 = vpop.permute.xlu0 %8284
      %8286 = vrot.lane.b32.xlu0 %v8139, 40
      %v8287 = vpop.permute.xlu0 %8286
      %8288 = vrot.lane.b32.xlu0 %v8142, 40
      %v8289 = vpop.permute.xlu0 %8288
      %8290 = vrot.lane.b32.xlu0 %v8145, 40
      %v8291 = vpop.permute.xlu0 %8290
      %8292 = vrot.lane.b32.xlu0 %v8148, 40
      %v8293 = vpop.permute.xlu0 %8292
      %8294 = vrot.lane.b32.xlu0 %v8151, 40
      %v8295 = vpop.permute.xlu0 %8294
      %8296 = vrot.lane.b32.xlu0 %v8154, 40
      %v8297 = vpop.permute.xlu0 %8296
      %8298 = vrot.lane.b32.xlu0 %v8157, 40
      %v8299 = vpop.permute.xlu0 %8298
      %8300 = vrot.lane.b32.xlu0 %v8160, 40
      %v8301 = vpop.permute.xlu0 %8300
      %8302 = vrot.lane.b32.xlu0 %v8271, 40
      %v8303 = vpop.permute.xlu0 %8302
      %8304 = vrot.lane.b32.xlu0 %v7845, 48
      %v8305 = vpop.permute.xlu0 %8304
      %8306 = vrot.lane.b32.xlu0 %v7846, 48
      %v8307 = vpop.permute.xlu0 %8306
      %8308 = vrot.lane.b32.xlu0 %v7847, 48
      %v8309 = vpop.permute.xlu0 %8308
      %8310 = vrot.lane.b32.xlu0 %v7848, 48
      %v8311 = vpop.permute.xlu0 %8310
      %8312 = vrot.lane.b32.xlu0 %v7849, 48
      %v8313 = vpop.permute.xlu0 %8312
      %8314 = vrot.lane.b32.xlu0 %v7850, 48
      %v8315 = vpop.permute.xlu0 %8314
      %8316 = vrot.lane.b32.xlu0 %v7851, 48
      %v8317 = vpop.permute.xlu0 %8316
      %8318 = vrot.lane.b32.xlu0 %v7852, 48
      %v8319 = vpop.permute.xlu0 %8318
      %8320 = vrot.lane.b32.xlu0 %v7853, 48
      %v8321 = vpop.permute.xlu0 %8320
      %8322 = vrot.lane.b32.xlu0 %v7854, 48
      %v8323 = vpop.permute.xlu0 %8322
      %8324 = vrot.lane.b32.xlu0 %v7855, 48
      %v8325 = vpop.permute.xlu0 %8324
      %8326 = vrot.lane.b32.xlu0 %v7856, 48
      %v8327 = vpop.permute.xlu0 %8326
      %8328 = vrot.lane.b32.xlu0 %v7857, 48
      %v8329 = vpop.permute.xlu0 %8328
      %8330 = vrot.lane.b32.xlu0 %v7858, 48
      %v8331 = vpop.permute.xlu0 %8330
      %8332 = vrot.lane.b32.xlu0 %v7859, 48
      %v8333 = vpop.permute.xlu0 %8332
      %8334 = vrot.lane.b32.xlu0 %v7899, 56
      %v8335 = vpop.permute.xlu0 %8334
      %8336 = vrot.lane.b32.xlu0 %v7911, 56
      %v8337 = vpop.permute.xlu0 %8336
      %8338 = vrot.lane.b32.xlu0 %v7923, 56
      %v8339 = vpop.permute.xlu0 %8338
      %8340 = vrot.lane.b32.xlu0 %v7935, 56
      %v8341 = vpop.permute.xlu0 %8340
      %8342 = vrot.lane.b32.xlu0 %v7947, 56
      %v8343 = vpop.permute.xlu0 %8342
      %8344 = vrot.lane.b32.xlu0 %v7959, 56
      %v8345 = vpop.permute.xlu0 %8344
      %8346 = vrot.lane.b32.xlu0 %v7971, 56
      %v8347 = vpop.permute.xlu0 %8346
      %8348 = vrot.lane.b32.xlu0 %v7983, 56
      %v8349 = vpop.permute.xlu0 %8348
      %8350 = vrot.lane.b32.xlu0 %v7995, 56
      %v8351 = vpop.permute.xlu0 %8350
      %8352 = vrot.lane.b32.xlu0 %v8007, 56
      %v8353 = vpop.permute.xlu0 %8352
      %8354 = vrot.lane.b32.xlu0 %v8019, 56
      %v8355 = vpop.permute.xlu0 %8354
      %8356 = vrot.lane.b32.xlu0 %v8031, 56
      %v8357 = vpop.permute.xlu0 %8356
      %8358 = vrot.lane.b32.xlu0 %v8043, 56
      %v8359 = vpop.permute.xlu0 %8358
      %8360 = vrot.lane.b32.xlu0 %v8055, 56
      %v8361 = vpop.permute.xlu0 %8360
      %8362 = vrot.lane.b32.xlu0 %v8235, 56
      %v8363 = vpop.permute.xlu0 %8362
      %8364 = vrot.lane.b32.xlu0 %v8121, 64
      %v8365 = vpop.permute.xlu0 %8364
      %8366 = vrot.lane.b32.xlu0 %v8124, 64
      %v8367 = vpop.permute.xlu0 %8366
      %8368 = vrot.lane.b32.xlu0 %v8127, 64
      %v8369 = vpop.permute.xlu0 %8368
      %8370 = vrot.lane.b32.xlu0 %v8130, 64
      %v8371 = vpop.permute.xlu0 %8370
      %8372 = vrot.lane.b32.xlu0 %v8133, 64
      %v8373 = vpop.permute.xlu0 %8372
      %8374 = vrot.lane.b32.xlu0 %v8136, 64
      %v8375 = vpop.permute.xlu0 %8374
      %8376 = vrot.lane.b32.xlu0 %v8139, 64
      %v8377 = vpop.permute.xlu0 %8376
      %8378 = vrot.lane.b32.xlu0 %v8142, 64
      %v8379 = vpop.permute.xlu0 %8378
      %8380 = vrot.lane.b32.xlu0 %v8145, 64
      %v8381 = vpop.permute.xlu0 %8380
      %8382 = vrot.lane.b32.xlu0 %v8148, 64
      %v8383 = vpop.permute.xlu0 %8382
      %8384 = vrot.lane.b32.xlu0 %v8151, 64
      %v8385 = vpop.permute.xlu0 %8384
      %8386 = vrot.lane.b32.xlu0 %v8154, 64
      %v8387 = vpop.permute.xlu0 %8386
      %8388 = vrot.lane.b32.xlu0 %v8157, 64
      %v8389 = vpop.permute.xlu0 %8388
      %8390 = vrot.lane.b32.xlu0 %v8160, 64
      %v8391 = vpop.permute.xlu0 %8390
      %8392 = vrot.lane.b32.xlu0 %v8271, 64
      %v8393 = vpop.permute.xlu0 %8392
      %v8395 = vsel %vm5954, %v7844, %v8057
      %v8397 = vsel %vm5954, %v7845, %v8059
      %v8399 = vsel %vm5954, %v7846, %v8061
      %v8401 = vsel %vm5954, %v7847, %v8063
      %v8403 = vsel %vm5954, %v7848, %v8065
      %v8405 = vsel %vm5954, %v7849, %v8067
      %v8407 = vsel %vm5954, %v7850, %v8069
      %v8409 = vsel %vm5954, %v7851, %v8071
      %v8411 = vsel %vm5954, %v7852, %v8073
      %v8413 = vsel %vm5954, %v7853, %v8075
      %v8415 = vsel %vm5954, %v7854, %v8077
      %v8417 = vsel %vm5954, %v7855, %v8079
      %v8419 = vsel %vm5954, %v7856, %v8081
      %v8421 = vsel %vm5954, %v7857, %v8083
      %v8423 = vsel %vm5954, %v7858, %v8085
      %v8425 = vsel %vm2828, %v8395, %v8162
      %v8427 = vsel %vm2828, %v8397, %v8164
      %v8429 = vsel %vm2828, %v8399, %v8166
      %v8431 = vsel %vm2828, %v8401, %v8168
      %v8433 = vsel %vm2828, %v8403, %v8170
      %v8435 = vsel %vm2828, %v8405, %v8172
      %v8437 = vsel %vm2828, %v8407, %v8174
      %v8439 = vsel %vm2828, %v8409, %v8176
      %v8441 = vsel %vm2828, %v8411, %v8178
      %v8443 = vsel %vm2828, %v8413, %v8180
      %v8445 = vsel %vm2828, %v8415, %v8182
      %v8447 = vsel %vm2828, %v8417, %v8184
      %v8449 = vsel %vm2828, %v8419, %v8186
      %v8451 = vsel %vm2828, %v8421, %v8188
      %v8453 = vsel %vm2828, %v8423, %v8190
      %v8455 = vsel %vm6019, %v5988, %v8193
      %v8457 = vsel %vm6019, %v8425, %v8195
      %v8459 = vsel %vm6019, %v8427, %v8197
      %v8461 = vsel %vm6019, %v8429, %v8199
      %v8463 = vsel %vm6019, %v8431, %v8201
      %v8465 = vsel %vm6019, %v8433, %v8203
      %v8467 = vsel %vm6019, %v8435, %v8205
      %v8469 = vsel %vm6019, %v8437, %v8207
      %v8471 = vsel %vm6019, %v8439, %v8209
      %v8473 = vsel %vm6019, %v8441, %v8211
      %v8475 = vsel %vm6019, %v8443, %v8213
      %v8477 = vsel %vm6019, %v8445, %v8215
      %v8479 = vsel %vm6019, %v8447, %v8217
      %v8481 = vsel %vm6019, %v8449, %v8219
      %v8483 = vsel %vm6019, %v8451, %v8221
      %v8485 = vsel %vm6019, %v8453, %v8223
      %v8487 = vsel %vm1229, %v8455, %v8237
      %v8489 = vsel %vm1229, %v8457, %v8239
      %v8491 = vsel %vm1229, %v8459, %v8241
      %v8493 = vsel %vm1229, %v8461, %v8243
      %v8495 = vsel %vm1229, %v8463, %v8245
      %v8497 = vsel %vm1229, %v8465, %v8247
      %v8499 = vsel %vm1229, %v8467, %v8249
      %v8501 = vsel %vm1229, %v8469, %v8251
      %v8503 = vsel %vm1229, %v8471, %v8253
      %v8505 = vsel %vm1229, %v8473, %v8255
      %v8507 = vsel %vm1229, %v8475, %v8257
      %v8509 = vsel %vm1229, %v8477, %v8259
      %v8511 = vsel %vm1229, %v8479, %v8261
      %v8513 = vsel %vm1229, %v8481, %v8263
      %v8515 = vsel %vm1229, %v8483, %v8265
      %v8517 = vsel %vm1229, %v8485, %v8267
      %v8519 = vsel %vm6084, %v8487, %v8273
      %v8521 = vsel %vm6084, %v8489, %v8275
      %v8523 = vsel %vm6084, %v8491, %v8277
      %v8525 = vsel %vm6084, %v8493, %v8279
      %v8527 = vsel %vm6084, %v8495, %v8281
      %v8529 = vsel %vm6084, %v8497, %v8283
      %v8531 = vsel %vm6084, %v8499, %v8285
      %v8533 = vsel %vm6084, %v8501, %v8287
      %v8535 = vsel %vm6084, %v8503, %v8289
      %v8537 = vsel %vm6084, %v8505, %v8291
      %v8539 = vsel %vm6084, %v8507, %v8293
      %v8541 = vsel %vm6084, %v8509, %v8295
      %v8543 = vsel %vm6084, %v8511, %v8297
      %v8545 = vsel %vm6084, %v8513, %v8299
      %v8547 = vsel %vm6084, %v8515, %v8301
      %v8549 = vsel %vm6084, %v8517, %v8303
      %v8551 = vsel %vm3239, %v8519, %v8305
      %v8553 = vsel %vm3239, %v8521, %v8307
      %v8555 = vsel %vm3239, %v8523, %v8309
      %v8557 = vsel %vm3239, %v8525, %v8311
      %v8559 = vsel %vm3239, %v8527, %v8313
      %v8561 = vsel %vm3239, %v8529, %v8315
      %v8563 = vsel %vm3239, %v8531, %v8317
      %v8565 = vsel %vm3239, %v8533, %v8319
      %v8567 = vsel %vm3239, %v8535, %v8321
      %v8569 = vsel %vm3239, %v8537, %v8323
      %v8571 = vsel %vm3239, %v8539, %v8325
      %v8573 = vsel %vm3239, %v8541, %v8327
      %v8575 = vsel %vm3239, %v8543, %v8329
      %v8577 = vsel %vm3239, %v8545, %v8331
      %v8579 = vsel %vm3239, %v8547, %v8333
      %v8580 = vsel %vm3239, %v8549, %v5889
      %v8582 = vsel %vm6149, %v8551, %v8335
      %v8584 = vsel %vm6149, %v8553, %v8337
      %v8586 = vsel %vm6149, %v8555, %v8339
      %v8588 = vsel %vm6149, %v8557, %v8341
      %v8590 = vsel %vm6149, %v8559, %v8343
      %v8592 = vsel %vm6149, %v8561, %v8345
      %v8594 = vsel %vm6149, %v8563, %v8347
      %v8596 = vsel %vm6149, %v8565, %v8349
      %v8598 = vsel %vm6149, %v8567, %v8351
      %v8600 = vsel %vm6149, %v8569, %v8353
      %v8602 = vsel %vm6149, %v8571, %v8355
      %v8604 = vsel %vm6149, %v8573, %v8357
      %v8606 = vsel %vm6149, %v8575, %v8359
      %v8608 = vsel %vm6149, %v8577, %v8361
      %v8610 = vsel %vm6149, %v8579, %v8363
      %v8611 = vsel %vm6149, %v8580, %v5921
      %v8613 = vsel %vm1238, %v8582, %v8365
      %v8615 = vsel %vm1238, %v8584, %v8367
      %v8617 = vsel %vm1238, %v8586, %v8369
      %v8619 = vsel %vm1238, %v8588, %v8371
      %v8621 = vsel %vm1238, %v8590, %v8373
      %v8623 = vsel %vm1238, %v8592, %v8375
      %v8625 = vsel %vm1238, %v8594, %v8377
      %v8627 = vsel %vm1238, %v8596, %v8379
      %v8629 = vsel %vm1238, %v8598, %v8381
      %v8631 = vsel %vm1238, %v8600, %v8383
      %v8633 = vsel %vm1238, %v8602, %v8385
      %v8635 = vsel %vm1238, %v8604, %v8387
      %v8637 = vsel %vm1238, %v8606, %v8389
      %v8639 = vsel %vm1238, %v8608, %v8391
      %v8641 = vsel %vm1238, %v8610, %v8393
      %v8642 = vsel %vm1238, %v8611, %v5953
      %v8644 = vlaneseq
      %v8645 = vshrl.u32 %v8644, 7
      %v8646 = vsub.s32 0, %v8645
      %v8647 = vrot.slane %v4843, %v8646
      %v8658 = vunpack.c.l.b16 %v4834
      %v8659 = vunpack.c.l.b16 %v4835
      %v8660 = vunpack.c.l.b16 %v4836
      %v8661 = vunpack.c.l.b16 %v4837
      %v8662 = vunpack.c.l.b16 %v4838
      %v8663 = vunpack.c.l.b16 %v4839
      %v8664 = vunpack.c.l.b16 %v4840
      %v8665 = vunpack.c.l.b16 %v4841
      %v8666 = vunpack.c.l.b16 %v4842
      %v8667 = vpack.c.b16 %v8659, %v8658
      %v8668 = vpack.c.b16 %v8661, %v8660
      %v8669 = vpack.c.b16 %v8663, %v8662
      %v8670 = vpack.c.b16 %v8665, %v8664
      %v8671 = vpack.c.b16 %v8666, %v8666
      %v8676 = vsel %vm7416, %v8613, 0
      %v8678 = vsel %vm7416, %v8615, 0
      %v8680 = vsel %vm7416, %v8617, 0
      %v8682 = vsel %vm7416, %v8619, 0
      %v8684 = vsel %vm7416, %v8621, 0
      %v8686 = vsel %vm7416, %v8623, 0
      %v8688 = vsel %vm7416, %v8625, 0
      %v8690 = vsel %vm7416, %v8627, 0
      %v8692 = vsel %vm7416, %v8629, 0
      %v8694 = vsel %vm7416, %v8631, 0
      %v8696 = vsel %vm7416, %v8633, 0
      %v8698 = vsel %vm7416, %v8635, 0
      %v8700 = vsel %vm7416, %v8637, 0
      %v8702 = vsel %vm7416, %v8639, 0
      %v8704 = vsel %vm7416, %v8641, 0
      %v8706 = vsel %vm7416, %v8642, 0
      %v8709 = vsel %vm7449, %v8671, 0
      %8711 = vmatprep.subr.bf16.mxu0 0
      %8712 = vmatpush1.bf16.msra.mxu0 %v8667
      %8713 = vmatprep.subr.bf16.mxu0 0
      %8714 = vmatpush1.bf16.msra.mxu0 %v8668
      %8715 = vmatprep.subr.bf16.mxu0 0
      %8716 = vmatpush1.bf16.msra.mxu0 %v8669
      %8717 = vmatprep.subr.bf16.mxu0 0
      %8718 = vmatpush1.bf16.msra.mxu0 %v8670
      %8719 = vmatprep.subr.bf16.mxu0 0
      %8720 = vmatpush1.bf16.msra.mxu0 %v8709
      %8721 = vmatprep.subr.bf16.mxu0 0
      %8722 = vmatpush1.bf16.msra.mxu0 0
      %8723 = vmatprep.subr.bf16.mxu0 0
      %8724 = vmatpush1.bf16.msra.mxu0 0
      %8725 = vmatprep.subr.bf16.mxu0 0
      %8726 = vmatpush1.bf16.msra.mxu0 0
      %8727 = vmatprep.subr.bf16.mxu0 0
      %8728 = vmatpush1.bf16.msra.mxu0 0
      %8729 = vmatprep.subr.bf16.mxu0 0
      %8730 = vmatpush1.bf16.msra.mxu0 0
      %8731 = vmatprep.subr.bf16.mxu0 0
      %8732 = vmatpush1.bf16.msra.mxu0 0
      %8733 = vmatprep.subr.bf16.mxu0 0
      %8734 = vmatpush1.bf16.msra.mxu0 0
      %8735 = vmatprep.subr.bf16.mxu0 0
      %8736 = vmatpush1.bf16.msra.mxu0 0
      %8737 = vmatprep.subr.bf16.mxu0 0
      %8738 = vmatpush1.bf16.msra.mxu0 0
      %8739 = vmatprep.subr.bf16.mxu0 0
      %8740 = vmatpush1.bf16.msra.mxu0 0
      %8741 = vmatprep.subr.bf16.mxu0 0
      %8742 = vmatpush1.bf16.msra.mxu0 0
      %8743 = vmatprep.mubr.bf16.mxu0 0
      %8744 = vmatmul.mubr.bf16.gmra.mrb[0].mxu0 %v8676
      %v8745 = vpop.f32.mrb[0].mxu0
      %v8746 = vadd.f32 %v8647, %v8745
      %v8747 = vpop.f32.mrb[0].mxu0
      %v8748 = vpop.f32.mrb[0].mxu0
      %v8749 = vadd.f32 %v8647, %v8748
      %v8750 = vpop.f32.mrb[0].mxu0
      %8751 = vmatprep.mubr.bf16.mxu0 0
      %8752 = vmatmul.mubr.bf16.gmra.mrb[0].mxu0 %v8678
      %v8753 = vpop.f32.mrb[0].mxu0
      %v8754 = vadd.f32 %v8647, %v8753
      %v8755 = vpop.f32.mrb[0].mxu0
      %v8756 = vpop.f32.mrb[0].mxu0
      %v8757 = vadd.f32 %v8647, %v8756
      %v8758 = vpop.f32.mrb[0].mxu0
      %8759 = vmatprep.mubr.bf16.mxu0 0
      %8760 = vmatmul.mubr.bf16.gmra.mrb[0].mxu0 %v8680
      %v8761 = vpop.f32.mrb[0].mxu0
      %v8762 = vadd.f32 %v8647, %v8761
      %v8763 = vpop.f32.mrb[0].mxu0
      %v8764 = vpop.f32.mrb[0].mxu0
      %v8765 = vadd.f32 %v8647, %v8764
      %v8766 = vpop.f32.mrb[0].mxu0
      %8767 = vmatprep.mubr.bf16.mxu0 0
      %8768 = vmatmul.mubr.bf16.gmra.mrb[0].mxu0 %v8682
      %v8769 = vpop.f32.mrb[0].mxu0
      %v8770 = vadd.f32 %v8647, %v8769
      %v8771 = vpop.f32.mrb[0].mxu0
      %v8772 = vpop.f32.mrb[0].mxu0
      %v8773 = vadd.f32 %v8647, %v8772
      %v8774 = vpop.f32.mrb[0].mxu0
      %8775 = vmatprep.mubr.bf16.mxu0 0
      %8776 = vmatmul.mubr.bf16.gmra.mrb[0].mxu0 %v8684
      %v8777 = vpop.f32.mrb[0].mxu0
      %v8778 = vadd.f32 %v8647, %v8777
      %v8779 = vpop.f32.mrb[0].mxu0
      %v8780 = vpop.f32.mrb[0].mxu0
      %v8781 = vadd.f32 %v8647, %v8780
      %v8782 = vpop.f32.mrb[0].mxu0
      %8783 = vmatprep.mubr.bf16.mxu0 0
      %8784 = vmatmul.mubr.bf16.gmra.mrb[0].mxu0 %v8686
      %v8785 = vpop.f32.mrb[0].mxu0
      %v8786 = vadd.f32 %v8647, %v8785
      %v8787 = vpop.f32.mrb[0].mxu0
      %v8788 = vpop.f32.mrb[0].mxu0
      %v8789 = vadd.f32 %v8647, %v8788
      %v8790 = vpop.f32.mrb[0].mxu0
      %8791 = vmatprep.mubr.bf16.mxu0 0
      %8792 = vmatmul.mubr.bf16.gmra.mrb[0].mxu0 %v8688
      %v8793 = vpop.f32.mrb[0].mxu0
      %v8794 = vadd.f32 %v8647, %v8793
      %v8795 = vpop.f32.mrb[0].mxu0
      %v8796 = vpop.f32.mrb[0].mxu0
      %v8797 = vadd.f32 %v8647, %v8796
      %v8798 = vpop.f32.mrb[0].mxu0
      %8799 = vmatprep.mubr.bf16.mxu0 0
      %8800 = vmatmul.mubr.bf16.gmra.mrb[0].mxu0 %v8690
      %v8801 = vpop.f32.mrb[0].mxu0
      %v8802 = vadd.f32 %v8647, %v8801
      %v8803 = vpop.f32.mrb[0].mxu0
      %v8804 = vpop.f32.mrb[0].mxu0
      %v8805 = vadd.f32 %v8647, %v8804
      %v8806 = vpop.f32.mrb[0].mxu0
      %8807 = vmatprep.mubr.bf16.mxu0 0
      %8808 = vmatmul.mubr.bf16.gmra.mrb[0].mxu0 %v8692
      %v8809 = vpop.f32.mrb[0].mxu0
      %v8810 = vadd.f32 %v8647, %v8809
      %v8811 = vpop.f32.mrb[0].mxu0
      %v8812 = vpop.f32.mrb[0].mxu0
      %v8813 = vadd.f32 %v8647, %v8812
      %v8814 = vpop.f32.mrb[0].mxu0
      %8815 = vmatprep.mubr.bf16.mxu0 0
      %8816 = vmatmul.mubr.bf16.gmra.mrb[0].mxu0 %v8694
      %v8817 = vpop.f32.mrb[0].mxu0
      %v8818 = vadd.f32 %v8647, %v8817
      %v8819 = vpop.f32.mrb[0].mxu0
      %v8820 = vpop.f32.mrb[0].mxu0
      %v8821 = vadd.f32 %v8647, %v8820
      %v8822 = vpop.f32.mrb[0].mxu0
      %8823 = vmatprep.mubr.bf16.mxu0 0
      %8824 = vmatmul.mubr.bf16.gmra.mrb[0].mxu0 %v8696
      %v8825 = vpop.f32.mrb[0].mxu0
      %v8826 = vadd.f32 %v8647, %v8825
      %v8827 = vpop.f32.mrb[0].mxu0
      %v8828 = vpop.f32.mrb[0].mxu0
      %v8829 = vadd.f32 %v8647, %v8828
      %v8830 = vpop.f32.mrb[0].mxu0
      %8831 = vmatprep.mubr.bf16.mxu0 0
      %8832 = vmatmul.mubr.bf16.gmra.mrb[0].mxu0 %v8698
      %v8833 = vpop.f32.mrb[0].mxu0
      %v8834 = vadd.f32 %v8647, %v8833
      %v8835 = vpop.f32.mrb[0].mxu0
      %v8836 = vpop.f32.mrb[0].mxu0
      %v8837 = vadd.f32 %v8647, %v8836
      %v8838 = vpop.f32.mrb[0].mxu0
      %8839 = vmatprep.mubr.bf16.mxu0 0
      %8840 = vmatmul.mubr.bf16.gmra.mrb[0].mxu0 %v8700
      %v8841 = vpop.f32.mrb[0].mxu0
      %v8842 = vadd.f32 %v8647, %v8841
      %v8843 = vpop.f32.mrb[0].mxu0
      %v8844 = vpop.f32.mrb[0].mxu0
      %v8845 = vadd.f32 %v8647, %v8844
      %v8846 = vpop.f32.mrb[0].mxu0
      %8847 = vmatprep.mubr.bf16.mxu0 0
      %8848 = vmatmul.mubr.bf16.gmra.mrb[0].mxu0 %v8702
      %v8849 = vpop.f32.mrb[0].mxu0
      %v8850 = vadd.f32 %v8647, %v8849
      %v8851 = vpop.f32.mrb[0].mxu0
      %v8852 = vpop.f32.mrb[0].mxu0
      %v8853 = vadd.f32 %v8647, %v8852
      %v8854 = vpop.f32.mrb[0].mxu0
      %8855 = vmatprep.mubr.bf16.mxu0 0
      %8856 = vmatmul.mubr.bf16.gmra.mrb[0].mxu0 %v8704
      %v8857 = vpop.f32.mrb[0].mxu0
      %v8858 = vadd.f32 %v8647, %v8857
      %v8859 = vpop.f32.mrb[0].mxu0
      %v8860 = vpop.f32.mrb[0].mxu0
      %v8861 = vadd.f32 %v8647, %v8860
      %v8862 = vpop.f32.mrb[0].mxu0
      %8863 = vmatprep.mubr.bf16.mxu0 0
      %8864 = vmatmul.mubr.bf16.gmra.mrb[0].mxu0 %v8706
      %v8865 = vpop.f32.mrb[0].mxu0
      %v8866 = vadd.f32 %v8647, %v8865
      %v8867 = vpop.f32.mrb[0].mxu0
      %v8868 = vpop.f32.mrb[0].mxu0
      %v8869 = vadd.f32 %v8647, %v8868
      %v8870 = vpop.f32.mrb[0].mxu0
      %8871 = vdwg.mxu0
      %v8872 = vmax.f32 %v8746, 0.0
      %v8873 = vmax.f32 %v8749, 0.0
      %v8874 = vmax.f32 %v8754, 0.0
      %v8875 = vmax.f32 %v8757, 0.0
      %v8876 = vmax.f32 %v8762, 0.0
      %v8877 = vmax.f32 %v8765, 0.0
      %v8878 = vmax.f32 %v8770, 0.0
      %v8879 = vmax.f32 %v8773, 0.0
      %v8880 = vmax.f32 %v8778, 0.0
      %v8881 = vmax.f32 %v8781, 0.0
      %v8882 = vmax.f32 %v8786, 0.0
      %v8883 = vmax.f32 %v8789, 0.0
      %v8884 = vmax.f32 %v8794, 0.0
      %v8885 = vmax.f32 %v8797, 0.0
      %v8886 = vmax.f32 %v8802, 0.0
      %v8887 = vmax.f32 %v8805, 0.0
      %v8888 = vmax.f32 %v8810, 0.0
      %v8889 = vmax.f32 %v8813, 0.0
      %v8890 = vmax.f32 %v8818, 0.0
      %v8891 = vmax.f32 %v8821, 0.0
      %v8892 = vmax.f32 %v8826, 0.0
      %v8893 = vmax.f32 %v8829, 0.0
      %v8894 = vmax.f32 %v8834, 0.0
      %v8895 = vmax.f32 %v8837, 0.0
      %v8896 = vmax.f32 %v8842, 0.0
      %v8897 = vmax.f32 %v8845, 0.0
      %v8898 = vmax.f32 %v8850, 0.0
      %v8899 = vmax.f32 %v8853, 0.0
      %v8900 = vmax.f32 %v8858, 0.0
      %v8901 = vmax.f32 %v8861, 0.0
      %v8902 = vmax.f32 %v8866, 0.0
      %v8903 = vmax.f32 %v8869, 0.0
      %8904 = vst.msk [vmem:[%s829] sm:$0xff] %vm5954, %v8872
      %8905 = vst.msk [vmem:[%s829 + $0x8] sm:$0xff] %vm5954, %v8873
      %8906 = vst.msk [vmem:[%s829 + $0x10] sm:$0xff] %vm5954, %v8874
      %8907 = vst.msk [vmem:[%s829 + $0x18] sm:$0xff] %vm5954, %v8875
      %8908 = vst.msk [vmem:[%s829 + $0x20] sm:$0xff] %vm5954, %v8876
      %8909 = vst.msk [vmem:[%s829 + $0x28] sm:$0xff] %vm5954, %v8877
      %8910 = vst.msk [vmem:[%s829 + $0x30] sm:$0xff] %vm5954, %v8878
      %8911 = vst.msk [vmem:[%s829 + $0x38] sm:$0xff] %vm5954, %v8879
      %8912 = vst.msk [vmem:[%s829 + $0x40] sm:$0xff] %vm5954, %v8880
      %8913 = vst.msk [vmem:[%s829 + $0x48] sm:$0xff] %vm5954, %v8881
      %8914 = vst.msk [vmem:[%s829 + $0x50] sm:$0xff] %vm5954, %v8882
      %8915 = vst.msk [vmem:[%s829 + $0x58] sm:$0xff] %vm5954, %v8883
      %8916 = vst.msk [vmem:[%s829 + $0x60] sm:$0xff] %vm5954, %v8884
      %8917 = vst.msk [vmem:[%s829 + $0x68] sm:$0xff] %vm5954, %v8885
      %8918 = vst.msk [vmem:[%s829 + $0x70] sm:$0xff] %vm5954, %v8886
      %8919 = vst.msk [vmem:[%s829 + $0x78] sm:$0xff] %vm5954, %v8887
      %8920 = vst.msk [vmem:[%s829 + $0x80] sm:$0xff] %vm5954, %v8888
      %8921 = vst.msk [vmem:[%s829 + $0x88] sm:$0xff] %vm5954, %v8889
      %8922 = vst.msk [vmem:[%s829 + $0x90] sm:$0xff] %vm5954, %v8890
      %8923 = vst.msk [vmem:[%s829 + $0x98] sm:$0xff] %vm5954, %v8891
      %8924 = vst.msk [vmem:[%s829 + $0xa0] sm:$0xff] %vm5954, %v8892
      %8925 = vst.msk [vmem:[%s829 + $0xa8] sm:$0xff] %vm5954, %v8893
      %8926 = vst.msk [vmem:[%s829 + $0xb0] sm:$0xff] %vm5954, %v8894
      %8927 = vst.msk [vmem:[%s829 + $0xb8] sm:$0xff] %vm5954, %v8895
      %8928 = vst.msk [vmem:[%s829 + $0xc0] sm:$0xff] %vm5954, %v8896
      %8929 = vst.msk [vmem:[%s829 + $0xc8] sm:$0xff] %vm5954, %v8897
      %8930 = vst.msk [vmem:[%s829 + $0xd0] sm:$0xff] %vm5954, %v8898
      %8931 = vst.msk [vmem:[%s829 + $0xd8] sm:$0xff] %vm5954, %v8899
      %8932 = vst.msk [vmem:[%s829 + $0xe0] sm:$0xff] %vm5954, %v8900
      %8933 = vst.msk [vmem:[%s829 + $0xe8] sm:$0xff] %vm5954, %v8901
      %8934 = vst.msk [vmem:[%s829 + $0xf0] sm:$0xff] %vm5954, %v8902
      %8935 = vst.msk [vmem:[%s829 + $0xf8] sm:$0xff] %vm5954, %v8903
      %v8936 = vpack.c.bf16 %v8873, %v8872
      %v8937 = vpack.c.bf16 %v8875, %v8874
      %v8938 = vpack.c.bf16 %v8877, %v8876
      %v8939 = vpack.c.bf16 %v8879, %v8878
      %v8940 = vpack.c.bf16 %v8881, %v8880
      %v8941 = vpack.c.bf16 %v8883, %v8882
      %v8942 = vpack.c.bf16 %v8885, %v8884
      %v8943 = vpack.c.bf16 %v8887, %v8886
      %v8944 = vpack.c.bf16 %v8889, %v8888
      %v8945 = vpack.c.bf16 %v8891, %v8890
      %v8946 = vpack.c.bf16 %v8893, %v8892
      %v8947 = vpack.c.bf16 %v8895, %v8894
      %v8948 = vpack.c.bf16 %v8897, %v8896
      %v8949 = vpack.c.bf16 %v8899, %v8898
      %v8950 = vpack.c.bf16 %v8901, %v8900
      %v8951 = vpack.c.bf16 %v8903, %v8902
      %v8952 = vld [vmem:[%s22] sm:$0xf]
      %v8953 = vld [vmem:[%s23] sm:$0x1]
      %v8955 = vlaneseq
      %v8956 = vshrl.u32 %v8955, 7
      %v8957 = vsub.s32 0, %v8956
      %v8958 = vrot.slane %v8953, %v8957
      %v8961 = vsel %vm5954, %v8936, 0
      %v8964 = vsel %vm5954, %v8937, 0
      %v8967 = vsel %vm5954, %v8938, 0
      %v8970 = vsel %vm5954, %v8939, 0
      %v8973 = vsel %vm5954, %v8940, 0
      %v8976 = vsel %vm5954, %v8941, 0
      %v8979 = vsel %vm5954, %v8942, 0
      %v8982 = vsel %vm5954, %v8943, 0
      %v8985 = vsel %vm5954, %v8944, 0
      %v8988 = vsel %vm5954, %v8945, 0
      %v8991 = vsel %vm5954, %v8946, 0
      %v8994 = vsel %vm5954, %v8947, 0
      %v8997 = vsel %vm5954, %v8948, 0
      %v9000 = vsel %vm5954, %v8949, 0
      %v9003 = vsel %vm5954, %v8950, 0
      %v9006 = vsel %vm5954, %v8951, 0
      %v9009 = vsel %vm7449, %v8952, 0
      %9011 = vmatprep.subr.bf16.mxu0 0
      %9012 = vmatpush1.bf16.msra.mxu0 %v9009
      %9013 = vmatprep.subr.bf16.mxu0 0
      %9014 = vmatpush1.bf16.msra.mxu0 0
      %9015 = vmatprep.subr.bf16.mxu0 0
      %9016 = vmatpush1.bf16.msra.mxu0 0
      %9017 = vmatprep.subr.bf16.mxu0 0
      %9018 = vmatpush1.bf16.msra.mxu0 0
      %9019 = vmatprep.subr.bf16.mxu0 0
      %9020 = vmatpush1.bf16.msra.mxu0 0
      %9021 = vmatprep.subr.bf16.mxu0 0
      %9022 = vmatpush1.bf16.msra.mxu0 0
      %9023 = vmatprep.subr.bf16.mxu0 0
      %9024 = vmatpush1.bf16.msra.mxu0 0
      %9025 = vmatprep.subr.bf16.mxu0 0
      %9026 = vmatpush1.bf16.msra.mxu0 0
      %9027 = vmatprep.subr.bf16.mxu0 0
      %9028 = vmatpush1.bf16.msra.mxu0 0
      %9029 = vmatprep.subr.bf16.mxu0 0
      %9030 = vmatpush1.bf16.msra.mxu0 0
      %9031 = vmatprep.subr.bf16.mxu0 0
      %9032 = vmatpush1.bf16.msra.mxu0 0
      %9033 = vmatprep.subr.bf16.mxu0 0
      %9034 = vmatpush1.bf16.msra.mxu0 0
      %9035 = vmatprep.subr.bf16.mxu0 0
      %9036 = vmatpush1.bf16.msra.mxu0 0
      %9037 = vmatprep.subr.bf16.mxu0 0
      %9038 = vmatpush1.bf16.msra.mxu0 0
      %9039 = vmatprep.subr.bf16.mxu0 0
      %9040 = vmatpush1.bf16.msra.mxu0 0
      %9041 = vmatprep.subr.bf16.mxu0 0
      %9042 = vmatpush1.bf16.msra.mxu0 0
      %9043 = vmatprep.mubr.bf16.mxu0 0
      %9044 = vmatmul.mubr.bf16.gmra.mrb[0].mxu0 %v8961
      %v9045 = vpop.f32.mrb[0].mxu0
      %v9046 = vadd.f32 %v8958, %v9045
      %v9047 = vpop.f32.mrb[0].mxu0
      %v9048 = vpop.f32.mrb[0].mxu0
      %v9049 = vadd.f32 %v8958, %v9048
      %v9050 = vpop.f32.mrb[0].mxu0
      %9051 = vmatprep.mubr.bf16.mxu0 0
      %9052 = vmatmul.mubr.bf16.gmra.mrb[0].mxu0 %v8964
      %v9053 = vpop.f32.mrb[0].mxu0
      %v9054 = vadd.f32 %v8958, %v9053
      %v9055 = vpop.f32.mrb[0].mxu0
      %v9056 = vpop.f32.mrb[0].mxu0
      %v9057 = vadd.f32 %v8958, %v9056
      %v9058 = vpop.f32.mrb[0].mxu0
      %9059 = vmatprep.mubr.bf16.mxu0 0
      %9060 = vmatmul.mubr.bf16.gmra.mrb[0].mxu0 %v8967
      %v9061 = vpop.f32.mrb[0].mxu0
      %v9062 = vadd.f32 %v8958, %v9061
      %v9063 = vpop.f32.mrb[0].mxu0
      %v9064 = vpop.f32.mrb[0].mxu0
      %v9065 = vadd.f32 %v8958, %v9064
      %v9066 = vpop.f32.mrb[0].mxu0
      %9067 = vmatprep.mubr.bf16.mxu0 0
      %9068 = vmatmul.mubr.bf16.gmra.mrb[0].mxu0 %v8970
      %v9069 = vpop.f32.mrb[0].mxu0
      %v9070 = vadd.f32 %v8958, %v9069
      %v9071 = vpop.f32.mrb[0].mxu0
      %v9072 = vpop.f32.mrb[0].mxu0
      %v9073 = vadd.f32 %v8958, %v9072
      %v9074 = vpop.f32.mrb[0].mxu0
      %9075 = vmatprep.mubr.bf16.mxu0 0
      %9076 = vmatmul.mubr.bf16.gmra.mrb[0].mxu0 %v8973
      %v9077 = vpop.f32.mrb[0].mxu0
      %v9078 = vadd.f32 %v8958, %v9077
      %v9079 = vpop.f32.mrb[0].mxu0
      %v9080 = vpop.f32.mrb[0].mxu0
      %v9081 = vadd.f32 %v8958, %v9080
      %v9082 = vpop.f32.mrb[0].mxu0
      %9083 = vmatprep.mubr.bf16.mxu0 0
      %9084 = vmatmul.mubr.bf16.gmra.mrb[0].mxu0 %v8976
      %v9085 = vpop.f32.mrb[0].mxu0
      %v9086 = vadd.f32 %v8958, %v9085
      %v9087 = vpop.f32.mrb[0].mxu0
      %v9088 = vpop.f32.mrb[0].mxu0
      %v9089 = vadd.f32 %v8958, %v9088
      %v9090 = vpop.f32.mrb[0].mxu0
      %9091 = vmatprep.mubr.bf16.mxu0 0
      %9092 = vmatmul.mubr.bf16.gmra.mrb[0].mxu0 %v8979
      %v9093 = vpop.f32.mrb[0].mxu0
      %v9094 = vadd.f32 %v8958, %v9093
      %v9095 = vpop.f32.mrb[0].mxu0
      %v9096 = vpop.f32.mrb[0].mxu0
      %v9097 = vadd.f32 %v8958, %v9096
      %v9098 = vpop.f32.mrb[0].mxu0
      %9099 = vmatprep.mubr.bf16.mxu0 0
      %9100 = vmatmul.mubr.bf16.gmra.mrb[0].mxu0 %v8982
      %v9101 = vpop.f32.mrb[0].mxu0
      %v9102 = vadd.f32 %v8958, %v9101
      %v9103 = vpop.f32.mrb[0].mxu0
      %v9104 = vpop.f32.mrb[0].mxu0
      %v9105 = vadd.f32 %v8958, %v9104
      %v9106 = vpop.f32.mrb[0].mxu0
      %9107 = vmatprep.mubr.bf16.mxu0 0
      %9108 = vmatmul.mubr.bf16.gmra.mrb[0].mxu0 %v8985
      %v9109 = vpop.f32.mrb[0].mxu0
      %v9110 = vadd.f32 %v8958, %v9109
      %v9111 = vpop.f32.mrb[0].mxu0
      %v9112 = vpop.f32.mrb[0].mxu0
      %v9113 = vadd.f32 %v8958, %v9112
      %v9114 = vpop.f32.mrb[0].mxu0
      %9115 = vmatprep.mubr.bf16.mxu0 0
      %9116 = vmatmul.mubr.bf16.gmra.mrb[0].mxu0 %v8988
      %v9117 = vpop.f32.mrb[0].mxu0
      %v9118 = vadd.f32 %v8958, %v9117
      %v9119 = vpop.f32.mrb[0].mxu0
      %v9120 = vpop.f32.mrb[0].mxu0
      %v9121 = vadd.f32 %v8958, %v9120
      %v9122 = vpop.f32.mrb[0].mxu0
      %9123 = vmatprep.mubr.bf16.mxu0 0
      %9124 = vmatmul.mubr.bf16.gmra.mrb[0].mxu0 %v8991
      %v9125 = vpop.f32.mrb[0].mxu0
      %v9126 = vadd.f32 %v8958, %v9125
      %v9127 = vpop.f32.mrb[0].mxu0
      %v9128 = vpop.f32.mrb[0].mxu0
      %v9129 = vadd.f32 %v8958, %v9128
      %v9130 = vpop.f32.mrb[0].mxu0
      %9131 = vmatprep.mubr.bf16.mxu0 0
      %9132 = vmatmul.mubr.bf16.gmra.mrb[0].mxu0 %v8994
      %v9133 = vpop.f32.mrb[0].mxu0
      %v9134 = vadd.f32 %v8958, %v9133
      %v9135 = vpop.f32.mrb[0].mxu0
      %v9136 = vpop.f32.mrb[0].mxu0
      %v9137 = vadd.f32 %v8958, %v9136
      %v9138 = vpop.f32.mrb[0].mxu0
      %9139 = vmatprep.mubr.bf16.mxu0 0
      %9140 = vmatmul.mubr.bf16.gmra.mrb[0].mxu0 %v8997
      %v9141 = vpop.f32.mrb[0].mxu0
      %v9142 = vadd.f32 %v8958, %v9141
      %v9143 = vpop.f32.mrb[0].mxu0
      %v9144 = vpop.f32.mrb[0].mxu0
      %v9145 = vadd.f32 %v8958, %v9144
      %v9146 = vpop.f32.mrb[0].mxu0
      %9147 = vmatprep.mubr.bf16.mxu0 0
      %9148 = vmatmul.mubr.bf16.gmra.mrb[0].mxu0 %v9000
      %v9149 = vpop.f32.mrb[0].mxu0
      %v9150 = vadd.f32 %v8958, %v9149
      %v9151 = vpop.f32.mrb[0].mxu0
      %v9152 = vpop.f32.mrb[0].mxu0
      %v9153 = vadd.f32 %v8958, %v9152
      %v9154 = vpop.f32.mrb[0].mxu0
      %9155 = vmatprep.mubr.bf16.mxu0 0
      %9156 = vmatmul.mubr.bf16.gmra.mrb[0].mxu0 %v9003
      %v9157 = vpop.f32.mrb[0].mxu0
      %v9158 = vadd.f32 %v8958, %v9157
      %v9159 = vpop.f32.mrb[0].mxu0
      %v9160 = vpop.f32.mrb[0].mxu0
      %v9161 = vadd.f32 %v8958, %v9160
      %v9162 = vpop.f32.mrb[0].mxu0
      %9163 = vmatprep.mubr.bf16.mxu0 0
      %9164 = vmatmul.mubr.bf16.gmra.mrb[0].mxu0 %v9006
      %v9165 = vpop.f32.mrb[0].mxu0
      %v9166 = vadd.f32 %v8958, %v9165
      %v9167 = vpop.f32.mrb[0].mxu0
      %v9168 = vpop.f32.mrb[0].mxu0
      %v9169 = vadd.f32 %v8958, %v9168
      %v9170 = vpop.f32.mrb[0].mxu0
      %9171 = vdwg.mxu0
      %9172 = vst.msk [vmem:[%s834] sm:$0xff] %vm1012, %v9046
      %9173 = vst.msk [vmem:[%s834 + $0x8] sm:$0xff] %vm1012, %v9049
      %9174 = vst.msk [vmem:[%s834 + $0x10] sm:$0xff] %vm1012, %v9054
      %9175 = vst.msk [vmem:[%s834 + $0x18] sm:$0xff] %vm1012, %v9057
      %9176 = vst.msk [vmem:[%s834 + $0x20] sm:$0xff] %vm1012, %v9062
      %9177 = vst.msk [vmem:[%s834 + $0x28] sm:$0xff] %vm1012, %v9065
      %9178 = vst.msk [vmem:[%s834 + $0x30] sm:$0xff] %vm1012, %v9070
      %9179 = vst.msk [vmem:[%s834 + $0x38] sm:$0xff] %vm1012, %v9073
      %9180 = vst.msk [vmem:[%s834 + $0x40] sm:$0xff] %vm1012, %v9078
      %9181 = vst.msk [vmem:[%s834 + $0x48] sm:$0xff] %vm1012, %v9081
      %9182 = vst.msk [vmem:[%s834 + $0x50] sm:$0xff] %vm1012, %v9086
      %9183 = vst.msk [vmem:[%s834 + $0x58] sm:$0xff] %vm1012, %v9089
      %9184 = vst.msk [vmem:[%s834 + $0x60] sm:$0xff] %vm1012, %v9094
      %9185 = vst.msk [vmem:[%s834 + $0x68] sm:$0xff] %vm1012, %v9097
      %9186 = vst.msk [vmem:[%s834 + $0x70] sm:$0xff] %vm1012, %v9102
      %9187 = vst.msk [vmem:[%s834 + $0x78] sm:$0xff] %vm1012, %v9105
      %9188 = vst.msk [vmem:[%s834 + $0x80] sm:$0xff] %vm1012, %v9110
      %9189 = vst.msk [vmem:[%s834 + $0x88] sm:$0xff] %vm1012, %v9113
      %9190 = vst.msk [vmem:[%s834 + $0x90] sm:$0xff] %vm1012, %v9118
      %9191 = vst.msk [vmem:[%s834 + $0x98] sm:$0xff] %vm1012, %v9121
      %9192 = vst.msk [vmem:[%s834 + $0xa0] sm:$0xff] %vm1012, %v9126
      %9193 = vst.msk [vmem:[%s834 + $0xa8] sm:$0xff] %vm1012, %v9129
      %9194 = vst.msk [vmem:[%s834 + $0xb0] sm:$0xff] %vm1012, %v9134
      %9195 = vst.msk [vmem:[%s834 + $0xb8] sm:$0xff] %vm1012, %v9137
      %9196 = vst.msk [vmem:[%s834 + $0xc0] sm:$0xff] %vm1012, %v9142
      %9197 = vst.msk [vmem:[%s834 + $0xc8] sm:$0xff] %vm1012, %v9145
      %9198 = vst.msk [vmem:[%s834 + $0xd0] sm:$0xff] %vm1012, %v9150
      %9199 = vst.msk [vmem:[%s834 + $0xd8] sm:$0xff] %vm1012, %v9153
      %9200 = vst.msk [vmem:[%s834 + $0xe0] sm:$0xff] %vm1012, %v9158
      %9201 = vst.msk [vmem:[%s834 + $0xe8] sm:$0xff] %vm1012, %v9161
      %9202 = vst.msk [vmem:[%s834 + $0xf0] sm:$0xff] %vm1012, %v9166
      %9203 = vst.msk [vmem:[%s834 + $0xf8] sm:$0xff] %vm1012, %v9169
      %p9204 = scmp.lt.s32.totalorder %s37, 1
      %s9205 = scalar_select %p9204, %s37, 1
      %s9206 = smul.addr %s9205, 32
      %s9207 = smul.addr %s9206, 8
      %s9208 = scalar_lea.vmem %s24, %s9207
      %p9209 = scmp.lt.s32.totalorder %s37, 1
      %s9210 = scalar_select %p9209, %s37, 1
      %s9211 = smul.addr %s9210, 32
      %s9212 = smul.addr %s9211, 8
      %s9213 = scalar_lea.vmem %s25, %s9212
      // Predicated region
      $region117: #{unet_decoder_forward.1} parent=115 // pred_check
        %p9214 = pneg %p579
      $region118: #{unet_decoder_forward.1} parent=115 // pred_check_branch
        %9216 = sbr.rel (%p9214) target = $region120
      $region119: #{unet_decoder_forward.1} parent=115 // pred_region
        _
      $region120: #{unet_decoder_forward.1} parent=115 // pred_fallthru
        _
      // Predicated region
      $region121: #{unet_decoder_forward.1} parent=115 // pred_check
        %p9217 = pneg %p605
      $region122: #{unet_decoder_forward.1} parent=115 // pred_check_branch
        %9219 = sbr.rel (%p9217) target = $region124
      $region123: #{unet_decoder_forward.1} parent=115 // pred_region
        _
      $region124: #{unet_decoder_forward.1} parent=115 // pred_fallthru
        _
    $region116: #{unet_decoder_forward.1} parent=5 // pred_fallthru
      _
    %p9220 = scmp.le.s32.totalorder 2, %s32
    // Predicated region
    $region125: #{unet_decoder_forward.1} parent=5 // pred_check
      %p9221 = pneg %p9220
    $region126: #{unet_decoder_forward.1} parent=5 // pred_check_branch
      %9223 = sbr.rel (%p9221) target = $region128
    $region127: #{unet_decoder_forward.1} parent=5 // pred_region
      %s9224 = ssub.s32 %s32, 2
      // Predicated region
      $region129: #{unet_decoder_forward.1} parent=127 // pred_check
        %p9225 = pneg %p585
      $region130: #{unet_decoder_forward.1} parent=127 // pred_check_branch
        %9227 = sbr.rel (%p9225) target = $region132
      $region131: #{unet_decoder_forward.1} parent=127 // pred_region
        %p9228 = scmp.lt.s32.totalorder %s38, 1
        %s9229 = scalar_select %p9228, %s38, 1
        %s9230 = smul.addr %s9229, 32
        %s9231 = smul.addr %s9230, 8
        %s9232 = scalar_lea.vmem %s24, %s9231
      $region132: #{unet_decoder_forward.1} parent=127 // pred_fallthru
        _
      // Predicated region
      $region133: #{unet_decoder_forward.1} parent=127 // pred_check
        %p9233 = pneg %p611
      $region134: #{unet_decoder_forward.1} parent=127 // pred_check_branch
        %9235 = sbr.rel (%p9233) target = $region136
      $region135: #{unet_decoder_forward.1} parent=127 // pred_region
        %p9236 = scmp.lt.s32.totalorder %s38, 1
        %s9237 = scalar_select %p9236, %s38, 1
        %s9238 = smul.addr %s9237, 32
        %s9239 = smul.addr %s9238, 8
        %s9240 = scalar_lea.vmem %s25, %s9239
      $region136: #{unet_decoder_forward.1} parent=127 // pred_fallthru
        _
    $region128: #{unet_decoder_forward.1} parent=5 // pred_fallthru
      _
  $region6: #{unet_decoder_forward.1} parent=0 // loop_footer
    %s36 = sadd.s32 1, %s32
  $region7: #{unet_decoder_forward.1} parent=0 // loop_footer_branch
    %31 = sbr.rel target = $region3
  $region8: #{unet_decoder_forward.1} parent=0 // loop_exit
    _

</llo_original>
